<compile_context>
chip_gen: v6e
topology: v6e:2x2x1
jax: 0.10.0
libtpu: 0.0.40
codegen_flags: <defaults>
</compile_context>

<pallas_src>
import jax
import jax.numpy as jnp
from jax import lax
from jax.experimental import pallas as pl
from jax.experimental.pallas import tpu as pltpu

EMB_SIZE = 2000
OUT_SIZE = 300
BN_EPS = 1e-5

E_PAD = 2048        # EMB_SIZE padded to a multiple of 128
O_PAD = 384         # OUT_SIZE padded to a multiple of 128


def _round_up(x, m):
    return ((x + m - 1) // m) * m


# --------------------------------------------------------------------------
# Single fused kernel (no grid): the whole forward pass in one invocation
# --------------------------------------------------------------------------
def _make_fused_kernel(B, S_s, S_t, V_s, V_t, V_pad, T_s_pad, T_t_pad):
    S_tot = S_s + S_t
    inv_cnt = 1.0 / float(B * EMB_SIZE)   # true BN count (padded cols are zero)

    def kernel(src_ids_ref, tgt_ids_ref, src_tab_ref, tgt_tab_ref,
               sg_ref, sb_ref, tg_ref, tb_ref,
               fsw_hbm, fsb_ref, ftw_hbm, ftb_ref,
               f1w_ref, f1b_ref,
               prw_hbm, prb_ref, pg_ref, pb_ref,
               o_ref,
               fsw_buf, ftw_buf, prw_buf, dma_sem):
        f32 = jnp.float32
        bf16 = jnp.bfloat16

        # Prefetch the three largest weights HBM -> VMEM scratch.  Each wait
        # sits right before the dot that needs the buffer, so the gathers /
        # BN / earlier matmuls hide the DMA.
        cp_fs = pltpu.make_async_copy(fsw_hbm, fsw_buf, dma_sem.at[0])
        cp_ft = pltpu.make_async_copy(ftw_hbm, ftw_buf, dma_sem.at[1])
        cp_pr = pltpu.make_async_copy(prw_hbm, prw_buf, dma_sem.at[2])
        cp_fs.start()
        cp_ft.start()
        cp_pr.start()

        def gather(ids_ref, tab_ref, n_rows, vocab):
            # One-hot (n_rows, vocab) @ (vocab, E_PAD) on the MXU.  Exact:
            # one-hot is 0/1 and accumulation is f32.
            pos = lax.broadcasted_iota(jnp.int32, (n_rows, vocab), 1)
            onehot = jnp.where(ids_ref[...] == pos, 1.0, 0.0).astype(bf16)
            return jnp.dot(onehot, tab_ref[...], preferred_element_type=f32)

        def bn_seq_channels(x, g_ref, b_ref, n_ch):
            # x: (rows, E_PAD) with channel-major rows (row = s*B + b); rows
            # may include sublane-padding rows past n_ch*B.  Training-mode BN
            # per channel over (B, EMB_SIZE) with biased variance, applied as
            # a per-row affine (padding rows get scale=shift=0 -> zeroed).
            rows = x.shape[0]
            ridx = lax.broadcasted_iota(jnp.int32, (rows, 1), 0)
            scale = jnp.zeros((rows, 1), f32)
            shift = jnp.zeros((rows, 1), f32)
            for s in range(n_ch):
                blk = x[s * B:(s + 1) * B, :]
                s1 = jnp.sum(jnp.sum(blk, axis=1, keepdims=True),
                             axis=0, keepdims=True)
                s2 = jnp.sum(jnp.sum(blk * blk, axis=1, keepdims=True),
                             axis=0, keepdims=True)
                m = s1 * inv_cnt
                v = s2 * inv_cnt - m * m
                sc = g_ref[s] * lax.rsqrt(v + BN_EPS)          # (1, 1)
                sh = b_ref[s] - m * sc                         # (1, 1)
                in_ch = jnp.logical_and(ridx >= s * B, ridx < (s + 1) * B)
                msk = jnp.where(in_ch, 1.0, 0.0).astype(f32)
                scale = scale + msk * sc
                shift = shift + msk * sh
            return x * scale + shift

        def linear_relu(x_f32, w, b_ref):
            # bf16 MXU operands, f32 accumulation, f32 VPU epilogue.
            y = jnp.dot(x_f32.astype(bf16), w[...], preferred_element_type=f32)
            return jnp.maximum(y + b_ref[...], 0.0)

        # --- source branch end-to-end (bounds live VMEM/vreg pressure) ------
        xs = gather(src_ids_ref, src_tab_ref, T_s_pad, V_s)
        xs = bn_seq_channels(xs, sg_ref, sb_ref, S_s)
        cp_fs.wait()
        hs = linear_relu(xs, fsw_buf, fsb_ref)          # (T_s_pad, O_PAD)

        # --- target branch end-to-end ----------------------------------------
        xt = gather(tgt_ids_ref, tgt_tab_ref, T_t_pad, V_t)
        xt = bn_seq_channels(xt, tg_ref, tb_ref, S_t)
        cp_ft.wait()
        ht = linear_relu(xt, ftw_buf, ftb_ref)          # (T_t_pad, O_PAD)

        # --- cat(seq) + ReLU (idempotent: inputs >= 0) + fc1 + ReLU ----------
        # Single fused fc1 matmul over all source+target rows; the row offset
        # T_s_pad is a multiple of 8, so the concat is sublane-aligned.
        h = jnp.concatenate([hs, ht], axis=0)           # (T_s_pad+T_t_pad, O_PAD)
        h = linear_relu(h, f1w_ref, f1b_ref)

        # --- torch.flatten(start_dim=1) + project: ONE K=S_tot*O_PAD matmul --
        # H2[b, s*O_PAD + o] = h[row(s)*B + b, o]; project_w is pre-flattened
        # to (S_tot*O_PAD, V_pad) with matching (s, o) row order and zero
        # padding, so the single dot equals the original flatten+Linear.
        blocks = ([h[s * B:(s + 1) * B, :] for s in range(S_s)] +
                  [h[T_s_pad + s * B:T_s_pad + (s + 1) * B, :]
                   for s in range(S_t)])
        h2 = jnp.concatenate(blocks, axis=1)            # (B, S_tot*O_PAD)
        cp_pr.wait()
        logits = (jnp.dot(h2.astype(bf16), prw_buf[...],
                          preferred_element_type=f32)
                  + prb_ref[...])                       # (B, V_pad)

        # --- BatchNorm1d(target_vocab) over the batch (training-mode stats) --
        mean = jnp.mean(logits, axis=0, keepdims=True)
        var = jnp.mean((logits - mean) ** 2, axis=0, keepdims=True)
        o_ref[...] = ((logits - mean) * lax.rsqrt(var + BN_EPS)
                      * pg_ref[...] + pb_ref[...])

    return kernel


# --------------------------------------------------------------------------
# Forward pass wrapper (one pallas_call)
# --------------------------------------------------------------------------
def neural_net_forward(params, source_ids, target_ids):
    B, S_s = source_ids.shape
    _, S_t = target_ids.shape
    V_s = params["emb_source"].shape[0]
    V_t = params["emb_target"].shape[0]
    V_pad = params["project_b"].shape[1]
    K_proj = params["project_w"].shape[0]
    T_s_pad = _round_up(S_s * B, 8)
    T_t_pad = _round_up(S_t * B, 8)

    kernel = _make_fused_kernel(B, S_s, S_t, V_s, V_t, V_pad, T_s_pad, T_t_pad)

    vmem = pl.BlockSpec(memory_space=pltpu.MemorySpace.VMEM)
    smem = pl.BlockSpec(memory_space=pltpu.MemorySpace.SMEM)
    anym = pl.BlockSpec(memory_space=pl.ANY)   # big weights: manual prefetch
    in_specs = [
        vmem, vmem,                  # ids (source, target)
        vmem, vmem,                  # embedding tables (bf16)
        smem, smem, smem, smem,      # emb BN gamma/beta (source, target)
        anym, vmem, anym, vmem,      # full_source w(ANY)/b, full_target w(ANY)/b
        vmem, vmem,                  # fc1 w/b
        anym, vmem, vmem, vmem,      # project w(ANY)/b, project BN gamma/beta
    ]
    scratch_shapes = [
        pltpu.VMEM((E_PAD, O_PAD), jnp.bfloat16),     # full_source_w buffer
        pltpu.VMEM((E_PAD, O_PAD), jnp.bfloat16),     # full_target_w buffer
        pltpu.VMEM((K_proj, V_pad), jnp.bfloat16),    # project_w buffer
        pltpu.SemaphoreType.DMA((3,)),
    ]

    call = pl.pallas_call(
        kernel,
        out_shape=jax.ShapeDtypeStruct((B, V_pad), jnp.float32),
        in_specs=in_specs,
        out_specs=pl.BlockSpec(memory_space=pltpu.MemorySpace.VMEM),
        scratch_shapes=scratch_shapes,
        compiler_params=pltpu.CompilerParams(
            vmem_limit_bytes=24 * 1024 * 1024),
    )

    # channel-major (s-major) flat index layout: row = s*B + b; row counts are
    # zero-padded to multiples of 8 so in-kernel concats stay sublane-aligned.
    src_ids = source_ids.T.reshape(S_s * B, 1).astype(jnp.int32)
    tgt_ids = target_ids.T.reshape(S_t * B, 1).astype(jnp.int32)
    src_ids = jnp.pad(src_ids, ((0, T_s_pad - S_s * B), (0, 0)))
    tgt_ids = jnp.pad(tgt_ids, ((0, T_t_pad - S_t * B), (0, 0)))

    logits_pad = call(
        src_ids, tgt_ids,
        params["emb_source"], params["emb_target"],
        params["emb_source_bn_gamma"], params["emb_source_bn_beta"],
        params["emb_target_bn_gamma"], params["emb_target_bn_beta"],
        params["full_source_w"], params["full_source_b"],
        params["full_target_w"], params["full_target_b"],
        params["fc1_w"], params["fc1_b"],
        params["project_w"], params["project_b"],
        params["project_bn_gamma"], params["project_bn_beta"],
    )
    return logits_pad[:, :V_t]


# --------------------------------------------------------------------------
# Parameter init (PyTorch-style defaults), stored pre-padded / kernel-ready
# --------------------------------------------------------------------------
def _linear_init(key, fan_in, fan_out):
    kw, kb = jax.random.split(key)
    bound = 1.0 / (fan_in ** 0.5)
    w = jax.random.uniform(kw, (fan_in, fan_out), jnp.float32, -bound, bound)
    b = jax.random.uniform(kb, (fan_out,), jnp.float32, -bound, bound)
    return w, b


def _pad_to(x, shape):
    pads = [(0, t - s) for s, t in zip(x.shape, shape)]
    return jnp.pad(x, pads)


def init_params(key, window_size, source_vocab, target_vocab):
    ks = jax.random.split(key, 6)
    s_len = 2 * window_size + 1
    t_len = window_size
    s_tot = s_len + t_len
    v_pad = _round_up(target_vocab, 128)
    bf16 = jnp.bfloat16

    fs_w, fs_b = _linear_init(ks[2], EMB_SIZE, OUT_SIZE)
    ft_w, ft_b = _linear_init(ks[3], EMB_SIZE, OUT_SIZE)
    f1_w, f1_b = _linear_init(ks[4], OUT_SIZE, OUT_SIZE)
    pr_w, pr_b = _linear_init(ks[5], OUT_SIZE * s_tot, target_vocab)
    # (s_tot*OUT, V) -> pad per (s, o, v) -> flatten to (s_tot*O_PAD, v_pad);
    # row order matches the in-kernel lane-concat of per-position blocks.
    pr_w3 = _pad_to(pr_w.reshape(s_tot, OUT_SIZE, target_vocab),
                    (s_tot, O_PAD, v_pad))
    pr_w_flat = pr_w3.reshape(s_tot * O_PAD, v_pad)

    return {
        # large matmul operands stored in bf16 (f32 accumulation in-kernel)
        "emb_source": _pad_to(
            jax.random.normal(ks[0], (source_vocab, EMB_SIZE), jnp.float32),
            (source_vocab, E_PAD)).astype(bf16),
        "emb_target": _pad_to(
            jax.random.normal(ks[1], (target_vocab, EMB_SIZE), jnp.float32),
            (target_vocab, E_PAD)).astype(bf16),
        "full_source_w": _pad_to(fs_w, (E_PAD, O_PAD)).astype(bf16),
        "full_target_w": _pad_to(ft_w, (E_PAD, O_PAD)).astype(bf16),
        "fc1_w": _pad_to(f1_w, (O_PAD, O_PAD)).astype(bf16),
        "project_w": pr_w_flat.astype(bf16),
        # small vectors / BN parameters stay f32
        "emb_source_bn_gamma": jnp.ones((s_len,), jnp.float32),
        "emb_source_bn_beta": jnp.zeros((s_len,), jnp.float32),
        "emb_target_bn_gamma": jnp.ones((t_len,), jnp.float32),
        "emb_target_bn_beta": jnp.zeros((t_len,), jnp.float32),
        "full_source_b": _pad_to(fs_b.reshape(1, OUT_SIZE), (1, O_PAD)),
        "full_target_b": _pad_to(ft_b.reshape(1, OUT_SIZE), (1, O_PAD)),
        "fc1_b": _pad_to(f1_b.reshape(1, OUT_SIZE), (1, O_PAD)),
        "project_b": _pad_to(pr_b.reshape(1, target_vocab), (1, v_pad)),
        "project_bn_gamma": _pad_to(jnp.ones((1, target_vocab), jnp.float32),
                                    (1, v_pad)),
        "project_bn_beta": jnp.zeros((1, v_pad), jnp.float32),
    }


if __name__ == "__main__":
    window_size = 2
    num_full_layers = 1            # unused by forward (as in the PyTorch model)
    source_vocab_size = 50
    target_vocab_size = 40
    batch = 4

    key = jax.random.PRNGKey(0)
    pkey, skey, tkey = jax.random.split(key, 3)
    params = init_params(pkey, window_size, source_vocab_size, target_vocab_size)

    source_input = jax.random.randint(
        skey, (batch, 2 * window_size + 1), 0, source_vocab_size, dtype=jnp.int32)
    target_input = jax.random.randint(
        tkey, (batch, window_size), 0, target_vocab_size, dtype=jnp.int32)

    fwd = jax.jit(neural_net_forward)
    out = fwd(params, source_input, target_input)
    out = jax.block_until_ready(out)
    assert out.shape == (batch, target_vocab_size)
    assert bool(jnp.all(jnp.isfinite(out)))
    print("KERNEL_OK")
</pallas_src>

<mosaic_0001>
module attributes {stable_mosaic.version = 11 : i64} {
  func.func @kernel(%arg0: memref<24x1xi32, #tpu.memory_space<vmem>>, %arg1: memref<8x1xi32, #tpu.memory_space<vmem>>, %arg2: memref<50x2048xbf16, #tpu.memory_space<vmem>>, %arg3: memref<40x2048xbf16, #tpu.memory_space<vmem>>, %arg4: memref<5xf32, #tpu.memory_space<smem>>, %arg5: memref<5xf32, #tpu.memory_space<smem>>, %arg6: memref<2xf32, #tpu.memory_space<smem>>, %arg7: memref<2xf32, #tpu.memory_space<smem>>, %arg8: memref<2048x384xbf16, #tpu.memory_space<any>>, %arg9: memref<1x384xf32, #tpu.memory_space<vmem>>, %arg10: memref<2048x384xbf16, #tpu.memory_space<any>>, %arg11: memref<1x384xf32, #tpu.memory_space<vmem>>, %arg12: memref<384x384xbf16, #tpu.memory_space<vmem>>, %arg13: memref<1x384xf32, #tpu.memory_space<vmem>>, %arg14: memref<2688x128xbf16, #tpu.memory_space<any>>, %arg15: memref<1x128xf32, #tpu.memory_space<vmem>>, %arg16: memref<1x128xf32, #tpu.memory_space<vmem>>, %arg17: memref<1x128xf32, #tpu.memory_space<vmem>>, %arg18: memref<4x128xf32, #tpu.memory_space<vmem>>, %arg19: memref<2048x384xbf16, #tpu.memory_space<vmem>>, %arg20: memref<2048x384xbf16, #tpu.memory_space<vmem>>, %arg21: memref<2688x128xbf16, #tpu.memory_space<vmem>>, %arg22: memref<3x!tpu.dma_semaphore, #tpu.memory_space<semaphore_mem>>) attributes {dimension_semantics = [], scalar_prefetch = 0 : i64, scratch_operands = 4 : i64, tpu.core_type = #tpu.core_type<tc>} {
    %c0_i32 = arith.constant 0 : i32
    %0 = tpu.memref_slice %arg22[%c0_i32] : memref<3x!tpu.dma_semaphore, #tpu.memory_space<semaphore_mem>> -> memref<1x!tpu.dma_semaphore, #tpu.memory_space<semaphore_mem>>
    %1 = tpu.memref_squeeze %0 : memref<1x!tpu.dma_semaphore, #tpu.memory_space<semaphore_mem>> -> memref<!tpu.dma_semaphore, #tpu.memory_space<semaphore_mem>>
    tpu.enqueue_dma source(%arg8 : memref<2048x384xbf16, #tpu.memory_space<any>>) target(%arg19 : memref<2048x384xbf16, #tpu.memory_space<vmem>>) target_semaphore(%1 : memref<!tpu.dma_semaphore, #tpu.memory_space<semaphore_mem>>)
    %c1_i32 = arith.constant 1 : i32
    %2 = tpu.memref_slice %arg22[%c1_i32] : memref<3x!tpu.dma_semaphore, #tpu.memory_space<semaphore_mem>> -> memref<1x!tpu.dma_semaphore, #tpu.memory_space<semaphore_mem>>
    %3 = tpu.memref_squeeze %2 : memref<1x!tpu.dma_semaphore, #tpu.memory_space<semaphore_mem>> -> memref<!tpu.dma_semaphore, #tpu.memory_space<semaphore_mem>>
    tpu.enqueue_dma source(%arg10 : memref<2048x384xbf16, #tpu.memory_space<any>>) target(%arg20 : memref<2048x384xbf16, #tpu.memory_space<vmem>>) target_semaphore(%3 : memref<!tpu.dma_semaphore, #tpu.memory_space<semaphore_mem>>)
    %c2_i32 = arith.constant 2 : i32
    %4 = tpu.memref_slice %arg22[%c2_i32] : memref<3x!tpu.dma_semaphore, #tpu.memory_space<semaphore_mem>> -> memref<1x!tpu.dma_semaphore, #tpu.memory_space<semaphore_mem>>
    %5 = tpu.memref_squeeze %4 : memref<1x!tpu.dma_semaphore, #tpu.memory_space<semaphore_mem>> -> memref<!tpu.dma_semaphore, #tpu.memory_space<semaphore_mem>>
    tpu.enqueue_dma source(%arg14 : memref<2688x128xbf16, #tpu.memory_space<any>>) target(%arg21 : memref<2688x128xbf16, #tpu.memory_space<vmem>>) target_semaphore(%5 : memref<!tpu.dma_semaphore, #tpu.memory_space<semaphore_mem>>)
    %6 = tpu.iota {dimensions = array<i32: 1>} : vector<24x50xi32>
    %c0 = arith.constant 0 : index
    %c0_0 = arith.constant 0 : index
    %7 = vector.load %arg0[%c0, %c0_0] : memref<24x1xi32, #tpu.memory_space<vmem>>, vector<24x1xi32>
    %8 = vector.broadcast %7 : vector<24x1xi32> to vector<24x50xi32>
    %9 = arith.cmpi eq, %8, %6 : vector<24x50xi32>
    %cst = arith.constant 1.000000e+00 : f32
    %cst_1 = arith.constant 0.000000e+00 : f32
    %10 = vector.broadcast %cst : f32 to vector<24x50xf32>
    %11 = vector.broadcast %cst_1 : f32 to vector<24x50xf32>
    %12 = arith.select %9, %10, %11 : vector<24x50xi1>, vector<24x50xf32>
    %13 = arith.truncf %12 : vector<24x50xf32> to vector<24x50xbf16>
    %c0_2 = arith.constant 0 : index
    %c0_3 = arith.constant 0 : index
    %14 = vector.load %arg2[%c0_2, %c0_3] : memref<50x2048xbf16, #tpu.memory_space<vmem>>, vector<50x2048xbf16>
    %cst_4 = arith.constant dense<0.000000e+00> : vector<24x2048xf32>
    %15 = tpu.matmul %13, %14, %cst_4 {dimension_numbers = #tpu.dot_dimension_numbers<[1], [0], [0], [1], [0, 0, 1, 1], [], []>} : vector<24x50xbf16>, vector<50x2048xbf16>, vector<24x2048xf32> -> vector<24x2048xf32>
    %16 = tpu.iota {dimensions = array<i32: 0>} : vector<24x1xi32>
    %cst_5 = arith.constant 0.000000e+00 : f32
    %17 = vector.broadcast %cst_5 : f32 to vector<24x1xf32>
    %cst_6 = arith.constant 0.000000e+00 : f32
    %18 = vector.broadcast %cst_6 : f32 to vector<24x1xf32>
    %19 = vector.extract_strided_slice %15 {offsets = [0, 0], sizes = [4, 2048], strides = [1, 1]} : vector<24x2048xf32> to vector<4x2048xf32>
    %cst_7 = arith.constant dense<0.000000e+00> : vector<4xf32>
    %20 = vector.multi_reduction <add>, %19, %cst_7 [1] : vector<4x2048xf32> to vector<4xf32>
    %21 = vector.shape_cast %20 : vector<4xf32> to vector<4x1xf32>
    %cst_8 = arith.constant dense<0.000000e+00> : vector<1xf32>
    %22 = vector.multi_reduction <add>, %21, %cst_8 [0] : vector<4x1xf32> to vector<1xf32>
    %23 = vector.shape_cast %22 : vector<1xf32> to vector<1x1xf32>
    %24 = arith.mulf %19, %19 : vector<4x2048xf32>
    %cst_9 = arith.constant dense<0.000000e+00> : vector<4xf32>
    %25 = vector.multi_reduction <add>, %24, %cst_9 [1] : vector<4x2048xf32> to vector<4xf32>
    %26 = vector.shape_cast %25 : vector<4xf32> to vector<4x1xf32>
    %cst_10 = arith.constant dense<0.000000e+00> : vector<1xf32>
    %27 = vector.multi_reduction <add>, %26, %cst_10 [0] : vector<4x1xf32> to vector<1xf32>
    %28 = vector.shape_cast %27 : vector<1xf32> to vector<1x1xf32>
    %cst_11 = arith.constant 1.250000e-04 : f32
    %29 = vector.broadcast %cst_11 : f32 to vector<1x1xf32>
    %30 = arith.mulf %23, %29 : vector<1x1xf32>
    %cst_12 = arith.constant 1.250000e-04 : f32
    %31 = vector.broadcast %cst_12 : f32 to vector<1x1xf32>
    %32 = arith.mulf %28, %31 : vector<1x1xf32>
    %33 = arith.mulf %30, %30 : vector<1x1xf32>
    %34 = arith.subf %32, %33 : vector<1x1xf32>
    %c0_13 = arith.constant 0 : index
    %35 = memref.load %arg4[%c0_13] : memref<5xf32, #tpu.memory_space<smem>>
    %cst_14 = arith.constant 9.99999974E-6 : f32
    %36 = vector.broadcast %cst_14 : f32 to vector<1x1xf32>
    %37 = arith.addf %34, %36 : vector<1x1xf32>
    %38 = math.rsqrt %37 : vector<1x1xf32>
    %39 = vector.broadcast %35 : f32 to vector<1x1xf32>
    %40 = arith.mulf %39, %38 : vector<1x1xf32>
    %c0_15 = arith.constant 0 : index
    %41 = memref.load %arg5[%c0_15] : memref<5xf32, #tpu.memory_space<smem>>
    %42 = arith.mulf %30, %40 : vector<1x1xf32>
    %43 = vector.broadcast %41 : f32 to vector<1x1xf32>
    %44 = arith.subf %43, %42 : vector<1x1xf32>
    %c0_i32_16 = arith.constant 0 : i32
    %45 = vector.broadcast %c0_i32_16 : i32 to vector<24x1xi32>
    %46 = arith.cmpi sge, %16, %45 : vector<24x1xi32>
    %c4_i32 = arith.constant 4 : i32
    %47 = vector.broadcast %c4_i32 : i32 to vector<24x1xi32>
    %48 = arith.cmpi slt, %16, %47 : vector<24x1xi32>
    %49 = arith.andi %46, %48 : vector<24x1xi1>
    %cst_17 = arith.constant 1.000000e+00 : f32
    %cst_18 = arith.constant 0.000000e+00 : f32
    %50 = vector.broadcast %cst_17 : f32 to vector<24x1xf32>
    %51 = vector.broadcast %cst_18 : f32 to vector<24x1xf32>
    %52 = arith.select %49, %50, %51 : vector<24x1xi1>, vector<24x1xf32>
    %53 = vector.broadcast %40 : vector<1x1xf32> to vector<24x1xf32>
    %54 = arith.mulf %52, %53 : vector<24x1xf32>
    %55 = arith.addf %17, %54 : vector<24x1xf32>
    %56 = vector.broadcast %44 : vector<1x1xf32> to vector<24x1xf32>
    %57 = arith.mulf %52, %56 : vector<24x1xf32>
    %58 = arith.addf %18, %57 : vector<24x1xf32>
    %59 = vector.extract_strided_slice %15 {offsets = [4, 0], sizes = [4, 2048], strides = [1, 1]} : vector<24x2048xf32> to vector<4x2048xf32>
    %cst_19 = arith.constant dense<0.000000e+00> : vector<4xf32>
    %60 = vector.multi_reduction <add>, %59, %cst_19 [1] : vector<4x2048xf32> to vector<4xf32>
    %61 = vector.shape_cast %60 : vector<4xf32> to vector<4x1xf32>
    %cst_20 = arith.constant dense<0.000000e+00> : vector<1xf32>
    %62 = vector.multi_reduction <add>, %61, %cst_20 [0] : vector<4x1xf32> to vector<1xf32>
    %63 = vector.shape_cast %62 : vector<1xf32> to vector<1x1xf32>
    %64 = arith.mulf %59, %59 : vector<4x2048xf32>
    %cst_21 = arith.constant dense<0.000000e+00> : vector<4xf32>
    %65 = vector.multi_reduction <add>, %64, %cst_21 [1] : vector<4x2048xf32> to vector<4xf32>
    %66 = vector.shape_cast %65 : vector<4xf32> to vector<4x1xf32>
    %cst_22 = arith.constant dense<0.000000e+00> : vector<1xf32>
    %67 = vector.multi_reduction <add>, %66, %cst_22 [0] : vector<4x1xf32> to vector<1xf32>
    %68 = vector.shape_cast %67 : vector<1xf32> to vector<1x1xf32>
    %cst_23 = arith.constant 1.250000e-04 : f32
    %69 = vector.broadcast %cst_23 : f32 to vector<1x1xf32>
    %70 = arith.mulf %63, %69 : vector<1x1xf32>
    %cst_24 = arith.constant 1.250000e-04 : f32
    %71 = vector.broadcast %cst_24 : f32 to vector<1x1xf32>
    %72 = arith.mulf %68, %71 : vector<1x1xf32>
    %73 = arith.mulf %70, %70 : vector<1x1xf32>
    %74 = arith.subf %72, %73 : vector<1x1xf32>
    %c1 = arith.constant 1 : index
    %75 = memref.load %arg4[%c1] : memref<5xf32, #tpu.memory_space<smem>>
    %cst_25 = arith.constant 9.99999974E-6 : f32
    %76 = vector.broadcast %cst_25 : f32 to vector<1x1xf32>
    %77 = arith.addf %74, %76 : vector<1x1xf32>
    %78 = math.rsqrt %77 : vector<1x1xf32>
    %79 = vector.broadcast %75 : f32 to vector<1x1xf32>
    %80 = arith.mulf %79, %78 : vector<1x1xf32>
    %c1_26 = arith.constant 1 : index
    %81 = memref.load %arg5[%c1_26] : memref<5xf32, #tpu.memory_space<smem>>
    %82 = arith.mulf %70, %80 : vector<1x1xf32>
    %83 = vector.broadcast %81 : f32 to vector<1x1xf32>
    %84 = arith.subf %83, %82 : vector<1x1xf32>
    %c4_i32_27 = arith.constant 4 : i32
    %85 = vector.broadcast %c4_i32_27 : i32 to vector<24x1xi32>
    %86 = arith.cmpi sge, %16, %85 : vector<24x1xi32>
    %c8_i32 = arith.constant 8 : i32
    %87 = vector.broadcast %c8_i32 : i32 to vector<24x1xi32>
    %88 = arith.cmpi slt, %16, %87 : vector<24x1xi32>
    %89 = arith.andi %86, %88 : vector<24x1xi1>
    %cst_28 = arith.constant 1.000000e+00 : f32
    %cst_29 = arith.constant 0.000000e+00 : f32
    %90 = vector.broadcast %cst_28 : f32 to vector<24x1xf32>
    %91 = vector.broadcast %cst_29 : f32 to vector<24x1xf32>
    %92 = arith.select %89, %90, %91 : vector<24x1xi1>, vector<24x1xf32>
    %93 = vector.broadcast %80 : vector<1x1xf32> to vector<24x1xf32>
    %94 = arith.mulf %92, %93 : vector<24x1xf32>
    %95 = arith.addf %55, %94 : vector<24x1xf32>
    %96 = vector.broadcast %84 : vector<1x1xf32> to vector<24x1xf32>
    %97 = arith.mulf %92, %96 : vector<24x1xf32>
    %98 = arith.addf %58, %97 : vector<24x1xf32>
    %99 = vector.extract_strided_slice %15 {offsets = [8, 0], sizes = [4, 2048], strides = [1, 1]} : vector<24x2048xf32> to vector<4x2048xf32>
    %cst_30 = arith.constant dense<0.000000e+00> : vector<4xf32>
    %100 = vector.multi_reduction <add>, %99, %cst_30 [1] : vector<4x2048xf32> to vector<4xf32>
    %101 = vector.shape_cast %100 : vector<4xf32> to vector<4x1xf32>
    %cst_31 = arith.constant dense<0.000000e+00> : vector<1xf32>
    %102 = vector.multi_reduction <add>, %101, %cst_31 [0] : vector<4x1xf32> to vector<1xf32>
    %103 = vector.shape_cast %102 : vector<1xf32> to vector<1x1xf32>
    %104 = arith.mulf %99, %99 : vector<4x2048xf32>
    %cst_32 = arith.constant dense<0.000000e+00> : vector<4xf32>
    %105 = vector.multi_reduction <add>, %104, %cst_32 [1] : vector<4x2048xf32> to vector<4xf32>
    %106 = vector.shape_cast %105 : vector<4xf32> to vector<4x1xf32>
    %cst_33 = arith.constant dense<0.000000e+00> : vector<1xf32>
    %107 = vector.multi_reduction <add>, %106, %cst_33 [0] : vector<4x1xf32> to vector<1xf32>
    %108 = vector.shape_cast %107 : vector<1xf32> to vector<1x1xf32>
    %cst_34 = arith.constant 1.250000e-04 : f32
    %109 = vector.broadcast %cst_34 : f32 to vector<1x1xf32>
    %110 = arith.mulf %103, %109 : vector<1x1xf32>
    %cst_35 = arith.constant 1.250000e-04 : f32
    %111 = vector.broadcast %cst_35 : f32 to vector<1x1xf32>
    %112 = arith.mulf %108, %111 : vector<1x1xf32>
    %113 = arith.mulf %110, %110 : vector<1x1xf32>
    %114 = arith.subf %112, %113 : vector<1x1xf32>
    %c2 = arith.constant 2 : index
    %115 = memref.load %arg4[%c2] : memref<5xf32, #tpu.memory_space<smem>>
    %cst_36 = arith.constant 9.99999974E-6 : f32
    %116 = vector.broadcast %cst_36 : f32 to vector<1x1xf32>
    %117 = arith.addf %114, %116 : vector<1x1xf32>
    %118 = math.rsqrt %117 : vector<1x1xf32>
    %119 = vector.broadcast %115 : f32 to vector<1x1xf32>
    %120 = arith.mulf %119, %118 : vector<1x1xf32>
    %c2_37 = arith.constant 2 : index
    %121 = memref.load %arg5[%c2_37] : memref<5xf32, #tpu.memory_space<smem>>
    %122 = arith.mulf %110, %120 : vector<1x1xf32>
    %123 = vector.broadcast %121 : f32 to vector<1x1xf32>
    %124 = arith.subf %123, %122 : vector<1x1xf32>
    %c8_i32_38 = arith.constant 8 : i32
    %125 = vector.broadcast %c8_i32_38 : i32 to vector<24x1xi32>
    %126 = arith.cmpi sge, %16, %125 : vector<24x1xi32>
    %c12_i32 = arith.constant 12 : i32
    %127 = vector.broadcast %c12_i32 : i32 to vector<24x1xi32>
    %128 = arith.cmpi slt, %16, %127 : vector<24x1xi32>
    %129 = arith.andi %126, %128 : vector<24x1xi1>
    %cst_39 = arith.constant 1.000000e+00 : f32
    %cst_40 = arith.constant 0.000000e+00 : f32
    %130 = vector.broadcast %cst_39 : f32 to vector<24x1xf32>
    %131 = vector.broadcast %cst_40 : f32 to vector<24x1xf32>
    %132 = arith.select %129, %130, %131 : vector<24x1xi1>, vector<24x1xf32>
    %133 = vector.broadcast %120 : vector<1x1xf32> to vector<24x1xf32>
    %134 = arith.mulf %132, %133 : vector<24x1xf32>
    %135 = arith.addf %95, %134 : vector<24x1xf32>
    %136 = vector.broadcast %124 : vector<1x1xf32> to vector<24x1xf32>
    %137 = arith.mulf %132, %136 : vector<24x1xf32>
    %138 = arith.addf %98, %137 : vector<24x1xf32>
    %139 = vector.extract_strided_slice %15 {offsets = [12, 0], sizes = [4, 2048], strides = [1, 1]} : vector<24x2048xf32> to vector<4x2048xf32>
    %cst_41 = arith.constant dense<0.000000e+00> : vector<4xf32>
    %140 = vector.multi_reduction <add>, %139, %cst_41 [1] : vector<4x2048xf32> to vector<4xf32>
    %141 = vector.shape_cast %140 : vector<4xf32> to vector<4x1xf32>
    %cst_42 = arith.constant dense<0.000000e+00> : vector<1xf32>
    %142 = vector.multi_reduction <add>, %141, %cst_42 [0] : vector<4x1xf32> to vector<1xf32>
    %143 = vector.shape_cast %142 : vector<1xf32> to vector<1x1xf32>
    %144 = arith.mulf %139, %139 : vector<4x2048xf32>
    %cst_43 = arith.constant dense<0.000000e+00> : vector<4xf32>
    %145 = vector.multi_reduction <add>, %144, %cst_43 [1] : vector<4x2048xf32> to vector<4xf32>
    %146 = vector.shape_cast %145 : vector<4xf32> to vector<4x1xf32>
    %cst_44 = arith.constant dense<0.000000e+00> : vector<1xf32>
    %147 = vector.multi_reduction <add>, %146, %cst_44 [0] : vector<4x1xf32> to vector<1xf32>
    %148 = vector.shape_cast %147 : vector<1xf32> to vector<1x1xf32>
    %cst_45 = arith.constant 1.250000e-04 : f32
    %149 = vector.broadcast %cst_45 : f32 to vector<1x1xf32>
    %150 = arith.mulf %143, %149 : vector<1x1xf32>
    %cst_46 = arith.constant 1.250000e-04 : f32
    %151 = vector.broadcast %cst_46 : f32 to vector<1x1xf32>
    %152 = arith.mulf %148, %151 : vector<1x1xf32>
    %153 = arith.mulf %150, %150 : vector<1x1xf32>
    %154 = arith.subf %152, %153 : vector<1x1xf32>
    %c3 = arith.constant 3 : index
    %155 = memref.load %arg4[%c3] : memref<5xf32, #tpu.memory_space<smem>>
    %cst_47 = arith.constant 9.99999974E-6 : f32
    %156 = vector.broadcast %cst_47 : f32 to vector<1x1xf32>
    %157 = arith.addf %154, %156 : vector<1x1xf32>
    %158 = math.rsqrt %157 : vector<1x1xf32>
    %159 = vector.broadcast %155 : f32 to vector<1x1xf32>
    %160 = arith.mulf %159, %158 : vector<1x1xf32>
    %c3_48 = arith.constant 3 : index
    %161 = memref.load %arg5[%c3_48] : memref<5xf32, #tpu.memory_space<smem>>
    %162 = arith.mulf %150, %160 : vector<1x1xf32>
    %163 = vector.broadcast %161 : f32 to vector<1x1xf32>
    %164 = arith.subf %163, %162 : vector<1x1xf32>
    %c12_i32_49 = arith.constant 12 : i32
    %165 = vector.broadcast %c12_i32_49 : i32 to vector<24x1xi32>
    %166 = arith.cmpi sge, %16, %165 : vector<24x1xi32>
    %c16_i32 = arith.constant 16 : i32
    %167 = vector.broadcast %c16_i32 : i32 to vector<24x1xi32>
    %168 = arith.cmpi slt, %16, %167 : vector<24x1xi32>
    %169 = arith.andi %166, %168 : vector<24x1xi1>
    %cst_50 = arith.constant 1.000000e+00 : f32
    %cst_51 = arith.constant 0.000000e+00 : f32
    %170 = vector.broadcast %cst_50 : f32 to vector<24x1xf32>
    %171 = vector.broadcast %cst_51 : f32 to vector<24x1xf32>
    %172 = arith.select %169, %170, %171 : vector<24x1xi1>, vector<24x1xf32>
    %173 = vector.broadcast %160 : vector<1x1xf32> to vector<24x1xf32>
    %174 = arith.mulf %172, %173 : vector<24x1xf32>
    %175 = arith.addf %135, %174 : vector<24x1xf32>
    %176 = vector.broadcast %164 : vector<1x1xf32> to vector<24x1xf32>
    %177 = arith.mulf %172, %176 : vector<24x1xf32>
    %178 = arith.addf %138, %177 : vector<24x1xf32>
    %179 = vector.extract_strided_slice %15 {offsets = [16, 0], sizes = [4, 2048], strides = [1, 1]} : vector<24x2048xf32> to vector<4x2048xf32>
    %cst_52 = arith.constant dense<0.000000e+00> : vector<4xf32>
    %180 = vector.multi_reduction <add>, %179, %cst_52 [1] : vector<4x2048xf32> to vector<4xf32>
    %181 = vector.shape_cast %180 : vector<4xf32> to vector<4x1xf32>
    %cst_53 = arith.constant dense<0.000000e+00> : vector<1xf32>
    %182 = vector.multi_reduction <add>, %181, %cst_53 [0] : vector<4x1xf32> to vector<1xf32>
    %183 = vector.shape_cast %182 : vector<1xf32> to vector<1x1xf32>
    %184 = arith.mulf %179, %179 : vector<4x2048xf32>
    %cst_54 = arith.constant dense<0.000000e+00> : vector<4xf32>
    %185 = vector.multi_reduction <add>, %184, %cst_54 [1] : vector<4x2048xf32> to vector<4xf32>
    %186 = vector.shape_cast %185 : vector<4xf32> to vector<4x1xf32>
    %cst_55 = arith.constant dense<0.000000e+00> : vector<1xf32>
    %187 = vector.multi_reduction <add>, %186, %cst_55 [0] : vector<4x1xf32> to vector<1xf32>
    %188 = vector.shape_cast %187 : vector<1xf32> to vector<1x1xf32>
    %cst_56 = arith.constant 1.250000e-04 : f32
    %189 = vector.broadcast %cst_56 : f32 to vector<1x1xf32>
    %190 = arith.mulf %183, %189 : vector<1x1xf32>
    %cst_57 = arith.constant 1.250000e-04 : f32
    %191 = vector.broadcast %cst_57 : f32 to vector<1x1xf32>
    %192 = arith.mulf %188, %191 : vector<1x1xf32>
    %193 = arith.mulf %190, %190 : vector<1x1xf32>
    %194 = arith.subf %192, %193 : vector<1x1xf32>
    %c4 = arith.constant 4 : index
    %195 = memref.load %arg4[%c4] : memref<5xf32, #tpu.memory_space<smem>>
    %cst_58 = arith.constant 9.99999974E-6 : f32
    %196 = vector.broadcast %cst_58 : f32 to vector<1x1xf32>
    %197 = arith.addf %194, %196 : vector<1x1xf32>
    %198 = math.rsqrt %197 : vector<1x1xf32>
    %199 = vector.broadcast %195 : f32 to vector<1x1xf32>
    %200 = arith.mulf %199, %198 : vector<1x1xf32>
    %c4_59 = arith.constant 4 : index
    %201 = memref.load %arg5[%c4_59] : memref<5xf32, #tpu.memory_space<smem>>
    %202 = arith.mulf %190, %200 : vector<1x1xf32>
    %203 = vector.broadcast %201 : f32 to vector<1x1xf32>
    %204 = arith.subf %203, %202 : vector<1x1xf32>
    %c16_i32_60 = arith.constant 16 : i32
    %205 = vector.broadcast %c16_i32_60 : i32 to vector<24x1xi32>
    %206 = arith.cmpi sge, %16, %205 : vector<24x1xi32>
    %c20_i32 = arith.constant 20 : i32
    %207 = vector.broadcast %c20_i32 : i32 to vector<24x1xi32>
    %208 = arith.cmpi slt, %16, %207 : vector<24x1xi32>
    %209 = arith.andi %206, %208 : vector<24x1xi1>
    %cst_61 = arith.constant 1.000000e+00 : f32
    %cst_62 = arith.constant 0.000000e+00 : f32
    %210 = vector.broadcast %cst_61 : f32 to vector<24x1xf32>
    %211 = vector.broadcast %cst_62 : f32 to vector<24x1xf32>
    %212 = arith.select %209, %210, %211 : vector<24x1xi1>, vector<24x1xf32>
    %213 = vector.broadcast %200 : vector<1x1xf32> to vector<24x1xf32>
    %214 = arith.mulf %212, %213 : vector<24x1xf32>
    %215 = arith.addf %175, %214 : vector<24x1xf32>
    %216 = vector.broadcast %204 : vector<1x1xf32> to vector<24x1xf32>
    %217 = arith.mulf %212, %216 : vector<24x1xf32>
    %218 = arith.addf %178, %217 : vector<24x1xf32>
    %219 = vector.broadcast %215 : vector<24x1xf32> to vector<24x2048xf32>
    %220 = arith.mulf %15, %219 : vector<24x2048xf32>
    %221 = vector.broadcast %218 : vector<24x1xf32> to vector<24x2048xf32>
    %222 = arith.addf %220, %221 : vector<24x2048xf32>
    %c0_i32_63 = arith.constant 0 : i32
    %223 = tpu.memref_slice %arg22[%c0_i32_63] : memref<3x!tpu.dma_semaphore, #tpu.memory_space<semaphore_mem>> -> memref<1x!tpu.dma_semaphore, #tpu.memory_space<semaphore_mem>>
    %224 = tpu.memref_squeeze %223 : memref<1x!tpu.dma_semaphore, #tpu.memory_space<semaphore_mem>> -> memref<!tpu.dma_semaphore, #tpu.memory_space<semaphore_mem>>
    tpu.wait_dma2 semaphore(%224 : memref<!tpu.dma_semaphore, #tpu.memory_space<semaphore_mem>>) src(%arg8 : memref<2048x384xbf16, #tpu.memory_space<any>>) dst(%arg19 : memref<2048x384xbf16, #tpu.memory_space<vmem>>)
    %225 = arith.truncf %222 : vector<24x2048xf32> to vector<24x2048xbf16>
    %c0_64 = arith.constant 0 : index
    %c0_65 = arith.constant 0 : index
    %226 = vector.load %arg19[%c0_64, %c0_65] : memref<2048x384xbf16, #tpu.memory_space<vmem>>, vector<2048x384xbf16>
    %cst_66 = arith.constant dense<0.000000e+00> : vector<24x384xf32>
    %227 = tpu.matmul %225, %226, %cst_66 {dimension_numbers = #tpu.dot_dimension_numbers<[1], [0], [0], [1], [0, 0, 1, 1], [], []>} : vector<24x2048xbf16>, vector<2048x384xbf16>, vector<24x384xf32> -> vector<24x384xf32>
    %c0_67 = arith.constant 0 : index
    %c0_68 = arith.constant 0 : index
    %228 = vector.load %arg9[%c0_67, %c0_68] : memref<1x384xf32, #tpu.memory_space<vmem>>, vector<1x384xf32>
    %229 = vector.broadcast %228 : vector<1x384xf32> to vector<24x384xf32>
    %230 = arith.addf %227, %229 : vector<24x384xf32>
    %cst_69 = arith.constant 0.000000e+00 : f32
    %231 = vector.broadcast %cst_69 : f32 to vector<24x384xf32>
    %232 = arith.maximumf %230, %231 : vector<24x384xf32>
    %233 = tpu.iota {dimensions = array<i32: 1>} : vector<8x40xi32>
    %c0_70 = arith.constant 0 : index
    %c0_71 = arith.constant 0 : index
    %234 = vector.load %arg1[%c0_70, %c0_71] : memref<8x1xi32, #tpu.memory_space<vmem>>, vector<8x1xi32>
    %235 = vector.broadcast %234 : vector<8x1xi32> to vector<8x40xi32>
    %236 = arith.cmpi eq, %235, %233 : vector<8x40xi32>
    %cst_72 = arith.constant 1.000000e+00 : f32
    %cst_73 = arith.constant 0.000000e+00 : f32
    %237 = vector.broadcast %cst_72 : f32 to vector<8x40xf32>
    %238 = vector.broadcast %cst_73 : f32 to vector<8x40xf32>
    %239 = arith.select %236, %237, %238 : vector<8x40xi1>, vector<8x40xf32>
    %240 = arith.truncf %239 : vector<8x40xf32> to vector<8x40xbf16>
    %c0_74 = arith.constant 0 : index
    %c0_75 = arith.constant 0 : index
    %241 = vector.load %arg3[%c0_74, %c0_75] : memref<40x2048xbf16, #tpu.memory_space<vmem>>, vector<40x2048xbf16>
    %cst_76 = arith.constant dense<0.000000e+00> : vector<8x2048xf32>
    %242 = tpu.matmul %240, %241, %cst_76 {dimension_numbers = #tpu.dot_dimension_numbers<[1], [0], [0], [1], [0, 0, 1, 1], [], []>} : vector<8x40xbf16>, vector<40x2048xbf16>, vector<8x2048xf32> -> vector<8x2048xf32>
    %243 = tpu.iota {dimensions = array<i32: 0>} : vector<8x1xi32>
    %cst_77 = arith.constant 0.000000e+00 : f32
    %244 = vector.broadcast %cst_77 : f32 to vector<8x1xf32>
    %cst_78 = arith.constant 0.000000e+00 : f32
    %245 = vector.broadcast %cst_78 : f32 to vector<8x1xf32>
    %246 = vector.extract_strided_slice %242 {offsets = [0, 0], sizes = [4, 2048], strides = [1, 1]} : vector<8x2048xf32> to vector<4x2048xf32>
    %cst_79 = arith.constant dense<0.000000e+00> : vector<4xf32>
    %247 = vector.multi_reduction <add>, %246, %cst_79 [1] : vector<4x2048xf32> to vector<4xf32>
    %248 = vector.shape_cast %247 : vector<4xf32> to vector<4x1xf32>
    %cst_80 = arith.constant dense<0.000000e+00> : vector<1xf32>
    %249 = vector.multi_reduction <add>, %248, %cst_80 [0] : vector<4x1xf32> to vector<1xf32>
    %250 = vector.shape_cast %249 : vector<1xf32> to vector<1x1xf32>
    %251 = arith.mulf %246, %246 : vector<4x2048xf32>
    %cst_81 = arith.constant dense<0.000000e+00> : vector<4xf32>
    %252 = vector.multi_reduction <add>, %251, %cst_81 [1] : vector<4x2048xf32> to vector<4xf32>
    %253 = vector.shape_cast %252 : vector<4xf32> to vector<4x1xf32>
    %cst_82 = arith.constant dense<0.000000e+00> : vector<1xf32>
    %254 = vector.multi_reduction <add>, %253, %cst_82 [0] : vector<4x1xf32> to vector<1xf32>
    %255 = vector.shape_cast %254 : vector<1xf32> to vector<1x1xf32>
    %cst_83 = arith.constant 1.250000e-04 : f32
    %256 = vector.broadcast %cst_83 : f32 to vector<1x1xf32>
    %257 = arith.mulf %250, %256 : vector<1x1xf32>
    %cst_84 = arith.constant 1.250000e-04 : f32
    %258 = vector.broadcast %cst_84 : f32 to vector<1x1xf32>
    %259 = arith.mulf %255, %258 : vector<1x1xf32>
    %260 = arith.mulf %257, %257 : vector<1x1xf32>
    %261 = arith.subf %259, %260 : vector<1x1xf32>
    %c0_85 = arith.constant 0 : index
    %262 = memref.load %arg6[%c0_85] : memref<2xf32, #tpu.memory_space<smem>>
    %cst_86 = arith.constant 9.99999974E-6 : f32
    %263 = vector.broadcast %cst_86 : f32 to vector<1x1xf32>
    %264 = arith.addf %261, %263 : vector<1x1xf32>
    %265 = math.rsqrt %264 : vector<1x1xf32>
    %266 = vector.broadcast %262 : f32 to vector<1x1xf32>
    %267 = arith.mulf %266, %265 : vector<1x1xf32>
    %c0_87 = arith.constant 0 : index
    %268 = memref.load %arg7[%c0_87] : memref<2xf32, #tpu.memory_space<smem>>
    %269 = arith.mulf %257, %267 : vector<1x1xf32>
    %270 = vector.broadcast %268 : f32 to vector<1x1xf32>
    %271 = arith.subf %270, %269 : vector<1x1xf32>
    %c0_i32_88 = arith.constant 0 : i32
    %272 = vector.broadcast %c0_i32_88 : i32 to vector<8x1xi32>
    %273 = arith.cmpi sge, %243, %272 : vector<8x1xi32>
    %c4_i32_89 = arith.constant 4 : i32
    %274 = vector.broadcast %c4_i32_89 : i32 to vector<8x1xi32>
    %275 = arith.cmpi slt, %243, %274 : vector<8x1xi32>
    %276 = arith.andi %273, %275 : vector<8x1xi1>
    %cst_90 = arith.constant 1.000000e+00 : f32
    %cst_91 = arith.constant 0.000000e+00 : f32
    %277 = vector.broadcast %cst_90 : f32 to vector<8x1xf32>
    %278 = vector.broadcast %cst_91 : f32 to vector<8x1xf32>
    %279 = arith.select %276, %277, %278 : vector<8x1xi1>, vector<8x1xf32>
    %280 = vector.broadcast %267 : vector<1x1xf32> to vector<8x1xf32>
    %281 = arith.mulf %279, %280 : vector<8x1xf32>
    %282 = arith.addf %244, %281 : vector<8x1xf32>
    %283 = vector.broadcast %271 : vector<1x1xf32> to vector<8x1xf32>
    %284 = arith.mulf %279, %283 : vector<8x1xf32>
    %285 = arith.addf %245, %284 : vector<8x1xf32>
    %286 = vector.extract_strided_slice %242 {offsets = [4, 0], sizes = [4, 2048], strides = [1, 1]} : vector<8x2048xf32> to vector<4x2048xf32>
    %cst_92 = arith.constant dense<0.000000e+00> : vector<4xf32>
    %287 = vector.multi_reduction <add>, %286, %cst_92 [1] : vector<4x2048xf32> to vector<4xf32>
    %288 = vector.shape_cast %287 : vector<4xf32> to vector<4x1xf32>
    %cst_93 = arith.constant dense<0.000000e+00> : vector<1xf32>
    %289 = vector.multi_reduction <add>, %288, %cst_93 [0] : vector<4x1xf32> to vector<1xf32>
    %290 = vector.shape_cast %289 : vector<1xf32> to vector<1x1xf32>
    %291 = arith.mulf %286, %286 : vector<4x2048xf32>
    %cst_94 = arith.constant dense<0.000000e+00> : vector<4xf32>
    %292 = vector.multi_reduction <add>, %291, %cst_94 [1] : vector<4x2048xf32> to vector<4xf32>
    %293 = vector.shape_cast %292 : vector<4xf32> to vector<4x1xf32>
    %cst_95 = arith.constant dense<0.000000e+00> : vector<1xf32>
    %294 = vector.multi_reduction <add>, %293, %cst_95 [0] : vector<4x1xf32> to vector<1xf32>
    %295 = vector.shape_cast %294 : vector<1xf32> to vector<1x1xf32>
    %cst_96 = arith.constant 1.250000e-04 : f32
    %296 = vector.broadcast %cst_96 : f32 to vector<1x1xf32>
    %297 = arith.mulf %290, %296 : vector<1x1xf32>
    %cst_97 = arith.constant 1.250000e-04 : f32
    %298 = vector.broadcast %cst_97 : f32 to vector<1x1xf32>
    %299 = arith.mulf %295, %298 : vector<1x1xf32>
    %300 = arith.mulf %297, %297 : vector<1x1xf32>
    %301 = arith.subf %299, %300 : vector<1x1xf32>
    %c1_98 = arith.constant 1 : index
    %302 = memref.load %arg6[%c1_98] : memref<2xf32, #tpu.memory_space<smem>>
    %cst_99 = arith.constant 9.99999974E-6 : f32
    %303 = vector.broadcast %cst_99 : f32 to vector<1x1xf32>
    %304 = arith.addf %301, %303 : vector<1x1xf32>
    %305 = math.rsqrt %304 : vector<1x1xf32>
    %306 = vector.broadcast %302 : f32 to vector<1x1xf32>
    %307 = arith.mulf %306, %305 : vector<1x1xf32>
    %c1_100 = arith.constant 1 : index
    %308 = memref.load %arg7[%c1_100] : memref<2xf32, #tpu.memory_space<smem>>
    %309 = arith.mulf %297, %307 : vector<1x1xf32>
    %310 = vector.broadcast %308 : f32 to vector<1x1xf32>
    %311 = arith.subf %310, %309 : vector<1x1xf32>
    %c4_i32_101 = arith.constant 4 : i32
    %312 = vector.broadcast %c4_i32_101 : i32 to vector<8x1xi32>
    %313 = arith.cmpi sge, %243, %312 : vector<8x1xi32>
    %c8_i32_102 = arith.constant 8 : i32
    %314 = vector.broadcast %c8_i32_102 : i32 to vector<8x1xi32>
    %315 = arith.cmpi slt, %243, %314 : vector<8x1xi32>
    %316 = arith.andi %313, %315 : vector<8x1xi1>
    %cst_103 = arith.constant 1.000000e+00 : f32
    %cst_104 = arith.constant 0.000000e+00 : f32
    %317 = vector.broadcast %cst_103 : f32 to vector<8x1xf32>
    %318 = vector.broadcast %cst_104 : f32 to vector<8x1xf32>
    %319 = arith.select %316, %317, %318 : vector<8x1xi1>, vector<8x1xf32>
    %320 = vector.broadcast %307 : vector<1x1xf32> to vector<8x1xf32>
    %321 = arith.mulf %319, %320 : vector<8x1xf32>
    %322 = arith.addf %282, %321 : vector<8x1xf32>
    %323 = vector.broadcast %311 : vector<1x1xf32> to vector<8x1xf32>
    %324 = arith.mulf %319, %323 : vector<8x1xf32>
    %325 = arith.addf %285, %324 : vector<8x1xf32>
    %326 = vector.broadcast %322 : vector<8x1xf32> to vector<8x2048xf32>
    %327 = arith.mulf %242, %326 : vector<8x2048xf32>
    %328 = vector.broadcast %325 : vector<8x1xf32> to vector<8x2048xf32>
    %329 = arith.addf %327, %328 : vector<8x2048xf32>
    %c1_i32_105 = arith.constant 1 : i32
    %330 = tpu.memref_slice %arg22[%c1_i32_105] : memref<3x!tpu.dma_semaphore, #tpu.memory_space<semaphore_mem>> -> memref<1x!tpu.dma_semaphore, #tpu.memory_space<semaphore_mem>>
    %331 = tpu.memref_squeeze %330 : memref<1x!tpu.dma_semaphore, #tpu.memory_space<semaphore_mem>> -> memref<!tpu.dma_semaphore, #tpu.memory_space<semaphore_mem>>
    tpu.wait_dma2 semaphore(%331 : memref<!tpu.dma_semaphore, #tpu.memory_space<semaphore_mem>>) src(%arg10 : memref<2048x384xbf16, #tpu.memory_space<any>>) dst(%arg20 : memref<2048x384xbf16, #tpu.memory_space<vmem>>)
    %332 = arith.truncf %329 : vector<8x2048xf32> to vector<8x2048xbf16>
    %c0_106 = arith.constant 0 : index
    %c0_107 = arith.constant 0 : index
    %333 = vector.load %arg20[%c0_106, %c0_107] : memref<2048x384xbf16, #tpu.memory_space<vmem>>, vector<2048x384xbf16>
    %cst_108 = arith.constant dense<0.000000e+00> : vector<8x384xf32>
    %334 = tpu.matmul %332, %333, %cst_108 {dimension_numbers = #tpu.dot_dimension_numbers<[1], [0], [0], [1], [0, 0, 1, 1], [], []>} : vector<8x2048xbf16>, vector<2048x384xbf16>, vector<8x384xf32> -> vector<8x384xf32>
    %c0_109 = arith.constant 0 : index
    %c0_110 = arith.constant 0 : index
    %335 = vector.load %arg11[%c0_109, %c0_110] : memref<1x384xf32, #tpu.memory_space<vmem>>, vector<1x384xf32>
    %336 = vector.broadcast %335 : vector<1x384xf32> to vector<8x384xf32>
    %337 = arith.addf %334, %336 : vector<8x384xf32>
    %cst_111 = arith.constant 0.000000e+00 : f32
    %338 = vector.broadcast %cst_111 : f32 to vector<8x384xf32>
    %339 = arith.maximumf %337, %338 : vector<8x384xf32>
    %340 = tpu.concatenate %232, %339 in 0 : vector<24x384xf32>, vector<8x384xf32> -> vector<32x384xf32>
    %341 = arith.truncf %340 : vector<32x384xf32> to vector<32x384xbf16>
    %c0_112 = arith.constant 0 : index
    %c0_113 = arith.constant 0 : index
    %342 = vector.load %arg12[%c0_112, %c0_113] : memref<384x384xbf16, #tpu.memory_space<vmem>>, vector<384x384xbf16>
    %cst_114 = arith.constant dense<0.000000e+00> : vector<32x384xf32>
    %343 = tpu.matmul %341, %342, %cst_114 {dimension_numbers = #tpu.dot_dimension_numbers<[1], [0], [0], [1], [0, 0, 1, 1], [], []>} : vector<32x384xbf16>, vector<384x384xbf16>, vector<32x384xf32> -> vector<32x384xf32>
    %c0_115 = arith.constant 0 : index
    %c0_116 = arith.constant 0 : index
    %344 = vector.load %arg13[%c0_115, %c0_116] : memref<1x384xf32, #tpu.memory_space<vmem>>, vector<1x384xf32>
    %345 = vector.broadcast %344 : vector<1x384xf32> to vector<32x384xf32>
    %346 = arith.addf %343, %345 : vector<32x384xf32>
    %cst_117 = arith.constant 0.000000e+00 : f32
    %347 = vector.broadcast %cst_117 : f32 to vector<32x384xf32>
    %348 = arith.maximumf %346, %347 : vector<32x384xf32>
    %349 = vector.extract_strided_slice %348 {offsets = [0, 0], sizes = [4, 384], strides = [1, 1]} : vector<32x384xf32> to vector<4x384xf32>
    %350 = vector.extract_strided_slice %348 {offsets = [4, 0], sizes = [4, 384], strides = [1, 1]} : vector<32x384xf32> to vector<4x384xf32>
    %351 = vector.extract_strided_slice %348 {offsets = [8, 0], sizes = [4, 384], strides = [1, 1]} : vector<32x384xf32> to vector<4x384xf32>
    %352 = vector.extract_strided_slice %348 {offsets = [12, 0], sizes = [4, 384], strides = [1, 1]} : vector<32x384xf32> to vector<4x384xf32>
    %353 = vector.extract_strided_slice %348 {offsets = [16, 0], sizes = [4, 384], strides = [1, 1]} : vector<32x384xf32> to vector<4x384xf32>
    %354 = vector.extract_strided_slice %348 {offsets = [24, 0], sizes = [4, 384], strides = [1, 1]} : vector<32x384xf32> to vector<4x384xf32>
    %355 = vector.extract_strided_slice %348 {offsets = [28, 0], sizes = [4, 384], strides = [1, 1]} : vector<32x384xf32> to vector<4x384xf32>
    %356 = tpu.concatenate %349, %350, %351, %352, %353, %354, %355 in 1 : vector<4x384xf32>, vector<4x384xf32>, vector<4x384xf32>, vector<4x384xf32>, vector<4x384xf32>, vector<4x384xf32>, vector<4x384xf32> -> vector<4x2688xf32>
    %c2_i32_118 = arith.constant 2 : i32
    %357 = tpu.memref_slice %arg22[%c2_i32_118] : memref<3x!tpu.dma_semaphore, #tpu.memory_space<semaphore_mem>> -> memref<1x!tpu.dma_semaphore, #tpu.memory_space<semaphore_mem>>
    %358 = tpu.memref_squeeze %357 : memref<1x!tpu.dma_semaphore, #tpu.memory_space<semaphore_mem>> -> memref<!tpu.dma_semaphore, #tpu.memory_space<semaphore_mem>>
    tpu.wait_dma2 semaphore(%358 : memref<!tpu.dma_semaphore, #tpu.memory_space<semaphore_mem>>) src(%arg14 : memref<2688x128xbf16, #tpu.memory_space<any>>) dst(%arg21 : memref<2688x128xbf16, #tpu.memory_space<vmem>>)
    %359 = arith.truncf %356 : vector<4x2688xf32> to vector<4x2688xbf16>
    %c0_119 = arith.constant 0 : index
    %c0_120 = arith.constant 0 : index
    %360 = vector.load %arg21[%c0_119, %c0_120] : memref<2688x128xbf16, #tpu.memory_space<vmem>>, vector<2688x128xbf16>
    %cst_121 = arith.constant dense<0.000000e+00> : vector<4x128xf32>
    %361 = tpu.matmul %359, %360, %cst_121 {dimension_numbers = #tpu.dot_dimension_numbers<[1], [0], [0], [1], [0, 0, 1, 1], [], []>} : vector<4x2688xbf16>, vector<2688x128xbf16>, vector<4x128xf32> -> vector<4x128xf32>
    %c0_122 = arith.constant 0 : index
    %c0_123 = arith.constant 0 : index
    %362 = vector.load %arg15[%c0_122, %c0_123] : memref<1x128xf32, #tpu.memory_space<vmem>>, vector<1x128xf32>
    %363 = vector.broadcast %362 : vector<1x128xf32> to vector<4x128xf32>
    %364 = arith.addf %361, %363 : vector<4x128xf32>
    %cst_124 = arith.constant dense<0.000000e+00> : vector<128xf32>
    %365 = vector.multi_reduction <add>, %364, %cst_124 [0] : vector<4x128xf32> to vector<128xf32>
    %366 = vector.shape_cast %365 : vector<128xf32> to vector<1x128xf32>
    %cst_125 = arith.constant 4.000000e+00 : f32
    %367 = vector.broadcast %cst_125 : f32 to vector<1x128xf32>
    %368 = arith.divf %366, %367 : vector<1x128xf32>
    %369 = vector.broadcast %368 : vector<1x128xf32> to vector<4x128xf32>
    %370 = arith.subf %364, %369 : vector<4x128xf32>
    %371 = arith.mulf %370, %370 : vector<4x128xf32>
    %cst_126 = arith.constant dense<0.000000e+00> : vector<128xf32>
    %372 = vector.multi_reduction <add>, %371, %cst_126 [0] : vector<4x128xf32> to vector<128xf32>
    %373 = vector.shape_cast %372 : vector<128xf32> to vector<1x128xf32>
    %cst_127 = arith.constant 4.000000e+00 : f32
    %374 = vector.broadcast %cst_127 : f32 to vector<1x128xf32>
    %375 = arith.divf %373, %374 : vector<1x128xf32>
    %376 = vector.broadcast %368 : vector<1x128xf32> to vector<4x128xf32>
    %377 = arith.subf %364, %376 : vector<4x128xf32>
    %cst_128 = arith.constant 9.99999974E-6 : f32
    %378 = vector.broadcast %cst_128 : f32 to vector<1x128xf32>
    %379 = arith.addf %375, %378 : vector<1x128xf32>
    %380 = math.rsqrt %379 : vector<1x128xf32>
    %381 = vector.broadcast %380 : vector<1x128xf32> to vector<4x128xf32>
    %382 = arith.mulf %377, %381 : vector<4x128xf32>
    %c0_129 = arith.constant 0 : index
    %c0_130 = arith.constant 0 : index
    %383 = vector.load %arg16[%c0_129, %c0_130] : memref<1x128xf32, #tpu.memory_space<vmem>>, vector<1x128xf32>
    %384 = vector.broadcast %383 : vector<1x128xf32> to vector<4x128xf32>
    %385 = arith.mulf %382, %384 : vector<4x128xf32>
    %c0_131 = arith.constant 0 : index
    %c0_132 = arith.constant 0 : index
    %386 = vector.load %arg17[%c0_131, %c0_132] : memref<1x128xf32, #tpu.memory_space<vmem>>, vector<1x128xf32>
    %387 = vector.broadcast %386 : vector<1x128xf32> to vector<4x128xf32>
    %388 = arith.addf %385, %387 : vector<4x128xf32>
    %c0_133 = arith.constant 0 : index
    %c0_134 = arith.constant 0 : index
    %389 = vector.load %arg18[%c0_133, %c0_134] : memref<4x128xf32, #tpu.memory_space<vmem>>, vector<4x128xf32>
    tpu.vector_store %arg18[%c0_133, %c0_134], %388 {strides = array<i32>} : memref<4x128xf32, #tpu.memory_space<vmem>>, vector<4x128xf32>,
    return
  }
}

</mosaic_0001>

<llo_original>
// kernel: neural_net_forward.1
$region0: #{neural_net_forward.1}
  #allocation0 [shape = 'u32[]', space=smem, size = 0x4, offset = 0x4, fixed_abs, tag = 'smem constant byte address 0x4 - core index']
  #allocation1 [shape = 'u32[144,128]{1,0:T(1,128)}', space=vmem, size = 0x12000, scoped, tag = 'internal scratch']
  #allocation2 [shape = 'bf16[2048,384]{1,0:T(8,128)(2,1)}', space=vmem, size = 0x180000, scoped, tag = 'scratch operand']
  #allocation3 [shape = 'bf16[2048,384]{1,0:T(8,128)(2,1)}', space=vmem, size = 0x180000, scoped, tag = 'scratch operand']
  #allocation4 [shape = 'bf16[2688,128]{1,0:T(8,128)(2,1)}', space=vmem, size = 0xa8000, scoped, tag = 'scratch operand']
  #allocation5 [shape = 's32[3]{0}', space=sflag, size = 0xc, scoped, tag = 'scratch operand']
  #allocation29 [shape = 's32[]', space=sflag, size = 0x4, offset = 0, fixed_abs, tag = 'sflag constant byte address 0x0 - dummy sync flag']
  #allocation30 [shape = 's32[]', space=sflag, size = 0x4, offset = 0, fixed_abs, tag = 'sflag constant byte address 0x0 - dummy sync flag']
  #allocation31 [shape = 'u32[]', space=smem, size = 0x4, offset = 0x44, fixed_abs, tag = 'smem constant byte address 0x44 - assertion arg 0']
  #allocation32 [shape = 'u32[]', space=smem, size = 0x4, offset = 0x48, fixed_abs, tag = 'smem constant byte address 0x48 - assertion arg 1']
  #allocation33 [shape = 's32[]', space=sflag, size = 0x4, offset = 0, fixed_abs, tag = 'sflag constant byte address 0x0 - dummy sync flag']
  #allocation34 [shape = 's32[]', space=sflag, size = 0x4, offset = 0, fixed_abs, tag = 'sflag constant byte address 0x0 - dummy sync flag']
  #allocation35 [shape = 's32[]', space=sflag, size = 0x4, offset = 0, fixed_abs, tag = 'sflag constant byte address 0x0 - dummy sync flag']
  #allocation36 [shape = 's32[]', space=sflag, size = 0x4, offset = 0, fixed_abs, tag = 'sflag constant byte address 0x0 - dummy sync flag']
  %s0 = inlined_call_operand.vmem [shape: s32[24,1], index: 0, kind: input, shape index: {}]
  %s1 = inlined_call_operand.vmem [shape: s32[8,1], index: 1, kind: input, shape index: {}]
  %s2 = inlined_call_operand.hbm [shape: bf16[50,2048], index: 2, kind: input, shape index: {}]
  %s3 = inlined_call_operand.hbm [shape: bf16[40,2048], index: 3, kind: input, shape index: {}]
  %s4 = inlined_call_operand.hbm [shape: f32[5], index: 4, kind: input, shape index: {}]
  %s5 = inlined_call_operand.hbm [shape: f32[5], index: 5, kind: input, shape index: {}]
  %s6 = inlined_call_operand.hbm [shape: f32[2], index: 6, kind: input, shape index: {}]
  %s7 = inlined_call_operand.hbm [shape: f32[2], index: 7, kind: input, shape index: {}]
  %s8 = inlined_call_operand.hbm [shape: bf16[2048,384], index: 8, kind: input, shape index: {}]
  %s9 = inlined_call_operand.hbm [shape: f32[1,384], index: 9, kind: input, shape index: {}]
  %s10 = inlined_call_operand.hbm [shape: bf16[2048,384], index: 10, kind: input, shape index: {}]
  %s11 = inlined_call_operand.hbm [shape: f32[1,384], index: 11, kind: input, shape index: {}]
  %s12 = inlined_call_operand.hbm [shape: bf16[384,384], index: 12, kind: input, shape index: {}]
  %s13 = inlined_call_operand.hbm [shape: f32[1,384], index: 13, kind: input, shape index: {}]
  %s14 = inlined_call_operand.hbm [shape: bf16[2688,128], index: 14, kind: input, shape index: {}]
  %s15 = inlined_call_operand.hbm [shape: f32[1,128], index: 15, kind: input, shape index: {}]
  %s16 = inlined_call_operand.hbm [shape: f32[1,128], index: 16, kind: input, shape index: {}]
  %s17 = inlined_call_operand.hbm [shape: f32[1,128], index: 17, kind: input, shape index: {}]
  %s18 = inlined_call_operand.hbm [shape: f32[4,128], index: 18, kind: output, shape index: {}]
  %s19 = sld [smem:[#allocation0]]
  $region134: #{neural_net_forward.1} parent=0
    _
  %s21 = ssub.s32 1, %s19
  %s22 = scalar_select 0, %s21, %s19
  $region1: #{neural_net_forward.1} parent=0
    #allocation6 [shape = 'u8[229376]{0}', space=vmem, size = 0x38000, scoped, tag = 'input window, operand 2, single buffered']
    #allocation7 [shape = 's32[1]{0}', space=sflag, size = 0x4, scoped, tag = 'scoped memory for neural_net_forward.1']
    #allocation8 [shape = 's32[1]{0}', space=sflag, size = 0x4, scoped, tag = 'scoped memory for neural_net_forward.1']
    #allocation9 [shape = 's32[1]{0}', space=sflag, size = 0x4, scoped, tag = 'scoped memory for neural_net_forward.1']
    #allocation10 [shape = 'u8[163840]{0}', space=vmem, size = 0x28000, scoped, tag = 'input window, operand 3, single buffered']
    #allocation11 [shape = 's32[1]{0}', space=sflag, size = 0x4, scoped, tag = 'scoped memory for neural_net_forward.1']
    #allocation12 [shape = 'u8[512]{0}', space=smem, size = 0x200, scoped, tag = 'input window, operand 4, single buffered']
    #allocation13 [shape = 'u8[512]{0}', space=smem, size = 0x200, scoped, tag = 'input window, operand 5, single buffered']
    #allocation14 [shape = 's32[1]{0}', space=sflag, size = 0x4, scoped, tag = 'scoped memory for neural_net_forward.1']
    #allocation15 [shape = 'u8[512]{0}', space=smem, size = 0x200, scoped, tag = 'input window, operand 6, single buffered']
    #allocation16 [shape = 'u8[512]{0}', space=smem, size = 0x200, scoped, tag = 'input window, operand 7, single buffered']
    #allocation17 [shape = 's32[1]{0}', space=sflag, size = 0x4, scoped, tag = 'scoped memory for neural_net_forward.1']
    #allocation18 [shape = 'u8[1536]{0}', space=vmem, size = 0x800, scoped, tag = 'input window, operand 9, single buffered']
    #allocation19 [shape = 'u8[1536]{0}', space=vmem, size = 0x800, scoped, tag = 'input window, operand 11, single buffered']
    #allocation20 [shape = 's32[1]{0}', space=sflag, size = 0x4, scoped, tag = 'scoped memory for neural_net_forward.1']
    #allocation21 [shape = 'u8[294912]{0}', space=vmem, size = 0x48000, scoped, tag = 'input window, operand 12, single buffered']
    #allocation22 [shape = 'u8[1536]{0}', space=vmem, size = 0x800, scoped, tag = 'input window, operand 13, single buffered']
    #allocation23 [shape = 's32[1]{0}', space=sflag, size = 0x4, scoped, tag = 'scoped memory for neural_net_forward.1']
    #allocation24 [shape = 'u8[512]{0}', space=vmem, size = 0x400, scoped, tag = 'input window, operand 15, single buffered']
    #allocation25 [shape = 'u8[512]{0}', space=vmem, size = 0x400, scoped, tag = 'input window, operand 16, single buffered']
    #allocation26 [shape = 's32[1]{0}', space=sflag, size = 0x4, scoped, tag = 'scoped memory for neural_net_forward.1']
    #allocation27 [shape = 'u8[512]{0}', space=vmem, size = 0x400, scoped, tag = 'input window, operand 17, single buffered']
    #allocation28 [shape = 'u8[2048]{0}', space=vmem, size = 0x800, scoped, tag = 'output window, operand 0, single buffered']
    %23 = vsyncpa [#allocation7], 0
    %24 = vsyncpa [#allocation11], 0
    %25 = vsyncpa [#allocation9], 0
    %26 = vsyncpa [#allocation14], 0
    %27 = vsyncpa [#allocation17], 0
    %28 = vsyncpa [#allocation20], 0
    %29 = vsyncpa [#allocation23], 0
    %30 = vsyncpa [#allocation26], 0
    %31 = vsyncpa [#allocation8], 0
    // Predicated region
    $region2: #{neural_net_forward.1} parent=1 // pred_check
      _
    $region3: #{neural_net_forward.1} parent=1 // pred_check_branch
      %33 = sbr.rel (0) target = $region5
    $region4: #{neural_net_forward.1} parent=1 // pred_region
      _
    $region5: #{neural_net_forward.1} parent=1 // pred_fallthru
      _
    // Predicated region
    $region6: #{neural_net_forward.1} parent=1 // pred_check
      _
    $region7: #{neural_net_forward.1} parent=1 // pred_check_branch
      %35 = sbr.rel (0) target = $region9
    $region8: #{neural_net_forward.1} parent=1 // pred_region
      _
    $region9: #{neural_net_forward.1} parent=1 // pred_fallthru
      _
    // Predicated region
    $region10: #{neural_net_forward.1} parent=1 // pred_check
      _
    $region11: #{neural_net_forward.1} parent=1 // pred_check_branch
      %37 = sbr.rel (0) target = $region13
    $region12: #{neural_net_forward.1} parent=1 // pred_region
      %s39 = ssub.s32 7168, 7168
      %40 = vsyncadd [#allocation7], %s39
      %s41 = sshll.u32 [#allocation6], 4
      %s42 = int_to_ptr.vmem [resolvable:$true] %s41
      %47 = dma.hbm_to_vmem [thread:$0]  %s2, 7168, %s42, [#allocation7], 1024, 1024, 64
    $region13: #{neural_net_forward.1} parent=1 // pred_fallthru
      _
    // Predicated region
    $region14: #{neural_net_forward.1} parent=1 // pred_check
      _
    $region15: #{neural_net_forward.1} parent=1 // pred_check_branch
      %49 = sbr.rel (0) target = $region17
    $region16: #{neural_net_forward.1} parent=1 // pred_region
      %s51 = ssub.s32 5120, 5120
      %52 = vsyncadd [#allocation11], %s51
      %s53 = sshll.u32 [#allocation10], 4
      %s54 = int_to_ptr.vmem [resolvable:$true] %s53
      %59 = dma.hbm_to_vmem [thread:$0]  %s3, 5120, %s54, [#allocation11], 1024, 1024, 64
    $region17: #{neural_net_forward.1} parent=1 // pred_fallthru
      _
    // Predicated region
    $region18: #{neural_net_forward.1} parent=1 // pred_check
      _
    $region19: #{neural_net_forward.1} parent=1 // pred_check_branch
      %61 = sbr.rel (0) target = $region21
    $region20: #{neural_net_forward.1} parent=1 // pred_region
      %s63 = ssub.s32 16, 16
      %64 = vsyncadd [#allocation9], %s63
      %67 = dma.hbm_to_smem %s4, 16, [#allocation12], [#allocation9]
    $region21: #{neural_net_forward.1} parent=1 // pred_fallthru
      _
    // Predicated region
    $region22: #{neural_net_forward.1} parent=1 // pred_check
      _
    $region23: #{neural_net_forward.1} parent=1 // pred_check_branch
      %69 = sbr.rel (0) target = $region25
    $region24: #{neural_net_forward.1} parent=1 // pred_region
      %s71 = ssub.s32 16, 16
      %72 = vsyncadd [#allocation14], %s71
      %75 = dma.hbm_to_smem %s5, 16, [#allocation13], [#allocation14]
    $region25: #{neural_net_forward.1} parent=1 // pred_fallthru
      _
    // Predicated region
    $region26: #{neural_net_forward.1} parent=1 // pred_check
      _
    $region27: #{neural_net_forward.1} parent=1 // pred_check_branch
      %77 = sbr.rel (0) target = $region29
    $region28: #{neural_net_forward.1} parent=1 // pred_region
      %s79 = ssub.s32 16, 16
      %80 = vsyncadd [#allocation14], %s79
      %83 = dma.hbm_to_smem %s6, 16, [#allocation15], [#allocation14]
    $region29: #{neural_net_forward.1} parent=1 // pred_fallthru
      _
    // Predicated region
    $region30: #{neural_net_forward.1} parent=1 // pred_check
      _
    $region31: #{neural_net_forward.1} parent=1 // pred_check_branch
      %85 = sbr.rel (0) target = $region33
    $region32: #{neural_net_forward.1} parent=1 // pred_region
      %s87 = ssub.s32 16, 16
      %88 = vsyncadd [#allocation17], %s87
      %91 = dma.hbm_to_smem %s7, 16, [#allocation16], [#allocation17]
    $region33: #{neural_net_forward.1} parent=1 // pred_fallthru
      _
    // Predicated region
    $region34: #{neural_net_forward.1} parent=1 // pred_check
      _
    $region35: #{neural_net_forward.1} parent=1 // pred_check_branch
      %93 = sbr.rel (0) target = $region37
    $region36: #{neural_net_forward.1} parent=1 // pred_region
      %s95 = ssub.s32 48, 48
      %96 = vsyncadd [#allocation11], %s95
      %s98 = sshll.u32 [#allocation18], 4
      %s99 = int_to_ptr.vmem [resolvable:$true] %s98
      %101 = dma.hbm_to_vmem [thread:$0]  %s9, 48, %s99, [#allocation11]
    $region37: #{neural_net_forward.1} parent=1 // pred_fallthru
      _
    // Predicated region
    $region38: #{neural_net_forward.1} parent=1 // pred_check
      _
    $region39: #{neural_net_forward.1} parent=1 // pred_check_branch
      %103 = sbr.rel (0) target = $region41
    $region40: #{neural_net_forward.1} parent=1 // pred_region
      %s105 = ssub.s32 48, 48
      %106 = vsyncadd [#allocation20], %s105
      %s108 = sshll.u32 [#allocation19], 4
      %s109 = int_to_ptr.vmem [resolvable:$true] %s108
      %111 = dma.hbm_to_vmem [thread:$0]  %s11, 48, %s109, [#allocation20]
    $region41: #{neural_net_forward.1} parent=1 // pred_fallthru
      _
    // Predicated region
    $region42: #{neural_net_forward.1} parent=1 // pred_check
      _
    $region43: #{neural_net_forward.1} parent=1 // pred_check_branch
      %113 = sbr.rel (0) target = $region45
    $region44: #{neural_net_forward.1} parent=1 // pred_region
      %s115 = ssub.s32 9216, 9216
      %116 = vsyncadd [#allocation20], %s115
      %s117 = sshll.u32 [#allocation21], 4
      %s118 = int_to_ptr.vmem [resolvable:$true] %s117
      %123 = dma.hbm_to_vmem [thread:$0]  %s12, 9216, %s118, [#allocation20], 192, 192, 12
    $region45: #{neural_net_forward.1} parent=1 // pred_fallthru
      _
    // Predicated region
    $region46: #{neural_net_forward.1} parent=1 // pred_check
      _
    $region47: #{neural_net_forward.1} parent=1 // pred_check_branch
      %125 = sbr.rel (0) target = $region49
    $region48: #{neural_net_forward.1} parent=1 // pred_region
      %s127 = ssub.s32 48, 48
      %128 = vsyncadd [#allocation23], %s127
      %s130 = sshll.u32 [#allocation22], 4
      %s131 = int_to_ptr.vmem [resolvable:$true] %s130
      %133 = dma.hbm_to_vmem [thread:$0]  %s13, 48, %s131, [#allocation23]
    $region49: #{neural_net_forward.1} parent=1 // pred_fallthru
      _
    // Predicated region
    $region50: #{neural_net_forward.1} parent=1 // pred_check
      _
    $region51: #{neural_net_forward.1} parent=1 // pred_check_branch
      %135 = sbr.rel (0) target = $region53
    $region52: #{neural_net_forward.1} parent=1 // pred_region
      %s137 = ssub.s32 16, 16
      %138 = vsyncadd [#allocation23], %s137
      %s140 = sshll.u32 [#allocation24], 4
      %s141 = int_to_ptr.vmem [resolvable:$true] %s140
      %143 = dma.hbm_to_vmem [thread:$0]  %s15, 16, %s141, [#allocation23]
    $region53: #{neural_net_forward.1} parent=1 // pred_fallthru
      _
    // Predicated region
    $region54: #{neural_net_forward.1} parent=1 // pred_check
      _
    $region55: #{neural_net_forward.1} parent=1 // pred_check_branch
      %145 = sbr.rel (0) target = $region57
    $region56: #{neural_net_forward.1} parent=1 // pred_region
      %s147 = ssub.s32 16, 16
      %148 = vsyncadd [#allocation26], %s147
      %s150 = sshll.u32 [#allocation25], 4
      %s151 = int_to_ptr.vmem [resolvable:$true] %s150
      %153 = dma.hbm_to_vmem [thread:$0]  %s16, 16, %s151, [#allocation26]
    $region57: #{neural_net_forward.1} parent=1 // pred_fallthru
      _
    // Predicated region
    $region58: #{neural_net_forward.1} parent=1 // pred_check
      _
    $region59: #{neural_net_forward.1} parent=1 // pred_check_branch
      %155 = sbr.rel (0) target = $region61
    $region60: #{neural_net_forward.1} parent=1 // pred_region
      %s157 = ssub.s32 16, 16
      %158 = vsyncadd [#allocation26], %s157
      %s160 = sshll.u32 [#allocation27], 4
      %s161 = int_to_ptr.vmem [resolvable:$true] %s160
      %163 = dma.hbm_to_vmem [thread:$0]  %s17, 16, %s161, [#allocation26]
    $region61: #{neural_net_forward.1} parent=1 // pred_fallthru
      _
    // Predicated region
    $region62: #{neural_net_forward.1} parent=1 // pred_check
      _
    $region63: #{neural_net_forward.1} parent=1 // pred_check_branch
      %165 = sbr.rel (0) target = $region65
    $region64: #{neural_net_forward.1} parent=1 // pred_region
      %166 = dma.done [#allocation7], 7168
    $region65: #{neural_net_forward.1} parent=1 // pred_fallthru
      _
    // Predicated region
    $region66: #{neural_net_forward.1} parent=1 // pred_check
      _
    $region67: #{neural_net_forward.1} parent=1 // pred_check_branch
      %168 = sbr.rel (0) target = $region69
    $region68: #{neural_net_forward.1} parent=1 // pred_region
      %169 = dma.done [#allocation11], 5120
    $region69: #{neural_net_forward.1} parent=1 // pred_fallthru
      _
    // Predicated region
    $region70: #{neural_net_forward.1} parent=1 // pred_check
      _
    $region71: #{neural_net_forward.1} parent=1 // pred_check_branch
      %171 = sbr.rel (0) target = $region73
    $region72: #{neural_net_forward.1} parent=1 // pred_region
      %172 = dma.done [#allocation9], 16
    $region73: #{neural_net_forward.1} parent=1 // pred_fallthru
      _
    // Predicated region
    $region74: #{neural_net_forward.1} parent=1 // pred_check
      _
    $region75: #{neural_net_forward.1} parent=1 // pred_check_branch
      %174 = sbr.rel (0) target = $region77
    $region76: #{neural_net_forward.1} parent=1 // pred_region
      %175 = dma.done [#allocation14], 16
    $region77: #{neural_net_forward.1} parent=1 // pred_fallthru
      _
    // Predicated region
    $region78: #{neural_net_forward.1} parent=1 // pred_check
      _
    $region79: #{neural_net_forward.1} parent=1 // pred_check_branch
      %177 = sbr.rel (0) target = $region81
    $region80: #{neural_net_forward.1} parent=1 // pred_region
      %178 = dma.done [#allocation14], 16
    $region81: #{neural_net_forward.1} parent=1 // pred_fallthru
      _
    // Predicated region
    $region82: #{neural_net_forward.1} parent=1 // pred_check
      _
    $region83: #{neural_net_forward.1} parent=1 // pred_check_branch
      %180 = sbr.rel (0) target = $region85
    $region84: #{neural_net_forward.1} parent=1 // pred_region
      %181 = dma.done [#allocation17], 16
    $region85: #{neural_net_forward.1} parent=1 // pred_fallthru
      _
    // Predicated region
    $region86: #{neural_net_forward.1} parent=1 // pred_check
      _
    $region87: #{neural_net_forward.1} parent=1 // pred_check_branch
      %183 = sbr.rel (0) target = $region89
    $region88: #{neural_net_forward.1} parent=1 // pred_region
      %184 = dma.done [#allocation11], 48
    $region89: #{neural_net_forward.1} parent=1 // pred_fallthru
      _
    // Predicated region
    $region90: #{neural_net_forward.1} parent=1 // pred_check
      _
    $region91: #{neural_net_forward.1} parent=1 // pred_check_branch
      %186 = sbr.rel (0) target = $region93
    $region92: #{neural_net_forward.1} parent=1 // pred_region
      %187 = dma.done [#allocation20], 48
    $region93: #{neural_net_forward.1} parent=1 // pred_fallthru
      _
    // Predicated region
    $region94: #{neural_net_forward.1} parent=1 // pred_check
      _
    $region95: #{neural_net_forward.1} parent=1 // pred_check_branch
      %189 = sbr.rel (0) target = $region97
    $region96: #{neural_net_forward.1} parent=1 // pred_region
      %190 = dma.done [#allocation20], 9216
    $region97: #{neural_net_forward.1} parent=1 // pred_fallthru
      _
    // Predicated region
    $region98: #{neural_net_forward.1} parent=1 // pred_check
      _
    $region99: #{neural_net_forward.1} parent=1 // pred_check_branch
      %192 = sbr.rel (0) target = $region101
    $region100: #{neural_net_forward.1} parent=1 // pred_region
      %193 = dma.done [#allocation23], 48
    $region101: #{neural_net_forward.1} parent=1 // pred_fallthru
      _
    // Predicated region
    $region102: #{neural_net_forward.1} parent=1 // pred_check
      _
    $region103: #{neural_net_forward.1} parent=1 // pred_check_branch
      %195 = sbr.rel (0) target = $region105
    $region104: #{neural_net_forward.1} parent=1 // pred_region
      %196 = dma.done [#allocation23], 16
    $region105: #{neural_net_forward.1} parent=1 // pred_fallthru
      _
    // Predicated region
    $region106: #{neural_net_forward.1} parent=1 // pred_check
      _
    $region107: #{neural_net_forward.1} parent=1 // pred_check_branch
      %198 = sbr.rel (0) target = $region109
    $region108: #{neural_net_forward.1} parent=1 // pred_region
      %199 = dma.done [#allocation26], 16
    $region109: #{neural_net_forward.1} parent=1 // pred_fallthru
      _
    // Predicated region
    $region110: #{neural_net_forward.1} parent=1 // pred_check
      _
    $region111: #{neural_net_forward.1} parent=1 // pred_check_branch
      %201 = sbr.rel (0) target = $region113
    $region112: #{neural_net_forward.1} parent=1 // pred_region
      %202 = dma.done [#allocation26], 16
    $region113: #{neural_net_forward.1} parent=1 // pred_fallthru
      _
    %203 = sfence
    // Predicated region
    $region114: #{neural_net_forward.1} parent=1 // pred_check
      _
    $region115: #{neural_net_forward.1} parent=1 // pred_check_branch
      %206 = sbr.rel target = $region117
    $region116: #{neural_net_forward.1} parent=1 // pred_region
      %207 = sst [smem:[#allocation31]] [#allocation30]
      %208 = sst [smem:[#allocation32]] [#allocation29]
    $region117: #{neural_net_forward.1} parent=1 // pred_fallthru
      _
    %210 = shalt.err (0)
    %s212 = sshll.u32 [#allocation2], 4
    %s213 = int_to_ptr.vmem [resolvable:$true] %s212
    %215 = dma.hbm_to_vmem [thread:$0]  %s8, 49152, %s213, [#allocation5]
    %s216 = scalar_lea.sflag [#allocation5], 1
    // Predicated region
    $region118: #{neural_net_forward.1} parent=1 // pred_check
      _
    $region119: #{neural_net_forward.1} parent=1 // pred_check_branch
      %218 = sbr.rel target = $region121
    $region120: #{neural_net_forward.1} parent=1 // pred_region
      %219 = sst [smem:[#allocation31]] [#allocation34]
      %220 = sst [smem:[#allocation32]] [#allocation33]
    $region121: #{neural_net_forward.1} parent=1 // pred_fallthru
      _
    %222 = shalt.err (0)
    %s224 = sshll.u32 [#allocation3], 4
    %s225 = int_to_ptr.vmem [resolvable:$true] %s224
    %227 = dma.hbm_to_vmem [thread:$0]  %s10, 49152, %s225, %s216
    %s228 = scalar_lea.sflag [#allocation5], 2
    // Predicated region
    $region122: #{neural_net_forward.1} parent=1 // pred_check
      _
    $region123: #{neural_net_forward.1} parent=1 // pred_check_branch
      %230 = sbr.rel target = $region125
    $region124: #{neural_net_forward.1} parent=1 // pred_region
      %231 = sst [smem:[#allocation31]] [#allocation36]
      %232 = sst [smem:[#allocation32]] [#allocation35]
    $region125: #{neural_net_forward.1} parent=1 // pred_fallthru
      _
    %234 = shalt.err (0)
    %s236 = sshll.u32 [#allocation4], 4
    %s237 = int_to_ptr.vmem [resolvable:$true] %s236
    %239 = dma.hbm_to_vmem [thread:$0]  %s14, 21504, %s237, %s228
    %v240 = vlaneseq
    %v241 = vand.u32 %v240, 127
    %v242 = vld [vmem:[%s0] sm:$0xff]
    %v243 = vld [vmem:[%s0 + $0x8] sm:$0xff]
    %v244 = vld [vmem:[%s0 + $0x10] sm:$0xff]
    %245 = vset.pattern.permute.xlu0 0
    %246 = vperm.xlu0 %245, %v242
    %v247 = vpop.permute.xlu0 %246
    %248 = vset.pattern.permute.xlu0 0
    %249 = vperm.xlu0 %248, %v243
    %v250 = vpop.permute.xlu0 %249
    %251 = vset.pattern.permute.xlu0 0
    %252 = vperm.xlu0 %251, %v244
    %v253 = vpop.permute.xlu0 %252
    %vm254 = vcmp.eq.s32.totalorder %v247, %v241
    %vm255 = vcmp.eq.s32.totalorder %v250, %v241
    %vm256 = vcmp.eq.s32.totalorder %v253, %v241
    %v257 = vsel %vm254, 1.0, 0.0
    %v258 = vsel %vm255, 1.0, 0.0
    %v259 = vsel %vm256, 1.0, 0.0
    %v260 = vpack.c.bf16 %v258, %v257
    %v261 = vpack.c.bf16 %v259, %v259
    %v262 = vld [vmem:[#allocation6] sm:$0xff]
    %v263 = vld [vmem:[#allocation6 + $0x8] sm:$0xff]
    %v264 = vld [vmem:[#allocation6 + $0x10] sm:$0xff]
    %v265 = vld [vmem:[#allocation6 + $0x18] sm:$0xff]
    %v266 = vld [vmem:[#allocation6 + $0x20] sm:$0xff]
    %v267 = vld [vmem:[#allocation6 + $0x28] sm:$0xff]
    %v268 = vld [vmem:[#allocation6 + $0x30] sm:$0xff]
    %v269 = vld [vmem:[#allocation6 + $0x38] sm:$0xff]
    %v270 = vld [vmem:[#allocation6 + $0x40] sm:$0xff]
    %v271 = vld [vmem:[#allocation6 + $0x48] sm:$0xff]
    %v272 = vld [vmem:[#allocation6 + $0x50] sm:$0xff]
    %v273 = vld [vmem:[#allocation6 + $0x58] sm:$0xff]
    %v274 = vld [vmem:[#allocation6 + $0x60] sm:$0xff]
    %v275 = vld [vmem:[#allocation6 + $0x68] sm:$0xff]
    %v276 = vld [vmem:[#allocation6 + $0x70] sm:$0xff]
    %v277 = vld [vmem:[#allocation6 + $0x78] sm:$0xff]
    %v278 = vld [vmem:[#allocation6 + $0x80] sm:$0xff]
    %v279 = vld [vmem:[#allocation6 + $0x88] sm:$0xff]
    %v280 = vld [vmem:[#allocation6 + $0x90] sm:$0xff]
    %v281 = vld [vmem:[#allocation6 + $0x98] sm:$0xff]
    %v282 = vld [vmem:[#allocation6 + $0xa0] sm:$0xff]
    %v283 = vld [vmem:[#allocation6 + $0xa8] sm:$0xff]
    %v284 = vld [vmem:[#allocation6 + $0xb0] sm:$0xff]
    %v285 = vld [vmem:[#allocation6 + $0xb8] sm:$0xff]
    %v286 = vld [vmem:[#allocation6 + $0xc0] sm:$0xff]
    %v287 = vld [vmem:[#allocation6 + $0xc8] sm:$0xff]
    %v288 = vld [vmem:[#allocation6 + $0xd0] sm:$0xff]
    %v289 = vld [vmem:[#allocation6 + $0xd8] sm:$0xff]
    %v290 = vld [vmem:[#allocation6 + $0xe0] sm:$0xff]
    %v291 = vld [vmem:[#allocation6 + $0xe8] sm:$0xff]
    %v292 = vld [vmem:[#allocation6 + $0xf0] sm:$0xff]
    %v293 = vld [vmem:[#allocation6 + $0xf8] sm:$0xff]
    %v294 = vld [vmem:[#allocation6 + $0x100] sm:$0xff]
    %v295 = vld [vmem:[#allocation6 + $0x108] sm:$0xff]
    %v296 = vld [vmem:[#allocation6 + $0x110] sm:$0xff]
    %v297 = vld [vmem:[#allocation6 + $0x118] sm:$0xff]
    %v298 = vld [vmem:[#allocation6 + $0x120] sm:$0xff]
    %v299 = vld [vmem:[#allocation6 + $0x128] sm:$0xff]
    %v300 = vld [vmem:[#allocation6 + $0x130] sm:$0xff]
    %v301 = vld [vmem:[#allocation6 + $0x138] sm:$0xff]
    %v302 = vld [vmem:[#allocation6 + $0x140] sm:$0xff]
    %v303 = vld [vmem:[#allocation6 + $0x148] sm:$0xff]
    %v304 = vld [vmem:[#allocation6 + $0x150] sm:$0xff]
    %v305 = vld [vmem:[#allocation6 + $0x158] sm:$0xff]
    %v306 = vld [vmem:[#allocation6 + $0x160] sm:$0xff]
    %v307 = vld [vmem:[#allocation6 + $0x168] sm:$0xff]
    %v308 = vld [vmem:[#allocation6 + $0x170] sm:$0xff]
    %v309 = vld [vmem:[#allocation6 + $0x178] sm:$0xff]
    %v310 = vld [vmem:[#allocation6 + $0x180] sm:$0x11]
    %v311 = vld [vmem:[#allocation6 + $0x188] sm:$0x11]
    %v312 = vld [vmem:[#allocation6 + $0x190] sm:$0x11]
    %v313 = vld [vmem:[#allocation6 + $0x198] sm:$0x11]
    %v314 = vld [vmem:[#allocation6 + $0x1a0] sm:$0x11]
    %v315 = vld [vmem:[#allocation6 + $0x1a8] sm:$0x11]
    %v316 = vld [vmem:[#allocation6 + $0x1b0] sm:$0x11]
    %v317 = vld [vmem:[#allocation6 + $0x1b8] sm:$0x11]
    %v374 = vunpack.c.l.b16 %v262
    %v375 = vunpack.c.h.b16 %v262
    %v376 = vunpack.c.l.b16 %v263
    %v377 = vunpack.c.h.b16 %v263
    %v378 = vunpack.c.l.b16 %v264
    %v379 = vunpack.c.h.b16 %v264
    %v380 = vunpack.c.l.b16 %v265
    %v381 = vunpack.c.h.b16 %v265
    %v382 = vunpack.c.l.b16 %v266
    %v383 = vunpack.c.h.b16 %v266
    %v384 = vunpack.c.l.b16 %v267
    %v385 = vunpack.c.h.b16 %v267
    %v386 = vunpack.c.l.b16 %v268
    %v387 = vunpack.c.h.b16 %v268
    %v388 = vunpack.c.l.b16 %v269
    %v389 = vunpack.c.h.b16 %v269
    %v390 = vunpack.c.l.b16 %v270
    %v391 = vunpack.c.h.b16 %v270
    %v392 = vunpack.c.l.b16 %v271
    %v393 = vunpack.c.h.b16 %v271
    %v394 = vunpack.c.l.b16 %v272
    %v395 = vunpack.c.h.b16 %v272
    %v396 = vunpack.c.l.b16 %v273
    %v397 = vunpack.c.h.b16 %v273
    %v398 = vunpack.c.l.b16 %v274
    %v399 = vunpack.c.h.b16 %v274
    %v400 = vunpack.c.l.b16 %v275
    %v401 = vunpack.c.h.b16 %v275
    %v402 = vunpack.c.l.b16 %v276
    %v403 = vunpack.c.h.b16 %v276
    %v404 = vunpack.c.l.b16 %v277
    %v405 = vunpack.c.h.b16 %v277
    %v406 = vunpack.c.l.b16 %v278
    %v407 = vunpack.c.h.b16 %v278
    %v408 = vunpack.c.l.b16 %v279
    %v409 = vunpack.c.h.b16 %v279
    %v410 = vunpack.c.l.b16 %v280
    %v411 = vunpack.c.h.b16 %v280
    %v412 = vunpack.c.l.b16 %v281
    %v413 = vunpack.c.h.b16 %v281
    %v414 = vunpack.c.l.b16 %v282
    %v415 = vunpack.c.h.b16 %v282
    %v416 = vunpack.c.l.b16 %v283
    %v417 = vunpack.c.h.b16 %v283
    %v418 = vunpack.c.l.b16 %v284
    %v419 = vunpack.c.h.b16 %v284
    %v420 = vunpack.c.l.b16 %v285
    %v421 = vunpack.c.h.b16 %v285
    %v422 = vunpack.c.l.b16 %v286
    %v423 = vunpack.c.h.b16 %v286
    %v424 = vunpack.c.l.b16 %v287
    %v425 = vunpack.c.h.b16 %v287
    %v426 = vunpack.c.l.b16 %v288
    %v427 = vunpack.c.h.b16 %v288
    %v428 = vunpack.c.l.b16 %v289
    %v429 = vunpack.c.h.b16 %v289
    %v430 = vunpack.c.l.b16 %v290
    %v431 = vunpack.c.h.b16 %v290
    %v432 = vunpack.c.l.b16 %v291
    %v433 = vunpack.c.h.b16 %v291
    %v434 = vunpack.c.l.b16 %v292
    %v435 = vunpack.c.h.b16 %v292
    %v436 = vunpack.c.l.b16 %v293
    %v437 = vunpack.c.h.b16 %v293
    %v438 = vunpack.c.l.b16 %v294
    %v439 = vunpack.c.h.b16 %v294
    %v440 = vunpack.c.l.b16 %v295
    %v441 = vunpack.c.h.b16 %v295
    %v442 = vunpack.c.l.b16 %v296
    %v443 = vunpack.c.h.b16 %v296
    %v444 = vunpack.c.l.b16 %v297
    %v445 = vunpack.c.h.b16 %v297
    %v446 = vunpack.c.l.b16 %v298
    %v447 = vunpack.c.h.b16 %v298
    %v448 = vunpack.c.l.b16 %v299
    %v449 = vunpack.c.h.b16 %v299
    %v450 = vunpack.c.l.b16 %v300
    %v451 = vunpack.c.h.b16 %v300
    %v452 = vunpack.c.l.b16 %v301
    %v453 = vunpack.c.h.b16 %v301
    %v454 = vunpack.c.l.b16 %v302
    %v455 = vunpack.c.h.b16 %v302
    %v456 = vunpack.c.l.b16 %v303
    %v457 = vunpack.c.h.b16 %v303
    %v458 = vunpack.c.l.b16 %v304
    %v459 = vunpack.c.h.b16 %v304
    %v460 = vunpack.c.l.b16 %v305
    %v461 = vunpack.c.h.b16 %v305
    %v462 = vunpack.c.l.b16 %v306
    %v463 = vunpack.c.h.b16 %v306
    %v464 = vunpack.c.l.b16 %v307
    %v465 = vunpack.c.h.b16 %v307
    %v466 = vunpack.c.l.b16 %v308
    %v467 = vunpack.c.h.b16 %v308
    %v468 = vunpack.c.l.b16 %v309
    %v469 = vunpack.c.h.b16 %v309
    %v470 = vunpack.c.l.b16 %v310
    %v471 = vunpack.c.h.b16 %v310
    %v472 = vunpack.c.l.b16 %v311
    %v473 = vunpack.c.h.b16 %v311
    %v474 = vunpack.c.l.b16 %v312
    %v475 = vunpack.c.h.b16 %v312
    %v476 = vunpack.c.l.b16 %v313
    %v477 = vunpack.c.h.b16 %v313
    %v478 = vunpack.c.l.b16 %v314
    %v479 = vunpack.c.h.b16 %v314
    %v480 = vunpack.c.l.b16 %v315
    %v481 = vunpack.c.h.b16 %v315
    %v482 = vunpack.c.l.b16 %v316
    %v483 = vunpack.c.h.b16 %v316
    %v484 = vunpack.c.l.b16 %v317
    %v485 = vunpack.c.h.b16 %v317
    %v486 = vpack.c.b16 %v390, %v374
    %v487 = vpack.c.b16 %v391, %v375
    %v488 = vpack.c.b16 %v392, %v376
    %v489 = vpack.c.b16 %v393, %v377
    %v490 = vpack.c.b16 %v394, %v378
    %v491 = vpack.c.b16 %v395, %v379
    %v492 = vpack.c.b16 %v396, %v380
    %v493 = vpack.c.b16 %v397, %v381
    %v494 = vpack.c.b16 %v398, %v382
    %v495 = vpack.c.b16 %v399, %v383
    %v496 = vpack.c.b16 %v400, %v384
    %v497 = vpack.c.b16 %v401, %v385
    %v498 = vpack.c.b16 %v402, %v386
    %v499 = vpack.c.b16 %v403, %v387
    %v500 = vpack.c.b16 %v404, %v388
    %v501 = vpack.c.b16 %v405, %v389
    %v502 = vpack.c.b16 %v422, %v406
    %v503 = vpack.c.b16 %v423, %v407
    %v504 = vpack.c.b16 %v424, %v408
    %v505 = vpack.c.b16 %v425, %v409
    %v506 = vpack.c.b16 %v426, %v410
    %v507 = vpack.c.b16 %v427, %v411
    %v508 = vpack.c.b16 %v428, %v412
    %v509 = vpack.c.b16 %v429, %v413
    %v510 = vpack.c.b16 %v430, %v414
    %v511 = vpack.c.b16 %v431, %v415
    %v512 = vpack.c.b16 %v432, %v416
    %v513 = vpack.c.b16 %v433, %v417
    %v514 = vpack.c.b16 %v434, %v418
    %v515 = vpack.c.b16 %v435, %v419
    %v516 = vpack.c.b16 %v436, %v420
    %v517 = vpack.c.b16 %v437, %v421
    %v518 = vpack.c.b16 %v454, %v438
    %v519 = vpack.c.b16 %v455, %v439
    %v520 = vpack.c.b16 %v456, %v440
    %v521 = vpack.c.b16 %v457, %v441
    %v522 = vpack.c.b16 %v458, %v442
    %v523 = vpack.c.b16 %v459, %v443
    %v524 = vpack.c.b16 %v460, %v444
    %v525 = vpack.c.b16 %v461, %v445
    %v526 = vpack.c.b16 %v462, %v446
    %v527 = vpack.c.b16 %v463, %v447
    %v528 = vpack.c.b16 %v464, %v448
    %v529 = vpack.c.b16 %v465, %v449
    %v530 = vpack.c.b16 %v466, %v450
    %v531 = vpack.c.b16 %v467, %v451
    %v532 = vpack.c.b16 %v468, %v452
    %v533 = vpack.c.b16 %v469, %v453
    %v534 = vpack.c.b16 %v470, %v470
    %v535 = vpack.c.b16 %v471, %v471
    %v536 = vpack.c.b16 %v472, %v472
    %v537 = vpack.c.b16 %v473, %v473
    %v538 = vpack.c.b16 %v474, %v474
    %v539 = vpack.c.b16 %v475, %v475
    %v540 = vpack.c.b16 %v476, %v476
    %v541 = vpack.c.b16 %v477, %v477
    %v542 = vpack.c.b16 %v478, %v478
    %v543 = vpack.c.b16 %v479, %v479
    %v544 = vpack.c.b16 %v480, %v480
    %v545 = vpack.c.b16 %v481, %v481
    %v546 = vpack.c.b16 %v482, %v482
    %v547 = vpack.c.b16 %v483, %v483
    %v548 = vpack.c.b16 %v484, %v484
    %v549 = vpack.c.b16 %v485, %v485
    %vm598 = vcmask 408576
    %v600 = vsel %vm598, %v260, 0
    %v603 = vsel %vm598, %v261, 0
    %vm605 = vcmask 1040384
    %v607 = vsel %vm605, %v534, 0
    %v610 = vsel %vm605, %v535, 0
    %v613 = vsel %vm605, %v536, 0
    %v616 = vsel %vm605, %v537, 0
    %v619 = vsel %vm605, %v538, 0
    %v622 = vsel %vm605, %v539, 0
    %v625 = vsel %vm605, %v540, 0
    %v628 = vsel %vm605, %v541, 0
    %v631 = vsel %vm605, %v542, 0
    %v634 = vsel %vm605, %v543, 0
    %v637 = vsel %vm605, %v544, 0
    %v640 = vsel %vm605, %v545, 0
    %v643 = vsel %vm605, %v546, 0
    %v646 = vsel %vm605, %v547, 0
    %v649 = vsel %vm605, %v548, 0
    %v652 = vsel %vm605, %v549, 0
    %654 = vmatprep.subr.bf16.mxu0 0
    %655 = vmatpush1.bf16.msra.mxu0 0
    %656 = vmatprep.subr.bf16.mxu0 0
    %657 = vmatpush1.bf16.msra.mxu0 0
    %658 = vmatprep.subr.bf16.mxu0 0
    %659 = vmatpush1.bf16.msra.mxu0 0
    %660 = vmatprep.subr.bf16.mxu0 0
    %661 = vmatpush1.bf16.msra.mxu0 0
    %662 = vmatprep.subr.bf16.mxu0 %v610
    %663 = vmatpush1.bf16.msra.mxu0 %v607
    %664 = vmatprep.subr.bf16.mxu0 %v519
    %665 = vmatpush1.bf16.msra.mxu0 %v518
    %666 = vmatprep.subr.bf16.mxu0 %v503
    %667 = vmatpush1.bf16.msra.mxu0 %v502
    %668 = vmatprep.subr.bf16.mxu0 %v487
    %669 = vmatpush1.bf16.msra.mxu0 %v486
    %670 = vmatprep.subr.bf16.mxu0 0
    %671 = vmatpush2.bf16.msra.mxu0 0
    %672 = vmatprep.subr.bf16.mxu0 0
    %673 = vmatpush2.bf16.msra.mxu0 0
    %674 = vmatprep.subr.bf16.mxu0 0
    %675 = vmatpush2.bf16.msra.mxu0 0
    %676 = vmatprep.subr.bf16.mxu0 0
    %677 = vmatpush2.bf16.msra.mxu0 0
    %678 = vmatprep.subr.bf16.mxu0 0
    %679 = vmatpush2.bf16.msra.mxu0 0
    %680 = vmatprep.subr.bf16.mxu0 0
    %681 = vmatpush2.bf16.msra.mxu0 0
    %682 = vmatprep.subr.bf16.mxu0 0
    %683 = vmatpush2.bf16.msra.mxu0 0
    %684 = vmatprep.subr.bf16.mxu0 0
    %685 = vmatpush2.bf16.msra.mxu0 0
    %686 = vmatprep.mubr.bf16.mxu0 0
    %687 = vmatmul.mubr.bf16.gmra.mxu0 %v600
    %v688 = vpop.f32.mrf.mxu0
    %v689 = vadd.f32 0.0, %v688
    %v690 = vpop.f32.mrf.mxu0
    %v691 = vadd.f32 0.0, %v690
    %v692 = vpop.f32.mrf.mxu0
    %v693 = vadd.f32 0.0, %v692
    %v694 = vpop.f32.mrf.mxu0
    %v695 = vadd.f32 0.0, %v694
    %696 = vmatprep.mubr.bf16.mxu0 0
    %697 = vmatmul.mubr.bf16.gmra.mxu0 %v603
    %v698 = vpop.f32.mrf.mxu0
    %v699 = vadd.f32 0.0, %v698
    %v700 = vpop.f32.mrf.mxu0
    %v701 = vadd.f32 0.0, %v700
    %v702 = vpop.f32.mrf.mxu0
    %v703 = vpop.f32.mrf.mxu0
    %704 = vdwg.mxu0
    %705 = vmatprep.subr.bf16.mxu0 0
    %706 = vmatpush1.bf16.msra.mxu0 0
    %707 = vmatprep.subr.bf16.mxu0 0
    %708 = vmatpush1.bf16.msra.mxu0 0
    %709 = vmatprep.subr.bf16.mxu0 0
    %710 = vmatpush1.bf16.msra.mxu0 0
    %711 = vmatprep.subr.bf16.mxu0 0
    %712 = vmatpush1.bf16.msra.mxu0 0
    %713 = vmatprep.subr.bf16.mxu0 %v616
    %714 = vmatpush1.bf16.msra.mxu0 %v613
    %715 = vmatprep.subr.bf16.mxu0 %v521
    %716 = vmatpush1.bf16.msra.mxu0 %v520
    %717 = vmatprep.subr.bf16.mxu0 %v505
    %718 = vmatpush1.bf16.msra.mxu0 %v504
    %719 = vmatprep.subr.bf16.mxu0 %v489
    %720 = vmatpush1.bf16.msra.mxu0 %v488
    %721 = vmatprep.subr.bf16.mxu0 0
    %722 = vmatpush2.bf16.msra.mxu0 0
    %723 = vmatprep.subr.bf16.mxu0 0
    %724 = vmatpush2.bf16.msra.mxu0 0
    %725 = vmatprep.subr.bf16.mxu0 0
    %726 = vmatpush2.bf16.msra.mxu0 0
    %727 = vmatprep.subr.bf16.mxu0 0
    %728 = vmatpush2.bf16.msra.mxu0 0
    %729 = vmatprep.subr.bf16.mxu0 0
    %730 = vmatpush2.bf16.msra.mxu0 0
    %731 = vmatprep.subr.bf16.mxu0 0
    %732 = vmatpush2.bf16.msra.mxu0 0
    %733 = vmatprep.subr.bf16.mxu0 0
    %734 = vmatpush2.bf16.msra.mxu0 0
    %735 = vmatprep.subr.bf16.mxu0 0
    %736 = vmatpush2.bf16.msra.mxu0 0
    %737 = vmatprep.mubr.bf16.mxu0 0
    %738 = vmatmul.mubr.bf16.gmra.mxu0 %v600
    %v739 = vpop.f32.mrf.mxu0
    %v740 = vadd.f32 0.0, %v739
    %v741 = vpop.f32.mrf.mxu0
    %v742 = vadd.f32 0.0, %v741
    %v743 = vpop.f32.mrf.mxu0
    %v744 = vadd.f32 0.0, %v743
    %v745 = vpop.f32.mrf.mxu0
    %v746 = vadd.f32 0.0, %v745
    %747 = vmatprep.mubr.bf16.mxu0 0
    %748 = vmatmul.mubr.bf16.gmra.mxu0 %v603
    %v749 = vpop.f32.mrf.mxu0
    %v750 = vadd.f32 0.0, %v749
    %v751 = vpop.f32.mrf.mxu0
    %v752 = vadd.f32 0.0, %v751
    %v753 = vpop.f32.mrf.mxu0
    %v754 = vpop.f32.mrf.mxu0
    %755 = vdwg.mxu0
    %756 = vmatprep.subr.bf16.mxu0 0
    %757 = vmatpush1.bf16.msra.mxu0 0
    %758 = vmatprep.subr.bf16.mxu0 0
    %759 = vmatpush1.bf16.msra.mxu0 0
    %760 = vmatprep.subr.bf16.mxu0 0
    %761 = vmatpush1.bf16.msra.mxu0 0
    %762 = vmatprep.subr.bf16.mxu0 0
    %763 = vmatpush1.bf16.msra.mxu0 0
    %764 = vmatprep.subr.bf16.mxu0 %v622
    %765 = vmatpush1.bf16.msra.mxu0 %v619
    %766 = vmatprep.subr.bf16.mxu0 %v523
    %767 = vmatpush1.bf16.msra.mxu0 %v522
    %768 = vmatprep.subr.bf16.mxu0 %v507
    %769 = vmatpush1.bf16.msra.mxu0 %v506
    %770 = vmatprep.subr.bf16.mxu0 %v491
    %771 = vmatpush1.bf16.msra.mxu0 %v490
    %772 = vmatprep.subr.bf16.mxu0 0
    %773 = vmatpush2.bf16.msra.mxu0 0
    %774 = vmatprep.subr.bf16.mxu0 0
    %775 = vmatpush2.bf16.msra.mxu0 0
    %776 = vmatprep.subr.bf16.mxu0 0
    %777 = vmatpush2.bf16.msra.mxu0 0
    %778 = vmatprep.subr.bf16.mxu0 0
    %779 = vmatpush2.bf16.msra.mxu0 0
    %780 = vmatprep.subr.bf16.mxu0 0
    %781 = vmatpush2.bf16.msra.mxu0 0
    %782 = vmatprep.subr.bf16.mxu0 0
    %783 = vmatpush2.bf16.msra.mxu0 0
    %784 = vmatprep.subr.bf16.mxu0 0
    %785 = vmatpush2.bf16.msra.mxu0 0
    %786 = vmatprep.subr.bf16.mxu0 0
    %787 = vmatpush2.bf16.msra.mxu0 0
    %788 = vmatprep.mubr.bf16.mxu0 0
    %789 = vmatmul.mubr.bf16.gmra.mxu0 %v600
    %v790 = vpop.f32.mrf.mxu0
    %v791 = vadd.f32 0.0, %v790
    %v792 = vpop.f32.mrf.mxu0
    %v793 = vadd.f32 0.0, %v792
    %v794 = vpop.f32.mrf.mxu0
    %v795 = vadd.f32 0.0, %v794
    %v796 = vpop.f32.mrf.mxu0
    %v797 = vadd.f32 0.0, %v796
    %798 = vmatprep.mubr.bf16.mxu0 0
    %799 = vmatmul.mubr.bf16.gmra.mxu0 %v603
    %v800 = vpop.f32.mrf.mxu0
    %v801 = vadd.f32 0.0, %v800
    %v802 = vpop.f32.mrf.mxu0
    %v803 = vadd.f32 0.0, %v802
    %v804 = vpop.f32.mrf.mxu0
    %v805 = vpop.f32.mrf.mxu0
    %806 = vdwg.mxu0
    %807 = vmatprep.subr.bf16.mxu0 0
    %808 = vmatpush1.bf16.msra.mxu0 0
    %809 = vmatprep.subr.bf16.mxu0 0
    %810 = vmatpush1.bf16.msra.mxu0 0
    %811 = vmatprep.subr.bf16.mxu0 0
    %812 = vmatpush1.bf16.msra.mxu0 0
    %813 = vmatprep.subr.bf16.mxu0 0
    %814 = vmatpush1.bf16.msra.mxu0 0
    %815 = vmatprep.subr.bf16.mxu0 %v628
    %816 = vmatpush1.bf16.msra.mxu0 %v625
    %817 = vmatprep.subr.bf16.mxu0 %v525
    %818 = vmatpush1.bf16.msra.mxu0 %v524
    %819 = vmatprep.subr.bf16.mxu0 %v509
    %820 = vmatpush1.bf16.msra.mxu0 %v508
    %821 = vmatprep.subr.bf16.mxu0 %v493
    %822 = vmatpush1.bf16.msra.mxu0 %v492
    %823 = vmatprep.subr.bf16.mxu0 0
    %824 = vmatpush2.bf16.msra.mxu0 0
    %825 = vmatprep.subr.bf16.mxu0 0
    %826 = vmatpush2.bf16.msra.mxu0 0
    %827 = vmatprep.subr.bf16.mxu0 0
    %828 = vmatpush2.bf16.msra.mxu0 0
    %829 = vmatprep.subr.bf16.mxu0 0
    %830 = vmatpush2.bf16.msra.mxu0 0
    %831 = vmatprep.subr.bf16.mxu0 0
    %832 = vmatpush2.bf16.msra.mxu0 0
    %833 = vmatprep.subr.bf16.mxu0 0
    %834 = vmatpush2.bf16.msra.mxu0 0
    %835 = vmatprep.subr.bf16.mxu0 0
    %836 = vmatpush2.bf16.msra.mxu0 0
    %837 = vmatprep.subr.bf16.mxu0 0
    %838 = vmatpush2.bf16.msra.mxu0 0
    %839 = vmatprep.mubr.bf16.mxu0 0
    %840 = vmatmul.mubr.bf16.gmra.mxu0 %v600
    %v841 = vpop.f32.mrf.mxu0
    %v842 = vadd.f32 0.0, %v841
    %v843 = vpop.f32.mrf.mxu0
    %v844 = vadd.f32 0.0, %v843
    %v845 = vpop.f32.mrf.mxu0
    %v846 = vadd.f32 0.0, %v845
    %v847 = vpop.f32.mrf.mxu0
    %v848 = vadd.f32 0.0, %v847
    %849 = vmatprep.mubr.bf16.mxu0 0
    %850 = vmatmul.mubr.bf16.gmra.mxu0 %v603
    %v851 = vpop.f32.mrf.mxu0
    %v852 = vadd.f32 0.0, %v851
    %v853 = vpop.f32.mrf.mxu0
    %v854 = vadd.f32 0.0, %v853
    %v855 = vpop.f32.mrf.mxu0
    %v856 = vpop.f32.mrf.mxu0
    %857 = vdwg.mxu0
    %858 = vmatprep.subr.bf16.mxu0 0
    %859 = vmatpush1.bf16.msra.mxu0 0
    %860 = vmatprep.subr.bf16.mxu0 0
    %861 = vmatpush1.bf16.msra.mxu0 0
    %862 = vmatprep.subr.bf16.mxu0 0
    %863 = vmatpush1.bf16.msra.mxu0 0
    %864 = vmatprep.subr.bf16.mxu0 0
    %865 = vmatpush1.bf16.msra.mxu0 0
    %866 = vmatprep.subr.bf16.mxu0 %v634
    %867 = vmatpush1.bf16.msra.mxu0 %v631
    %868 = vmatprep.subr.bf16.mxu0 %v527
    %869 = vmatpush1.bf16.msra.mxu0 %v526
    %870 = vmatprep.subr.bf16.mxu0 %v511
    %871 = vmatpush1.bf16.msra.mxu0 %v510
    %872 = vmatprep.subr.bf16.mxu0 %v495
    %873 = vmatpush1.bf16.msra.mxu0 %v494
    %874 = vmatprep.subr.bf16.mxu0 0
    %875 = vmatpush2.bf16.msra.mxu0 0
    %876 = vmatprep.subr.bf16.mxu0 0
    %877 = vmatpush2.bf16.msra.mxu0 0
    %878 = vmatprep.subr.bf16.mxu0 0
    %879 = vmatpush2.bf16.msra.mxu0 0
    %880 = vmatprep.subr.bf16.mxu0 0
    %881 = vmatpush2.bf16.msra.mxu0 0
    %882 = vmatprep.subr.bf16.mxu0 0
    %883 = vmatpush2.bf16.msra.mxu0 0
    %884 = vmatprep.subr.bf16.mxu0 0
    %885 = vmatpush2.bf16.msra.mxu0 0
    %886 = vmatprep.subr.bf16.mxu0 0
    %887 = vmatpush2.bf16.msra.mxu0 0
    %888 = vmatprep.subr.bf16.mxu0 0
    %889 = vmatpush2.bf16.msra.mxu0 0
    %890 = vmatprep.mubr.bf16.mxu0 0
    %891 = vmatmul.mubr.bf16.gmra.mxu0 %v600
    %v892 = vpop.f32.mrf.mxu0
    %v893 = vadd.f32 0.0, %v892
    %v894 = vpop.f32.mrf.mxu0
    %v895 = vadd.f32 0.0, %v894
    %v896 = vpop.f32.mrf.mxu0
    %v897 = vadd.f32 0.0, %v896
    %v898 = vpop.f32.mrf.mxu0
    %v899 = vadd.f32 0.0, %v898
    %900 = vmatprep.mubr.bf16.mxu0 0
    %901 = vmatmul.mubr.bf16.gmra.mxu0 %v603
    %v902 = vpop.f32.mrf.mxu0
    %v903 = vadd.f32 0.0, %v902
    %v904 = vpop.f32.mrf.mxu0
    %v905 = vadd.f32 0.0, %v904
    %v906 = vpop.f32.mrf.mxu0
    %v907 = vpop.f32.mrf.mxu0
    %908 = vdwg.mxu0
    %909 = vmatprep.subr.bf16.mxu0 0
    %910 = vmatpush1.bf16.msra.mxu0 0
    %911 = vmatprep.subr.bf16.mxu0 0
    %912 = vmatpush1.bf16.msra.mxu0 0
    %913 = vmatprep.subr.bf16.mxu0 0
    %914 = vmatpush1.bf16.msra.mxu0 0
    %915 = vmatprep.subr.bf16.mxu0 0
    %916 = vmatpush1.bf16.msra.mxu0 0
    %917 = vmatprep.subr.bf16.mxu0 %v640
    %918 = vmatpush1.bf16.msra.mxu0 %v637
    %919 = vmatprep.subr.bf16.mxu0 %v529
    %920 = vmatpush1.bf16.msra.mxu0 %v528
    %921 = vmatprep.subr.bf16.mxu0 %v513
    %922 = vmatpush1.bf16.msra.mxu0 %v512
    %923 = vmatprep.subr.bf16.mxu0 %v497
    %924 = vmatpush1.bf16.msra.mxu0 %v496
    %925 = vmatprep.subr.bf16.mxu0 0
    %926 = vmatpush2.bf16.msra.mxu0 0
    %927 = vmatprep.subr.bf16.mxu0 0
    %928 = vmatpush2.bf16.msra.mxu0 0
    %929 = vmatprep.subr.bf16.mxu0 0
    %930 = vmatpush2.bf16.msra.mxu0 0
    %931 = vmatprep.subr.bf16.mxu0 0
    %932 = vmatpush2.bf16.msra.mxu0 0
    %933 = vmatprep.subr.bf16.mxu0 0
    %934 = vmatpush2.bf16.msra.mxu0 0
    %935 = vmatprep.subr.bf16.mxu0 0
    %936 = vmatpush2.bf16.msra.mxu0 0
    %937 = vmatprep.subr.bf16.mxu0 0
    %938 = vmatpush2.bf16.msra.mxu0 0
    %939 = vmatprep.subr.bf16.mxu0 0
    %940 = vmatpush2.bf16.msra.mxu0 0
    %941 = vmatprep.mubr.bf16.mxu0 0
    %942 = vmatmul.mubr.bf16.gmra.mxu0 %v600
    %v943 = vpop.f32.mrf.mxu0
    %v944 = vadd.f32 0.0, %v943
    %v945 = vpop.f32.mrf.mxu0
    %v946 = vadd.f32 0.0, %v945
    %v947 = vpop.f32.mrf.mxu0
    %v948 = vadd.f32 0.0, %v947
    %v949 = vpop.f32.mrf.mxu0
    %v950 = vadd.f32 0.0, %v949
    %951 = vmatprep.mubr.bf16.mxu0 0
    %952 = vmatmul.mubr.bf16.gmra.mxu0 %v603
    %v953 = vpop.f32.mrf.mxu0
    %v954 = vadd.f32 0.0, %v953
    %v955 = vpop.f32.mrf.mxu0
    %v956 = vadd.f32 0.0, %v955
    %v957 = vpop.f32.mrf.mxu0
    %v958 = vpop.f32.mrf.mxu0
    %959 = vdwg.mxu0
    %960 = vmatprep.subr.bf16.mxu0 0
    %961 = vmatpush1.bf16.msra.mxu0 0
    %962 = vmatprep.subr.bf16.mxu0 0
    %963 = vmatpush1.bf16.msra.mxu0 0
    %964 = vmatprep.subr.bf16.mxu0 0
    %965 = vmatpush1.bf16.msra.mxu0 0
    %966 = vmatprep.subr.bf16.mxu0 0
    %967 = vmatpush1.bf16.msra.mxu0 0
    %968 = vmatprep.subr.bf16.mxu0 %v646
    %969 = vmatpush1.bf16.msra.mxu0 %v643
    %970 = vmatprep.subr.bf16.mxu0 %v531
    %971 = vmatpush1.bf16.msra.mxu0 %v530
    %972 = vmatprep.subr.bf16.mxu0 %v515
    %973 = vmatpush1.bf16.msra.mxu0 %v514
    %974 = vmatprep.subr.bf16.mxu0 %v499
    %975 = vmatpush1.bf16.msra.mxu0 %v498
    %976 = vmatprep.subr.bf16.mxu0 0
    %977 = vmatpush2.bf16.msra.mxu0 0
    %978 = vmatprep.subr.bf16.mxu0 0
    %979 = vmatpush2.bf16.msra.mxu0 0
    %980 = vmatprep.subr.bf16.mxu0 0
    %981 = vmatpush2.bf16.msra.mxu0 0
    %982 = vmatprep.subr.bf16.mxu0 0
    %983 = vmatpush2.bf16.msra.mxu0 0
    %984 = vmatprep.subr.bf16.mxu0 0
    %985 = vmatpush2.bf16.msra.mxu0 0
    %986 = vmatprep.subr.bf16.mxu0 0
    %987 = vmatpush2.bf16.msra.mxu0 0
    %988 = vmatprep.subr.bf16.mxu0 0
    %989 = vmatpush2.bf16.msra.mxu0 0
    %990 = vmatprep.subr.bf16.mxu0 0
    %991 = vmatpush2.bf16.msra.mxu0 0
    %992 = vmatprep.mubr.bf16.mxu0 0
    %993 = vmatmul.mubr.bf16.gmra.mxu0 %v600
    %v994 = vpop.f32.mrf.mxu0
    %v995 = vadd.f32 0.0, %v994
    %v996 = vpop.f32.mrf.mxu0
    %v997 = vadd.f32 0.0, %v996
    %v998 = vpop.f32.mrf.mxu0
    %v999 = vadd.f32 0.0, %v998
    %v1000 = vpop.f32.mrf.mxu0
    %v1001 = vadd.f32 0.0, %v1000
    %1002 = vmatprep.mubr.bf16.mxu0 0
    %1003 = vmatmul.mubr.bf16.gmra.mxu0 %v603
    %v1004 = vpop.f32.mrf.mxu0
    %v1005 = vadd.f32 0.0, %v1004
    %v1006 = vpop.f32.mrf.mxu0
    %v1007 = vadd.f32 0.0, %v1006
    %v1008 = vpop.f32.mrf.mxu0
    %v1009 = vpop.f32.mrf.mxu0
    %1010 = vdwg.mxu0
    %1011 = vmatprep.subr.bf16.mxu0 0
    %1012 = vmatpush1.bf16.msra.mxu0 0
    %1013 = vmatprep.subr.bf16.mxu0 0
    %1014 = vmatpush1.bf16.msra.mxu0 0
    %1015 = vmatprep.subr.bf16.mxu0 0
    %1016 = vmatpush1.bf16.msra.mxu0 0
    %1017 = vmatprep.subr.bf16.mxu0 0
    %1018 = vmatpush1.bf16.msra.mxu0 0
    %1019 = vmatprep.subr.bf16.mxu0 %v652
    %1020 = vmatpush1.bf16.msra.mxu0 %v649
    %1021 = vmatprep.subr.bf16.mxu0 %v533
    %1022 = vmatpush1.bf16.msra.mxu0 %v532
    %1023 = vmatprep.subr.bf16.mxu0 %v517
    %1024 = vmatpush1.bf16.msra.mxu0 %v516
    %1025 = vmatprep.subr.bf16.mxu0 %v501
    %1026 = vmatpush1.bf16.msra.mxu0 %v500
    %1027 = vmatprep.subr.bf16.mxu0 0
    %1028 = vmatpush2.bf16.msra.mxu0 0
    %1029 = vmatprep.subr.bf16.mxu0 0
    %1030 = vmatpush2.bf16.msra.mxu0 0
    %1031 = vmatprep.subr.bf16.mxu0 0
    %1032 = vmatpush2.bf16.msra.mxu0 0
    %1033 = vmatprep.subr.bf16.mxu0 0
    %1034 = vmatpush2.bf16.msra.mxu0 0
    %1035 = vmatprep.subr.bf16.mxu0 0
    %1036 = vmatpush2.bf16.msra.mxu0 0
    %1037 = vmatprep.subr.bf16.mxu0 0
    %1038 = vmatpush2.bf16.msra.mxu0 0
    %1039 = vmatprep.subr.bf16.mxu0 0
    %1040 = vmatpush2.bf16.msra.mxu0 0
    %1041 = vmatprep.subr.bf16.mxu0 0
    %1042 = vmatpush2.bf16.msra.mxu0 0
    %1043 = vmatprep.mubr.bf16.mxu0 0
    %1044 = vmatmul.mubr.bf16.gmra.mxu0 %v600
    %v1045 = vpop.f32.mrf.mxu0
    %v1046 = vadd.f32 0.0, %v1045
    %v1047 = vpop.f32.mrf.mxu0
    %v1048 = vadd.f32 0.0, %v1047
    %v1049 = vpop.f32.mrf.mxu0
    %v1050 = vadd.f32 0.0, %v1049
    %v1051 = vpop.f32.mrf.mxu0
    %v1052 = vadd.f32 0.0, %v1051
    %1053 = vmatprep.mubr.bf16.mxu0 0
    %1054 = vmatmul.mubr.bf16.gmra.mxu0 %v603
    %v1055 = vpop.f32.mrf.mxu0
    %v1056 = vadd.f32 0.0, %v1055
    %v1057 = vpop.f32.mrf.mxu0
    %v1058 = vadd.f32 0.0, %v1057
    %v1059 = vpop.f32.mrf.mxu0
    %v1060 = vpop.f32.mrf.mxu0
    %1061 = vdwg.mxu0
    %v1062 = vlaneseq
    %v1063 = vshrl.u32 %v1062, 7
    %v1064 = vadd.s32 %v1063, 8
    %v1065 = vadd.s32 %v1063, 16
    %vm1066 = vcmask 1043456
    %v1067 = vsel %vm1066, %v689, 0.0
    %v1068 = vsel %vm1066, %v691, 0.0
    %v1069 = vadd.f32 %v1067, %v1068
    %v1070 = vsel %vm1066, %v740, 0.0
    %v1071 = vadd.f32 %v1069, %v1070
    %v1072 = vsel %vm1066, %v742, 0.0
    %v1073 = vadd.f32 %v1071, %v1072
    %v1074 = vsel %vm1066, %v791, 0.0
    %v1075 = vadd.f32 %v1073, %v1074
    %v1076 = vsel %vm1066, %v793, 0.0
    %v1077 = vadd.f32 %v1075, %v1076
    %v1078 = vsel %vm1066, %v842, 0.0
    %v1079 = vadd.f32 %v1077, %v1078
    %v1080 = vsel %vm1066, %v844, 0.0
    %v1081 = vadd.f32 %v1079, %v1080
    %v1082 = vsel %vm1066, %v893, 0.0
    %v1083 = vadd.f32 %v1081, %v1082
    %v1084 = vsel %vm1066, %v895, 0.0
    %v1085 = vadd.f32 %v1083, %v1084
    %v1086 = vsel %vm1066, %v944, 0.0
    %v1087 = vadd.f32 %v1085, %v1086
    %v1088 = vsel %vm1066, %v946, 0.0
    %v1089 = vadd.f32 %v1087, %v1088
    %v1090 = vsel %vm1066, %v995, 0.0
    %v1091 = vadd.f32 %v1089, %v1090
    %v1092 = vsel %vm1066, %v997, 0.0
    %v1093 = vadd.f32 %v1091, %v1092
    %v1094 = vsel %vm1066, %v1046, 0.0
    %v1095 = vadd.f32 %v1093, %v1094
    %v1096 = vsel %vm1066, %v1048, 0.0
    %v1097 = vadd.f32 %v1095, %v1096
    %1098 = vadd.xlane.f32.xlu0 %v1097
    %v1099 = vpop.xlane.xlu0 %1098
    %v1100 = vsel %vm1066, %v1099, 0.0
    %v1101 = vrot.slane %v1100, 4
    %v1102 = vadd.f32 %v1100, %v1101
    %v1103 = vrot.slane %v1102, 2
    %v1104 = vadd.f32 %v1102, %v1103
    %v1105 = vrot.slane %v1104, 1
    %v1106 = vadd.f32 %v1104, %v1105
    %v1107 = vmul.f32 %v689, %v689
    %v1108 = vmul.f32 %v691, %v691
    %v1109 = vmul.f32 %v740, %v740
    %v1110 = vmul.f32 %v742, %v742
    %v1111 = vmul.f32 %v791, %v791
    %v1112 = vmul.f32 %v793, %v793
    %v1113 = vmul.f32 %v842, %v842
    %v1114 = vmul.f32 %v844, %v844
    %v1115 = vmul.f32 %v893, %v893
    %v1116 = vmul.f32 %v895, %v895
    %v1117 = vmul.f32 %v944, %v944
    %v1118 = vmul.f32 %v946, %v946
    %v1119 = vmul.f32 %v995, %v995
    %v1120 = vmul.f32 %v997, %v997
    %v1121 = vmul.f32 %v1046, %v1046
    %v1122 = vmul.f32 %v1048, %v1048
    %v1123 = vsel %vm1066, %v1107, 0.0
    %v1124 = vsel %vm1066, %v1108, 0.0
    %v1125 = vadd.f32 %v1123, %v1124
    %v1126 = vsel %vm1066, %v1109, 0.0
    %v1127 = vadd.f32 %v1125, %v1126
    %v1128 = vsel %vm1066, %v1110, 0.0
    %v1129 = vadd.f32 %v1127, %v1128
    %v1130 = vsel %vm1066, %v1111, 0.0
    %v1131 = vadd.f32 %v1129, %v1130
    %v1132 = vsel %vm1066, %v1112, 0.0
    %v1133 = vadd.f32 %v1131, %v1132
    %v1134 = vsel %vm1066, %v1113, 0.0
    %v1135 = vadd.f32 %v1133, %v1134
    %v1136 = vsel %vm1066, %v1114, 0.0
    %v1137 = vadd.f32 %v1135, %v1136
    %v1138 = vsel %vm1066, %v1115, 0.0
    %v1139 = vadd.f32 %v1137, %v1138
    %v1140 = vsel %vm1066, %v1116, 0.0
    %v1141 = vadd.f32 %v1139, %v1140
    %v1142 = vsel %vm1066, %v1117, 0.0
    %v1143 = vadd.f32 %v1141, %v1142
    %v1144 = vsel %vm1066, %v1118, 0.0
    %v1145 = vadd.f32 %v1143, %v1144
    %v1146 = vsel %vm1066, %v1119, 0.0
    %v1147 = vadd.f32 %v1145, %v1146
    %v1148 = vsel %vm1066, %v1120, 0.0
    %v1149 = vadd.f32 %v1147, %v1148
    %v1150 = vsel %vm1066, %v1121, 0.0
    %v1151 = vadd.f32 %v1149, %v1150
    %v1152 = vsel %vm1066, %v1122, 0.0
    %v1153 = vadd.f32 %v1151, %v1152
    %1154 = vadd.xlane.f32.xlu0 %v1153
    %v1155 = vpop.xlane.xlu0 %1154
    %v1156 = vsel %vm1066, %v1155, 0.0
    %v1157 = vrot.slane %v1156, 4
    %v1158 = vadd.f32 %v1156, %v1157
    %v1159 = vrot.slane %v1158, 2
    %v1160 = vadd.f32 %v1158, %v1159
    %v1161 = vrot.slane %v1160, 1
    %v1162 = vadd.f32 %v1160, %v1161
    %v1163 = vmul.f32 %v1106, 0.000125
    %v1164 = vmul.f32 %v1162, 0.000125
    %v1165 = vmul.f32 %v1163, %v1163
    %v1166 = vsub.f32 %v1164, %v1165
    %s1167 = sld [smem:[#allocation12]]
    %v1168 = vadd.f32 %v1166, 1e-05
    %v1169 = vrsqrt.pop %v1168
    %v1170 = vstv %s1167
    %v1171 = vmul.f32 %v1170, %v1169
    %s1172 = sld [smem:[#allocation13]]
    %v1173 = vmul.f32 %v1163, %v1171
    %v1174 = vstv %s1172
    %v1175 = vsub.f32 %v1174, %v1173
    %vm1176 = vcmp.ge.s32.totalorder %v1063, 0
    %vm1177 = vcmp.ge.s32.totalorder %v1064, 0
    %vm1178 = vcmp.ge.s32.totalorder %v1065, 0
    %vm1179 = vcmp.lt.s32.totalorder %v1063, 4
    %vm1180 = vcmp.lt.s32.totalorder %v1064, 4
    %vm1181 = vcmp.lt.s32.totalorder %v1065, 4
    %vm1182 = vmand %vm1176, %vm1179
    %vm1183 = vmand %vm1177, %vm1180
    %vm1184 = vmand %vm1178, %vm1181
    %v1185 = vsel %vm1182, 1.0, 0.0
    %v1186 = vsel %vm1183, 1.0, 0.0
    %v1187 = vsel %vm1184, 1.0, 0.0
    %v1188 = vmul.f32 %v1185, %v1171
    %v1189 = vmul.f32 %v1186, %v1171
    %v1190 = vmul.f32 %v1187, %v1171
    %v1191 = vadd.f32 %v1188, 0.0
    %v1192 = vadd.f32 %v1189, 0.0
    %v1193 = vadd.f32 %v1190, 0.0
    %v1194 = vmul.f32 %v1185, %v1175
    %v1195 = vmul.f32 %v1186, %v1175
    %v1196 = vmul.f32 %v1187, %v1175
    %v1197 = vadd.f32 %v1194, 0.0
    %v1198 = vadd.f32 %v1195, 0.0
    %v1199 = vadd.f32 %v1196, 0.0
    %vm1200 = vcmask 1047556
    %v1201 = vsel %vm1200, %v689, 0.0
    %v1202 = vsel %vm1200, %v691, 0.0
    %v1203 = vadd.f32 %v1201, %v1202
    %v1204 = vsel %vm1200, %v740, 0.0
    %v1205 = vadd.f32 %v1203, %v1204
    %v1206 = vsel %vm1200, %v742, 0.0
    %v1207 = vadd.f32 %v1205, %v1206
    %v1208 = vsel %vm1200, %v791, 0.0
    %v1209 = vadd.f32 %v1207, %v1208
    %v1210 = vsel %vm1200, %v793, 0.0
    %v1211 = vadd.f32 %v1209, %v1210
    %v1212 = vsel %vm1200, %v842, 0.0
    %v1213 = vadd.f32 %v1211, %v1212
    %v1214 = vsel %vm1200, %v844, 0.0
    %v1215 = vadd.f32 %v1213, %v1214
    %v1216 = vsel %vm1200, %v893, 0.0
    %v1217 = vadd.f32 %v1215, %v1216
    %v1218 = vsel %vm1200, %v895, 0.0
    %v1219 = vadd.f32 %v1217, %v1218
    %v1220 = vsel %vm1200, %v944, 0.0
    %v1221 = vadd.f32 %v1219, %v1220
    %v1222 = vsel %vm1200, %v946, 0.0
    %v1223 = vadd.f32 %v1221, %v1222
    %v1224 = vsel %vm1200, %v995, 0.0
    %v1225 = vadd.f32 %v1223, %v1224
    %v1226 = vsel %vm1200, %v997, 0.0
    %v1227 = vadd.f32 %v1225, %v1226
    %v1228 = vsel %vm1200, %v1046, 0.0
    %v1229 = vadd.f32 %v1227, %v1228
    %v1230 = vsel %vm1200, %v1048, 0.0
    %v1231 = vadd.f32 %v1229, %v1230
    %1232 = vadd.xlane.f32.xlu0 %v1231
    %v1233 = vpop.xlane.xlu0 %1232
    %v1235 = vrot.slane %v1233, 4
    %v1237 = vsel %vm1066, %v1235, 0.0
    %v1238 = vrot.slane %v1237, 4
    %v1239 = vadd.f32 %v1237, %v1238
    %v1240 = vrot.slane %v1239, 2
    %v1241 = vadd.f32 %v1239, %v1240
    %v1242 = vrot.slane %v1241, 1
    %v1243 = vadd.f32 %v1241, %v1242
    %v1244 = vsel %vm1200, %v1107, 0.0
    %v1245 = vsel %vm1200, %v1108, 0.0
    %v1246 = vadd.f32 %v1244, %v1245
    %v1247 = vsel %vm1200, %v1109, 0.0
    %v1248 = vadd.f32 %v1246, %v1247
    %v1249 = vsel %vm1200, %v1110, 0.0
    %v1250 = vadd.f32 %v1248, %v1249
    %v1251 = vsel %vm1200, %v1111, 0.0
    %v1252 = vadd.f32 %v1250, %v1251
    %v1253 = vsel %vm1200, %v1112, 0.0
    %v1254 = vadd.f32 %v1252, %v1253
    %v1255 = vsel %vm1200, %v1113, 0.0
    %v1256 = vadd.f32 %v1254, %v1255
    %v1257 = vsel %vm1200, %v1114, 0.0
    %v1258 = vadd.f32 %v1256, %v1257
    %v1259 = vsel %vm1200, %v1115, 0.0
    %v1260 = vadd.f32 %v1258, %v1259
    %v1261 = vsel %vm1200, %v1116, 0.0
    %v1262 = vadd.f32 %v1260, %v1261
    %v1263 = vsel %vm1200, %v1117, 0.0
    %v1264 = vadd.f32 %v1262, %v1263
    %v1265 = vsel %vm1200, %v1118, 0.0
    %v1266 = vadd.f32 %v1264, %v1265
    %v1267 = vsel %vm1200, %v1119, 0.0
    %v1268 = vadd.f32 %v1266, %v1267
    %v1269 = vsel %vm1200, %v1120, 0.0
    %v1270 = vadd.f32 %v1268, %v1269
    %v1271 = vsel %vm1200, %v1121, 0.0
    %v1272 = vadd.f32 %v1270, %v1271
    %v1273 = vsel %vm1200, %v1122, 0.0
    %v1274 = vadd.f32 %v1272, %v1273
    %1275 = vadd.xlane.f32.xlu0 %v1274
    %v1276 = vpop.xlane.xlu0 %1275
    %v1278 = vrot.slane %v1276, 4
    %v1280 = vsel %vm1066, %v1278, 0.0
    %v1281 = vrot.slane %v1280, 4
    %v1282 = vadd.f32 %v1280, %v1281
    %v1283 = vrot.slane %v1282, 2
    %v1284 = vadd.f32 %v1282, %v1283
    %v1285 = vrot.slane %v1284, 1
    %v1286 = vadd.f32 %v1284, %v1285
    %v1287 = vmul.f32 %v1243, 0.000125
    %v1288 = vmul.f32 %v1286, 0.000125
    %v1289 = vmul.f32 %v1287, %v1287
    %v1290 = vsub.f32 %v1288, %v1289
    %s1291 = sld [smem:[#allocation12 + $0x1]]
    %v1292 = vadd.f32 %v1290, 1e-05
    %v1293 = vrsqrt.pop %v1292
    %v1294 = vstv %s1291
    %v1295 = vmul.f32 %v1294, %v1293
    %s1296 = sld [smem:[#allocation13 + $0x1]]
    %v1297 = vmul.f32 %v1287, %v1295
    %v1298 = vstv %s1296
    %v1299 = vsub.f32 %v1298, %v1297
    %vm1300 = vcmp.ge.s32.totalorder %v1063, 4
    %vm1301 = vcmp.ge.s32.totalorder %v1064, 4
    %vm1302 = vcmp.ge.s32.totalorder %v1065, 4
    %vm1303 = vcmp.lt.s32.totalorder %v1063, 8
    %vm1304 = vcmp.lt.s32.totalorder %v1064, 8
    %vm1305 = vcmp.lt.s32.totalorder %v1065, 8
    %vm1306 = vmand %vm1300, %vm1303
    %vm1307 = vmand %vm1301, %vm1304
    %vm1308 = vmand %vm1302, %vm1305
    %v1309 = vsel %vm1306, 1.0, 0.0
    %v1310 = vsel %vm1307, 1.0, 0.0
    %v1311 = vsel %vm1308, 1.0, 0.0
    %v1312 = vmul.f32 %v1309, %v1295
    %v1313 = vmul.f32 %v1310, %v1295
    %v1314 = vmul.f32 %v1311, %v1295
    %v1315 = vadd.f32 %v1191, %v1312
    %v1316 = vadd.f32 %v1192, %v1313
    %v1317 = vadd.f32 %v1193, %v1314
    %v1318 = vmul.f32 %v1309, %v1299
    %v1319 = vmul.f32 %v1310, %v1299
    %v1320 = vmul.f32 %v1311, %v1299
    %v1321 = vadd.f32 %v1197, %v1318
    %v1322 = vadd.f32 %v1198, %v1319
    %v1323 = vadd.f32 %v1199, %v1320
    %v1324 = vsel %vm1066, %v693, 0.0
    %v1325 = vsel %vm1066, %v695, 0.0
    %v1326 = vadd.f32 %v1324, %v1325
    %v1327 = vsel %vm1066, %v744, 0.0
    %v1328 = vadd.f32 %v1326, %v1327
    %v1329 = vsel %vm1066, %v746, 0.0
    %v1330 = vadd.f32 %v1328, %v1329
    %v1331 = vsel %vm1066, %v795, 0.0
    %v1332 = vadd.f32 %v1330, %v1331
    %v1333 = vsel %vm1066, %v797, 0.0
    %v1334 = vadd.f32 %v1332, %v1333
    %v1335 = vsel %vm1066, %v846, 0.0
    %v1336 = vadd.f32 %v1334, %v1335
    %v1337 = vsel %vm1066, %v848, 0.0
    %v1338 = vadd.f32 %v1336, %v1337
    %v1339 = vsel %vm1066, %v897, 0.0
    %v1340 = vadd.f32 %v1338, %v1339
    %v1341 = vsel %vm1066, %v899, 0.0
    %v1342 = vadd.f32 %v1340, %v1341
    %v1343 = vsel %vm1066, %v948, 0.0
    %v1344 = vadd.f32 %v1342, %v1343
    %v1345 = vsel %vm1066, %v950, 0.0
    %v1346 = vadd.f32 %v1344, %v1345
    %v1347 = vsel %vm1066, %v999, 0.0
    %v1348 = vadd.f32 %v1346, %v1347
    %v1349 = vsel %vm1066, %v1001, 0.0
    %v1350 = vadd.f32 %v1348, %v1349
    %v1351 = vsel %vm1066, %v1050, 0.0
    %v1352 = vadd.f32 %v1350, %v1351
    %v1353 = vsel %vm1066, %v1052, 0.0
    %v1354 = vadd.f32 %v1352, %v1353
    %1355 = vadd.xlane.f32.xlu0 %v1354
    %v1356 = vpop.xlane.xlu0 %1355
    %v1357 = vsel %vm1066, %v1356, 0.0
    %v1358 = vrot.slane %v1357, 4
    %v1359 = vadd.f32 %v1357, %v1358
    %v1360 = vrot.slane %v1359, 2
    %v1361 = vadd.f32 %v1359, %v1360
    %v1362 = vrot.slane %v1361, 1
    %v1363 = vadd.f32 %v1361, %v1362
    %v1364 = vmul.f32 %v693, %v693
    %v1365 = vmul.f32 %v695, %v695
    %v1366 = vmul.f32 %v744, %v744
    %v1367 = vmul.f32 %v746, %v746
    %v1368 = vmul.f32 %v795, %v795
    %v1369 = vmul.f32 %v797, %v797
    %v1370 = vmul.f32 %v846, %v846
    %v1371 = vmul.f32 %v848, %v848
    %v1372 = vmul.f32 %v897, %v897
    %v1373 = vmul.f32 %v899, %v899
    %v1374 = vmul.f32 %v948, %v948
    %v1375 = vmul.f32 %v950, %v950
    %v1376 = vmul.f32 %v999, %v999
    %v1377 = vmul.f32 %v1001, %v1001
    %v1378 = vmul.f32 %v1050, %v1050
    %v1379 = vmul.f32 %v1052, %v1052
    %v1380 = vsel %vm1066, %v1364, 0.0
    %v1381 = vsel %vm1066, %v1365, 0.0
    %v1382 = vadd.f32 %v1380, %v1381
    %v1383 = vsel %vm1066, %v1366, 0.0
    %v1384 = vadd.f32 %v1382, %v1383
    %v1385 = vsel %vm1066, %v1367, 0.0
    %v1386 = vadd.f32 %v1384, %v1385
    %v1387 = vsel %vm1066, %v1368, 0.0
    %v1388 = vadd.f32 %v1386, %v1387
    %v1389 = vsel %vm1066, %v1369, 0.0
    %v1390 = vadd.f32 %v1388, %v1389
    %v1391 = vsel %vm1066, %v1370, 0.0
    %v1392 = vadd.f32 %v1390, %v1391
    %v1393 = vsel %vm1066, %v1371, 0.0
    %v1394 = vadd.f32 %v1392, %v1393
    %v1395 = vsel %vm1066, %v1372, 0.0
    %v1396 = vadd.f32 %v1394, %v1395
    %v1397 = vsel %vm1066, %v1373, 0.0
    %v1398 = vadd.f32 %v1396, %v1397
    %v1399 = vsel %vm1066, %v1374, 0.0
    %v1400 = vadd.f32 %v1398, %v1399
    %v1401 = vsel %vm1066, %v1375, 0.0
    %v1402 = vadd.f32 %v1400, %v1401
    %v1403 = vsel %vm1066, %v1376, 0.0
    %v1404 = vadd.f32 %v1402, %v1403
    %v1405 = vsel %vm1066, %v1377, 0.0
    %v1406 = vadd.f32 %v1404, %v1405
    %v1407 = vsel %vm1066, %v1378, 0.0
    %v1408 = vadd.f32 %v1406, %v1407
    %v1409 = vsel %vm1066, %v1379, 0.0
    %v1410 = vadd.f32 %v1408, %v1409
    %1411 = vadd.xlane.f32.xlu0 %v1410
    %v1412 = vpop.xlane.xlu0 %1411
    %v1413 = vsel %vm1066, %v1412, 0.0
    %v1414 = vrot.slane %v1413, 4
    %v1415 = vadd.f32 %v1413, %v1414
    %v1416 = vrot.slane %v1415, 2
    %v1417 = vadd.f32 %v1415, %v1416
    %v1418 = vrot.slane %v1417, 1
    %v1419 = vadd.f32 %v1417, %v1418
    %v1420 = vmul.f32 %v1363, 0.000125
    %v1421 = vmul.f32 %v1419, 0.000125
    %v1422 = vmul.f32 %v1420, %v1420
    %v1423 = vsub.f32 %v1421, %v1422
    %s1424 = sld [smem:[#allocation12 + $0x2]]
    %v1425 = vadd.f32 %v1423, 1e-05
    %v1426 = vrsqrt.pop %v1425
    %v1427 = vstv %s1424
    %v1428 = vmul.f32 %v1427, %v1426
    %s1429 = sld [smem:[#allocation13 + $0x2]]
    %v1430 = vmul.f32 %v1420, %v1428
    %v1431 = vstv %s1429
    %v1432 = vsub.f32 %v1431, %v1430
    %vm1433 = vcmp.ge.s32.totalorder %v1063, 8
    %vm1434 = vcmp.ge.s32.totalorder %v1064, 8
    %vm1435 = vcmp.ge.s32.totalorder %v1065, 8
    %vm1436 = vcmp.lt.s32.totalorder %v1063, 12
    %vm1437 = vcmp.lt.s32.totalorder %v1064, 12
    %vm1438 = vcmp.lt.s32.totalorder %v1065, 12
    %vm1439 = vmand %vm1433, %vm1436
    %vm1440 = vmand %vm1434, %vm1437
    %vm1441 = vmand %vm1435, %vm1438
    %v1442 = vsel %vm1439, 1.0, 0.0
    %v1443 = vsel %vm1440, 1.0, 0.0
    %v1444 = vsel %vm1441, 1.0, 0.0
    %v1445 = vmul.f32 %v1442, %v1428
    %v1446 = vmul.f32 %v1443, %v1428
    %v1447 = vmul.f32 %v1444, %v1428
    %v1448 = vadd.f32 %v1315, %v1445
    %v1449 = vadd.f32 %v1316, %v1446
    %v1450 = vadd.f32 %v1317, %v1447
    %v1451 = vmul.f32 %v1442, %v1432
    %v1452 = vmul.f32 %v1443, %v1432
    %v1453 = vmul.f32 %v1444, %v1432
    %v1454 = vadd.f32 %v1321, %v1451
    %v1455 = vadd.f32 %v1322, %v1452
    %v1456 = vadd.f32 %v1323, %v1453
    %v1457 = vsel %vm1200, %v693, 0.0
    %v1458 = vsel %vm1200, %v695, 0.0
    %v1459 = vadd.f32 %v1457, %v1458
    %v1460 = vsel %vm1200, %v744, 0.0
    %v1461 = vadd.f32 %v1459, %v1460
    %v1462 = vsel %vm1200, %v746, 0.0
    %v1463 = vadd.f32 %v1461, %v1462
    %v1464 = vsel %vm1200, %v795, 0.0
    %v1465 = vadd.f32 %v1463, %v1464
    %v1466 = vsel %vm1200, %v797, 0.0
    %v1467 = vadd.f32 %v1465, %v1466
    %v1468 = vsel %vm1200, %v846, 0.0
    %v1469 = vadd.f32 %v1467, %v1468
    %v1470 = vsel %vm1200, %v848, 0.0
    %v1471 = vadd.f32 %v1469, %v1470
    %v1472 = vsel %vm1200, %v897, 0.0
    %v1473 = vadd.f32 %v1471, %v1472
    %v1474 = vsel %vm1200, %v899, 0.0
    %v1475 = vadd.f32 %v1473, %v1474
    %v1476 = vsel %vm1200, %v948, 0.0
    %v1477 = vadd.f32 %v1475, %v1476
    %v1478 = vsel %vm1200, %v950, 0.0
    %v1479 = vadd.f32 %v1477, %v1478
    %v1480 = vsel %vm1200, %v999, 0.0
    %v1481 = vadd.f32 %v1479, %v1480
    %v1482 = vsel %vm1200, %v1001, 0.0
    %v1483 = vadd.f32 %v1481, %v1482
    %v1484 = vsel %vm1200, %v1050, 0.0
    %v1485 = vadd.f32 %v1483, %v1484
    %v1486 = vsel %vm1200, %v1052, 0.0
    %v1487 = vadd.f32 %v1485, %v1486
    %1488 = vadd.xlane.f32.xlu0 %v1487
    %v1489 = vpop.xlane.xlu0 %1488
    %v1491 = vrot.slane %v1489, 4
    %v1493 = vsel %vm1066, %v1491, 0.0
    %v1494 = vrot.slane %v1493, 4
    %v1495 = vadd.f32 %v1493, %v1494
    %v1496 = vrot.slane %v1495, 2
    %v1497 = vadd.f32 %v1495, %v1496
    %v1498 = vrot.slane %v1497, 1
    %v1499 = vadd.f32 %v1497, %v1498
    %v1500 = vsel %vm1200, %v1364, 0.0
    %v1501 = vsel %vm1200, %v1365, 0.0
    %v1502 = vadd.f32 %v1500, %v1501
    %v1503 = vsel %vm1200, %v1366, 0.0
    %v1504 = vadd.f32 %v1502, %v1503
    %v1505 = vsel %vm1200, %v1367, 0.0
    %v1506 = vadd.f32 %v1504, %v1505
    %v1507 = vsel %vm1200, %v1368, 0.0
    %v1508 = vadd.f32 %v1506, %v1507
    %v1509 = vsel %vm1200, %v1369, 0.0
    %v1510 = vadd.f32 %v1508, %v1509
    %v1511 = vsel %vm1200, %v1370, 0.0
    %v1512 = vadd.f32 %v1510, %v1511
    %v1513 = vsel %vm1200, %v1371, 0.0
    %v1514 = vadd.f32 %v1512, %v1513
    %v1515 = vsel %vm1200, %v1372, 0.0
    %v1516 = vadd.f32 %v1514, %v1515
    %v1517 = vsel %vm1200, %v1373, 0.0
    %v1518 = vadd.f32 %v1516, %v1517
    %v1519 = vsel %vm1200, %v1374, 0.0
    %v1520 = vadd.f32 %v1518, %v1519
    %v1521 = vsel %vm1200, %v1375, 0.0
    %v1522 = vadd.f32 %v1520, %v1521
    %v1523 = vsel %vm1200, %v1376, 0.0
    %v1524 = vadd.f32 %v1522, %v1523
    %v1525 = vsel %vm1200, %v1377, 0.0
    %v1526 = vadd.f32 %v1524, %v1525
    %v1527 = vsel %vm1200, %v1378, 0.0
    %v1528 = vadd.f32 %v1526, %v1527
    %v1529 = vsel %vm1200, %v1379, 0.0
    %v1530 = vadd.f32 %v1528, %v1529
    %1531 = vadd.xlane.f32.xlu0 %v1530
    %v1532 = vpop.xlane.xlu0 %1531
    %v1534 = vrot.slane %v1532, 4
    %v1536 = vsel %vm1066, %v1534, 0.0
    %v1537 = vrot.slane %v1536, 4
    %v1538 = vadd.f32 %v1536, %v1537
    %v1539 = vrot.slane %v1538, 2
    %v1540 = vadd.f32 %v1538, %v1539
    %v1541 = vrot.slane %v1540, 1
    %v1542 = vadd.f32 %v1540, %v1541
    %v1543 = vmul.f32 %v1499, 0.000125
    %v1544 = vmul.f32 %v1542, 0.000125
    %v1545 = vmul.f32 %v1543, %v1543
    %v1546 = vsub.f32 %v1544, %v1545
    %s1547 = sld [smem:[#allocation12 + $0x3]]
    %v1548 = vadd.f32 %v1546, 1e-05
    %v1549 = vrsqrt.pop %v1548
    %v1550 = vstv %s1547
    %v1551 = vmul.f32 %v1550, %v1549
    %s1552 = sld [smem:[#allocation13 + $0x3]]
    %v1553 = vmul.f32 %v1543, %v1551
    %v1554 = vstv %s1552
    %v1555 = vsub.f32 %v1554, %v1553
    %vm1556 = vcmp.ge.s32.totalorder %v1063, 12
    %vm1557 = vcmp.ge.s32.totalorder %v1064, 12
    %vm1558 = vcmp.ge.s32.totalorder %v1065, 12
    %vm1559 = vcmp.lt.s32.totalorder %v1063, 16
    %vm1560 = vcmp.lt.s32.totalorder %v1064, 16
    %vm1561 = vcmp.lt.s32.totalorder %v1065, 16
    %vm1562 = vmand %vm1556, %vm1559
    %vm1563 = vmand %vm1557, %vm1560
    %vm1564 = vmand %vm1558, %vm1561
    %v1565 = vsel %vm1562, 1.0, 0.0
    %v1566 = vsel %vm1563, 1.0, 0.0
    %v1567 = vsel %vm1564, 1.0, 0.0
    %v1568 = vmul.f32 %v1565, %v1551
    %v1569 = vmul.f32 %v1566, %v1551
    %v1570 = vmul.f32 %v1567, %v1551
    %v1571 = vadd.f32 %v1448, %v1568
    %v1572 = vadd.f32 %v1449, %v1569
    %v1573 = vadd.f32 %v1450, %v1570
    %v1574 = vmul.f32 %v1565, %v1555
    %v1575 = vmul.f32 %v1566, %v1555
    %v1576 = vmul.f32 %v1567, %v1555
    %v1577 = vadd.f32 %v1454, %v1574
    %v1578 = vadd.f32 %v1455, %v1575
    %v1579 = vadd.f32 %v1456, %v1576
    %v1580 = vsel %vm1066, %v699, 0.0
    %v1581 = vsel %vm1066, %v701, 0.0
    %v1582 = vadd.f32 %v1580, %v1581
    %v1583 = vsel %vm1066, %v750, 0.0
    %v1584 = vadd.f32 %v1582, %v1583
    %v1585 = vsel %vm1066, %v752, 0.0
    %v1586 = vadd.f32 %v1584, %v1585
    %v1587 = vsel %vm1066, %v801, 0.0
    %v1588 = vadd.f32 %v1586, %v1587
    %v1589 = vsel %vm1066, %v803, 0.0
    %v1590 = vadd.f32 %v1588, %v1589
    %v1591 = vsel %vm1066, %v852, 0.0
    %v1592 = vadd.f32 %v1590, %v1591
    %v1593 = vsel %vm1066, %v854, 0.0
    %v1594 = vadd.f32 %v1592, %v1593
    %v1595 = vsel %vm1066, %v903, 0.0
    %v1596 = vadd.f32 %v1594, %v1595
    %v1597 = vsel %vm1066, %v905, 0.0
    %v1598 = vadd.f32 %v1596, %v1597
    %v1599 = vsel %vm1066, %v954, 0.0
    %v1600 = vadd.f32 %v1598, %v1599
    %v1601 = vsel %vm1066, %v956, 0.0
    %v1602 = vadd.f32 %v1600, %v1601
    %v1603 = vsel %vm1066, %v1005, 0.0
    %v1604 = vadd.f32 %v1602, %v1603
    %v1605 = vsel %vm1066, %v1007, 0.0
    %v1606 = vadd.f32 %v1604, %v1605
    %v1607 = vsel %vm1066, %v1056, 0.0
    %v1608 = vadd.f32 %v1606, %v1607
    %v1609 = vsel %vm1066, %v1058, 0.0
    %v1610 = vadd.f32 %v1608, %v1609
    %1611 = vadd.xlane.f32.xlu0 %v1610
    %v1612 = vpop.xlane.xlu0 %1611
    %v1613 = vsel %vm1066, %v1612, 0.0
    %v1614 = vrot.slane %v1613, 4
    %v1615 = vadd.f32 %v1613, %v1614
    %v1616 = vrot.slane %v1615, 2
    %v1617 = vadd.f32 %v1615, %v1616
    %v1618 = vrot.slane %v1617, 1
    %v1619 = vadd.f32 %v1617, %v1618
    %v1620 = vmul.f32 %v699, %v699
    %v1621 = vmul.f32 %v701, %v701
    %v1622 = vmul.f32 %v750, %v750
    %v1623 = vmul.f32 %v752, %v752
    %v1624 = vmul.f32 %v801, %v801
    %v1625 = vmul.f32 %v803, %v803
    %v1626 = vmul.f32 %v852, %v852
    %v1627 = vmul.f32 %v854, %v854
    %v1628 = vmul.f32 %v903, %v903
    %v1629 = vmul.f32 %v905, %v905
    %v1630 = vmul.f32 %v954, %v954
    %v1631 = vmul.f32 %v956, %v956
    %v1632 = vmul.f32 %v1005, %v1005
    %v1633 = vmul.f32 %v1007, %v1007
    %v1634 = vmul.f32 %v1056, %v1056
    %v1635 = vmul.f32 %v1058, %v1058
    %v1636 = vsel %vm1066, %v1620, 0.0
    %v1637 = vsel %vm1066, %v1621, 0.0
    %v1638 = vadd.f32 %v1636, %v1637
    %v1639 = vsel %vm1066, %v1622, 0.0
    %v1640 = vadd.f32 %v1638, %v1639
    %v1641 = vsel %vm1066, %v1623, 0.0
    %v1642 = vadd.f32 %v1640, %v1641
    %v1643 = vsel %vm1066, %v1624, 0.0
    %v1644 = vadd.f32 %v1642, %v1643
    %v1645 = vsel %vm1066, %v1625, 0.0
    %v1646 = vadd.f32 %v1644, %v1645
    %v1647 = vsel %vm1066, %v1626, 0.0
    %v1648 = vadd.f32 %v1646, %v1647
    %v1649 = vsel %vm1066, %v1627, 0.0
    %v1650 = vadd.f32 %v1648, %v1649
    %v1651 = vsel %vm1066, %v1628, 0.0
    %v1652 = vadd.f32 %v1650, %v1651
    %v1653 = vsel %vm1066, %v1629, 0.0
    %v1654 = vadd.f32 %v1652, %v1653
    %v1655 = vsel %vm1066, %v1630, 0.0
    %v1656 = vadd.f32 %v1654, %v1655
    %v1657 = vsel %vm1066, %v1631, 0.0
    %v1658 = vadd.f32 %v1656, %v1657
    %v1659 = vsel %vm1066, %v1632, 0.0
    %v1660 = vadd.f32 %v1658, %v1659
    %v1661 = vsel %vm1066, %v1633, 0.0
    %v1662 = vadd.f32 %v1660, %v1661
    %v1663 = vsel %vm1066, %v1634, 0.0
    %v1664 = vadd.f32 %v1662, %v1663
    %v1665 = vsel %vm1066, %v1635, 0.0
    %v1666 = vadd.f32 %v1664, %v1665
    %1667 = vadd.xlane.f32.xlu0 %v1666
    %v1668 = vpop.xlane.xlu0 %1667
    %v1669 = vsel %vm1066, %v1668, 0.0
    %v1670 = vrot.slane %v1669, 4
    %v1671 = vadd.f32 %v1669, %v1670
    %v1672 = vrot.slane %v1671, 2
    %v1673 = vadd.f32 %v1671, %v1672
    %v1674 = vrot.slane %v1673, 1
    %v1675 = vadd.f32 %v1673, %v1674
    %v1676 = vmul.f32 %v1619, 0.000125
    %v1677 = vmul.f32 %v1675, 0.000125
    %v1678 = vmul.f32 %v1676, %v1676
    %v1679 = vsub.f32 %v1677, %v1678
    %s1680 = sld [smem:[#allocation12 + $0x4]]
    %v1681 = vadd.f32 %v1679, 1e-05
    %v1682 = vrsqrt.pop %v1681
    %v1683 = vstv %s1680
    %v1684 = vmul.f32 %v1683, %v1682
    %s1685 = sld [smem:[#allocation13 + $0x4]]
    %v1686 = vmul.f32 %v1676, %v1684
    %v1687 = vstv %s1685
    %v1688 = vsub.f32 %v1687, %v1686
    %vm1689 = vcmp.ge.s32.totalorder %v1063, 16
    %vm1690 = vcmp.ge.s32.totalorder %v1064, 16
    %vm1691 = vcmp.ge.s32.totalorder %v1065, 16
    %vm1692 = vcmp.lt.s32.totalorder %v1063, 20
    %vm1693 = vcmp.lt.s32.totalorder %v1064, 20
    %vm1694 = vcmp.lt.s32.totalorder %v1065, 20
    %vm1695 = vmand %vm1689, %vm1692
    %vm1696 = vmand %vm1690, %vm1693
    %vm1697 = vmand %vm1691, %vm1694
    %v1698 = vsel %vm1695, 1.0, 0.0
    %v1699 = vsel %vm1696, 1.0, 0.0
    %v1700 = vsel %vm1697, 1.0, 0.0
    %v1701 = vmul.f32 %v1698, %v1684
    %v1702 = vmul.f32 %v1699, %v1684
    %v1703 = vmul.f32 %v1700, %v1684
    %v1704 = vadd.f32 %v1571, %v1701
    %v1705 = vadd.f32 %v1572, %v1702
    %v1706 = vadd.f32 %v1573, %v1703
    %v1707 = vmul.f32 %v1698, %v1688
    %v1708 = vmul.f32 %v1699, %v1688
    %v1709 = vmul.f32 %v1700, %v1688
    %v1710 = vadd.f32 %v1577, %v1707
    %v1711 = vadd.f32 %v1578, %v1708
    %v1712 = vadd.f32 %v1579, %v1709
    %v1713 = vmul.f32 %v689, %v1704
    %v1714 = vmul.f32 %v691, %v1704
    %v1715 = vmul.f32 %v740, %v1704
    %v1716 = vmul.f32 %v742, %v1704
    %v1717 = vmul.f32 %v791, %v1704
    %v1718 = vmul.f32 %v793, %v1704
    %v1719 = vmul.f32 %v842, %v1704
    %v1720 = vmul.f32 %v844, %v1704
    %v1721 = vmul.f32 %v893, %v1704
    %v1722 = vmul.f32 %v895, %v1704
    %v1723 = vmul.f32 %v944, %v1704
    %v1724 = vmul.f32 %v946, %v1704
    %v1725 = vmul.f32 %v995, %v1704
    %v1726 = vmul.f32 %v997, %v1704
    %v1727 = vmul.f32 %v1046, %v1704
    %v1728 = vmul.f32 %v1048, %v1704
    %v1729 = vmul.f32 %v693, %v1705
    %v1730 = vmul.f32 %v695, %v1705
    %v1731 = vmul.f32 %v744, %v1705
    %v1732 = vmul.f32 %v746, %v1705
    %v1733 = vmul.f32 %v795, %v1705
    %v1734 = vmul.f32 %v797, %v1705
    %v1735 = vmul.f32 %v846, %v1705
    %v1736 = vmul.f32 %v848, %v1705
    %v1737 = vmul.f32 %v897, %v1705
    %v1738 = vmul.f32 %v899, %v1705
    %v1739 = vmul.f32 %v948, %v1705
    %v1740 = vmul.f32 %v950, %v1705
    %v1741 = vmul.f32 %v999, %v1705
    %v1742 = vmul.f32 %v1001, %v1705
    %v1743 = vmul.f32 %v1050, %v1705
    %v1744 = vmul.f32 %v1052, %v1705
    %v1745 = vmul.f32 %v699, %v1706
    %v1746 = vmul.f32 %v701, %v1706
    %v1747 = vmul.f32 %v750, %v1706
    %v1748 = vmul.f32 %v752, %v1706
    %v1749 = vmul.f32 %v801, %v1706
    %v1750 = vmul.f32 %v803, %v1706
    %v1751 = vmul.f32 %v852, %v1706
    %v1752 = vmul.f32 %v854, %v1706
    %v1753 = vmul.f32 %v903, %v1706
    %v1754 = vmul.f32 %v905, %v1706
    %v1755 = vmul.f32 %v954, %v1706
    %v1756 = vmul.f32 %v956, %v1706
    %v1757 = vmul.f32 %v1005, %v1706
    %v1758 = vmul.f32 %v1007, %v1706
    %v1759 = vmul.f32 %v1056, %v1706
    %v1760 = vmul.f32 %v1058, %v1706
    %v1761 = vadd.f32 %v1713, %v1710
    %v1762 = vadd.f32 %v1714, %v1710
    %v1763 = vadd.f32 %v1715, %v1710
    %v1764 = vadd.f32 %v1716, %v1710
    %v1765 = vadd.f32 %v1717, %v1710
    %v1766 = vadd.f32 %v1718, %v1710
    %v1767 = vadd.f32 %v1719, %v1710
    %v1768 = vadd.f32 %v1720, %v1710
    %v1769 = vadd.f32 %v1721, %v1710
    %v1770 = vadd.f32 %v1722, %v1710
    %v1771 = vadd.f32 %v1723, %v1710
    %v1772 = vadd.f32 %v1724, %v1710
    %v1773 = vadd.f32 %v1725, %v1710
    %v1774 = vadd.f32 %v1726, %v1710
    %v1775 = vadd.f32 %v1727, %v1710
    %v1776 = vadd.f32 %v1728, %v1710
    %v1777 = vadd.f32 %v1729, %v1711
    %v1778 = vadd.f32 %v1730, %v1711
    %v1779 = vadd.f32 %v1731, %v1711
    %v1780 = vadd.f32 %v1732, %v1711
    %v1781 = vadd.f32 %v1733, %v1711
    %v1782 = vadd.f32 %v1734, %v1711
    %v1783 = vadd.f32 %v1735, %v1711
    %v1784 = vadd.f32 %v1736, %v1711
    %v1785 = vadd.f32 %v1737, %v1711
    %v1786 = vadd.f32 %v1738, %v1711
    %v1787 = vadd.f32 %v1739, %v1711
    %v1788 = vadd.f32 %v1740, %v1711
    %v1789 = vadd.f32 %v1741, %v1711
    %v1790 = vadd.f32 %v1742, %v1711
    %v1791 = vadd.f32 %v1743, %v1711
    %v1792 = vadd.f32 %v1744, %v1711
    %v1793 = vadd.f32 %v1745, %v1712
    %v1794 = vadd.f32 %v1746, %v1712
    %v1795 = vadd.f32 %v1747, %v1712
    %v1796 = vadd.f32 %v1748, %v1712
    %v1797 = vadd.f32 %v1749, %v1712
    %v1798 = vadd.f32 %v1750, %v1712
    %v1799 = vadd.f32 %v1751, %v1712
    %v1800 = vadd.f32 %v1752, %v1712
    %v1801 = vadd.f32 %v1753, %v1712
    %v1802 = vadd.f32 %v1754, %v1712
    %v1803 = vadd.f32 %v1755, %v1712
    %v1804 = vadd.f32 %v1756, %v1712
    %v1805 = vadd.f32 %v1757, %v1712
    %v1806 = vadd.f32 %v1758, %v1712
    %v1807 = vadd.f32 %v1759, %v1712
    %v1808 = vadd.f32 %v1760, %v1712
    %s1809 = smul.u32 4, 256
    %s1810 = smul.u32 %s1809, 3
    %s1811 = sshll.u32 %s1810, 4
    %1812 = dma.done [#allocation5], %s1811
    %v1813 = vpack.c.bf16 %v1777, %v1761
    %v1814 = vpack.c.bf16 %v1778, %v1762
    %v1815 = vpack.c.bf16 %v1779, %v1763
    %v1816 = vpack.c.bf16 %v1780, %v1764
    %v1817 = vpack.c.bf16 %v1781, %v1765
    %v1818 = vpack.c.bf16 %v1782, %v1766
    %v1819 = vpack.c.bf16 %v1783, %v1767
    %v1820 = vpack.c.bf16 %v1784, %v1768
    %v1821 = vpack.c.bf16 %v1785, %v1769
    %v1822 = vpack.c.bf16 %v1786, %v1770
    %v1823 = vpack.c.bf16 %v1787, %v1771
    %v1824 = vpack.c.bf16 %v1788, %v1772
    %v1825 = vpack.c.bf16 %v1789, %v1773
    %v1826 = vpack.c.bf16 %v1790, %v1774
    %v1827 = vpack.c.bf16 %v1791, %v1775
    %v1828 = vpack.c.bf16 %v1792, %v1776
    %v1829 = vpack.c.bf16 %v1793, %v1793
    %v1830 = vpack.c.bf16 %v1794, %v1794
    %v1831 = vpack.c.bf16 %v1795, %v1795
    %v1832 = vpack.c.bf16 %v1796, %v1796
    %v1833 = vpack.c.bf16 %v1797, %v1797
    %v1834 = vpack.c.bf16 %v1798, %v1798
    %v1835 = vpack.c.bf16 %v1799, %v1799
    %v1836 = vpack.c.bf16 %v1800, %v1800
    %v1837 = vpack.c.bf16 %v1801, %v1801
    %v1838 = vpack.c.bf16 %v1802, %v1802
    %v1839 = vpack.c.bf16 %v1803, %v1803
    %v1840 = vpack.c.bf16 %v1804, %v1804
    %v1841 = vpack.c.bf16 %v1805, %v1805
    %v1842 = vpack.c.bf16 %v1806, %v1806
    %v1843 = vpack.c.bf16 %v1807, %v1807
    %v1844 = vpack.c.bf16 %v1808, %v1808
    %v1845 = vld [vmem:[#allocation2] sm:$0xff]
    %v1846 = vld [vmem:[#allocation2 + $0x8] sm:$0xf]
    %v1847 = vld [vmem:[#allocation2 + $0xc] sm:$0xff]
    %v1848 = vld [vmem:[#allocation2 + $0x14] sm:$0xf]
    %v1849 = vld [vmem:[#allocation2 + $0x18] sm:$0xff]
    %v1850 = vld [vmem:[#allocation2 + $0x20] sm:$0xf]
    %v1851 = vld [vmem:[#allocation2 + $0x24] sm:$0xff]
    %v1852 = vld [vmem:[#allocation2 + $0x2c] sm:$0xf]
    %v1853 = vld [vmem:[#allocation2 + $0x30] sm:$0xff]
    %v1854 = vld [vmem:[#allocation2 + $0x38] sm:$0xf]
    %v1855 = vld [vmem:[#allocation2 + $0x3c] sm:$0xff]
    %v1856 = vld [vmem:[#allocation2 + $0x44] sm:$0xf]
    %v1857 = vld [vmem:[#allocation2 + $0x48] sm:$0xff]
    %v1858 = vld [vmem:[#allocation2 + $0x50] sm:$0xf]
    %v1859 = vld [vmem:[#allocation2 + $0x54] sm:$0xff]
    %v1860 = vld [vmem:[#allocation2 + $0x5c] sm:$0xf]
    %v1861 = vld [vmem:[#allocation2 + $0x60] sm:$0xff]
    %v1862 = vld [vmem:[#allocation2 + $0x68] sm:$0xf]
    %v1863 = vld [vmem:[#allocation2 + $0x6c] sm:$0xff]
    %v1864 = vld [vmem:[#allocation2 + $0x74] sm:$0xf]
    %v1865 = vld [vmem:[#allocation2 + $0x78] sm:$0xff]
    %v1866 = vld [vmem:[#allocation2 + $0x80] sm:$0xf]
    %v1867 = vld [vmem:[#allocation2 + $0x84] sm:$0xff]
    %v1868 = vld [vmem:[#allocation2 + $0x8c] sm:$0xf]
    %v1869 = vld [vmem:[#allocation2 + $0x90] sm:$0xff]
    %v1870 = vld [vmem:[#allocation2 + $0x98] sm:$0xf]
    %v1871 = vld [vmem:[#allocation2 + $0x9c] sm:$0xff]
    %v1872 = vld [vmem:[#allocation2 + $0xa4] sm:$0xf]
    %v1873 = vld [vmem:[#allocation2 + $0xa8] sm:$0xff]
    %v1874 = vld [vmem:[#allocation2 + $0xb0] sm:$0xf]
    %v1875 = vld [vmem:[#allocation2 + $0xb4] sm:$0xff]
    %v1876 = vld [vmem:[#allocation2 + $0xbc] sm:$0xf]
    %v1877 = vld [vmem:[#allocation2 + $0xc0] sm:$0xff]
    %v1878 = vld [vmem:[#allocation2 + $0xc8] sm:$0xf]
    %v1879 = vld [vmem:[#allocation2 + $0xcc] sm:$0xff]
    %v1880 = vld [vmem:[#allocation2 + $0xd4] sm:$0xf]
    %v1881 = vld [vmem:[#allocation2 + $0xd8] sm:$0xff]
    %v1882 = vld [vmem:[#allocation2 + $0xe0] sm:$0xf]
    %v1883 = vld [vmem:[#allocation2 + $0xe4] sm:$0xff]
    %v1884 = vld [vmem:[#allocation2 + $0xec] sm:$0xf]
    %v1885 = vld [vmem:[#allocation2 + $0xf0] sm:$0xff]
    %v1886 = vld [vmem:[#allocation2 + $0xf8] sm:$0xf]
    %v1887 = vld [vmem:[#allocation2 + $0xfc] sm:$0xff]
    %v1888 = vld [vmem:[#allocation2 + $0x104] sm:$0xf]
    %v1889 = vld [vmem:[#allocation2 + $0x108] sm:$0xff]
    %v1890 = vld [vmem:[#allocation2 + $0x110] sm:$0xf]
    %v1891 = vld [vmem:[#allocation2 + $0x114] sm:$0xff]
    %v1892 = vld [vmem:[#allocation2 + $0x11c] sm:$0xf]
    %v1893 = vld [vmem:[#allocation2 + $0x120] sm:$0xff]
    %v1894 = vld [vmem:[#allocation2 + $0x128] sm:$0xf]
    %v1895 = vld [vmem:[#allocation2 + $0x12c] sm:$0xff]
    %v1896 = vld [vmem:[#allocation2 + $0x134] sm:$0xf]
    %v1897 = vld [vmem:[#allocation2 + $0x138] sm:$0xff]
    %v1898 = vld [vmem:[#allocation2 + $0x140] sm:$0xf]
    %v1899 = vld [vmem:[#allocation2 + $0x144] sm:$0xff]
    %v1900 = vld [vmem:[#allocation2 + $0x14c] sm:$0xf]
    %v1901 = vld [vmem:[#allocation2 + $0x150] sm:$0xff]
    %v1902 = vld [vmem:[#allocation2 + $0x158] sm:$0xf]
    %v1903 = vld [vmem:[#allocation2 + $0x15c] sm:$0xff]
    %v1904 = vld [vmem:[#allocation2 + $0x164] sm:$0xf]
    %v1905 = vld [vmem:[#allocation2 + $0x168] sm:$0xff]
    %v1906 = vld [vmem:[#allocation2 + $0x170] sm:$0xf]
    %v1907 = vld [vmem:[#allocation2 + $0x174] sm:$0xff]
    %v1908 = vld [vmem:[#allocation2 + $0x17c] sm:$0xf]
    %v1909 = vld [vmem:[#allocation2 + $0x180] sm:$0xff]
    %v1910 = vld [vmem:[#allocation2 + $0x188] sm:$0xf]
    %v1911 = vld [vmem:[#allocation2 + $0x18c] sm:$0xff]
    %v1912 = vld [vmem:[#allocation2 + $0x194] sm:$0xf]
    %v1913 = vld [vmem:[#allocation2 + $0x198] sm:$0xff]
    %v1914 = vld [vmem:[#allocation2 + $0x1a0] sm:$0xf]
    %v1915 = vld [vmem:[#allocation2 + $0x1a4] sm:$0xff]
    %v1916 = vld [vmem:[#allocation2 + $0x1ac] sm:$0xf]
    %v1917 = vld [vmem:[#allocation2 + $0x1b0] sm:$0xff]
    %v1918 = vld [vmem:[#allocation2 + $0x1b8] sm:$0xf]
    %v1919 = vld [vmem:[#allocation2 + $0x1bc] sm:$0xff]
    %v1920 = vld [vmem:[#allocation2 + $0x1c4] sm:$0xf]
    %v1921 = vld [vmem:[#allocation2 + $0x1c8] sm:$0xff]
    %v1922 = vld [vmem:[#allocation2 + $0x1d0] sm:$0xf]
    %v1923 = vld [vmem:[#allocation2 + $0x1d4] sm:$0xff]
    %v1924 = vld [vmem:[#allocation2 + $0x1dc] sm:$0xf]
    %v1925 = vld [vmem:[#allocation2 + $0x1e0] sm:$0xff]
    %v1926 = vld [vmem:[#allocation2 + $0x1e8] sm:$0xf]
    %v1927 = vld [vmem:[#allocation2 + $0x1ec] sm:$0xff]
    %v1928 = vld [vmem:[#allocation2 + $0x1f4] sm:$0xf]
    %v1929 = vld [vmem:[#allocation2 + $0x1f8] sm:$0xff]
    %v1930 = vld [vmem:[#allocation2 + $0x200] sm:$0xf]
    %v1931 = vld [vmem:[#allocation2 + $0x204] sm:$0xff]
    %v1932 = vld [vmem:[#allocation2 + $0x20c] sm:$0xf]
    %v1933 = vld [vmem:[#allocation2 + $0x210] sm:$0xff]
    %v1934 = vld [vmem:[#allocation2 + $0x218] sm:$0xf]
    %v1935 = vld [vmem:[#allocation2 + $0x21c] sm:$0xff]
    %v1936 = vld [vmem:[#allocation2 + $0x224] sm:$0xf]
    %v1937 = vld [vmem:[#allocation2 + $0x228] sm:$0xff]
    %v1938 = vld [vmem:[#allocation2 + $0x230] sm:$0xf]
    %v1939 = vld [vmem:[#allocation2 + $0x234] sm:$0xff]
    %v1940 = vld [vmem:[#allocation2 + $0x23c] sm:$0xf]
    %v1941 = vld [vmem:[#allocation2 + $0x240] sm:$0xff]
    %v1942 = vld [vmem:[#allocation2 + $0x248] sm:$0xf]
    %v1943 = vld [vmem:[#allocation2 + $0x24c] sm:$0xff]
    %v1944 = vld [vmem:[#allocation2 + $0x254] sm:$0xf]
    %v1945 = vld [vmem:[#allocation2 + $0x258] sm:$0xff]
    %v1946 = vld [vmem:[#allocation2 + $0x260] sm:$0xf]
    %v1947 = vld [vmem:[#allocation2 + $0x264] sm:$0xff]
    %v1948 = vld [vmem:[#allocation2 + $0x26c] sm:$0xf]
    %v1949 = vld [vmem:[#allocation2 + $0x270] sm:$0xff]
    %v1950 = vld [vmem:[#allocation2 + $0x278] sm:$0xf]
    %v1951 = vld [vmem:[#allocation2 + $0x27c] sm:$0xff]
    %v1952 = vld [vmem:[#allocation2 + $0x284] sm:$0xf]
    %v1953 = vld [vmem:[#allocation2 + $0x288] sm:$0xff]
    %v1954 = vld [vmem:[#allocation2 + $0x290] sm:$0xf]
    %v1955 = vld [vmem:[#allocation2 + $0x294] sm:$0xff]
    %v1956 = vld [vmem:[#allocation2 + $0x29c] sm:$0xf]
    %v1957 = vld [vmem:[#allocation2 + $0x2a0] sm:$0xff]
    %v1958 = vld [vmem:[#allocation2 + $0x2a8] sm:$0xf]
    %v1959 = vld [vmem:[#allocation2 + $0x2ac] sm:$0xff]
    %v1960 = vld [vmem:[#allocation2 + $0x2b4] sm:$0xf]
    %v1961 = vld [vmem:[#allocation2 + $0x2b8] sm:$0xff]
    %v1962 = vld [vmem:[#allocation2 + $0x2c0] sm:$0xf]
    %v1963 = vld [vmem:[#allocation2 + $0x2c4] sm:$0xff]
    %v1964 = vld [vmem:[#allocation2 + $0x2cc] sm:$0xf]
    %v1965 = vld [vmem:[#allocation2 + $0x2d0] sm:$0xff]
    %v1966 = vld [vmem:[#allocation2 + $0x2d8] sm:$0xf]
    %v1967 = vld [vmem:[#allocation2 + $0x2dc] sm:$0xff]
    %v1968 = vld [vmem:[#allocation2 + $0x2e4] sm:$0xf]
    %v1969 = vld [vmem:[#allocation2 + $0x2e8] sm:$0xff]
    %v1970 = vld [vmem:[#allocation2 + $0x2f0] sm:$0xf]
    %v1971 = vld [vmem:[#allocation2 + $0x2f4] sm:$0xff]
    %v1972 = vld [vmem:[#allocation2 + $0x2fc] sm:$0xf]
    %v1973 = vld [vmem:[#allocation2 + $0x300] sm:$0xff]
    %v1974 = vld [vmem:[#allocation2 + $0x308] sm:$0xf]
    %v1975 = vld [vmem:[#allocation2 + $0x30c] sm:$0xff]
    %v1976 = vld [vmem:[#allocation2 + $0x314] sm:$0xf]
    %v1977 = vld [vmem:[#allocation2 + $0x318] sm:$0xff]
    %v1978 = vld [vmem:[#allocation2 + $0x320] sm:$0xf]
    %v1979 = vld [vmem:[#allocation2 + $0x324] sm:$0xff]
    %v1980 = vld [vmem:[#allocation2 + $0x32c] sm:$0xf]
    %v1981 = vld [vmem:[#allocation2 + $0x330] sm:$0xff]
    %v1982 = vld [vmem:[#allocation2 + $0x338] sm:$0xf]
    %v1983 = vld [vmem:[#allocation2 + $0x33c] sm:$0xff]
    %v1984 = vld [vmem:[#allocation2 + $0x344] sm:$0xf]
    %v1985 = vld [vmem:[#allocation2 + $0x348] sm:$0xff]
    %v1986 = vld [vmem:[#allocation2 + $0x350] sm:$0xf]
    %v1987 = vld [vmem:[#allocation2 + $0x354] sm:$0xff]
    %v1988 = vld [vmem:[#allocation2 + $0x35c] sm:$0xf]
    %v1989 = vld [vmem:[#allocation2 + $0x360] sm:$0xff]
    %v1990 = vld [vmem:[#allocation2 + $0x368] sm:$0xf]
    %v1991 = vld [vmem:[#allocation2 + $0x36c] sm:$0xff]
    %v1992 = vld [vmem:[#allocation2 + $0x374] sm:$0xf]
    %v1993 = vld [vmem:[#allocation2 + $0x378] sm:$0xff]
    %v1994 = vld [vmem:[#allocation2 + $0x380] sm:$0xf]
    %v1995 = vld [vmem:[#allocation2 + $0x384] sm:$0xff]
    %v1996 = vld [vmem:[#allocation2 + $0x38c] sm:$0xf]
    %v1997 = vld [vmem:[#allocation2 + $0x390] sm:$0xff]
    %v1998 = vld [vmem:[#allocation2 + $0x398] sm:$0xf]
    %v1999 = vld [vmem:[#allocation2 + $0x39c] sm:$0xff]
    %v2000 = vld [vmem:[#allocation2 + $0x3a4] sm:$0xf]
    %v2001 = vld [vmem:[#allocation2 + $0x3a8] sm:$0xff]
    %v2002 = vld [vmem:[#allocation2 + $0x3b0] sm:$0xf]
    %v2003 = vld [vmem:[#allocation2 + $0x3b4] sm:$0xff]
    %v2004 = vld [vmem:[#allocation2 + $0x3bc] sm:$0xf]
    %v2005 = vld [vmem:[#allocation2 + $0x3c0] sm:$0xff]
    %v2006 = vld [vmem:[#allocation2 + $0x3c8] sm:$0xf]
    %v2007 = vld [vmem:[#allocation2 + $0x3cc] sm:$0xff]
    %v2008 = vld [vmem:[#allocation2 + $0x3d4] sm:$0xf]
    %v2009 = vld [vmem:[#allocation2 + $0x3d8] sm:$0xff]
    %v2010 = vld [vmem:[#allocation2 + $0x3e0] sm:$0xf]
    %v2011 = vld [vmem:[#allocation2 + $0x3e4] sm:$0xff]
    %v2012 = vld [vmem:[#allocation2 + $0x3ec] sm:$0xf]
    %v2013 = vld [vmem:[#allocation2 + $0x3f0] sm:$0xff]
    %v2014 = vld [vmem:[#allocation2 + $0x3f8] sm:$0xf]
    %v2015 = vld [vmem:[#allocation2 + $0x3fc] sm:$0xff]
    %v2016 = vld [vmem:[#allocation2 + $0x404] sm:$0xf]
    %v2017 = vld [vmem:[#allocation2 + $0x408] sm:$0xff]
    %v2018 = vld [vmem:[#allocation2 + $0x410] sm:$0xf]
    %v2019 = vld [vmem:[#allocation2 + $0x414] sm:$0xff]
    %v2020 = vld [vmem:[#allocation2 + $0x41c] sm:$0xf]
    %v2021 = vld [vmem:[#allocation2 + $0x420] sm:$0xff]
    %v2022 = vld [vmem:[#allocation2 + $0x428] sm:$0xf]
    %v2023 = vld [vmem:[#allocation2 + $0x42c] sm:$0xff]
    %v2024 = vld [vmem:[#allocation2 + $0x434] sm:$0xf]
    %v2025 = vld [vmem:[#allocation2 + $0x438] sm:$0xff]
    %v2026 = vld [vmem:[#allocation2 + $0x440] sm:$0xf]
    %v2027 = vld [vmem:[#allocation2 + $0x444] sm:$0xff]
    %v2028 = vld [vmem:[#allocation2 + $0x44c] sm:$0xf]
    %v2029 = vld [vmem:[#allocation2 + $0x450] sm:$0xff]
    %v2030 = vld [vmem:[#allocation2 + $0x458] sm:$0xf]
    %v2031 = vld [vmem:[#allocation2 + $0x45c] sm:$0xff]
    %v2032 = vld [vmem:[#allocation2 + $0x464] sm:$0xf]
    %v2033 = vld [vmem:[#allocation2 + $0x468] sm:$0xff]
    %v2034 = vld [vmem:[#allocation2 + $0x470] sm:$0xf]
    %v2035 = vld [vmem:[#allocation2 + $0x474] sm:$0xff]
    %v2036 = vld [vmem:[#allocation2 + $0x47c] sm:$0xf]
    %v2037 = vld [vmem:[#allocation2 + $0x480] sm:$0xff]
    %v2038 = vld [vmem:[#allocation2 + $0x488] sm:$0xf]
    %v2039 = vld [vmem:[#allocation2 + $0x48c] sm:$0xff]
    %v2040 = vld [vmem:[#allocation2 + $0x494] sm:$0xf]
    %v2041 = vld [vmem:[#allocation2 + $0x498] sm:$0xff]
    %v2042 = vld [vmem:[#allocation2 + $0x4a0] sm:$0xf]
    %v2043 = vld [vmem:[#allocation2 + $0x4a4] sm:$0xff]
    %v2044 = vld [vmem:[#allocation2 + $0x4ac] sm:$0xf]
    %v2045 = vld [vmem:[#allocation2 + $0x4b0] sm:$0xff]
    %v2046 = vld [vmem:[#allocation2 + $0x4b8] sm:$0xf]
    %v2047 = vld [vmem:[#allocation2 + $0x4bc] sm:$0xff]
    %v2048 = vld [vmem:[#allocation2 + $0x4c4] sm:$0xf]
    %v2049 = vld [vmem:[#allocation2 + $0x4c8] sm:$0xff]
    %v2050 = vld [vmem:[#allocation2 + $0x4d0] sm:$0xf]
    %v2051 = vld [vmem:[#allocation2 + $0x4d4] sm:$0xff]
    %v2052 = vld [vmem:[#allocation2 + $0x4dc] sm:$0xf]
    %v2053 = vld [vmem:[#allocation2 + $0x4e0] sm:$0xff]
    %v2054 = vld [vmem:[#allocation2 + $0x4e8] sm:$0xf]
    %v2055 = vld [vmem:[#allocation2 + $0x4ec] sm:$0xff]
    %v2056 = vld [vmem:[#allocation2 + $0x4f4] sm:$0xf]
    %v2057 = vld [vmem:[#allocation2 + $0x4f8] sm:$0xff]
    %v2058 = vld [vmem:[#allocation2 + $0x500] sm:$0xf]
    %v2059 = vld [vmem:[#allocation2 + $0x504] sm:$0xff]
    %v2060 = vld [vmem:[#allocation2 + $0x50c] sm:$0xf]
    %v2061 = vld [vmem:[#allocation2 + $0x510] sm:$0xff]
    %v2062 = vld [vmem:[#allocation2 + $0x518] sm:$0xf]
    %v2063 = vld [vmem:[#allocation2 + $0x51c] sm:$0xff]
    %v2064 = vld [vmem:[#allocation2 + $0x524] sm:$0xf]
    %v2065 = vld [vmem:[#allocation2 + $0x528] sm:$0xff]
    %v2066 = vld [vmem:[#allocation2 + $0x530] sm:$0xf]
    %v2067 = vld [vmem:[#allocation2 + $0x534] sm:$0xff]
    %v2068 = vld [vmem:[#allocation2 + $0x53c] sm:$0xf]
    %v2069 = vld [vmem:[#allocation2 + $0x540] sm:$0xff]
    %v2070 = vld [vmem:[#allocation2 + $0x548] sm:$0xf]
    %v2071 = vld [vmem:[#allocation2 + $0x54c] sm:$0xff]
    %v2072 = vld [vmem:[#allocation2 + $0x554] sm:$0xf]
    %v2073 = vld [vmem:[#allocation2 + $0x558] sm:$0xff]
    %v2074 = vld [vmem:[#allocation2 + $0x560] sm:$0xf]
    %v2075 = vld [vmem:[#allocation2 + $0x564] sm:$0xff]
    %v2076 = vld [vmem:[#allocation2 + $0x56c] sm:$0xf]
    %v2077 = vld [vmem:[#allocation2 + $0x570] sm:$0xff]
    %v2078 = vld [vmem:[#allocation2 + $0x578] sm:$0xf]
    %v2079 = vld [vmem:[#allocation2 + $0x57c] sm:$0xff]
    %v2080 = vld [vmem:[#allocation2 + $0x584] sm:$0xf]
    %v2081 = vld [vmem:[#allocation2 + $0x588] sm:$0xff]
    %v2082 = vld [vmem:[#allocation2 + $0x590] sm:$0xf]
    %v2083 = vld [vmem:[#allocation2 + $0x594] sm:$0xff]
    %v2084 = vld [vmem:[#allocation2 + $0x59c] sm:$0xf]
    %v2085 = vld [vmem:[#allocation2 + $0x5a0] sm:$0xff]
    %v2086 = vld [vmem:[#allocation2 + $0x5a8] sm:$0xf]
    %v2087 = vld [vmem:[#allocation2 + $0x5ac] sm:$0xff]
    %v2088 = vld [vmem:[#allocation2 + $0x5b4] sm:$0xf]
    %v2089 = vld [vmem:[#allocation2 + $0x5b8] sm:$0xff]
    %v2090 = vld [vmem:[#allocation2 + $0x5c0] sm:$0xf]
    %v2091 = vld [vmem:[#allocation2 + $0x5c4] sm:$0xff]
    %v2092 = vld [vmem:[#allocation2 + $0x5cc] sm:$0xf]
    %v2093 = vld [vmem:[#allocation2 + $0x5d0] sm:$0xff]
    %v2094 = vld [vmem:[#allocation2 + $0x5d8] sm:$0xf]
    %v2095 = vld [vmem:[#allocation2 + $0x5dc] sm:$0xff]
    %v2096 = vld [vmem:[#allocation2 + $0x5e4] sm:$0xf]
    %v2097 = vld [vmem:[#allocation2 + $0x5e8] sm:$0xff]
    %v2098 = vld [vmem:[#allocation2 + $0x5f0] sm:$0xf]
    %v2099 = vld [vmem:[#allocation2 + $0x5f4] sm:$0xff]
    %v2100 = vld [vmem:[#allocation2 + $0x5fc] sm:$0xf]
    %v2101 = vld [vmem:[#allocation2 + $0x600] sm:$0xff]
    %v2102 = vld [vmem:[#allocation2 + $0x608] sm:$0xf]
    %v2103 = vld [vmem:[#allocation2 + $0x60c] sm:$0xff]
    %v2104 = vld [vmem:[#allocation2 + $0x614] sm:$0xf]
    %v2105 = vld [vmem:[#allocation2 + $0x618] sm:$0xff]
    %v2106 = vld [vmem:[#allocation2 + $0x620] sm:$0xf]
    %v2107 = vld [vmem:[#allocation2 + $0x624] sm:$0xff]
    %v2108 = vld [vmem:[#allocation2 + $0x62c] sm:$0xf]
    %v2109 = vld [vmem:[#allocation2 + $0x630] sm:$0xff]
    %v2110 = vld [vmem:[#allocation2 + $0x638] sm:$0xf]
    %v2111 = vld [vmem:[#allocation2 + $0x63c] sm:$0xff]
    %v2112 = vld [vmem:[#allocation2 + $0x644] sm:$0xf]
    %v2113 = vld [vmem:[#allocation2 + $0x648] sm:$0xff]
    %v2114 = vld [vmem:[#allocation2 + $0x650] sm:$0xf]
    %v2115 = vld [vmem:[#allocation2 + $0x654] sm:$0xff]
    %v2116 = vld [vmem:[#allocation2 + $0x65c] sm:$0xf]
    %v2117 = vld [vmem:[#allocation2 + $0x660] sm:$0xff]
    %v2118 = vld [vmem:[#allocation2 + $0x668] sm:$0xf]
    %v2119 = vld [vmem:[#allocation2 + $0x66c] sm:$0xff]
    %v2120 = vld [vmem:[#allocation2 + $0x674] sm:$0xf]
    %v2121 = vld [vmem:[#allocation2 + $0x678] sm:$0xff]
    %v2122 = vld [vmem:[#allocation2 + $0x680] sm:$0xf]
    %v2123 = vld [vmem:[#allocation2 + $0x684] sm:$0xff]
    %v2124 = vld [vmem:[#allocation2 + $0x68c] sm:$0xf]
    %v2125 = vld [vmem:[#allocation2 + $0x690] sm:$0xff]
    %v2126 = vld [vmem:[#allocation2 + $0x698] sm:$0xf]
    %v2127 = vld [vmem:[#allocation2 + $0x69c] sm:$0xff]
    %v2128 = vld [vmem:[#allocation2 + $0x6a4] sm:$0xf]
    %v2129 = vld [vmem:[#allocation2 + $0x6a8] sm:$0xff]
    %v2130 = vld [vmem:[#allocation2 + $0x6b0] sm:$0xf]
    %v2131 = vld [vmem:[#allocation2 + $0x6b4] sm:$0xff]
    %v2132 = vld [vmem:[#allocation2 + $0x6bc] sm:$0xf]
    %v2133 = vld [vmem:[#allocation2 + $0x6c0] sm:$0xff]
    %v2134 = vld [vmem:[#allocation2 + $0x6c8] sm:$0xf]
    %v2135 = vld [vmem:[#allocation2 + $0x6cc] sm:$0xff]
    %v2136 = vld [vmem:[#allocation2 + $0x6d4] sm:$0xf]
    %v2137 = vld [vmem:[#allocation2 + $0x6d8] sm:$0xff]
    %v2138 = vld [vmem:[#allocation2 + $0x6e0] sm:$0xf]
    %v2139 = vld [vmem:[#allocation2 + $0x6e4] sm:$0xff]
    %v2140 = vld [vmem:[#allocation2 + $0x6ec] sm:$0xf]
    %v2141 = vld [vmem:[#allocation2 + $0x6f0] sm:$0xff]
    %v2142 = vld [vmem:[#allocation2 + $0x6f8] sm:$0xf]
    %v2143 = vld [vmem:[#allocation2 + $0x6fc] sm:$0xff]
    %v2144 = vld [vmem:[#allocation2 + $0x704] sm:$0xf]
    %v2145 = vld [vmem:[#allocation2 + $0x708] sm:$0xff]
    %v2146 = vld [vmem:[#allocation2 + $0x710] sm:$0xf]
    %v2147 = vld [vmem:[#allocation2 + $0x714] sm:$0xff]
    %v2148 = vld [vmem:[#allocation2 + $0x71c] sm:$0xf]
    %v2149 = vld [vmem:[#allocation2 + $0x720] sm:$0xff]
    %v2150 = vld [vmem:[#allocation2 + $0x728] sm:$0xf]
    %v2151 = vld [vmem:[#allocation2 + $0x72c] sm:$0xff]
    %v2152 = vld [vmem:[#allocation2 + $0x734] sm:$0xf]
    %v2153 = vld [vmem:[#allocation2 + $0x738] sm:$0xff]
    %v2154 = vld [vmem:[#allocation2 + $0x740] sm:$0xf]
    %v2155 = vld [vmem:[#allocation2 + $0x744] sm:$0xff]
    %v2156 = vld [vmem:[#allocation2 + $0x74c] sm:$0xf]
    %v2157 = vld [vmem:[#allocation2 + $0x750] sm:$0xff]
    %v2158 = vld [vmem:[#allocation2 + $0x758] sm:$0xf]
    %v2159 = vld [vmem:[#allocation2 + $0x75c] sm:$0xff]
    %v2160 = vld [vmem:[#allocation2 + $0x764] sm:$0xf]
    %v2161 = vld [vmem:[#allocation2 + $0x768] sm:$0xff]
    %v2162 = vld [vmem:[#allocation2 + $0x770] sm:$0xf]
    %v2163 = vld [vmem:[#allocation2 + $0x774] sm:$0xff]
    %v2164 = vld [vmem:[#allocation2 + $0x77c] sm:$0xf]
    %v2165 = vld [vmem:[#allocation2 + $0x780] sm:$0xff]
    %v2166 = vld [vmem:[#allocation2 + $0x788] sm:$0xf]
    %v2167 = vld [vmem:[#allocation2 + $0x78c] sm:$0xff]
    %v2168 = vld [vmem:[#allocation2 + $0x794] sm:$0xf]
    %v2169 = vld [vmem:[#allocation2 + $0x798] sm:$0xff]
    %v2170 = vld [vmem:[#allocation2 + $0x7a0] sm:$0xf]
    %v2171 = vld [vmem:[#allocation2 + $0x7a4] sm:$0xff]
    %v2172 = vld [vmem:[#allocation2 + $0x7ac] sm:$0xf]
    %v2173 = vld [vmem:[#allocation2 + $0x7b0] sm:$0xff]
    %v2174 = vld [vmem:[#allocation2 + $0x7b8] sm:$0xf]
    %v2175 = vld [vmem:[#allocation2 + $0x7bc] sm:$0xff]
    %v2176 = vld [vmem:[#allocation2 + $0x7c4] sm:$0xf]
    %v2177 = vld [vmem:[#allocation2 + $0x7c8] sm:$0xff]
    %v2178 = vld [vmem:[#allocation2 + $0x7d0] sm:$0xf]
    %v2179 = vld [vmem:[#allocation2 + $0x7d4] sm:$0xff]
    %v2180 = vld [vmem:[#allocation2 + $0x7dc] sm:$0xf]
    %v2181 = vld [vmem:[#allocation2 + $0x7e0] sm:$0xff]
    %v2182 = vld [vmem:[#allocation2 + $0x7e8] sm:$0xf]
    %v2183 = vld [vmem:[#allocation2 + $0x7ec] sm:$0xff]
    %v2184 = vld [vmem:[#allocation2 + $0x7f4] sm:$0xf]
    %v2185 = vld [vmem:[#allocation2 + $0x7f8] sm:$0xff]
    %v2186 = vld [vmem:[#allocation2 + $0x800] sm:$0xf]
    %v2187 = vld [vmem:[#allocation2 + $0x804] sm:$0xff]
    %v2188 = vld [vmem:[#allocation2 + $0x80c] sm:$0xf]
    %v2189 = vld [vmem:[#allocation2 + $0x810] sm:$0xff]
    %v2190 = vld [vmem:[#allocation2 + $0x818] sm:$0xf]
    %v2191 = vld [vmem:[#allocation2 + $0x81c] sm:$0xff]
    %v2192 = vld [vmem:[#allocation2 + $0x824] sm:$0xf]
    %v2193 = vld [vmem:[#allocation2 + $0x828] sm:$0xff]
    %v2194 = vld [vmem:[#allocation2 + $0x830] sm:$0xf]
    %v2195 = vld [vmem:[#allocation2 + $0x834] sm:$0xff]
    %v2196 = vld [vmem:[#allocation2 + $0x83c] sm:$0xf]
    %v2197 = vld [vmem:[#allocation2 + $0x840] sm:$0xff]
    %v2198 = vld [vmem:[#allocation2 + $0x848] sm:$0xf]
    %v2199 = vld [vmem:[#allocation2 + $0x84c] sm:$0xff]
    %v2200 = vld [vmem:[#allocation2 + $0x854] sm:$0xf]
    %v2201 = vld [vmem:[#allocation2 + $0x858] sm:$0xff]
    %v2202 = vld [vmem:[#allocation2 + $0x860] sm:$0xf]
    %v2203 = vld [vmem:[#allocation2 + $0x864] sm:$0xff]
    %v2204 = vld [vmem:[#allocation2 + $0x86c] sm:$0xf]
    %v2205 = vld [vmem:[#allocation2 + $0x870] sm:$0xff]
    %v2206 = vld [vmem:[#allocation2 + $0x878] sm:$0xf]
    %v2207 = vld [vmem:[#allocation2 + $0x87c] sm:$0xff]
    %v2208 = vld [vmem:[#allocation2 + $0x884] sm:$0xf]
    %v2209 = vld [vmem:[#allocation2 + $0x888] sm:$0xff]
    %v2210 = vld [vmem:[#allocation2 + $0x890] sm:$0xf]
    %v2211 = vld [vmem:[#allocation2 + $0x894] sm:$0xff]
    %v2212 = vld [vmem:[#allocation2 + $0x89c] sm:$0xf]
    %v2213 = vld [vmem:[#allocation2 + $0x8a0] sm:$0xff]
    %v2214 = vld [vmem:[#allocation2 + $0x8a8] sm:$0xf]
    %v2215 = vld [vmem:[#allocation2 + $0x8ac] sm:$0xff]
    %v2216 = vld [vmem:[#allocation2 + $0x8b4] sm:$0xf]
    %v2217 = vld [vmem:[#allocation2 + $0x8b8] sm:$0xff]
    %v2218 = vld [vmem:[#allocation2 + $0x8c0] sm:$0xf]
    %v2219 = vld [vmem:[#allocation2 + $0x8c4] sm:$0xff]
    %v2220 = vld [vmem:[#allocation2 + $0x8cc] sm:$0xf]
    %v2221 = vld [vmem:[#allocation2 + $0x8d0] sm:$0xff]
    %v2222 = vld [vmem:[#allocation2 + $0x8d8] sm:$0xf]
    %v2223 = vld [vmem:[#allocation2 + $0x8dc] sm:$0xff]
    %v2224 = vld [vmem:[#allocation2 + $0x8e4] sm:$0xf]
    %v2225 = vld [vmem:[#allocation2 + $0x8e8] sm:$0xff]
    %v2226 = vld [vmem:[#allocation2 + $0x8f0] sm:$0xf]
    %v2227 = vld [vmem:[#allocation2 + $0x8f4] sm:$0xff]
    %v2228 = vld [vmem:[#allocation2 + $0x8fc] sm:$0xf]
    %v2229 = vld [vmem:[#allocation2 + $0x900] sm:$0xff]
    %v2230 = vld [vmem:[#allocation2 + $0x908] sm:$0xf]
    %v2231 = vld [vmem:[#allocation2 + $0x90c] sm:$0xff]
    %v2232 = vld [vmem:[#allocation2 + $0x914] sm:$0xf]
    %v2233 = vld [vmem:[#allocation2 + $0x918] sm:$0xff]
    %v2234 = vld [vmem:[#allocation2 + $0x920] sm:$0xf]
    %v2235 = vld [vmem:[#allocation2 + $0x924] sm:$0xff]
    %v2236 = vld [vmem:[#allocation2 + $0x92c] sm:$0xf]
    %v2237 = vld [vmem:[#allocation2 + $0x930] sm:$0xff]
    %v2238 = vld [vmem:[#allocation2 + $0x938] sm:$0xf]
    %v2239 = vld [vmem:[#allocation2 + $0x93c] sm:$0xff]
    %v2240 = vld [vmem:[#allocation2 + $0x944] sm:$0xf]
    %v2241 = vld [vmem:[#allocation2 + $0x948] sm:$0xff]
    %v2242 = vld [vmem:[#allocation2 + $0x950] sm:$0xf]
    %v2243 = vld [vmem:[#allocation2 + $0x954] sm:$0xff]
    %v2244 = vld [vmem:[#allocation2 + $0x95c] sm:$0xf]
    %v2245 = vld [vmem:[#allocation2 + $0x960] sm:$0xff]
    %v2246 = vld [vmem:[#allocation2 + $0x968] sm:$0xf]
    %v2247 = vld [vmem:[#allocation2 + $0x96c] sm:$0xff]
    %v2248 = vld [vmem:[#allocation2 + $0x974] sm:$0xf]
    %v2249 = vld [vmem:[#allocation2 + $0x978] sm:$0xff]
    %v2250 = vld [vmem:[#allocation2 + $0x980] sm:$0xf]
    %v2251 = vld [vmem:[#allocation2 + $0x984] sm:$0xff]
    %v2252 = vld [vmem:[#allocation2 + $0x98c] sm:$0xf]
    %v2253 = vld [vmem:[#allocation2 + $0x990] sm:$0xff]
    %v2254 = vld [vmem:[#allocation2 + $0x998] sm:$0xf]
    %v2255 = vld [vmem:[#allocation2 + $0x99c] sm:$0xff]
    %v2256 = vld [vmem:[#allocation2 + $0x9a4] sm:$0xf]
    %v2257 = vld [vmem:[#allocation2 + $0x9a8] sm:$0xff]
    %v2258 = vld [vmem:[#allocation2 + $0x9b0] sm:$0xf]
    %v2259 = vld [vmem:[#allocation2 + $0x9b4] sm:$0xff]
    %v2260 = vld [vmem:[#allocation2 + $0x9bc] sm:$0xf]
    %v2261 = vld [vmem:[#allocation2 + $0x9c0] sm:$0xff]
    %v2262 = vld [vmem:[#allocation2 + $0x9c8] sm:$0xf]
    %v2263 = vld [vmem:[#allocation2 + $0x9cc] sm:$0xff]
    %v2264 = vld [vmem:[#allocation2 + $0x9d4] sm:$0xf]
    %v2265 = vld [vmem:[#allocation2 + $0x9d8] sm:$0xff]
    %v2266 = vld [vmem:[#allocation2 + $0x9e0] sm:$0xf]
    %v2267 = vld [vmem:[#allocation2 + $0x9e4] sm:$0xff]
    %v2268 = vld [vmem:[#allocation2 + $0x9ec] sm:$0xf]
    %v2269 = vld [vmem:[#allocation2 + $0x9f0] sm:$0xff]
    %v2270 = vld [vmem:[#allocation2 + $0x9f8] sm:$0xf]
    %v2271 = vld [vmem:[#allocation2 + $0x9fc] sm:$0xff]
    %v2272 = vld [vmem:[#allocation2 + $0xa04] sm:$0xf]
    %v2273 = vld [vmem:[#allocation2 + $0xa08] sm:$0xff]
    %v2274 = vld [vmem:[#allocation2 + $0xa10] sm:$0xf]
    %v2275 = vld [vmem:[#allocation2 + $0xa14] sm:$0xff]
    %v2276 = vld [vmem:[#allocation2 + $0xa1c] sm:$0xf]
    %v2277 = vld [vmem:[#allocation2 + $0xa20] sm:$0xff]
    %v2278 = vld [vmem:[#allocation2 + $0xa28] sm:$0xf]
    %v2279 = vld [vmem:[#allocation2 + $0xa2c] sm:$0xff]
    %v2280 = vld [vmem:[#allocation2 + $0xa34] sm:$0xf]
    %v2281 = vld [vmem:[#allocation2 + $0xa38] sm:$0xff]
    %v2282 = vld [vmem:[#allocation2 + $0xa40] sm:$0xf]
    %v2283 = vld [vmem:[#allocation2 + $0xa44] sm:$0xff]
    %v2284 = vld [vmem:[#allocation2 + $0xa4c] sm:$0xf]
    %v2285 = vld [vmem:[#allocation2 + $0xa50] sm:$0xff]
    %v2286 = vld [vmem:[#allocation2 + $0xa58] sm:$0xf]
    %v2287 = vld [vmem:[#allocation2 + $0xa5c] sm:$0xff]
    %v2288 = vld [vmem:[#allocation2 + $0xa64] sm:$0xf]
    %v2289 = vld [vmem:[#allocation2 + $0xa68] sm:$0xff]
    %v2290 = vld [vmem:[#allocation2 + $0xa70] sm:$0xf]
    %v2291 = vld [vmem:[#allocation2 + $0xa74] sm:$0xff]
    %v2292 = vld [vmem:[#allocation2 + $0xa7c] sm:$0xf]
    %v2293 = vld [vmem:[#allocation2 + $0xa80] sm:$0xff]
    %v2294 = vld [vmem:[#allocation2 + $0xa88] sm:$0xf]
    %v2295 = vld [vmem:[#allocation2 + $0xa8c] sm:$0xff]
    %v2296 = vld [vmem:[#allocation2 + $0xa94] sm:$0xf]
    %v2297 = vld [vmem:[#allocation2 + $0xa98] sm:$0xff]
    %v2298 = vld [vmem:[#allocation2 + $0xaa0] sm:$0xf]
    %v2299 = vld [vmem:[#allocation2 + $0xaa4] sm:$0xff]
    %v2300 = vld [vmem:[#allocation2 + $0xaac] sm:$0xf]
    %v2301 = vld [vmem:[#allocation2 + $0xab0] sm:$0xff]
    %v2302 = vld [vmem:[#allocation2 + $0xab8] sm:$0xf]
    %v2303 = vld [vmem:[#allocation2 + $0xabc] sm:$0xff]
    %v2304 = vld [vmem:[#allocation2 + $0xac4] sm:$0xf]
    %v2305 = vld [vmem:[#allocation2 + $0xac8] sm:$0xff]
    %v2306 = vld [vmem:[#allocation2 + $0xad0] sm:$0xf]
    %v2307 = vld [vmem:[#allocation2 + $0xad4] sm:$0xff]
    %v2308 = vld [vmem:[#allocation2 + $0xadc] sm:$0xf]
    %v2309 = vld [vmem:[#allocation2 + $0xae0] sm:$0xff]
    %v2310 = vld [vmem:[#allocation2 + $0xae8] sm:$0xf]
    %v2311 = vld [vmem:[#allocation2 + $0xaec] sm:$0xff]
    %v2312 = vld [vmem:[#allocation2 + $0xaf4] sm:$0xf]
    %v2313 = vld [vmem:[#allocation2 + $0xaf8] sm:$0xff]
    %v2314 = vld [vmem:[#allocation2 + $0xb00] sm:$0xf]
    %v2315 = vld [vmem:[#allocation2 + $0xb04] sm:$0xff]
    %v2316 = vld [vmem:[#allocation2 + $0xb0c] sm:$0xf]
    %v2317 = vld [vmem:[#allocation2 + $0xb10] sm:$0xff]
    %v2318 = vld [vmem:[#allocation2 + $0xb18] sm:$0xf]
    %v2319 = vld [vmem:[#allocation2 + $0xb1c] sm:$0xff]
    %v2320 = vld [vmem:[#allocation2 + $0xb24] sm:$0xf]
    %v2321 = vld [vmem:[#allocation2 + $0xb28] sm:$0xff]
    %v2322 = vld [vmem:[#allocation2 + $0xb30] sm:$0xf]
    %v2323 = vld [vmem:[#allocation2 + $0xb34] sm:$0xff]
    %v2324 = vld [vmem:[#allocation2 + $0xb3c] sm:$0xf]
    %v2325 = vld [vmem:[#allocation2 + $0xb40] sm:$0xff]
    %v2326 = vld [vmem:[#allocation2 + $0xb48] sm:$0xf]
    %v2327 = vld [vmem:[#allocation2 + $0xb4c] sm:$0xff]
    %v2328 = vld [vmem:[#allocation2 + $0xb54] sm:$0xf]
    %v2329 = vld [vmem:[#allocation2 + $0xb58] sm:$0xff]
    %v2330 = vld [vmem:[#allocation2 + $0xb60] sm:$0xf]
    %v2331 = vld [vmem:[#allocation2 + $0xb64] sm:$0xff]
    %v2332 = vld [vmem:[#allocation2 + $0xb6c] sm:$0xf]
    %v2333 = vld [vmem:[#allocation2 + $0xb70] sm:$0xff]
    %v2334 = vld [vmem:[#allocation2 + $0xb78] sm:$0xf]
    %v2335 = vld [vmem:[#allocation2 + $0xb7c] sm:$0xff]
    %v2336 = vld [vmem:[#allocation2 + $0xb84] sm:$0xf]
    %v2337 = vld [vmem:[#allocation2 + $0xb88] sm:$0xff]
    %v2338 = vld [vmem:[#allocation2 + $0xb90] sm:$0xf]
    %v2339 = vld [vmem:[#allocation2 + $0xb94] sm:$0xff]
    %v2340 = vld [vmem:[#allocation2 + $0xb9c] sm:$0xf]
    %v2341 = vld [vmem:[#allocation2 + $0xba0] sm:$0xff]
    %v2342 = vld [vmem:[#allocation2 + $0xba8] sm:$0xf]
    %v2343 = vld [vmem:[#allocation2 + $0xbac] sm:$0xff]
    %v2344 = vld [vmem:[#allocation2 + $0xbb4] sm:$0xf]
    %v2345 = vld [vmem:[#allocation2 + $0xbb8] sm:$0xff]
    %v2346 = vld [vmem:[#allocation2 + $0xbc0] sm:$0xf]
    %v2347 = vld [vmem:[#allocation2 + $0xbc4] sm:$0xff]
    %v2348 = vld [vmem:[#allocation2 + $0xbcc] sm:$0xf]
    %v2349 = vld [vmem:[#allocation2 + $0xbd0] sm:$0xff]
    %v2350 = vld [vmem:[#allocation2 + $0xbd8] sm:$0xf]
    %v2351 = vld [vmem:[#allocation2 + $0xbdc] sm:$0xff]
    %v2352 = vld [vmem:[#allocation2 + $0xbe4] sm:$0xf]
    %v2353 = vld [vmem:[#allocation2 + $0xbe8] sm:$0xff]
    %v2354 = vld [vmem:[#allocation2 + $0xbf0] sm:$0xf]
    %v2355 = vld [vmem:[#allocation2 + $0xbf4] sm:$0xff]
    %v2356 = vld [vmem:[#allocation2 + $0xbfc] sm:$0xf]
    %v2357 = vld [vmem:[#allocation18] sm:$0x7]
    %v2359 = vlaneseq
    %v2360 = vshrl.u32 %v2359, 7
    %v2361 = vsub.s32 0, %v2360
    %v2362 = vrot.slane %v2357, %v2361
    %v2363 = vlaneseq
    %v2364 = vshrl.u32 %v2363, 7
    %v2365 = vsub.s32 1, %v2364
    %v2366 = vrot.slane %v2357, %v2365
    %v2367 = vlaneseq
    %v2368 = vshrl.u32 %v2367, 7
    %v2369 = vsub.s32 2, %v2368
    %v2370 = vrot.slane %v2357, %v2369
    %v2886 = vunpack.c.l.b16 %v1845
    %v2887 = vunpack.c.h.b16 %v1845
    %v2888 = vunpack.c.l.b16 %v1846
    %v2889 = vunpack.c.l.b16 %v1847
    %v2890 = vunpack.c.h.b16 %v1847
    %v2891 = vunpack.c.l.b16 %v1848
    %v2892 = vunpack.c.l.b16 %v1849
    %v2893 = vunpack.c.h.b16 %v1849
    %v2894 = vunpack.c.l.b16 %v1850
    %v2895 = vunpack.c.l.b16 %v1851
    %v2896 = vunpack.c.h.b16 %v1851
    %v2897 = vunpack.c.l.b16 %v1852
    %v2898 = vunpack.c.l.b16 %v1853
    %v2899 = vunpack.c.h.b16 %v1853
    %v2900 = vunpack.c.l.b16 %v1854
    %v2901 = vunpack.c.l.b16 %v1855
    %v2902 = vunpack.c.h.b16 %v1855
    %v2903 = vunpack.c.l.b16 %v1856
    %v2904 = vunpack.c.l.b16 %v1857
    %v2905 = vunpack.c.h.b16 %v1857
    %v2906 = vunpack.c.l.b16 %v1858
    %v2907 = vunpack.c.l.b16 %v1859
    %v2908 = vunpack.c.h.b16 %v1859
    %v2909 = vunpack.c.l.b16 %v1860
    %v2910 = vunpack.c.l.b16 %v1861
    %v2911 = vunpack.c.h.b16 %v1861
    %v2912 = vunpack.c.l.b16 %v1862
    %v2913 = vunpack.c.l.b16 %v1863
    %v2914 = vunpack.c.h.b16 %v1863
    %v2915 = vunpack.c.l.b16 %v1864
    %v2916 = vunpack.c.l.b16 %v1865
    %v2917 = vunpack.c.h.b16 %v1865
    %v2918 = vunpack.c.l.b16 %v1866
    %v2919 = vunpack.c.l.b16 %v1867
    %v2920 = vunpack.c.h.b16 %v1867
    %v2921 = vunpack.c.l.b16 %v1868
    %v2922 = vunpack.c.l.b16 %v1869
    %v2923 = vunpack.c.h.b16 %v1869
    %v2924 = vunpack.c.l.b16 %v1870
    %v2925 = vunpack.c.l.b16 %v1871
    %v2926 = vunpack.c.h.b16 %v1871
    %v2927 = vunpack.c.l.b16 %v1872
    %v2928 = vunpack.c.l.b16 %v1873
    %v2929 = vunpack.c.h.b16 %v1873
    %v2930 = vunpack.c.l.b16 %v1874
    %v2931 = vunpack.c.l.b16 %v1875
    %v2932 = vunpack.c.h.b16 %v1875
    %v2933 = vunpack.c.l.b16 %v1876
    %v2934 = vunpack.c.l.b16 %v1877
    %v2935 = vunpack.c.h.b16 %v1877
    %v2936 = vunpack.c.l.b16 %v1878
    %v2937 = vunpack.c.l.b16 %v1879
    %v2938 = vunpack.c.h.b16 %v1879
    %v2939 = vunpack.c.l.b16 %v1880
    %v2940 = vunpack.c.l.b16 %v1881
    %v2941 = vunpack.c.h.b16 %v1881
    %v2942 = vunpack.c.l.b16 %v1882
    %v2943 = vunpack.c.l.b16 %v1883
    %v2944 = vunpack.c.h.b16 %v1883
    %v2945 = vunpack.c.l.b16 %v1884
    %v2946 = vunpack.c.l.b16 %v1885
    %v2947 = vunpack.c.h.b16 %v1885
    %v2948 = vunpack.c.l.b16 %v1886
    %v2949 = vunpack.c.l.b16 %v1887
    %v2950 = vunpack.c.h.b16 %v1887
    %v2951 = vunpack.c.l.b16 %v1888
    %v2952 = vunpack.c.l.b16 %v1889
    %v2953 = vunpack.c.h.b16 %v1889
    %v2954 = vunpack.c.l.b16 %v1890
    %v2955 = vunpack.c.l.b16 %v1891
    %v2956 = vunpack.c.h.b16 %v1891
    %v2957 = vunpack.c.l.b16 %v1892
    %v2958 = vunpack.c.l.b16 %v1893
    %v2959 = vunpack.c.h.b16 %v1893
    %v2960 = vunpack.c.l.b16 %v1894
    %v2961 = vunpack.c.l.b16 %v1895
    %v2962 = vunpack.c.h.b16 %v1895
    %v2963 = vunpack.c.l.b16 %v1896
    %v2964 = vunpack.c.l.b16 %v1897
    %v2965 = vunpack.c.h.b16 %v1897
    %v2966 = vunpack.c.l.b16 %v1898
    %v2967 = vunpack.c.l.b16 %v1899
    %v2968 = vunpack.c.h.b16 %v1899
    %v2969 = vunpack.c.l.b16 %v1900
    %v2970 = vunpack.c.l.b16 %v1901
    %v2971 = vunpack.c.h.b16 %v1901
    %v2972 = vunpack.c.l.b16 %v1902
    %v2973 = vunpack.c.l.b16 %v1903
    %v2974 = vunpack.c.h.b16 %v1903
    %v2975 = vunpack.c.l.b16 %v1904
    %v2976 = vunpack.c.l.b16 %v1905
    %v2977 = vunpack.c.h.b16 %v1905
    %v2978 = vunpack.c.l.b16 %v1906
    %v2979 = vunpack.c.l.b16 %v1907
    %v2980 = vunpack.c.h.b16 %v1907
    %v2981 = vunpack.c.l.b16 %v1908
    %v2982 = vunpack.c.l.b16 %v1909
    %v2983 = vunpack.c.h.b16 %v1909
    %v2984 = vunpack.c.l.b16 %v1910
    %v2985 = vunpack.c.l.b16 %v1911
    %v2986 = vunpack.c.h.b16 %v1911
    %v2987 = vunpack.c.l.b16 %v1912
    %v2988 = vunpack.c.l.b16 %v1913
    %v2989 = vunpack.c.h.b16 %v1913
    %v2990 = vunpack.c.l.b16 %v1914
    %v2991 = vunpack.c.l.b16 %v1915
    %v2992 = vunpack.c.h.b16 %v1915
    %v2993 = vunpack.c.l.b16 %v1916
    %v2994 = vunpack.c.l.b16 %v1917
    %v2995 = vunpack.c.h.b16 %v1917
    %v2996 = vunpack.c.l.b16 %v1918
    %v2997 = vunpack.c.l.b16 %v1919
    %v2998 = vunpack.c.h.b16 %v1919
    %v2999 = vunpack.c.l.b16 %v1920
    %v3000 = vunpack.c.l.b16 %v1921
    %v3001 = vunpack.c.h.b16 %v1921
    %v3002 = vunpack.c.l.b16 %v1922
    %v3003 = vunpack.c.l.b16 %v1923
    %v3004 = vunpack.c.h.b16 %v1923
    %v3005 = vunpack.c.l.b16 %v1924
    %v3006 = vunpack.c.l.b16 %v1925
    %v3007 = vunpack.c.h.b16 %v1925
    %v3008 = vunpack.c.l.b16 %v1926
    %v3009 = vunpack.c.l.b16 %v1927
    %v3010 = vunpack.c.h.b16 %v1927
    %v3011 = vunpack.c.l.b16 %v1928
    %v3012 = vunpack.c.l.b16 %v1929
    %v3013 = vunpack.c.h.b16 %v1929
    %v3014 = vunpack.c.l.b16 %v1930
    %v3015 = vunpack.c.l.b16 %v1931
    %v3016 = vunpack.c.h.b16 %v1931
    %v3017 = vunpack.c.l.b16 %v1932
    %v3018 = vunpack.c.l.b16 %v1933
    %v3019 = vunpack.c.h.b16 %v1933
    %v3020 = vunpack.c.l.b16 %v1934
    %v3021 = vunpack.c.l.b16 %v1935
    %v3022 = vunpack.c.h.b16 %v1935
    %v3023 = vunpack.c.l.b16 %v1936
    %v3024 = vunpack.c.l.b16 %v1937
    %v3025 = vunpack.c.h.b16 %v1937
    %v3026 = vunpack.c.l.b16 %v1938
    %v3027 = vunpack.c.l.b16 %v1939
    %v3028 = vunpack.c.h.b16 %v1939
    %v3029 = vunpack.c.l.b16 %v1940
    %v3030 = vunpack.c.l.b16 %v1941
    %v3031 = vunpack.c.h.b16 %v1941
    %v3032 = vunpack.c.l.b16 %v1942
    %v3033 = vunpack.c.l.b16 %v1943
    %v3034 = vunpack.c.h.b16 %v1943
    %v3035 = vunpack.c.l.b16 %v1944
    %v3036 = vunpack.c.l.b16 %v1945
    %v3037 = vunpack.c.h.b16 %v1945
    %v3038 = vunpack.c.l.b16 %v1946
    %v3039 = vunpack.c.l.b16 %v1947
    %v3040 = vunpack.c.h.b16 %v1947
    %v3041 = vunpack.c.l.b16 %v1948
    %v3042 = vunpack.c.l.b16 %v1949
    %v3043 = vunpack.c.h.b16 %v1949
    %v3044 = vunpack.c.l.b16 %v1950
    %v3045 = vunpack.c.l.b16 %v1951
    %v3046 = vunpack.c.h.b16 %v1951
    %v3047 = vunpack.c.l.b16 %v1952
    %v3048 = vunpack.c.l.b16 %v1953
    %v3049 = vunpack.c.h.b16 %v1953
    %v3050 = vunpack.c.l.b16 %v1954
    %v3051 = vunpack.c.l.b16 %v1955
    %v3052 = vunpack.c.h.b16 %v1955
    %v3053 = vunpack.c.l.b16 %v1956
    %v3054 = vunpack.c.l.b16 %v1957
    %v3055 = vunpack.c.h.b16 %v1957
    %v3056 = vunpack.c.l.b16 %v1958
    %v3057 = vunpack.c.l.b16 %v1959
    %v3058 = vunpack.c.h.b16 %v1959
    %v3059 = vunpack.c.l.b16 %v1960
    %v3060 = vunpack.c.l.b16 %v1961
    %v3061 = vunpack.c.h.b16 %v1961
    %v3062 = vunpack.c.l.b16 %v1962
    %v3063 = vunpack.c.l.b16 %v1963
    %v3064 = vunpack.c.h.b16 %v1963
    %v3065 = vunpack.c.l.b16 %v1964
    %v3066 = vunpack.c.l.b16 %v1965
    %v3067 = vunpack.c.h.b16 %v1965
    %v3068 = vunpack.c.l.b16 %v1966
    %v3069 = vunpack.c.l.b16 %v1967
    %v3070 = vunpack.c.h.b16 %v1967
    %v3071 = vunpack.c.l.b16 %v1968
    %v3072 = vunpack.c.l.b16 %v1969
    %v3073 = vunpack.c.h.b16 %v1969
    %v3074 = vunpack.c.l.b16 %v1970
    %v3075 = vunpack.c.l.b16 %v1971
    %v3076 = vunpack.c.h.b16 %v1971
    %v3077 = vunpack.c.l.b16 %v1972
    %v3078 = vunpack.c.l.b16 %v1973
    %v3079 = vunpack.c.h.b16 %v1973
    %v3080 = vunpack.c.l.b16 %v1974
    %v3081 = vunpack.c.l.b16 %v1975
    %v3082 = vunpack.c.h.b16 %v1975
    %v3083 = vunpack.c.l.b16 %v1976
    %v3084 = vunpack.c.l.b16 %v1977
    %v3085 = vunpack.c.h.b16 %v1977
    %v3086 = vunpack.c.l.b16 %v1978
    %v3087 = vunpack.c.l.b16 %v1979
    %v3088 = vunpack.c.h.b16 %v1979
    %v3089 = vunpack.c.l.b16 %v1980
    %v3090 = vunpack.c.l.b16 %v1981
    %v3091 = vunpack.c.h.b16 %v1981
    %v3092 = vunpack.c.l.b16 %v1982
    %v3093 = vunpack.c.l.b16 %v1983
    %v3094 = vunpack.c.h.b16 %v1983
    %v3095 = vunpack.c.l.b16 %v1984
    %v3096 = vunpack.c.l.b16 %v1985
    %v3097 = vunpack.c.h.b16 %v1985
    %v3098 = vunpack.c.l.b16 %v1986
    %v3099 = vunpack.c.l.b16 %v1987
    %v3100 = vunpack.c.h.b16 %v1987
    %v3101 = vunpack.c.l.b16 %v1988
    %v3102 = vunpack.c.l.b16 %v1989
    %v3103 = vunpack.c.h.b16 %v1989
    %v3104 = vunpack.c.l.b16 %v1990
    %v3105 = vunpack.c.l.b16 %v1991
    %v3106 = vunpack.c.h.b16 %v1991
    %v3107 = vunpack.c.l.b16 %v1992
    %v3108 = vunpack.c.l.b16 %v1993
    %v3109 = vunpack.c.h.b16 %v1993
    %v3110 = vunpack.c.l.b16 %v1994
    %v3111 = vunpack.c.l.b16 %v1995
    %v3112 = vunpack.c.h.b16 %v1995
    %v3113 = vunpack.c.l.b16 %v1996
    %v3114 = vunpack.c.l.b16 %v1997
    %v3115 = vunpack.c.h.b16 %v1997
    %v3116 = vunpack.c.l.b16 %v1998
    %v3117 = vunpack.c.l.b16 %v1999
    %v3118 = vunpack.c.h.b16 %v1999
    %v3119 = vunpack.c.l.b16 %v2000
    %v3120 = vunpack.c.l.b16 %v2001
    %v3121 = vunpack.c.h.b16 %v2001
    %v3122 = vunpack.c.l.b16 %v2002
    %v3123 = vunpack.c.l.b16 %v2003
    %v3124 = vunpack.c.h.b16 %v2003
    %v3125 = vunpack.c.l.b16 %v2004
    %v3126 = vunpack.c.l.b16 %v2005
    %v3127 = vunpack.c.h.b16 %v2005
    %v3128 = vunpack.c.l.b16 %v2006
    %v3129 = vunpack.c.l.b16 %v2007
    %v3130 = vunpack.c.h.b16 %v2007
    %v3131 = vunpack.c.l.b16 %v2008
    %v3132 = vunpack.c.l.b16 %v2009
    %v3133 = vunpack.c.h.b16 %v2009
    %v3134 = vunpack.c.l.b16 %v2010
    %v3135 = vunpack.c.l.b16 %v2011
    %v3136 = vunpack.c.h.b16 %v2011
    %v3137 = vunpack.c.l.b16 %v2012
    %v3138 = vunpack.c.l.b16 %v2013
    %v3139 = vunpack.c.h.b16 %v2013
    %v3140 = vunpack.c.l.b16 %v2014
    %v3141 = vunpack.c.l.b16 %v2015
    %v3142 = vunpack.c.h.b16 %v2015
    %v3143 = vunpack.c.l.b16 %v2016
    %v3144 = vunpack.c.l.b16 %v2017
    %v3145 = vunpack.c.h.b16 %v2017
    %v3146 = vunpack.c.l.b16 %v2018
    %v3147 = vunpack.c.l.b16 %v2019
    %v3148 = vunpack.c.h.b16 %v2019
    %v3149 = vunpack.c.l.b16 %v2020
    %v3150 = vunpack.c.l.b16 %v2021
    %v3151 = vunpack.c.h.b16 %v2021
    %v3152 = vunpack.c.l.b16 %v2022
    %v3153 = vunpack.c.l.b16 %v2023
    %v3154 = vunpack.c.h.b16 %v2023
    %v3155 = vunpack.c.l.b16 %v2024
    %v3156 = vunpack.c.l.b16 %v2025
    %v3157 = vunpack.c.h.b16 %v2025
    %v3158 = vunpack.c.l.b16 %v2026
    %v3159 = vunpack.c.l.b16 %v2027
    %v3160 = vunpack.c.h.b16 %v2027
    %v3161 = vunpack.c.l.b16 %v2028
    %v3162 = vunpack.c.l.b16 %v2029
    %v3163 = vunpack.c.h.b16 %v2029
    %v3164 = vunpack.c.l.b16 %v2030
    %v3165 = vunpack.c.l.b16 %v2031
    %v3166 = vunpack.c.h.b16 %v2031
    %v3167 = vunpack.c.l.b16 %v2032
    %v3168 = vunpack.c.l.b16 %v2033
    %v3169 = vunpack.c.h.b16 %v2033
    %v3170 = vunpack.c.l.b16 %v2034
    %v3171 = vunpack.c.l.b16 %v2035
    %v3172 = vunpack.c.h.b16 %v2035
    %v3173 = vunpack.c.l.b16 %v2036
    %v3174 = vunpack.c.l.b16 %v2037
    %v3175 = vunpack.c.h.b16 %v2037
    %v3176 = vunpack.c.l.b16 %v2038
    %v3177 = vunpack.c.l.b16 %v2039
    %v3178 = vunpack.c.h.b16 %v2039
    %v3179 = vunpack.c.l.b16 %v2040
    %v3180 = vunpack.c.l.b16 %v2041
    %v3181 = vunpack.c.h.b16 %v2041
    %v3182 = vunpack.c.l.b16 %v2042
    %v3183 = vunpack.c.l.b16 %v2043
    %v3184 = vunpack.c.h.b16 %v2043
    %v3185 = vunpack.c.l.b16 %v2044
    %v3186 = vunpack.c.l.b16 %v2045
    %v3187 = vunpack.c.h.b16 %v2045
    %v3188 = vunpack.c.l.b16 %v2046
    %v3189 = vunpack.c.l.b16 %v2047
    %v3190 = vunpack.c.h.b16 %v2047
    %v3191 = vunpack.c.l.b16 %v2048
    %v3192 = vunpack.c.l.b16 %v2049
    %v3193 = vunpack.c.h.b16 %v2049
    %v3194 = vunpack.c.l.b16 %v2050
    %v3195 = vunpack.c.l.b16 %v2051
    %v3196 = vunpack.c.h.b16 %v2051
    %v3197 = vunpack.c.l.b16 %v2052
    %v3198 = vunpack.c.l.b16 %v2053
    %v3199 = vunpack.c.h.b16 %v2053
    %v3200 = vunpack.c.l.b16 %v2054
    %v3201 = vunpack.c.l.b16 %v2055
    %v3202 = vunpack.c.h.b16 %v2055
    %v3203 = vunpack.c.l.b16 %v2056
    %v3204 = vunpack.c.l.b16 %v2057
    %v3205 = vunpack.c.h.b16 %v2057
    %v3206 = vunpack.c.l.b16 %v2058
    %v3207 = vunpack.c.l.b16 %v2059
    %v3208 = vunpack.c.h.b16 %v2059
    %v3209 = vunpack.c.l.b16 %v2060
    %v3210 = vunpack.c.l.b16 %v2061
    %v3211 = vunpack.c.h.b16 %v2061
    %v3212 = vunpack.c.l.b16 %v2062
    %v3213 = vunpack.c.l.b16 %v2063
    %v3214 = vunpack.c.h.b16 %v2063
    %v3215 = vunpack.c.l.b16 %v2064
    %v3216 = vunpack.c.l.b16 %v2065
    %v3217 = vunpack.c.h.b16 %v2065
    %v3218 = vunpack.c.l.b16 %v2066
    %v3219 = vunpack.c.l.b16 %v2067
    %v3220 = vunpack.c.h.b16 %v2067
    %v3221 = vunpack.c.l.b16 %v2068
    %v3222 = vunpack.c.l.b16 %v2069
    %v3223 = vunpack.c.h.b16 %v2069
    %v3224 = vunpack.c.l.b16 %v2070
    %v3225 = vunpack.c.l.b16 %v2071
    %v3226 = vunpack.c.h.b16 %v2071
    %v3227 = vunpack.c.l.b16 %v2072
    %v3228 = vunpack.c.l.b16 %v2073
    %v3229 = vunpack.c.h.b16 %v2073
    %v3230 = vunpack.c.l.b16 %v2074
    %v3231 = vunpack.c.l.b16 %v2075
    %v3232 = vunpack.c.h.b16 %v2075
    %v3233 = vunpack.c.l.b16 %v2076
    %v3234 = vunpack.c.l.b16 %v2077
    %v3235 = vunpack.c.h.b16 %v2077
    %v3236 = vunpack.c.l.b16 %v2078
    %v3237 = vunpack.c.l.b16 %v2079
    %v3238 = vunpack.c.h.b16 %v2079
    %v3239 = vunpack.c.l.b16 %v2080
    %v3240 = vunpack.c.l.b16 %v2081
    %v3241 = vunpack.c.h.b16 %v2081
    %v3242 = vunpack.c.l.b16 %v2082
    %v3243 = vunpack.c.l.b16 %v2083
    %v3244 = vunpack.c.h.b16 %v2083
    %v3245 = vunpack.c.l.b16 %v2084
    %v3246 = vunpack.c.l.b16 %v2085
    %v3247 = vunpack.c.h.b16 %v2085
    %v3248 = vunpack.c.l.b16 %v2086
    %v3249 = vunpack.c.l.b16 %v2087
    %v3250 = vunpack.c.h.b16 %v2087
    %v3251 = vunpack.c.l.b16 %v2088
    %v3252 = vunpack.c.l.b16 %v2089
    %v3253 = vunpack.c.h.b16 %v2089
    %v3254 = vunpack.c.l.b16 %v2090
    %v3255 = vunpack.c.l.b16 %v2091
    %v3256 = vunpack.c.h.b16 %v2091
    %v3257 = vunpack.c.l.b16 %v2092
    %v3258 = vunpack.c.l.b16 %v2093
    %v3259 = vunpack.c.h.b16 %v2093
    %v3260 = vunpack.c.l.b16 %v2094
    %v3261 = vunpack.c.l.b16 %v2095
    %v3262 = vunpack.c.h.b16 %v2095
    %v3263 = vunpack.c.l.b16 %v2096
    %v3264 = vunpack.c.l.b16 %v2097
    %v3265 = vunpack.c.h.b16 %v2097
    %v3266 = vunpack.c.l.b16 %v2098
    %v3267 = vunpack.c.l.b16 %v2099
    %v3268 = vunpack.c.h.b16 %v2099
    %v3269 = vunpack.c.l.b16 %v2100
    %v3270 = vunpack.c.l.b16 %v2101
    %v3271 = vunpack.c.h.b16 %v2101
    %v3272 = vunpack.c.l.b16 %v2102
    %v3273 = vunpack.c.l.b16 %v2103
    %v3274 = vunpack.c.h.b16 %v2103
    %v3275 = vunpack.c.l.b16 %v2104
    %v3276 = vunpack.c.l.b16 %v2105
    %v3277 = vunpack.c.h.b16 %v2105
    %v3278 = vunpack.c.l.b16 %v2106
    %v3279 = vunpack.c.l.b16 %v2107
    %v3280 = vunpack.c.h.b16 %v2107
    %v3281 = vunpack.c.l.b16 %v2108
    %v3282 = vunpack.c.l.b16 %v2109
    %v3283 = vunpack.c.h.b16 %v2109
    %v3284 = vunpack.c.l.b16 %v2110
    %v3285 = vunpack.c.l.b16 %v2111
    %v3286 = vunpack.c.h.b16 %v2111
    %v3287 = vunpack.c.l.b16 %v2112
    %v3288 = vunpack.c.l.b16 %v2113
    %v3289 = vunpack.c.h.b16 %v2113
    %v3290 = vunpack.c.l.b16 %v2114
    %v3291 = vunpack.c.l.b16 %v2115
    %v3292 = vunpack.c.h.b16 %v2115
    %v3293 = vunpack.c.l.b16 %v2116
    %v3294 = vunpack.c.l.b16 %v2117
    %v3295 = vunpack.c.h.b16 %v2117
    %v3296 = vunpack.c.l.b16 %v2118
    %v3297 = vunpack.c.l.b16 %v2119
    %v3298 = vunpack.c.h.b16 %v2119
    %v3299 = vunpack.c.l.b16 %v2120
    %v3300 = vunpack.c.l.b16 %v2121
    %v3301 = vunpack.c.h.b16 %v2121
    %v3302 = vunpack.c.l.b16 %v2122
    %v3303 = vunpack.c.l.b16 %v2123
    %v3304 = vunpack.c.h.b16 %v2123
    %v3305 = vunpack.c.l.b16 %v2124
    %v3306 = vunpack.c.l.b16 %v2125
    %v3307 = vunpack.c.h.b16 %v2125
    %v3308 = vunpack.c.l.b16 %v2126
    %v3309 = vunpack.c.l.b16 %v2127
    %v3310 = vunpack.c.h.b16 %v2127
    %v3311 = vunpack.c.l.b16 %v2128
    %v3312 = vunpack.c.l.b16 %v2129
    %v3313 = vunpack.c.h.b16 %v2129
    %v3314 = vunpack.c.l.b16 %v2130
    %v3315 = vunpack.c.l.b16 %v2131
    %v3316 = vunpack.c.h.b16 %v2131
    %v3317 = vunpack.c.l.b16 %v2132
    %v3318 = vunpack.c.l.b16 %v2133
    %v3319 = vunpack.c.h.b16 %v2133
    %v3320 = vunpack.c.l.b16 %v2134
    %v3321 = vunpack.c.l.b16 %v2135
    %v3322 = vunpack.c.h.b16 %v2135
    %v3323 = vunpack.c.l.b16 %v2136
    %v3324 = vunpack.c.l.b16 %v2137
    %v3325 = vunpack.c.h.b16 %v2137
    %v3326 = vunpack.c.l.b16 %v2138
    %v3327 = vunpack.c.l.b16 %v2139
    %v3328 = vunpack.c.h.b16 %v2139
    %v3329 = vunpack.c.l.b16 %v2140
    %v3330 = vunpack.c.l.b16 %v2141
    %v3331 = vunpack.c.h.b16 %v2141
    %v3332 = vunpack.c.l.b16 %v2142
    %v3333 = vunpack.c.l.b16 %v2143
    %v3334 = vunpack.c.h.b16 %v2143
    %v3335 = vunpack.c.l.b16 %v2144
    %v3336 = vunpack.c.l.b16 %v2145
    %v3337 = vunpack.c.h.b16 %v2145
    %v3338 = vunpack.c.l.b16 %v2146
    %v3339 = vunpack.c.l.b16 %v2147
    %v3340 = vunpack.c.h.b16 %v2147
    %v3341 = vunpack.c.l.b16 %v2148
    %v3342 = vunpack.c.l.b16 %v2149
    %v3343 = vunpack.c.h.b16 %v2149
    %v3344 = vunpack.c.l.b16 %v2150
    %v3345 = vunpack.c.l.b16 %v2151
    %v3346 = vunpack.c.h.b16 %v2151
    %v3347 = vunpack.c.l.b16 %v2152
    %v3348 = vunpack.c.l.b16 %v2153
    %v3349 = vunpack.c.h.b16 %v2153
    %v3350 = vunpack.c.l.b16 %v2154
    %v3351 = vunpack.c.l.b16 %v2155
    %v3352 = vunpack.c.h.b16 %v2155
    %v3353 = vunpack.c.l.b16 %v2156
    %v3354 = vunpack.c.l.b16 %v2157
    %v3355 = vunpack.c.h.b16 %v2157
    %v3356 = vunpack.c.l.b16 %v2158
    %v3357 = vunpack.c.l.b16 %v2159
    %v3358 = vunpack.c.h.b16 %v2159
    %v3359 = vunpack.c.l.b16 %v2160
    %v3360 = vunpack.c.l.b16 %v2161
    %v3361 = vunpack.c.h.b16 %v2161
    %v3362 = vunpack.c.l.b16 %v2162
    %v3363 = vunpack.c.l.b16 %v2163
    %v3364 = vunpack.c.h.b16 %v2163
    %v3365 = vunpack.c.l.b16 %v2164
    %v3366 = vunpack.c.l.b16 %v2165
    %v3367 = vunpack.c.h.b16 %v2165
    %v3368 = vunpack.c.l.b16 %v2166
    %v3369 = vunpack.c.l.b16 %v2167
    %v3370 = vunpack.c.h.b16 %v2167
    %v3371 = vunpack.c.l.b16 %v2168
    %v3372 = vunpack.c.l.b16 %v2169
    %v3373 = vunpack.c.h.b16 %v2169
    %v3374 = vunpack.c.l.b16 %v2170
    %v3375 = vunpack.c.l.b16 %v2171
    %v3376 = vunpack.c.h.b16 %v2171
    %v3377 = vunpack.c.l.b16 %v2172
    %v3378 = vunpack.c.l.b16 %v2173
    %v3379 = vunpack.c.h.b16 %v2173
    %v3380 = vunpack.c.l.b16 %v2174
    %v3381 = vunpack.c.l.b16 %v2175
    %v3382 = vunpack.c.h.b16 %v2175
    %v3383 = vunpack.c.l.b16 %v2176
    %v3384 = vunpack.c.l.b16 %v2177
    %v3385 = vunpack.c.h.b16 %v2177
    %v3386 = vunpack.c.l.b16 %v2178
    %v3387 = vunpack.c.l.b16 %v2179
    %v3388 = vunpack.c.h.b16 %v2179
    %v3389 = vunpack.c.l.b16 %v2180
    %v3390 = vunpack.c.l.b16 %v2181
    %v3391 = vunpack.c.h.b16 %v2181
    %v3392 = vunpack.c.l.b16 %v2182
    %v3393 = vunpack.c.l.b16 %v2183
    %v3394 = vunpack.c.h.b16 %v2183
    %v3395 = vunpack.c.l.b16 %v2184
    %v3396 = vunpack.c.l.b16 %v2185
    %v3397 = vunpack.c.h.b16 %v2185
    %v3398 = vunpack.c.l.b16 %v2186
    %v3399 = vunpack.c.l.b16 %v2187
    %v3400 = vunpack.c.h.b16 %v2187
    %v3401 = vunpack.c.l.b16 %v2188
    %v3402 = vunpack.c.l.b16 %v2189
    %v3403 = vunpack.c.h.b16 %v2189
    %v3404 = vunpack.c.l.b16 %v2190
    %v3405 = vunpack.c.l.b16 %v2191
    %v3406 = vunpack.c.h.b16 %v2191
    %v3407 = vunpack.c.l.b16 %v2192
    %v3408 = vunpack.c.l.b16 %v2193
    %v3409 = vunpack.c.h.b16 %v2193
    %v3410 = vunpack.c.l.b16 %v2194
    %v3411 = vunpack.c.l.b16 %v2195
    %v3412 = vunpack.c.h.b16 %v2195
    %v3413 = vunpack.c.l.b16 %v2196
    %v3414 = vunpack.c.l.b16 %v2197
    %v3415 = vunpack.c.h.b16 %v2197
    %v3416 = vunpack.c.l.b16 %v2198
    %v3417 = vunpack.c.l.b16 %v2199
    %v3418 = vunpack.c.h.b16 %v2199
    %v3419 = vunpack.c.l.b16 %v2200
    %v3420 = vunpack.c.l.b16 %v2201
    %v3421 = vunpack.c.h.b16 %v2201
    %v3422 = vunpack.c.l.b16 %v2202
    %v3423 = vunpack.c.l.b16 %v2203
    %v3424 = vunpack.c.h.b16 %v2203
    %v3425 = vunpack.c.l.b16 %v2204
    %v3426 = vunpack.c.l.b16 %v2205
    %v3427 = vunpack.c.h.b16 %v2205
    %v3428 = vunpack.c.l.b16 %v2206
    %v3429 = vunpack.c.l.b16 %v2207
    %v3430 = vunpack.c.h.b16 %v2207
    %v3431 = vunpack.c.l.b16 %v2208
    %v3432 = vunpack.c.l.b16 %v2209
    %v3433 = vunpack.c.h.b16 %v2209
    %v3434 = vunpack.c.l.b16 %v2210
    %v3435 = vunpack.c.l.b16 %v2211
    %v3436 = vunpack.c.h.b16 %v2211
    %v3437 = vunpack.c.l.b16 %v2212
    %v3438 = vunpack.c.l.b16 %v2213
    %v3439 = vunpack.c.h.b16 %v2213
    %v3440 = vunpack.c.l.b16 %v2214
    %v3441 = vunpack.c.l.b16 %v2215
    %v3442 = vunpack.c.h.b16 %v2215
    %v3443 = vunpack.c.l.b16 %v2216
    %v3444 = vunpack.c.l.b16 %v2217
    %v3445 = vunpack.c.h.b16 %v2217
    %v3446 = vunpack.c.l.b16 %v2218
    %v3447 = vunpack.c.l.b16 %v2219
    %v3448 = vunpack.c.h.b16 %v2219
    %v3449 = vunpack.c.l.b16 %v2220
    %v3450 = vunpack.c.l.b16 %v2221
    %v3451 = vunpack.c.h.b16 %v2221
    %v3452 = vunpack.c.l.b16 %v2222
    %v3453 = vunpack.c.l.b16 %v2223
    %v3454 = vunpack.c.h.b16 %v2223
    %v3455 = vunpack.c.l.b16 %v2224
    %v3456 = vunpack.c.l.b16 %v2225
    %v3457 = vunpack.c.h.b16 %v2225
    %v3458 = vunpack.c.l.b16 %v2226
    %v3459 = vunpack.c.l.b16 %v2227
    %v3460 = vunpack.c.h.b16 %v2227
    %v3461 = vunpack.c.l.b16 %v2228
    %v3462 = vunpack.c.l.b16 %v2229
    %v3463 = vunpack.c.h.b16 %v2229
    %v3464 = vunpack.c.l.b16 %v2230
    %v3465 = vunpack.c.l.b16 %v2231
    %v3466 = vunpack.c.h.b16 %v2231
    %v3467 = vunpack.c.l.b16 %v2232
    %v3468 = vunpack.c.l.b16 %v2233
    %v3469 = vunpack.c.h.b16 %v2233
    %v3470 = vunpack.c.l.b16 %v2234
    %v3471 = vunpack.c.l.b16 %v2235
    %v3472 = vunpack.c.h.b16 %v2235
    %v3473 = vunpack.c.l.b16 %v2236
    %v3474 = vunpack.c.l.b16 %v2237
    %v3475 = vunpack.c.h.b16 %v2237
    %v3476 = vunpack.c.l.b16 %v2238
    %v3477 = vunpack.c.l.b16 %v2239
    %v3478 = vunpack.c.h.b16 %v2239
    %v3479 = vunpack.c.l.b16 %v2240
    %v3480 = vunpack.c.l.b16 %v2241
    %v3481 = vunpack.c.h.b16 %v2241
    %v3482 = vunpack.c.l.b16 %v2242
    %v3483 = vunpack.c.l.b16 %v2243
    %v3484 = vunpack.c.h.b16 %v2243
    %v3485 = vunpack.c.l.b16 %v2244
    %v3486 = vunpack.c.l.b16 %v2245
    %v3487 = vunpack.c.h.b16 %v2245
    %v3488 = vunpack.c.l.b16 %v2246
    %v3489 = vunpack.c.l.b16 %v2247
    %v3490 = vunpack.c.h.b16 %v2247
    %v3491 = vunpack.c.l.b16 %v2248
    %v3492 = vunpack.c.l.b16 %v2249
    %v3493 = vunpack.c.h.b16 %v2249
    %v3494 = vunpack.c.l.b16 %v2250
    %v3495 = vunpack.c.l.b16 %v2251
    %v3496 = vunpack.c.h.b16 %v2251
    %v3497 = vunpack.c.l.b16 %v2252
    %v3498 = vunpack.c.l.b16 %v2253
    %v3499 = vunpack.c.h.b16 %v2253
    %v3500 = vunpack.c.l.b16 %v2254
    %v3501 = vunpack.c.l.b16 %v2255
    %v3502 = vunpack.c.h.b16 %v2255
    %v3503 = vunpack.c.l.b16 %v2256
    %v3504 = vunpack.c.l.b16 %v2257
    %v3505 = vunpack.c.h.b16 %v2257
    %v3506 = vunpack.c.l.b16 %v2258
    %v3507 = vunpack.c.l.b16 %v2259
    %v3508 = vunpack.c.h.b16 %v2259
    %v3509 = vunpack.c.l.b16 %v2260
    %v3510 = vunpack.c.l.b16 %v2261
    %v3511 = vunpack.c.h.b16 %v2261
    %v3512 = vunpack.c.l.b16 %v2262
    %v3513 = vunpack.c.l.b16 %v2263
    %v3514 = vunpack.c.h.b16 %v2263
    %v3515 = vunpack.c.l.b16 %v2264
    %v3516 = vunpack.c.l.b16 %v2265
    %v3517 = vunpack.c.h.b16 %v2265
    %v3518 = vunpack.c.l.b16 %v2266
    %v3519 = vunpack.c.l.b16 %v2267
    %v3520 = vunpack.c.h.b16 %v2267
    %v3521 = vunpack.c.l.b16 %v2268
    %v3522 = vunpack.c.l.b16 %v2269
    %v3523 = vunpack.c.h.b16 %v2269
    %v3524 = vunpack.c.l.b16 %v2270
    %v3525 = vunpack.c.l.b16 %v2271
    %v3526 = vunpack.c.h.b16 %v2271
    %v3527 = vunpack.c.l.b16 %v2272
    %v3528 = vunpack.c.l.b16 %v2273
    %v3529 = vunpack.c.h.b16 %v2273
    %v3530 = vunpack.c.l.b16 %v2274
    %v3531 = vunpack.c.l.b16 %v2275
    %v3532 = vunpack.c.h.b16 %v2275
    %v3533 = vunpack.c.l.b16 %v2276
    %v3534 = vunpack.c.l.b16 %v2277
    %v3535 = vunpack.c.h.b16 %v2277
    %v3536 = vunpack.c.l.b16 %v2278
    %v3537 = vunpack.c.l.b16 %v2279
    %v3538 = vunpack.c.h.b16 %v2279
    %v3539 = vunpack.c.l.b16 %v2280
    %v3540 = vunpack.c.l.b16 %v2281
    %v3541 = vunpack.c.h.b16 %v2281
    %v3542 = vunpack.c.l.b16 %v2282
    %v3543 = vunpack.c.l.b16 %v2283
    %v3544 = vunpack.c.h.b16 %v2283
    %v3545 = vunpack.c.l.b16 %v2284
    %v3546 = vunpack.c.l.b16 %v2285
    %v3547 = vunpack.c.h.b16 %v2285
    %v3548 = vunpack.c.l.b16 %v2286
    %v3549 = vunpack.c.l.b16 %v2287
    %v3550 = vunpack.c.h.b16 %v2287
    %v3551 = vunpack.c.l.b16 %v2288
    %v3552 = vunpack.c.l.b16 %v2289
    %v3553 = vunpack.c.h.b16 %v2289
    %v3554 = vunpack.c.l.b16 %v2290
    %v3555 = vunpack.c.l.b16 %v2291
    %v3556 = vunpack.c.h.b16 %v2291
    %v3557 = vunpack.c.l.b16 %v2292
    %v3558 = vunpack.c.l.b16 %v2293
    %v3559 = vunpack.c.h.b16 %v2293
    %v3560 = vunpack.c.l.b16 %v2294
    %v3561 = vunpack.c.l.b16 %v2295
    %v3562 = vunpack.c.h.b16 %v2295
    %v3563 = vunpack.c.l.b16 %v2296
    %v3564 = vunpack.c.l.b16 %v2297
    %v3565 = vunpack.c.h.b16 %v2297
    %v3566 = vunpack.c.l.b16 %v2298
    %v3567 = vunpack.c.l.b16 %v2299
    %v3568 = vunpack.c.h.b16 %v2299
    %v3569 = vunpack.c.l.b16 %v2300
    %v3570 = vunpack.c.l.b16 %v2301
    %v3571 = vunpack.c.h.b16 %v2301
    %v3572 = vunpack.c.l.b16 %v2302
    %v3573 = vunpack.c.l.b16 %v2303
    %v3574 = vunpack.c.h.b16 %v2303
    %v3575 = vunpack.c.l.b16 %v2304
    %v3576 = vunpack.c.l.b16 %v2305
    %v3577 = vunpack.c.h.b16 %v2305
    %v3578 = vunpack.c.l.b16 %v2306
    %v3579 = vunpack.c.l.b16 %v2307
    %v3580 = vunpack.c.h.b16 %v2307
    %v3581 = vunpack.c.l.b16 %v2308
    %v3582 = vunpack.c.l.b16 %v2309
    %v3583 = vunpack.c.h.b16 %v2309
    %v3584 = vunpack.c.l.b16 %v2310
    %v3585 = vunpack.c.l.b16 %v2311
    %v3586 = vunpack.c.h.b16 %v2311
    %v3587 = vunpack.c.l.b16 %v2312
    %v3588 = vunpack.c.l.b16 %v2313
    %v3589 = vunpack.c.h.b16 %v2313
    %v3590 = vunpack.c.l.b16 %v2314
    %v3591 = vunpack.c.l.b16 %v2315
    %v3592 = vunpack.c.h.b16 %v2315
    %v3593 = vunpack.c.l.b16 %v2316
    %v3594 = vunpack.c.l.b16 %v2317
    %v3595 = vunpack.c.h.b16 %v2317
    %v3596 = vunpack.c.l.b16 %v2318
    %v3597 = vunpack.c.l.b16 %v2319
    %v3598 = vunpack.c.h.b16 %v2319
    %v3599 = vunpack.c.l.b16 %v2320
    %v3600 = vunpack.c.l.b16 %v2321
    %v3601 = vunpack.c.h.b16 %v2321
    %v3602 = vunpack.c.l.b16 %v2322
    %v3603 = vunpack.c.l.b16 %v2323
    %v3604 = vunpack.c.h.b16 %v2323
    %v3605 = vunpack.c.l.b16 %v2324
    %v3606 = vunpack.c.l.b16 %v2325
    %v3607 = vunpack.c.h.b16 %v2325
    %v3608 = vunpack.c.l.b16 %v2326
    %v3609 = vunpack.c.l.b16 %v2327
    %v3610 = vunpack.c.h.b16 %v2327
    %v3611 = vunpack.c.l.b16 %v2328
    %v3612 = vunpack.c.l.b16 %v2329
    %v3613 = vunpack.c.h.b16 %v2329
    %v3614 = vunpack.c.l.b16 %v2330
    %v3615 = vunpack.c.l.b16 %v2331
    %v3616 = vunpack.c.h.b16 %v2331
    %v3617 = vunpack.c.l.b16 %v2332
    %v3618 = vunpack.c.l.b16 %v2333
    %v3619 = vunpack.c.h.b16 %v2333
    %v3620 = vunpack.c.l.b16 %v2334
    %v3621 = vunpack.c.l.b16 %v2335
    %v3622 = vunpack.c.h.b16 %v2335
    %v3623 = vunpack.c.l.b16 %v2336
    %v3624 = vunpack.c.l.b16 %v2337
    %v3625 = vunpack.c.h.b16 %v2337
    %v3626 = vunpack.c.l.b16 %v2338
    %v3627 = vunpack.c.l.b16 %v2339
    %v3628 = vunpack.c.h.b16 %v2339
    %v3629 = vunpack.c.l.b16 %v2340
    %v3630 = vunpack.c.l.b16 %v2341
    %v3631 = vunpack.c.h.b16 %v2341
    %v3632 = vunpack.c.l.b16 %v2342
    %v3633 = vunpack.c.l.b16 %v2343
    %v3634 = vunpack.c.h.b16 %v2343
    %v3635 = vunpack.c.l.b16 %v2344
    %v3636 = vunpack.c.l.b16 %v2345
    %v3637 = vunpack.c.h.b16 %v2345
    %v3638 = vunpack.c.l.b16 %v2346
    %v3639 = vunpack.c.l.b16 %v2347
    %v3640 = vunpack.c.h.b16 %v2347
    %v3641 = vunpack.c.l.b16 %v2348
    %v3642 = vunpack.c.l.b16 %v2349
    %v3643 = vunpack.c.h.b16 %v2349
    %v3644 = vunpack.c.l.b16 %v2350
    %v3645 = vunpack.c.l.b16 %v2351
    %v3646 = vunpack.c.h.b16 %v2351
    %v3647 = vunpack.c.l.b16 %v2352
    %v3648 = vunpack.c.l.b16 %v2353
    %v3649 = vunpack.c.h.b16 %v2353
    %v3650 = vunpack.c.l.b16 %v2354
    %v3651 = vunpack.c.l.b16 %v2355
    %v3652 = vunpack.c.h.b16 %v2355
    %v3653 = vunpack.c.l.b16 %v2356
    %v3654 = vpack.c.b16 %v2889, %v2886
    %v3655 = vpack.c.b16 %v2890, %v2887
    %v3656 = vpack.c.b16 %v2891, %v2888
    %v3657 = vpack.c.b16 %v2895, %v2892
    %v3658 = vpack.c.b16 %v2896, %v2893
    %v3659 = vpack.c.b16 %v2897, %v2894
    %v3660 = vpack.c.b16 %v2901, %v2898
    %v3661 = vpack.c.b16 %v2902, %v2899
    %v3662 = vpack.c.b16 %v2903, %v2900
    %v3663 = vpack.c.b16 %v2907, %v2904
    %v3664 = vpack.c.b16 %v2908, %v2905
    %v3665 = vpack.c.b16 %v2909, %v2906
    %v3666 = vpack.c.b16 %v2913, %v2910
    %v3667 = vpack.c.b16 %v2914, %v2911
    %v3668 = vpack.c.b16 %v2915, %v2912
    %v3669 = vpack.c.b16 %v2919, %v2916
    %v3670 = vpack.c.b16 %v2920, %v2917
    %v3671 = vpack.c.b16 %v2921, %v2918
    %v3672 = vpack.c.b16 %v2925, %v2922
    %v3673 = vpack.c.b16 %v2926, %v2923
    %v3674 = vpack.c.b16 %v2927, %v2924
    %v3675 = vpack.c.b16 %v2931, %v2928
    %v3676 = vpack.c.b16 %v2932, %v2929
    %v3677 = vpack.c.b16 %v2933, %v2930
    %v3678 = vpack.c.b16 %v2937, %v2934
    %v3679 = vpack.c.b16 %v2938, %v2935
    %v3680 = vpack.c.b16 %v2939, %v2936
    %v3681 = vpack.c.b16 %v2943, %v2940
    %v3682 = vpack.c.b16 %v2944, %v2941
    %v3683 = vpack.c.b16 %v2945, %v2942
    %v3684 = vpack.c.b16 %v2949, %v2946
    %v3685 = vpack.c.b16 %v2950, %v2947
    %v3686 = vpack.c.b16 %v2951, %v2948
    %v3687 = vpack.c.b16 %v2955, %v2952
    %v3688 = vpack.c.b16 %v2956, %v2953
    %v3689 = vpack.c.b16 %v2957, %v2954
    %v3690 = vpack.c.b16 %v2961, %v2958
    %v3691 = vpack.c.b16 %v2962, %v2959
    %v3692 = vpack.c.b16 %v2963, %v2960
    %v3693 = vpack.c.b16 %v2967, %v2964
    %v3694 = vpack.c.b16 %v2968, %v2965
    %v3695 = vpack.c.b16 %v2969, %v2966
    %v3696 = vpack.c.b16 %v2973, %v2970
    %v3697 = vpack.c.b16 %v2974, %v2971
    %v3698 = vpack.c.b16 %v2975, %v2972
    %v3699 = vpack.c.b16 %v2979, %v2976
    %v3700 = vpack.c.b16 %v2980, %v2977
    %v3701 = vpack.c.b16 %v2981, %v2978
    %v3702 = vpack.c.b16 %v2985, %v2982
    %v3703 = vpack.c.b16 %v2986, %v2983
    %v3704 = vpack.c.b16 %v2987, %v2984
    %v3705 = vpack.c.b16 %v2991, %v2988
    %v3706 = vpack.c.b16 %v2992, %v2989
    %v3707 = vpack.c.b16 %v2993, %v2990
    %v3708 = vpack.c.b16 %v2997, %v2994
    %v3709 = vpack.c.b16 %v2998, %v2995
    %v3710 = vpack.c.b16 %v2999, %v2996
    %v3711 = vpack.c.b16 %v3003, %v3000
    %v3712 = vpack.c.b16 %v3004, %v3001
    %v3713 = vpack.c.b16 %v3005, %v3002
    %v3714 = vpack.c.b16 %v3009, %v3006
    %v3715 = vpack.c.b16 %v3010, %v3007
    %v3716 = vpack.c.b16 %v3011, %v3008
    %v3717 = vpack.c.b16 %v3015, %v3012
    %v3718 = vpack.c.b16 %v3016, %v3013
    %v3719 = vpack.c.b16 %v3017, %v3014
    %v3720 = vpack.c.b16 %v3021, %v3018
    %v3721 = vpack.c.b16 %v3022, %v3019
    %v3722 = vpack.c.b16 %v3023, %v3020
    %v3723 = vpack.c.b16 %v3027, %v3024
    %v3724 = vpack.c.b16 %v3028, %v3025
    %v3725 = vpack.c.b16 %v3029, %v3026
    %v3726 = vpack.c.b16 %v3033, %v3030
    %v3727 = vpack.c.b16 %v3034, %v3031
    %v3728 = vpack.c.b16 %v3035, %v3032
    %v3729 = vpack.c.b16 %v3039, %v3036
    %v3730 = vpack.c.b16 %v3040, %v3037
    %v3731 = vpack.c.b16 %v3041, %v3038
    %v3732 = vpack.c.b16 %v3045, %v3042
    %v3733 = vpack.c.b16 %v3046, %v3043
    %v3734 = vpack.c.b16 %v3047, %v3044
    %v3735 = vpack.c.b16 %v3051, %v3048
    %v3736 = vpack.c.b16 %v3052, %v3049
    %v3737 = vpack.c.b16 %v3053, %v3050
    %v3738 = vpack.c.b16 %v3057, %v3054
    %v3739 = vpack.c.b16 %v3058, %v3055
    %v3740 = vpack.c.b16 %v3059, %v3056
    %v3741 = vpack.c.b16 %v3063, %v3060
    %v3742 = vpack.c.b16 %v3064, %v3061
    %v3743 = vpack.c.b16 %v3065, %v3062
    %v3744 = vpack.c.b16 %v3069, %v3066
    %v3745 = vpack.c.b16 %v3070, %v3067
    %v3746 = vpack.c.b16 %v3071, %v3068
    %v3747 = vpack.c.b16 %v3075, %v3072
    %v3748 = vpack.c.b16 %v3076, %v3073
    %v3749 = vpack.c.b16 %v3077, %v3074
    %v3750 = vpack.c.b16 %v3081, %v3078
    %v3751 = vpack.c.b16 %v3082, %v3079
    %v3752 = vpack.c.b16 %v3083, %v3080
    %v3753 = vpack.c.b16 %v3087, %v3084
    %v3754 = vpack.c.b16 %v3088, %v3085
    %v3755 = vpack.c.b16 %v3089, %v3086
    %v3756 = vpack.c.b16 %v3093, %v3090
    %v3757 = vpack.c.b16 %v3094, %v3091
    %v3758 = vpack.c.b16 %v3095, %v3092
    %v3759 = vpack.c.b16 %v3099, %v3096
    %v3760 = vpack.c.b16 %v3100, %v3097
    %v3761 = vpack.c.b16 %v3101, %v3098
    %v3762 = vpack.c.b16 %v3105, %v3102
    %v3763 = vpack.c.b16 %v3106, %v3103
    %v3764 = vpack.c.b16 %v3107, %v3104
    %v3765 = vpack.c.b16 %v3111, %v3108
    %v3766 = vpack.c.b16 %v3112, %v3109
    %v3767 = vpack.c.b16 %v3113, %v3110
    %v3768 = vpack.c.b16 %v3117, %v3114
    %v3769 = vpack.c.b16 %v3118, %v3115
    %v3770 = vpack.c.b16 %v3119, %v3116
    %v3771 = vpack.c.b16 %v3123, %v3120
    %v3772 = vpack.c.b16 %v3124, %v3121
    %v3773 = vpack.c.b16 %v3125, %v3122
    %v3774 = vpack.c.b16 %v3129, %v3126
    %v3775 = vpack.c.b16 %v3130, %v3127
    %v3776 = vpack.c.b16 %v3131, %v3128
    %v3777 = vpack.c.b16 %v3135, %v3132
    %v3778 = vpack.c.b16 %v3136, %v3133
    %v3779 = vpack.c.b16 %v3137, %v3134
    %v3780 = vpack.c.b16 %v3141, %v3138
    %v3781 = vpack.c.b16 %v3142, %v3139
    %v3782 = vpack.c.b16 %v3143, %v3140
    %v3783 = vpack.c.b16 %v3147, %v3144
    %v3784 = vpack.c.b16 %v3148, %v3145
    %v3785 = vpack.c.b16 %v3149, %v3146
    %v3786 = vpack.c.b16 %v3153, %v3150
    %v3787 = vpack.c.b16 %v3154, %v3151
    %v3788 = vpack.c.b16 %v3155, %v3152
    %v3789 = vpack.c.b16 %v3159, %v3156
    %v3790 = vpack.c.b16 %v3160, %v3157
    %v3791 = vpack.c.b16 %v3161, %v3158
    %v3792 = vpack.c.b16 %v3165, %v3162
    %v3793 = vpack.c.b16 %v3166, %v3163
    %v3794 = vpack.c.b16 %v3167, %v3164
    %v3795 = vpack.c.b16 %v3171, %v3168
    %v3796 = vpack.c.b16 %v3172, %v3169
    %v3797 = vpack.c.b16 %v3173, %v3170
    %v3798 = vpack.c.b16 %v3177, %v3174
    %v3799 = vpack.c.b16 %v3178, %v3175
    %v3800 = vpack.c.b16 %v3179, %v3176
    %v3801 = vpack.c.b16 %v3183, %v3180
    %v3802 = vpack.c.b16 %v3184, %v3181
    %v3803 = vpack.c.b16 %v3185, %v3182
    %v3804 = vpack.c.b16 %v3189, %v3186
    %v3805 = vpack.c.b16 %v3190, %v3187
    %v3806 = vpack.c.b16 %v3191, %v3188
    %v3807 = vpack.c.b16 %v3195, %v3192
    %v3808 = vpack.c.b16 %v3196, %v3193
    %v3809 = vpack.c.b16 %v3197, %v3194
    %v3810 = vpack.c.b16 %v3201, %v3198
    %v3811 = vpack.c.b16 %v3202, %v3199
    %v3812 = vpack.c.b16 %v3203, %v3200
    %v3813 = vpack.c.b16 %v3207, %v3204
    %v3814 = vpack.c.b16 %v3208, %v3205
    %v3815 = vpack.c.b16 %v3209, %v3206
    %v3816 = vpack.c.b16 %v3213, %v3210
    %v3817 = vpack.c.b16 %v3214, %v3211
    %v3818 = vpack.c.b16 %v3215, %v3212
    %v3819 = vpack.c.b16 %v3219, %v3216
    %v3820 = vpack.c.b16 %v3220, %v3217
    %v3821 = vpack.c.b16 %v3221, %v3218
    %v3822 = vpack.c.b16 %v3225, %v3222
    %v3823 = vpack.c.b16 %v3226, %v3223
    %v3824 = vpack.c.b16 %v3227, %v3224
    %v3825 = vpack.c.b16 %v3231, %v3228
    %v3826 = vpack.c.b16 %v3232, %v3229
    %v3827 = vpack.c.b16 %v3233, %v3230
    %v3828 = vpack.c.b16 %v3237, %v3234
    %v3829 = vpack.c.b16 %v3238, %v3235
    %v3830 = vpack.c.b16 %v3239, %v3236
    %v3831 = vpack.c.b16 %v3243, %v3240
    %v3832 = vpack.c.b16 %v3244, %v3241
    %v3833 = vpack.c.b16 %v3245, %v3242
    %v3834 = vpack.c.b16 %v3249, %v3246
    %v3835 = vpack.c.b16 %v3250, %v3247
    %v3836 = vpack.c.b16 %v3251, %v3248
    %v3837 = vpack.c.b16 %v3255, %v3252
    %v3838 = vpack.c.b16 %v3256, %v3253
    %v3839 = vpack.c.b16 %v3257, %v3254
    %v3840 = vpack.c.b16 %v3261, %v3258
    %v3841 = vpack.c.b16 %v3262, %v3259
    %v3842 = vpack.c.b16 %v3263, %v3260
    %v3843 = vpack.c.b16 %v3267, %v3264
    %v3844 = vpack.c.b16 %v3268, %v3265
    %v3845 = vpack.c.b16 %v3269, %v3266
    %v3846 = vpack.c.b16 %v3273, %v3270
    %v3847 = vpack.c.b16 %v3274, %v3271
    %v3848 = vpack.c.b16 %v3275, %v3272
    %v3849 = vpack.c.b16 %v3279, %v3276
    %v3850 = vpack.c.b16 %v3280, %v3277
    %v3851 = vpack.c.b16 %v3281, %v3278
    %v3852 = vpack.c.b16 %v3285, %v3282
    %v3853 = vpack.c.b16 %v3286, %v3283
    %v3854 = vpack.c.b16 %v3287, %v3284
    %v3855 = vpack.c.b16 %v3291, %v3288
    %v3856 = vpack.c.b16 %v3292, %v3289
    %v3857 = vpack.c.b16 %v3293, %v3290
    %v3858 = vpack.c.b16 %v3297, %v3294
    %v3859 = vpack.c.b16 %v3298, %v3295
    %v3860 = vpack.c.b16 %v3299, %v3296
    %v3861 = vpack.c.b16 %v3303, %v3300
    %v3862 = vpack.c.b16 %v3304, %v3301
    %v3863 = vpack.c.b16 %v3305, %v3302
    %v3864 = vpack.c.b16 %v3309, %v3306
    %v3865 = vpack.c.b16 %v3310, %v3307
    %v3866 = vpack.c.b16 %v3311, %v3308
    %v3867 = vpack.c.b16 %v3315, %v3312
    %v3868 = vpack.c.b16 %v3316, %v3313
    %v3869 = vpack.c.b16 %v3317, %v3314
    %v3870 = vpack.c.b16 %v3321, %v3318
    %v3871 = vpack.c.b16 %v3322, %v3319
    %v3872 = vpack.c.b16 %v3323, %v3320
    %v3873 = vpack.c.b16 %v3327, %v3324
    %v3874 = vpack.c.b16 %v3328, %v3325
    %v3875 = vpack.c.b16 %v3329, %v3326
    %v3876 = vpack.c.b16 %v3333, %v3330
    %v3877 = vpack.c.b16 %v3334, %v3331
    %v3878 = vpack.c.b16 %v3335, %v3332
    %v3879 = vpack.c.b16 %v3339, %v3336
    %v3880 = vpack.c.b16 %v3340, %v3337
    %v3881 = vpack.c.b16 %v3341, %v3338
    %v3882 = vpack.c.b16 %v3345, %v3342
    %v3883 = vpack.c.b16 %v3346, %v3343
    %v3884 = vpack.c.b16 %v3347, %v3344
    %v3885 = vpack.c.b16 %v3351, %v3348
    %v3886 = vpack.c.b16 %v3352, %v3349
    %v3887 = vpack.c.b16 %v3353, %v3350
    %v3888 = vpack.c.b16 %v3357, %v3354
    %v3889 = vpack.c.b16 %v3358, %v3355
    %v3890 = vpack.c.b16 %v3359, %v3356
    %v3891 = vpack.c.b16 %v3363, %v3360
    %v3892 = vpack.c.b16 %v3364, %v3361
    %v3893 = vpack.c.b16 %v3365, %v3362
    %v3894 = vpack.c.b16 %v3369, %v3366
    %v3895 = vpack.c.b16 %v3370, %v3367
    %v3896 = vpack.c.b16 %v3371, %v3368
    %v3897 = vpack.c.b16 %v3375, %v3372
    %v3898 = vpack.c.b16 %v3376, %v3373
    %v3899 = vpack.c.b16 %v3377, %v3374
    %v3900 = vpack.c.b16 %v3381, %v3378
    %v3901 = vpack.c.b16 %v3382, %v3379
    %v3902 = vpack.c.b16 %v3383, %v3380
    %v3903 = vpack.c.b16 %v3387, %v3384
    %v3904 = vpack.c.b16 %v3388, %v3385
    %v3905 = vpack.c.b16 %v3389, %v3386
    %v3906 = vpack.c.b16 %v3393, %v3390
    %v3907 = vpack.c.b16 %v3394, %v3391
    %v3908 = vpack.c.b16 %v3395, %v3392
    %v3909 = vpack.c.b16 %v3399, %v3396
    %v3910 = vpack.c.b16 %v3400, %v3397
    %v3911 = vpack.c.b16 %v3401, %v3398
    %v3912 = vpack.c.b16 %v3405, %v3402
    %v3913 = vpack.c.b16 %v3406, %v3403
    %v3914 = vpack.c.b16 %v3407, %v3404
    %v3915 = vpack.c.b16 %v3411, %v3408
    %v3916 = vpack.c.b16 %v3412, %v3409
    %v3917 = vpack.c.b16 %v3413, %v3410
    %v3918 = vpack.c.b16 %v3417, %v3414
    %v3919 = vpack.c.b16 %v3418, %v3415
    %v3920 = vpack.c.b16 %v3419, %v3416
    %v3921 = vpack.c.b16 %v3423, %v3420
    %v3922 = vpack.c.b16 %v3424, %v3421
    %v3923 = vpack.c.b16 %v3425, %v3422
    %v3924 = vpack.c.b16 %v3429, %v3426
    %v3925 = vpack.c.b16 %v3430, %v3427
    %v3926 = vpack.c.b16 %v3431, %v3428
    %v3927 = vpack.c.b16 %v3435, %v3432
    %v3928 = vpack.c.b16 %v3436, %v3433
    %v3929 = vpack.c.b16 %v3437, %v3434
    %v3930 = vpack.c.b16 %v3441, %v3438
    %v3931 = vpack.c.b16 %v3442, %v3439
    %v3932 = vpack.c.b16 %v3443, %v3440
    %v3933 = vpack.c.b16 %v3447, %v3444
    %v3934 = vpack.c.b16 %v3448, %v3445
    %v3935 = vpack.c.b16 %v3449, %v3446
    %v3936 = vpack.c.b16 %v3453, %v3450
    %v3937 = vpack.c.b16 %v3454, %v3451
    %v3938 = vpack.c.b16 %v3455, %v3452
    %v3939 = vpack.c.b16 %v3459, %v3456
    %v3940 = vpack.c.b16 %v3460, %v3457
    %v3941 = vpack.c.b16 %v3461, %v3458
    %v3942 = vpack.c.b16 %v3465, %v3462
    %v3943 = vpack.c.b16 %v3466, %v3463
    %v3944 = vpack.c.b16 %v3467, %v3464
    %v3945 = vpack.c.b16 %v3471, %v3468
    %v3946 = vpack.c.b16 %v3472, %v3469
    %v3947 = vpack.c.b16 %v3473, %v3470
    %v3948 = vpack.c.b16 %v3477, %v3474
    %v3949 = vpack.c.b16 %v3478, %v3475
    %v3950 = vpack.c.b16 %v3479, %v3476
    %v3951 = vpack.c.b16 %v3483, %v3480
    %v3952 = vpack.c.b16 %v3484, %v3481
    %v3953 = vpack.c.b16 %v3485, %v3482
    %v3954 = vpack.c.b16 %v3489, %v3486
    %v3955 = vpack.c.b16 %v3490, %v3487
    %v3956 = vpack.c.b16 %v3491, %v3488
    %v3957 = vpack.c.b16 %v3495, %v3492
    %v3958 = vpack.c.b16 %v3496, %v3493
    %v3959 = vpack.c.b16 %v3497, %v3494
    %v3960 = vpack.c.b16 %v3501, %v3498
    %v3961 = vpack.c.b16 %v3502, %v3499
    %v3962 = vpack.c.b16 %v3503, %v3500
    %v3963 = vpack.c.b16 %v3507, %v3504
    %v3964 = vpack.c.b16 %v3508, %v3505
    %v3965 = vpack.c.b16 %v3509, %v3506
    %v3966 = vpack.c.b16 %v3513, %v3510
    %v3967 = vpack.c.b16 %v3514, %v3511
    %v3968 = vpack.c.b16 %v3515, %v3512
    %v3969 = vpack.c.b16 %v3519, %v3516
    %v3970 = vpack.c.b16 %v3520, %v3517
    %v3971 = vpack.c.b16 %v3521, %v3518
    %v3972 = vpack.c.b16 %v3525, %v3522
    %v3973 = vpack.c.b16 %v3526, %v3523
    %v3974 = vpack.c.b16 %v3527, %v3524
    %v3975 = vpack.c.b16 %v3531, %v3528
    %v3976 = vpack.c.b16 %v3532, %v3529
    %v3977 = vpack.c.b16 %v3533, %v3530
    %v3978 = vpack.c.b16 %v3537, %v3534
    %v3979 = vpack.c.b16 %v3538, %v3535
    %v3980 = vpack.c.b16 %v3539, %v3536
    %v3981 = vpack.c.b16 %v3543, %v3540
    %v3982 = vpack.c.b16 %v3544, %v3541
    %v3983 = vpack.c.b16 %v3545, %v3542
    %v3984 = vpack.c.b16 %v3549, %v3546
    %v3985 = vpack.c.b16 %v3550, %v3547
    %v3986 = vpack.c.b16 %v3551, %v3548
    %v3987 = vpack.c.b16 %v3555, %v3552
    %v3988 = vpack.c.b16 %v3556, %v3553
    %v3989 = vpack.c.b16 %v3557, %v3554
    %v3990 = vpack.c.b16 %v3561, %v3558
    %v3991 = vpack.c.b16 %v3562, %v3559
    %v3992 = vpack.c.b16 %v3563, %v3560
    %v3993 = vpack.c.b16 %v3567, %v3564
    %v3994 = vpack.c.b16 %v3568, %v3565
    %v3995 = vpack.c.b16 %v3569, %v3566
    %v3996 = vpack.c.b16 %v3573, %v3570
    %v3997 = vpack.c.b16 %v3574, %v3571
    %v3998 = vpack.c.b16 %v3575, %v3572
    %v3999 = vpack.c.b16 %v3579, %v3576
    %v4000 = vpack.c.b16 %v3580, %v3577
    %v4001 = vpack.c.b16 %v3581, %v3578
    %v4002 = vpack.c.b16 %v3585, %v3582
    %v4003 = vpack.c.b16 %v3586, %v3583
    %v4004 = vpack.c.b16 %v3587, %v3584
    %v4005 = vpack.c.b16 %v3591, %v3588
    %v4006 = vpack.c.b16 %v3592, %v3589
    %v4007 = vpack.c.b16 %v3593, %v3590
    %v4008 = vpack.c.b16 %v3597, %v3594
    %v4009 = vpack.c.b16 %v3598, %v3595
    %v4010 = vpack.c.b16 %v3599, %v3596
    %v4011 = vpack.c.b16 %v3603, %v3600
    %v4012 = vpack.c.b16 %v3604, %v3601
    %v4013 = vpack.c.b16 %v3605, %v3602
    %v4014 = vpack.c.b16 %v3609, %v3606
    %v4015 = vpack.c.b16 %v3610, %v3607
    %v4016 = vpack.c.b16 %v3611, %v3608
    %v4017 = vpack.c.b16 %v3615, %v3612
    %v4018 = vpack.c.b16 %v3616, %v3613
    %v4019 = vpack.c.b16 %v3617, %v3614
    %v4020 = vpack.c.b16 %v3621, %v3618
    %v4021 = vpack.c.b16 %v3622, %v3619
    %v4022 = vpack.c.b16 %v3623, %v3620
    %v4023 = vpack.c.b16 %v3627, %v3624
    %v4024 = vpack.c.b16 %v3628, %v3625
    %v4025 = vpack.c.b16 %v3629, %v3626
    %v4026 = vpack.c.b16 %v3633, %v3630
    %v4027 = vpack.c.b16 %v3634, %v3631
    %v4028 = vpack.c.b16 %v3635, %v3632
    %v4029 = vpack.c.b16 %v3639, %v3636
    %v4030 = vpack.c.b16 %v3640, %v3637
    %v4031 = vpack.c.b16 %v3641, %v3638
    %v4032 = vpack.c.b16 %v3645, %v3642
    %v4033 = vpack.c.b16 %v3646, %v3643
    %v4034 = vpack.c.b16 %v3647, %v3644
    %v4035 = vpack.c.b16 %v3651, %v3648
    %v4036 = vpack.c.b16 %v3652, %v3649
    %v4037 = vpack.c.b16 %v3653, %v3650
    %4422 = vmatprep.subr.bf16.mxu0 %v3676
    %4423 = vmatpush1.bf16.msra.mxu0 %v3675
    %4424 = vmatprep.subr.bf16.mxu0 %v3673
    %4425 = vmatpush1.bf16.msra.mxu0 %v3672
    %4426 = vmatprep.subr.bf16.mxu0 %v3670
    %4427 = vmatpush1.bf16.msra.mxu0 %v3669
    %4428 = vmatprep.subr.bf16.mxu0 %v3667
    %4429 = vmatpush1.bf16.msra.mxu0 %v3666
    %4430 = vmatprep.subr.bf16.mxu0 %v3664
    %4431 = vmatpush1.bf16.msra.mxu0 %v3663
    %4432 = vmatprep.subr.bf16.mxu0 %v3661
    %4433 = vmatpush1.bf16.msra.mxu0 %v3660
    %4434 = vmatprep.subr.bf16.mxu0 %v3658
    %4435 = vmatpush1.bf16.msra.mxu0 %v3657
    %4436 = vmatprep.subr.bf16.mxu0 %v3655
    %4437 = vmatpush1.bf16.msra.mxu0 %v3654
    %4438 = vmatprep.subr.bf16.mxu0 %v3700
    %4439 = vmatpush2.bf16.msra.mxu0 %v3699
    %4440 = vmatprep.subr.bf16.mxu0 %v3697
    %4441 = vmatpush2.bf16.msra.mxu0 %v3696
    %4442 = vmatprep.subr.bf16.mxu0 %v3694
    %4443 = vmatpush2.bf16.msra.mxu0 %v3693
    %4444 = vmatprep.subr.bf16.mxu0 %v3691
    %4445 = vmatpush2.bf16.msra.mxu0 %v3690
    %4446 = vmatprep.subr.bf16.mxu0 %v3688
    %4447 = vmatpush2.bf16.msra.mxu0 %v3687
    %4448 = vmatprep.subr.bf16.mxu0 %v3685
    %4449 = vmatpush2.bf16.msra.mxu0 %v3684
    %4450 = vmatprep.subr.bf16.mxu0 %v3682
    %4451 = vmatpush2.bf16.msra.mxu0 %v3681
    %4452 = vmatprep.subr.bf16.mxu0 %v3679
    %4453 = vmatpush2.bf16.msra.mxu0 %v3678
    %4454 = vmatprep.mubr.bf16.mxu0 %v1814
    %4455 = vmatmul.mubr.bf16.gmra.mxu0 %v1813
    %v4456 = vpop.f32.mrf.mxu0
    %v4457 = vadd.f32 %v2362, %v4456
    %v4458 = vpop.f32.mrf.mxu0
    %v4459 = vadd.f32 %v2366, %v4458
    %v4460 = vpop.f32.mrf.mxu0
    %v4461 = vadd.f32 %v2362, %v4460
    %v4462 = vpop.f32.mrf.mxu0
    %v4463 = vadd.f32 %v2366, %v4462
    %4464 = vmatprep.mubr.bf16.mxu0 %v1830
    %4465 = vmatmul.mubr.bf16.gmra.mxu0 %v1829
    %v4466 = vpop.f32.mrf.mxu0
    %v4467 = vadd.f32 %v2362, %v4466
    %v4468 = vpop.f32.mrf.mxu0
    %v4469 = vadd.f32 %v2366, %v4468
    %v4470 = vpop.f32.mrf.mxu0
    %v4471 = vpop.f32.mrf.mxu0
    %4472 = vdwg.mxu0
    %4473 = vmatprep.subr.bf16.mxu0 %v3724
    %4474 = vmatpush1.bf16.msra.mxu0 %v3723
    %4475 = vmatprep.subr.bf16.mxu0 %v3721
    %4476 = vmatpush1.bf16.msra.mxu0 %v3720
    %4477 = vmatprep.subr.bf16.mxu0 %v3718
    %4478 = vmatpush1.bf16.msra.mxu0 %v3717
    %4479 = vmatprep.subr.bf16.mxu0 %v3715
    %4480 = vmatpush1.bf16.msra.mxu0 %v3714
    %4481 = vmatprep.subr.bf16.mxu0 %v3712
    %4482 = vmatpush1.bf16.msra.mxu0 %v3711
    %4483 = vmatprep.subr.bf16.mxu0 %v3709
    %4484 = vmatpush1.bf16.msra.mxu0 %v3708
    %4485 = vmatprep.subr.bf16.mxu0 %v3706
    %4486 = vmatpush1.bf16.msra.mxu0 %v3705
    %4487 = vmatprep.subr.bf16.mxu0 %v3703
    %4488 = vmatpush1.bf16.msra.mxu0 %v3702
    %4489 = vmatprep.subr.bf16.mxu0 %v3748
    %4490 = vmatpush2.bf16.msra.mxu0 %v3747
    %4491 = vmatprep.subr.bf16.mxu0 %v3745
    %4492 = vmatpush2.bf16.msra.mxu0 %v3744
    %4493 = vmatprep.subr.bf16.mxu0 %v3742
    %4494 = vmatpush2.bf16.msra.mxu0 %v3741
    %4495 = vmatprep.subr.bf16.mxu0 %v3739
    %4496 = vmatpush2.bf16.msra.mxu0 %v3738
    %4497 = vmatprep.subr.bf16.mxu0 %v3736
    %4498 = vmatpush2.bf16.msra.mxu0 %v3735
    %4499 = vmatprep.subr.bf16.mxu0 %v3733
    %4500 = vmatpush2.bf16.msra.mxu0 %v3732
    %4501 = vmatprep.subr.bf16.mxu0 %v3730
    %4502 = vmatpush2.bf16.msra.mxu0 %v3729
    %4503 = vmatprep.subr.bf16.mxu0 %v3727
    %4504 = vmatpush2.bf16.msra.mxu0 %v3726
    %4505 = vmatprep.mubr.bf16.mxu0 %v1816
    %4506 = vmatmul.mubr.bf16.gmra.mxu0 %v1815
    %v4507 = vpop.f32.mrf.mxu0
    %v4508 = vadd.f32 %v4457, %v4507
    %v4509 = vpop.f32.mrf.mxu0
    %v4510 = vadd.f32 %v4459, %v4509
    %v4511 = vpop.f32.mrf.mxu0
    %v4512 = vadd.f32 %v4461, %v4511
    %v4513 = vpop.f32.mrf.mxu0
    %v4514 = vadd.f32 %v4463, %v4513
    %4515 = vmatprep.mubr.bf16.mxu0 %v1832
    %4516 = vmatmul.mubr.bf16.gmra.mxu0 %v1831
    %v4517 = vpop.f32.mrf.mxu0
    %v4518 = vadd.f32 %v4467, %v4517
    %v4519 = vpop.f32.mrf.mxu0
    %v4520 = vadd.f32 %v4469, %v4519
    %v4521 = vpop.f32.mrf.mxu0
    %v4522 = vpop.f32.mrf.mxu0
    %4523 = vdwg.mxu0
    %4524 = vmatprep.subr.bf16.mxu0 %v3772
    %4525 = vmatpush1.bf16.msra.mxu0 %v3771
    %4526 = vmatprep.subr.bf16.mxu0 %v3769
    %4527 = vmatpush1.bf16.msra.mxu0 %v3768
    %4528 = vmatprep.subr.bf16.mxu0 %v3766
    %4529 = vmatpush1.bf16.msra.mxu0 %v3765
    %4530 = vmatprep.subr.bf16.mxu0 %v3763
    %4531 = vmatpush1.bf16.msra.mxu0 %v3762
    %4532 = vmatprep.subr.bf16.mxu0 %v3760
    %4533 = vmatpush1.bf16.msra.mxu0 %v3759
    %4534 = vmatprep.subr.bf16.mxu0 %v3757
    %4535 = vmatpush1.bf16.msra.mxu0 %v3756
    %4536 = vmatprep.subr.bf16.mxu0 %v3754
    %4537 = vmatpush1.bf16.msra.mxu0 %v3753
    %4538 = vmatprep.subr.bf16.mxu0 %v3751
    %4539 = vmatpush1.bf16.msra.mxu0 %v3750
    %4540 = vmatprep.subr.bf16.mxu0 %v3796
    %4541 = vmatpush2.bf16.msra.mxu0 %v3795
    %4542 = vmatprep.subr.bf16.mxu0 %v3793
    %4543 = vmatpush2.bf16.msra.mxu0 %v3792
    %4544 = vmatprep.subr.bf16.mxu0 %v3790
    %4545 = vmatpush2.bf16.msra.mxu0 %v3789
    %4546 = vmatprep.subr.bf16.mxu0 %v3787
    %4547 = vmatpush2.bf16.msra.mxu0 %v3786
    %4548 = vmatprep.subr.bf16.mxu0 %v3784
    %4549 = vmatpush2.bf16.msra.mxu0 %v3783
    %4550 = vmatprep.subr.bf16.mxu0 %v3781
    %4551 = vmatpush2.bf16.msra.mxu0 %v3780
    %4552 = vmatprep.subr.bf16.mxu0 %v3778
    %4553 = vmatpush2.bf16.msra.mxu0 %v3777
    %4554 = vmatprep.subr.bf16.mxu0 %v3775
    %4555 = vmatpush2.bf16.msra.mxu0 %v3774
    %4556 = vmatprep.mubr.bf16.mxu0 %v1818
    %4557 = vmatmul.mubr.bf16.gmra.mxu0 %v1817
    %v4558 = vpop.f32.mrf.mxu0
    %v4559 = vadd.f32 %v4508, %v4558
    %v4560 = vpop.f32.mrf.mxu0
    %v4561 = vadd.f32 %v4510, %v4560
    %v4562 = vpop.f32.mrf.mxu0
    %v4563 = vadd.f32 %v4512, %v4562
    %v4564 = vpop.f32.mrf.mxu0
    %v4565 = vadd.f32 %v4514, %v4564
    %4566 = vmatprep.mubr.bf16.mxu0 %v1834
    %4567 = vmatmul.mubr.bf16.gmra.mxu0 %v1833
    %v4568 = vpop.f32.mrf.mxu0
    %v4569 = vadd.f32 %v4518, %v4568
    %v4570 = vpop.f32.mrf.mxu0
    %v4571 = vadd.f32 %v4520, %v4570
    %v4572 = vpop.f32.mrf.mxu0
    %v4573 = vpop.f32.mrf.mxu0
    %4574 = vdwg.mxu0
    %4575 = vmatprep.subr.bf16.mxu0 %v3820
    %4576 = vmatpush1.bf16.msra.mxu0 %v3819
    %4577 = vmatprep.subr.bf16.mxu0 %v3817
    %4578 = vmatpush1.bf16.msra.mxu0 %v3816
    %4579 = vmatprep.subr.bf16.mxu0 %v3814
    %4580 = vmatpush1.bf16.msra.mxu0 %v3813
    %4581 = vmatprep.subr.bf16.mxu0 %v3811
    %4582 = vmatpush1.bf16.msra.mxu0 %v3810
    %4583 = vmatprep.subr.bf16.mxu0 %v3808
    %4584 = vmatpush1.bf16.msra.mxu0 %v3807
    %4585 = vmatprep.subr.bf16.mxu0 %v3805
    %4586 = vmatpush1.bf16.msra.mxu0 %v3804
    %4587 = vmatprep.subr.bf16.mxu0 %v3802
    %4588 = vmatpush1.bf16.msra.mxu0 %v3801
    %4589 = vmatprep.subr.bf16.mxu0 %v3799
    %4590 = vmatpush1.bf16.msra.mxu0 %v3798
    %4591 = vmatprep.subr.bf16.mxu0 %v3844
    %4592 = vmatpush2.bf16.msra.mxu0 %v3843
    %4593 = vmatprep.subr.bf16.mxu0 %v3841
    %4594 = vmatpush2.bf16.msra.mxu0 %v3840
    %4595 = vmatprep.subr.bf16.mxu0 %v3838
    %4596 = vmatpush2.bf16.msra.mxu0 %v3837
    %4597 = vmatprep.subr.bf16.mxu0 %v3835
    %4598 = vmatpush2.bf16.msra.mxu0 %v3834
    %4599 = vmatprep.subr.bf16.mxu0 %v3832
    %4600 = vmatpush2.bf16.msra.mxu0 %v3831
    %4601 = vmatprep.subr.bf16.mxu0 %v3829
    %4602 = vmatpush2.bf16.msra.mxu0 %v3828
    %4603 = vmatprep.subr.bf16.mxu0 %v3826
    %4604 = vmatpush2.bf16.msra.mxu0 %v3825
    %4605 = vmatprep.subr.bf16.mxu0 %v3823
    %4606 = vmatpush2.bf16.msra.mxu0 %v3822
    %4607 = vmatprep.mubr.bf16.mxu0 %v1820
    %4608 = vmatmul.mubr.bf16.gmra.mxu0 %v1819
    %v4609 = vpop.f32.mrf.mxu0
    %v4610 = vadd.f32 %v4559, %v4609
    %v4611 = vpop.f32.mrf.mxu0
    %v4612 = vadd.f32 %v4561, %v4611
    %v4613 = vpop.f32.mrf.mxu0
    %v4614 = vadd.f32 %v4563, %v4613
    %v4615 = vpop.f32.mrf.mxu0
    %v4616 = vadd.f32 %v4565, %v4615
    %4617 = vmatprep.mubr.bf16.mxu0 %v1836
    %4618 = vmatmul.mubr.bf16.gmra.mxu0 %v1835
    %v4619 = vpop.f32.mrf.mxu0
    %v4620 = vadd.f32 %v4569, %v4619
    %v4621 = vpop.f32.mrf.mxu0
    %v4622 = vadd.f32 %v4571, %v4621
    %v4623 = vpop.f32.mrf.mxu0
    %v4624 = vpop.f32.mrf.mxu0
    %4625 = vdwg.mxu0
    %4626 = vmatprep.subr.bf16.mxu0 %v3868
    %4627 = vmatpush1.bf16.msra.mxu0 %v3867
    %4628 = vmatprep.subr.bf16.mxu0 %v3865
    %4629 = vmatpush1.bf16.msra.mxu0 %v3864
    %4630 = vmatprep.subr.bf16.mxu0 %v3862
    %4631 = vmatpush1.bf16.msra.mxu0 %v3861
    %4632 = vmatprep.subr.bf16.mxu0 %v3859
    %4633 = vmatpush1.bf16.msra.mxu0 %v3858
    %4634 = vmatprep.subr.bf16.mxu0 %v3856
    %4635 = vmatpush1.bf16.msra.mxu0 %v3855
    %4636 = vmatprep.subr.bf16.mxu0 %v3853
    %4637 = vmatpush1.bf16.msra.mxu0 %v3852
    %4638 = vmatprep.subr.bf16.mxu0 %v3850
    %4639 = vmatpush1.bf16.msra.mxu0 %v3849
    %4640 = vmatprep.subr.bf16.mxu0 %v3847
    %4641 = vmatpush1.bf16.msra.mxu0 %v3846
    %4642 = vmatprep.subr.bf16.mxu0 %v3892
    %4643 = vmatpush2.bf16.msra.mxu0 %v3891
    %4644 = vmatprep.subr.bf16.mxu0 %v3889
    %4645 = vmatpush2.bf16.msra.mxu0 %v3888
    %4646 = vmatprep.subr.bf16.mxu0 %v3886
    %4647 = vmatpush2.bf16.msra.mxu0 %v3885
    %4648 = vmatprep.subr.bf16.mxu0 %v3883
    %4649 = vmatpush2.bf16.msra.mxu0 %v3882
    %4650 = vmatprep.subr.bf16.mxu0 %v3880
    %4651 = vmatpush2.bf16.msra.mxu0 %v3879
    %4652 = vmatprep.subr.bf16.mxu0 %v3877
    %4653 = vmatpush2.bf16.msra.mxu0 %v3876
    %4654 = vmatprep.subr.bf16.mxu0 %v3874
    %4655 = vmatpush2.bf16.msra.mxu0 %v3873
    %4656 = vmatprep.subr.bf16.mxu0 %v3871
    %4657 = vmatpush2.bf16.msra.mxu0 %v3870
    %4658 = vmatprep.mubr.bf16.mxu0 %v1822
    %4659 = vmatmul.mubr.bf16.gmra.mxu0 %v1821
    %v4660 = vpop.f32.mrf.mxu0
    %v4661 = vadd.f32 %v4610, %v4660
    %v4662 = vpop.f32.mrf.mxu0
    %v4663 = vadd.f32 %v4612, %v4662
    %v4664 = vpop.f32.mrf.mxu0
    %v4665 = vadd.f32 %v4614, %v4664
    %v4666 = vpop.f32.mrf.mxu0
    %v4667 = vadd.f32 %v4616, %v4666
    %4668 = vmatprep.mubr.bf16.mxu0 %v1838
    %4669 = vmatmul.mubr.bf16.gmra.mxu0 %v1837
    %v4670 = vpop.f32.mrf.mxu0
    %v4671 = vadd.f32 %v4620, %v4670
    %v4672 = vpop.f32.mrf.mxu0
    %v4673 = vadd.f32 %v4622, %v4672
    %v4674 = vpop.f32.mrf.mxu0
    %v4675 = vpop.f32.mrf.mxu0
    %4676 = vdwg.mxu0
    %4677 = vmatprep.subr.bf16.mxu0 %v3916
    %4678 = vmatpush1.bf16.msra.mxu0 %v3915
    %4679 = vmatprep.subr.bf16.mxu0 %v3913
    %4680 = vmatpush1.bf16.msra.mxu0 %v3912
    %4681 = vmatprep.subr.bf16.mxu0 %v3910
    %4682 = vmatpush1.bf16.msra.mxu0 %v3909
    %4683 = vmatprep.subr.bf16.mxu0 %v3907
    %4684 = vmatpush1.bf16.msra.mxu0 %v3906
    %4685 = vmatprep.subr.bf16.mxu0 %v3904
    %4686 = vmatpush1.bf16.msra.mxu0 %v3903
    %4687 = vmatprep.subr.bf16.mxu0 %v3901
    %4688 = vmatpush1.bf16.msra.mxu0 %v3900
    %4689 = vmatprep.subr.bf16.mxu0 %v3898
    %4690 = vmatpush1.bf16.msra.mxu0 %v3897
    %4691 = vmatprep.subr.bf16.mxu0 %v3895
    %4692 = vmatpush1.bf16.msra.mxu0 %v3894
    %4693 = vmatprep.subr.bf16.mxu0 %v3940
    %4694 = vmatpush2.bf16.msra.mxu0 %v3939
    %4695 = vmatprep.subr.bf16.mxu0 %v3937
    %4696 = vmatpush2.bf16.msra.mxu0 %v3936
    %4697 = vmatprep.subr.bf16.mxu0 %v3934
    %4698 = vmatpush2.bf16.msra.mxu0 %v3933
    %4699 = vmatprep.subr.bf16.mxu0 %v3931
    %4700 = vmatpush2.bf16.msra.mxu0 %v3930
    %4701 = vmatprep.subr.bf16.mxu0 %v3928
    %4702 = vmatpush2.bf16.msra.mxu0 %v3927
    %4703 = vmatprep.subr.bf16.mxu0 %v3925
    %4704 = vmatpush2.bf16.msra.mxu0 %v3924
    %4705 = vmatprep.subr.bf16.mxu0 %v3922
    %4706 = vmatpush2.bf16.msra.mxu0 %v3921
    %4707 = vmatprep.subr.bf16.mxu0 %v3919
    %4708 = vmatpush2.bf16.msra.mxu0 %v3918
    %4709 = vmatprep.mubr.bf16.mxu0 %v1824
    %4710 = vmatmul.mubr.bf16.gmra.mxu0 %v1823
    %v4711 = vpop.f32.mrf.mxu0
    %v4712 = vadd.f32 %v4661, %v4711
    %v4713 = vpop.f32.mrf.mxu0
    %v4714 = vadd.f32 %v4663, %v4713
    %v4715 = vpop.f32.mrf.mxu0
    %v4716 = vadd.f32 %v4665, %v4715
    %v4717 = vpop.f32.mrf.mxu0
    %v4718 = vadd.f32 %v4667, %v4717
    %4719 = vmatprep.mubr.bf16.mxu0 %v1840
    %4720 = vmatmul.mubr.bf16.gmra.mxu0 %v1839
    %v4721 = vpop.f32.mrf.mxu0
    %v4722 = vadd.f32 %v4671, %v4721
    %v4723 = vpop.f32.mrf.mxu0
    %v4724 = vadd.f32 %v4673, %v4723
    %v4725 = vpop.f32.mrf.mxu0
    %v4726 = vpop.f32.mrf.mxu0
    %4727 = vdwg.mxu0
    %4728 = vmatprep.subr.bf16.mxu0 %v3964
    %4729 = vmatpush1.bf16.msra.mxu0 %v3963
    %4730 = vmatprep.subr.bf16.mxu0 %v3961
    %4731 = vmatpush1.bf16.msra.mxu0 %v3960
    %4732 = vmatprep.subr.bf16.mxu0 %v3958
    %4733 = vmatpush1.bf16.msra.mxu0 %v3957
    %4734 = vmatprep.subr.bf16.mxu0 %v3955
    %4735 = vmatpush1.bf16.msra.mxu0 %v3954
    %4736 = vmatprep.subr.bf16.mxu0 %v3952
    %4737 = vmatpush1.bf16.msra.mxu0 %v3951
    %4738 = vmatprep.subr.bf16.mxu0 %v3949
    %4739 = vmatpush1.bf16.msra.mxu0 %v3948
    %4740 = vmatprep.subr.bf16.mxu0 %v3946
    %4741 = vmatpush1.bf16.msra.mxu0 %v3945
    %4742 = vmatprep.subr.bf16.mxu0 %v3943
    %4743 = vmatpush1.bf16.msra.mxu0 %v3942
    %4744 = vmatprep.subr.bf16.mxu0 %v3988
    %4745 = vmatpush2.bf16.msra.mxu0 %v3987
    %4746 = vmatprep.subr.bf16.mxu0 %v3985
    %4747 = vmatpush2.bf16.msra.mxu0 %v3984
    %4748 = vmatprep.subr.bf16.mxu0 %v3982
    %4749 = vmatpush2.bf16.msra.mxu0 %v3981
    %4750 = vmatprep.subr.bf16.mxu0 %v3979
    %4751 = vmatpush2.bf16.msra.mxu0 %v3978
    %4752 = vmatprep.subr.bf16.mxu0 %v3976
    %4753 = vmatpush2.bf16.msra.mxu0 %v3975
    %4754 = vmatprep.subr.bf16.mxu0 %v3973
    %4755 = vmatpush2.bf16.msra.mxu0 %v3972
    %4756 = vmatprep.subr.bf16.mxu0 %v3970
    %4757 = vmatpush2.bf16.msra.mxu0 %v3969
    %4758 = vmatprep.subr.bf16.mxu0 %v3967
    %4759 = vmatpush2.bf16.msra.mxu0 %v3966
    %4760 = vmatprep.mubr.bf16.mxu0 %v1826
    %4761 = vmatmul.mubr.bf16.gmra.mxu0 %v1825
    %v4762 = vpop.f32.mrf.mxu0
    %v4763 = vadd.f32 %v4712, %v4762
    %v4764 = vpop.f32.mrf.mxu0
    %v4765 = vadd.f32 %v4714, %v4764
    %v4766 = vpop.f32.mrf.mxu0
    %v4767 = vadd.f32 %v4716, %v4766
    %v4768 = vpop.f32.mrf.mxu0
    %v4769 = vadd.f32 %v4718, %v4768
    %4770 = vmatprep.mubr.bf16.mxu0 %v1842
    %4771 = vmatmul.mubr.bf16.gmra.mxu0 %v1841
    %v4772 = vpop.f32.mrf.mxu0
    %v4773 = vadd.f32 %v4722, %v4772
    %v4774 = vpop.f32.mrf.mxu0
    %v4775 = vadd.f32 %v4724, %v4774
    %v4776 = vpop.f32.mrf.mxu0
    %v4777 = vpop.f32.mrf.mxu0
    %4778 = vdwg.mxu0
    %4779 = vmatprep.subr.bf16.mxu0 %v4012
    %4780 = vmatpush1.bf16.msra.mxu0 %v4011
    %4781 = vmatprep.subr.bf16.mxu0 %v4009
    %4782 = vmatpush1.bf16.msra.mxu0 %v4008
    %4783 = vmatprep.subr.bf16.mxu0 %v4006
    %4784 = vmatpush1.bf16.msra.mxu0 %v4005
    %4785 = vmatprep.subr.bf16.mxu0 %v4003
    %4786 = vmatpush1.bf16.msra.mxu0 %v4002
    %4787 = vmatprep.subr.bf16.mxu0 %v4000
    %4788 = vmatpush1.bf16.msra.mxu0 %v3999
    %4789 = vmatprep.subr.bf16.mxu0 %v3997
    %4790 = vmatpush1.bf16.msra.mxu0 %v3996
    %4791 = vmatprep.subr.bf16.mxu0 %v3994
    %4792 = vmatpush1.bf16.msra.mxu0 %v3993
    %4793 = vmatprep.subr.bf16.mxu0 %v3991
    %4794 = vmatpush1.bf16.msra.mxu0 %v3990
    %4795 = vmatprep.subr.bf16.mxu0 %v4036
    %4796 = vmatpush2.bf16.msra.mxu0 %v4035
    %4797 = vmatprep.subr.bf16.mxu0 %v4033
    %4798 = vmatpush2.bf16.msra.mxu0 %v4032
    %4799 = vmatprep.subr.bf16.mxu0 %v4030
    %4800 = vmatpush2.bf16.msra.mxu0 %v4029
    %4801 = vmatprep.subr.bf16.mxu0 %v4027
    %4802 = vmatpush2.bf16.msra.mxu0 %v4026
    %4803 = vmatprep.subr.bf16.mxu0 %v4024
    %4804 = vmatpush2.bf16.msra.mxu0 %v4023
    %4805 = vmatprep.subr.bf16.mxu0 %v4021
    %4806 = vmatpush2.bf16.msra.mxu0 %v4020
    %4807 = vmatprep.subr.bf16.mxu0 %v4018
    %4808 = vmatpush2.bf16.msra.mxu0 %v4017
    %4809 = vmatprep.subr.bf16.mxu0 %v4015
    %4810 = vmatpush2.bf16.msra.mxu0 %v4014
    %4811 = vmatprep.mubr.bf16.mxu0 %v1828
    %4812 = vmatmul.mubr.bf16.gmra.mxu0 %v1827
    %v4813 = vpop.f32.mrf.mxu0
    %v4814 = vadd.f32 %v4763, %v4813
    %v4815 = vpop.f32.mrf.mxu0
    %v4816 = vadd.f32 %v4765, %v4815
    %v4817 = vpop.f32.mrf.mxu0
    %v4818 = vadd.f32 %v4767, %v4817
    %v4819 = vpop.f32.mrf.mxu0
    %v4820 = vadd.f32 %v4769, %v4819
    %4821 = vmatprep.mubr.bf16.mxu0 %v1844
    %4822 = vmatmul.mubr.bf16.gmra.mxu0 %v1843
    %v4823 = vpop.f32.mrf.mxu0
    %v4824 = vadd.f32 %v4773, %v4823
    %v4825 = vpop.f32.mrf.mxu0
    %v4826 = vadd.f32 %v4775, %v4825
    %v4827 = vpop.f32.mrf.mxu0
    %v4828 = vpop.f32.mrf.mxu0
    %4829 = vdwg.mxu0
    %4830 = vmatprep.subr.bf16.mxu0 0
    %4831 = vmatpush1.bf16.msra.mxu0 %v3677
    %4832 = vmatprep.subr.bf16.mxu0 0
    %4833 = vmatpush1.bf16.msra.mxu0 %v3674
    %4834 = vmatprep.subr.bf16.mxu0 0
    %4835 = vmatpush1.bf16.msra.mxu0 %v3671
    %4836 = vmatprep.subr.bf16.mxu0 0
    %4837 = vmatpush1.bf16.msra.mxu0 %v3668
    %4838 = vmatprep.subr.bf16.mxu0 0
    %4839 = vmatpush1.bf16.msra.mxu0 %v3665
    %4840 = vmatprep.subr.bf16.mxu0 0
    %4841 = vmatpush1.bf16.msra.mxu0 %v3662
    %4842 = vmatprep.subr.bf16.mxu0 0
    %4843 = vmatpush1.bf16.msra.mxu0 %v3659
    %4844 = vmatprep.subr.bf16.mxu0 0
    %4845 = vmatpush1.bf16.msra.mxu0 %v3656
    %4846 = vmatprep.subr.bf16.mxu0 0
    %4847 = vmatpush2.bf16.msra.mxu0 %v3701
    %4848 = vmatprep.subr.bf16.mxu0 0
    %4849 = vmatpush2.bf16.msra.mxu0 %v3698
    %4850 = vmatprep.subr.bf16.mxu0 0
    %4851 = vmatpush2.bf16.msra.mxu0 %v3695
    %4852 = vmatprep.subr.bf16.mxu0 0
    %4853 = vmatpush2.bf16.msra.mxu0 %v3692
    %4854 = vmatprep.subr.bf16.mxu0 0
    %4855 = vmatpush2.bf16.msra.mxu0 %v3689
    %4856 = vmatprep.subr.bf16.mxu0 0
    %4857 = vmatpush2.bf16.msra.mxu0 %v3686
    %4858 = vmatprep.subr.bf16.mxu0 0
    %4859 = vmatpush2.bf16.msra.mxu0 %v3683
    %4860 = vmatprep.subr.bf16.mxu0 0
    %4861 = vmatpush2.bf16.msra.mxu0 %v3680
    %4862 = vmatprep.mubr.bf16.mxu0 %v1814
    %4863 = vmatmul.mubr.bf16.gmra.mxu0 %v1813
    %v4864 = vpop.f32.mrf.mxu0
    %v4865 = vadd.f32 %v2370, %v4864
    %v4866 = vpop.f32.mrf.mxu0
    %v4867 = vpop.f32.mrf.mxu0
    %v4868 = vadd.f32 %v2370, %v4867
    %v4869 = vpop.f32.mrf.mxu0
    %4870 = vmatprep.mubr.bf16.mxu0 %v1830
    %4871 = vmatmul.mubr.bf16.gmra.mxu0 %v1829
    %v4872 = vpop.f32.mrf.mxu0
    %v4873 = vadd.f32 %v2370, %v4872
    %v4874 = vpop.f32.mrf.mxu0
    %v4875 = vpop.f32.mrf.mxu0
    %v4876 = vpop.f32.mrf.mxu0
    %4877 = vdwg.mxu0
    %4878 = vmatprep.subr.bf16.mxu0 0
    %4879 = vmatpush1.bf16.msra.mxu0 %v3725
    %4880 = vmatprep.subr.bf16.mxu0 0
    %4881 = vmatpush1.bf16.msra.mxu0 %v3722
    %4882 = vmatprep.subr.bf16.mxu0 0
    %4883 = vmatpush1.bf16.msra.mxu0 %v3719
    %4884 = vmatprep.subr.bf16.mxu0 0
    %4885 = vmatpush1.bf16.msra.mxu0 %v3716
    %4886 = vmatprep.subr.bf16.mxu0 0
    %4887 = vmatpush1.bf16.msra.mxu0 %v3713
    %4888 = vmatprep.subr.bf16.mxu0 0
    %4889 = vmatpush1.bf16.msra.mxu0 %v3710
    %4890 = vmatprep.subr.bf16.mxu0 0
    %4891 = vmatpush1.bf16.msra.mxu0 %v3707
    %4892 = vmatprep.subr.bf16.mxu0 0
    %4893 = vmatpush1.bf16.msra.mxu0 %v3704
    %4894 = vmatprep.subr.bf16.mxu0 0
    %4895 = vmatpush2.bf16.msra.mxu0 %v3749
    %4896 = vmatprep.subr.bf16.mxu0 0
    %4897 = vmatpush2.bf16.msra.mxu0 %v3746
    %4898 = vmatprep.subr.bf16.mxu0 0
    %4899 = vmatpush2.bf16.msra.mxu0 %v3743
    %4900 = vmatprep.subr.bf16.mxu0 0
    %4901 = vmatpush2.bf16.msra.mxu0 %v3740
    %4902 = vmatprep.subr.bf16.mxu0 0
    %4903 = vmatpush2.bf16.msra.mxu0 %v3737
    %4904 = vmatprep.subr.bf16.mxu0 0
    %4905 = vmatpush2.bf16.msra.mxu0 %v3734
    %4906 = vmatprep.subr.bf16.mxu0 0
    %4907 = vmatpush2.bf16.msra.mxu0 %v3731
    %4908 = vmatprep.subr.bf16.mxu0 0
    %4909 = vmatpush2.bf16.msra.mxu0 %v3728
    %4910 = vmatprep.mubr.bf16.mxu0 %v1816
    %4911 = vmatmul.mubr.bf16.gmra.mxu0 %v1815
    %v4912 = vpop.f32.mrf.mxu0
    %v4913 = vadd.f32 %v4865, %v4912
    %v4914 = vpop.f32.mrf.mxu0
    %v4915 = vpop.f32.mrf.mxu0
    %v4916 = vadd.f32 %v4868, %v4915
    %v4917 = vpop.f32.mrf.mxu0
    %4918 = vmatprep.mubr.bf16.mxu0 %v1832
    %4919 = vmatmul.mubr.bf16.gmra.mxu0 %v1831
    %v4920 = vpop.f32.mrf.mxu0
    %v4921 = vadd.f32 %v4873, %v4920
    %v4922 = vpop.f32.mrf.mxu0
    %v4923 = vpop.f32.mrf.mxu0
    %v4924 = vpop.f32.mrf.mxu0
    %4925 = vdwg.mxu0
    %4926 = vmatprep.subr.bf16.mxu0 0
    %4927 = vmatpush1.bf16.msra.mxu0 %v3773
    %4928 = vmatprep.subr.bf16.mxu0 0
    %4929 = vmatpush1.bf16.msra.mxu0 %v3770
    %4930 = vmatprep.subr.bf16.mxu0 0
    %4931 = vmatpush1.bf16.msra.mxu0 %v3767
    %4932 = vmatprep.subr.bf16.mxu0 0
    %4933 = vmatpush1.bf16.msra.mxu0 %v3764
    %4934 = vmatprep.subr.bf16.mxu0 0
    %4935 = vmatpush1.bf16.msra.mxu0 %v3761
    %4936 = vmatprep.subr.bf16.mxu0 0
    %4937 = vmatpush1.bf16.msra.mxu0 %v3758
    %4938 = vmatprep.subr.bf16.mxu0 0
    %4939 = vmatpush1.bf16.msra.mxu0 %v3755
    %4940 = vmatprep.subr.bf16.mxu0 0
    %4941 = vmatpush1.bf16.msra.mxu0 %v3752
    %4942 = vmatprep.subr.bf16.mxu0 0
    %4943 = vmatpush2.bf16.msra.mxu0 %v3797
    %4944 = vmatprep.subr.bf16.mxu0 0
    %4945 = vmatpush2.bf16.msra.mxu0 %v3794
    %4946 = vmatprep.subr.bf16.mxu0 0
    %4947 = vmatpush2.bf16.msra.mxu0 %v3791
    %4948 = vmatprep.subr.bf16.mxu0 0
    %4949 = vmatpush2.bf16.msra.mxu0 %v3788
    %4950 = vmatprep.subr.bf16.mxu0 0
    %4951 = vmatpush2.bf16.msra.mxu0 %v3785
    %4952 = vmatprep.subr.bf16.mxu0 0
    %4953 = vmatpush2.bf16.msra.mxu0 %v3782
    %4954 = vmatprep.subr.bf16.mxu0 0
    %4955 = vmatpush2.bf16.msra.mxu0 %v3779
    %4956 = vmatprep.subr.bf16.mxu0 0
    %4957 = vmatpush2.bf16.msra.mxu0 %v3776
    %4958 = vmatprep.mubr.bf16.mxu0 %v1818
    %4959 = vmatmul.mubr.bf16.gmra.mxu0 %v1817
    %v4960 = vpop.f32.mrf.mxu0
    %v4961 = vadd.f32 %v4913, %v4960
    %v4962 = vpop.f32.mrf.mxu0
    %v4963 = vpop.f32.mrf.mxu0
    %v4964 = vadd.f32 %v4916, %v4963
    %v4965 = vpop.f32.mrf.mxu0
    %4966 = vmatprep.mubr.bf16.mxu0 %v1834
    %4967 = vmatmul.mubr.bf16.gmra.mxu0 %v1833
    %v4968 = vpop.f32.mrf.mxu0
    %v4969 = vadd.f32 %v4921, %v4968
    %v4970 = vpop.f32.mrf.mxu0
    %v4971 = vpop.f32.mrf.mxu0
    %v4972 = vpop.f32.mrf.mxu0
    %4973 = vdwg.mxu0
    %4974 = vmatprep.subr.bf16.mxu0 0
    %4975 = vmatpush1.bf16.msra.mxu0 %v3821
    %4976 = vmatprep.subr.bf16.mxu0 0
    %4977 = vmatpush1.bf16.msra.mxu0 %v3818
    %4978 = vmatprep.subr.bf16.mxu0 0
    %4979 = vmatpush1.bf16.msra.mxu0 %v3815
    %4980 = vmatprep.subr.bf16.mxu0 0
    %4981 = vmatpush1.bf16.msra.mxu0 %v3812
    %4982 = vmatprep.subr.bf16.mxu0 0
    %4983 = vmatpush1.bf16.msra.mxu0 %v3809
    %4984 = vmatprep.subr.bf16.mxu0 0
    %4985 = vmatpush1.bf16.msra.mxu0 %v3806
    %4986 = vmatprep.subr.bf16.mxu0 0
    %4987 = vmatpush1.bf16.msra.mxu0 %v3803
    %4988 = vmatprep.subr.bf16.mxu0 0
    %4989 = vmatpush1.bf16.msra.mxu0 %v3800
    %4990 = vmatprep.subr.bf16.mxu0 0
    %4991 = vmatpush2.bf16.msra.mxu0 %v3845
    %4992 = vmatprep.subr.bf16.mxu0 0
    %4993 = vmatpush2.bf16.msra.mxu0 %v3842
    %4994 = vmatprep.subr.bf16.mxu0 0
    %4995 = vmatpush2.bf16.msra.mxu0 %v3839
    %4996 = vmatprep.subr.bf16.mxu0 0
    %4997 = vmatpush2.bf16.msra.mxu0 %v3836
    %4998 = vmatprep.subr.bf16.mxu0 0
    %4999 = vmatpush2.bf16.msra.mxu0 %v3833
    %5000 = vmatprep.subr.bf16.mxu0 0
    %5001 = vmatpush2.bf16.msra.mxu0 %v3830
    %5002 = vmatprep.subr.bf16.mxu0 0
    %5003 = vmatpush2.bf16.msra.mxu0 %v3827
    %5004 = vmatprep.subr.bf16.mxu0 0
    %5005 = vmatpush2.bf16.msra.mxu0 %v3824
    %5006 = vmatprep.mubr.bf16.mxu0 %v1820
    %5007 = vmatmul.mubr.bf16.gmra.mxu0 %v1819
    %v5008 = vpop.f32.mrf.mxu0
    %v5009 = vadd.f32 %v4961, %v5008
    %v5010 = vpop.f32.mrf.mxu0
    %v5011 = vpop.f32.mrf.mxu0
    %v5012 = vadd.f32 %v4964, %v5011
    %v5013 = vpop.f32.mrf.mxu0
    %5014 = vmatprep.mubr.bf16.mxu0 %v1836
    %5015 = vmatmul.mubr.bf16.gmra.mxu0 %v1835
    %v5016 = vpop.f32.mrf.mxu0
    %v5017 = vadd.f32 %v4969, %v5016
    %v5018 = vpop.f32.mrf.mxu0
    %v5019 = vpop.f32.mrf.mxu0
    %v5020 = vpop.f32.mrf.mxu0
    %5021 = vdwg.mxu0
    %5022 = vmatprep.subr.bf16.mxu0 0
    %5023 = vmatpush1.bf16.msra.mxu0 %v3869
    %5024 = vmatprep.subr.bf16.mxu0 0
    %5025 = vmatpush1.bf16.msra.mxu0 %v3866
    %5026 = vmatprep.subr.bf16.mxu0 0
    %5027 = vmatpush1.bf16.msra.mxu0 %v3863
    %5028 = vmatprep.subr.bf16.mxu0 0
    %5029 = vmatpush1.bf16.msra.mxu0 %v3860
    %5030 = vmatprep.subr.bf16.mxu0 0
    %5031 = vmatpush1.bf16.msra.mxu0 %v3857
    %5032 = vmatprep.subr.bf16.mxu0 0
    %5033 = vmatpush1.bf16.msra.mxu0 %v3854
    %5034 = vmatprep.subr.bf16.mxu0 0
    %5035 = vmatpush1.bf16.msra.mxu0 %v3851
    %5036 = vmatprep.subr.bf16.mxu0 0
    %5037 = vmatpush1.bf16.msra.mxu0 %v3848
    %5038 = vmatprep.subr.bf16.mxu0 0
    %5039 = vmatpush2.bf16.msra.mxu0 %v3893
    %5040 = vmatprep.subr.bf16.mxu0 0
    %5041 = vmatpush2.bf16.msra.mxu0 %v3890
    %5042 = vmatprep.subr.bf16.mxu0 0
    %5043 = vmatpush2.bf16.msra.mxu0 %v3887
    %5044 = vmatprep.subr.bf16.mxu0 0
    %5045 = vmatpush2.bf16.msra.mxu0 %v3884
    %5046 = vmatprep.subr.bf16.mxu0 0
    %5047 = vmatpush2.bf16.msra.mxu0 %v3881
    %5048 = vmatprep.subr.bf16.mxu0 0
    %5049 = vmatpush2.bf16.msra.mxu0 %v3878
    %5050 = vmatprep.subr.bf16.mxu0 0
    %5051 = vmatpush2.bf16.msra.mxu0 %v3875
    %5052 = vmatprep.subr.bf16.mxu0 0
    %5053 = vmatpush2.bf16.msra.mxu0 %v3872
    %5054 = vmatprep.mubr.bf16.mxu0 %v1822
    %5055 = vmatmul.mubr.bf16.gmra.mxu0 %v1821
    %v5056 = vpop.f32.mrf.mxu0
    %v5057 = vadd.f32 %v5009, %v5056
    %v5058 = vpop.f32.mrf.mxu0
    %v5059 = vpop.f32.mrf.mxu0
    %v5060 = vadd.f32 %v5012, %v5059
    %v5061 = vpop.f32.mrf.mxu0
    %5062 = vmatprep.mubr.bf16.mxu0 %v1838
    %5063 = vmatmul.mubr.bf16.gmra.mxu0 %v1837
    %v5064 = vpop.f32.mrf.mxu0
    %v5065 = vadd.f32 %v5017, %v5064
    %v5066 = vpop.f32.mrf.mxu0
    %v5067 = vpop.f32.mrf.mxu0
    %v5068 = vpop.f32.mrf.mxu0
    %5069 = vdwg.mxu0
    %5070 = vmatprep.subr.bf16.mxu0 0
    %5071 = vmatpush1.bf16.msra.mxu0 %v3917
    %5072 = vmatprep.subr.bf16.mxu0 0
    %5073 = vmatpush1.bf16.msra.mxu0 %v3914
    %5074 = vmatprep.subr.bf16.mxu0 0
    %5075 = vmatpush1.bf16.msra.mxu0 %v3911
    %5076 = vmatprep.subr.bf16.mxu0 0
    %5077 = vmatpush1.bf16.msra.mxu0 %v3908
    %5078 = vmatprep.subr.bf16.mxu0 0
    %5079 = vmatpush1.bf16.msra.mxu0 %v3905
    %5080 = vmatprep.subr.bf16.mxu0 0
    %5081 = vmatpush1.bf16.msra.mxu0 %v3902
    %5082 = vmatprep.subr.bf16.mxu0 0
    %5083 = vmatpush1.bf16.msra.mxu0 %v3899
    %5084 = vmatprep.subr.bf16.mxu0 0
    %5085 = vmatpush1.bf16.msra.mxu0 %v3896
    %5086 = vmatprep.subr.bf16.mxu0 0
    %5087 = vmatpush2.bf16.msra.mxu0 %v3941
    %5088 = vmatprep.subr.bf16.mxu0 0
    %5089 = vmatpush2.bf16.msra.mxu0 %v3938
    %5090 = vmatprep.subr.bf16.mxu0 0
    %5091 = vmatpush2.bf16.msra.mxu0 %v3935
    %5092 = vmatprep.subr.bf16.mxu0 0
    %5093 = vmatpush2.bf16.msra.mxu0 %v3932
    %5094 = vmatprep.subr.bf16.mxu0 0
    %5095 = vmatpush2.bf16.msra.mxu0 %v3929
    %5096 = vmatprep.subr.bf16.mxu0 0
    %5097 = vmatpush2.bf16.msra.mxu0 %v3926
    %5098 = vmatprep.subr.bf16.mxu0 0
    %5099 = vmatpush2.bf16.msra.mxu0 %v3923
    %5100 = vmatprep.subr.bf16.mxu0 0
    %5101 = vmatpush2.bf16.msra.mxu0 %v3920
    %5102 = vmatprep.mubr.bf16.mxu0 %v1824
    %5103 = vmatmul.mubr.bf16.gmra.mxu0 %v1823
    %v5104 = vpop.f32.mrf.mxu0
    %v5105 = vadd.f32 %v5057, %v5104
    %v5106 = vpop.f32.mrf.mxu0
    %v5107 = vpop.f32.mrf.mxu0
    %v5108 = vadd.f32 %v5060, %v5107
    %v5109 = vpop.f32.mrf.mxu0
    %5110 = vmatprep.mubr.bf16.mxu0 %v1840
    %5111 = vmatmul.mubr.bf16.gmra.mxu0 %v1839
    %v5112 = vpop.f32.mrf.mxu0
    %v5113 = vadd.f32 %v5065, %v5112
    %v5114 = vpop.f32.mrf.mxu0
    %v5115 = vpop.f32.mrf.mxu0
    %v5116 = vpop.f32.mrf.mxu0
    %5117 = vdwg.mxu0
    %5118 = vmatprep.subr.bf16.mxu0 0
    %5119 = vmatpush1.bf16.msra.mxu0 %v3965
    %5120 = vmatprep.subr.bf16.mxu0 0
    %5121 = vmatpush1.bf16.msra.mxu0 %v3962
    %5122 = vmatprep.subr.bf16.mxu0 0
    %5123 = vmatpush1.bf16.msra.mxu0 %v3959
    %5124 = vmatprep.subr.bf16.mxu0 0
    %5125 = vmatpush1.bf16.msra.mxu0 %v3956
    %5126 = vmatprep.subr.bf16.mxu0 0
    %5127 = vmatpush1.bf16.msra.mxu0 %v3953
    %5128 = vmatprep.subr.bf16.mxu0 0
    %5129 = vmatpush1.bf16.msra.mxu0 %v3950
    %5130 = vmatprep.subr.bf16.mxu0 0
    %5131 = vmatpush1.bf16.msra.mxu0 %v3947
    %5132 = vmatprep.subr.bf16.mxu0 0
    %5133 = vmatpush1.bf16.msra.mxu0 %v3944
    %5134 = vmatprep.subr.bf16.mxu0 0
    %5135 = vmatpush2.bf16.msra.mxu0 %v3989
    %5136 = vmatprep.subr.bf16.mxu0 0
    %5137 = vmatpush2.bf16.msra.mxu0 %v3986
    %5138 = vmatprep.subr.bf16.mxu0 0
    %5139 = vmatpush2.bf16.msra.mxu0 %v3983
    %5140 = vmatprep.subr.bf16.mxu0 0
    %5141 = vmatpush2.bf16.msra.mxu0 %v3980
    %5142 = vmatprep.subr.bf16.mxu0 0
    %5143 = vmatpush2.bf16.msra.mxu0 %v3977
    %5144 = vmatprep.subr.bf16.mxu0 0
    %5145 = vmatpush2.bf16.msra.mxu0 %v3974
    %5146 = vmatprep.subr.bf16.mxu0 0
    %5147 = vmatpush2.bf16.msra.mxu0 %v3971
    %5148 = vmatprep.subr.bf16.mxu0 0
    %5149 = vmatpush2.bf16.msra.mxu0 %v3968
    %5150 = vmatprep.mubr.bf16.mxu0 %v1826
    %5151 = vmatmul.mubr.bf16.gmra.mxu0 %v1825
    %v5152 = vpop.f32.mrf.mxu0
    %v5153 = vadd.f32 %v5105, %v5152
    %v5154 = vpop.f32.mrf.mxu0
    %v5155 = vpop.f32.mrf.mxu0
    %v5156 = vadd.f32 %v5108, %v5155
    %v5157 = vpop.f32.mrf.mxu0
    %5158 = vmatprep.mubr.bf16.mxu0 %v1842
    %5159 = vmatmul.mubr.bf16.gmra.mxu0 %v1841
    %v5160 = vpop.f32.mrf.mxu0
    %v5161 = vadd.f32 %v5113, %v5160
    %v5162 = vpop.f32.mrf.mxu0
    %v5163 = vpop.f32.mrf.mxu0
    %v5164 = vpop.f32.mrf.mxu0
    %5165 = vdwg.mxu0
    %5166 = vmatprep.subr.bf16.mxu0 0
    %5167 = vmatpush1.bf16.msra.mxu0 %v4013
    %5168 = vmatprep.subr.bf16.mxu0 0
    %5169 = vmatpush1.bf16.msra.mxu0 %v4010
    %5170 = vmatprep.subr.bf16.mxu0 0
    %5171 = vmatpush1.bf16.msra.mxu0 %v4007
    %5172 = vmatprep.subr.bf16.mxu0 0
    %5173 = vmatpush1.bf16.msra.mxu0 %v4004
    %5174 = vmatprep.subr.bf16.mxu0 0
    %5175 = vmatpush1.bf16.msra.mxu0 %v4001
    %5176 = vmatprep.subr.bf16.mxu0 0
    %5177 = vmatpush1.bf16.msra.mxu0 %v3998
    %5178 = vmatprep.subr.bf16.mxu0 0
    %5179 = vmatpush1.bf16.msra.mxu0 %v3995
    %5180 = vmatprep.subr.bf16.mxu0 0
    %5181 = vmatpush1.bf16.msra.mxu0 %v3992
    %5182 = vmatprep.subr.bf16.mxu0 0
    %5183 = vmatpush2.bf16.msra.mxu0 %v4037
    %5184 = vmatprep.subr.bf16.mxu0 0
    %5185 = vmatpush2.bf16.msra.mxu0 %v4034
    %5186 = vmatprep.subr.bf16.mxu0 0
    %5187 = vmatpush2.bf16.msra.mxu0 %v4031
    %5188 = vmatprep.subr.bf16.mxu0 0
    %5189 = vmatpush2.bf16.msra.mxu0 %v4028
    %5190 = vmatprep.subr.bf16.mxu0 0
    %5191 = vmatpush2.bf16.msra.mxu0 %v4025
    %5192 = vmatprep.subr.bf16.mxu0 0
    %5193 = vmatpush2.bf16.msra.mxu0 %v4022
    %5194 = vmatprep.subr.bf16.mxu0 0
    %5195 = vmatpush2.bf16.msra.mxu0 %v4019
    %5196 = vmatprep.subr.bf16.mxu0 0
    %5197 = vmatpush2.bf16.msra.mxu0 %v4016
    %5198 = vmatprep.mubr.bf16.mxu0 %v1828
    %5199 = vmatmul.mubr.bf16.gmra.mxu0 %v1827
    %v5200 = vpop.f32.mrf.mxu0
    %v5201 = vadd.f32 %v5153, %v5200
    %v5202 = vpop.f32.mrf.mxu0
    %v5203 = vpop.f32.mrf.mxu0
    %v5204 = vadd.f32 %v5156, %v5203
    %v5205 = vpop.f32.mrf.mxu0
    %5206 = vmatprep.mubr.bf16.mxu0 %v1844
    %5207 = vmatmul.mubr.bf16.gmra.mxu0 %v1843
    %v5208 = vpop.f32.mrf.mxu0
    %v5209 = vadd.f32 %v5161, %v5208
    %v5210 = vpop.f32.mrf.mxu0
    %v5211 = vpop.f32.mrf.mxu0
    %v5212 = vpop.f32.mrf.mxu0
    %5213 = vdwg.mxu0
    %v5214 = vmax.f32 %v4814, 0.0
    %v5215 = vmax.f32 %v4816, 0.0
    %v5216 = vmax.f32 %v5201, 0.0
    %v5217 = vmax.f32 %v4818, 0.0
    %v5218 = vmax.f32 %v4820, 0.0
    %v5219 = vmax.f32 %v5204, 0.0
    %v5220 = vmax.f32 %v4824, 0.0
    %v5221 = vmax.f32 %v4826, 0.0
    %v5222 = vmax.f32 %v5209, 0.0
    %v5223 = vld [vmem:[%s1] sm:$0xff]
    %5224 = vset.pattern.permute.xlu0 0
    %5225 = vperm.xlu0 %5224, %v5223
    %v5226 = vpop.permute.xlu0 %5225
    %vm5227 = vcmp.eq.s32.totalorder %v5226, %v241
    %v5228 = vsel %vm5227, 1.0, 0.0
    %v5229 = vpack.c.bf16 %v5228, %v5228
    %v5230 = vld [vmem:[#allocation10] sm:$0xff]
    %v5231 = vld [vmem:[#allocation10 + $0x8] sm:$0xff]
    %v5232 = vld [vmem:[#allocation10 + $0x10] sm:$0xff]
    %v5233 = vld [vmem:[#allocation10 + $0x18] sm:$0xff]
    %v5234 = vld [vmem:[#allocation10 + $0x20] sm:$0xff]
    %v5235 = vld [vmem:[#allocation10 + $0x28] sm:$0xff]
    %v5236 = vld [vmem:[#allocation10 + $0x30] sm:$0xff]
    %v5237 = vld [vmem:[#allocation10 + $0x38] sm:$0xff]
    %v5238 = vld [vmem:[#allocation10 + $0x40] sm:$0xff]
    %v5239 = vld [vmem:[#allocation10 + $0x48] sm:$0xff]
    %v5240 = vld [vmem:[#allocation10 + $0x50] sm:$0xff]
    %v5241 = vld [vmem:[#allocation10 + $0x58] sm:$0xff]
    %v5242 = vld [vmem:[#allocation10 + $0x60] sm:$0xff]
    %v5243 = vld [vmem:[#allocation10 + $0x68] sm:$0xff]
    %v5244 = vld [vmem:[#allocation10 + $0x70] sm:$0xff]
    %v5245 = vld [vmem:[#allocation10 + $0x78] sm:$0xff]
    %v5246 = vld [vmem:[#allocation10 + $0x80] sm:$0xff]
    %v5247 = vld [vmem:[#allocation10 + $0x88] sm:$0xff]
    %v5248 = vld [vmem:[#allocation10 + $0x90] sm:$0xff]
    %v5249 = vld [vmem:[#allocation10 + $0x98] sm:$0xff]
    %v5250 = vld [vmem:[#allocation10 + $0xa0] sm:$0xff]
    %v5251 = vld [vmem:[#allocation10 + $0xa8] sm:$0xff]
    %v5252 = vld [vmem:[#allocation10 + $0xb0] sm:$0xff]
    %v5253 = vld [vmem:[#allocation10 + $0xb8] sm:$0xff]
    %v5254 = vld [vmem:[#allocation10 + $0xc0] sm:$0xff]
    %v5255 = vld [vmem:[#allocation10 + $0xc8] sm:$0xff]
    %v5256 = vld [vmem:[#allocation10 + $0xd0] sm:$0xff]
    %v5257 = vld [vmem:[#allocation10 + $0xd8] sm:$0xff]
    %v5258 = vld [vmem:[#allocation10 + $0xe0] sm:$0xff]
    %v5259 = vld [vmem:[#allocation10 + $0xe8] sm:$0xff]
    %v5260 = vld [vmem:[#allocation10 + $0xf0] sm:$0xff]
    %v5261 = vld [vmem:[#allocation10 + $0xf8] sm:$0xff]
    %v5262 = vld [vmem:[#allocation10 + $0x100] sm:$0xff]
    %v5263 = vld [vmem:[#allocation10 + $0x108] sm:$0xff]
    %v5264 = vld [vmem:[#allocation10 + $0x110] sm:$0xff]
    %v5265 = vld [vmem:[#allocation10 + $0x118] sm:$0xff]
    %v5266 = vld [vmem:[#allocation10 + $0x120] sm:$0xff]
    %v5267 = vld [vmem:[#allocation10 + $0x128] sm:$0xff]
    %v5268 = vld [vmem:[#allocation10 + $0x130] sm:$0xff]
    %v5269 = vld [vmem:[#allocation10 + $0x138] sm:$0xff]
    %v5310 = vunpack.c.l.b16 %v5230
    %v5311 = vunpack.c.h.b16 %v5230
    %v5312 = vunpack.c.l.b16 %v5231
    %v5313 = vunpack.c.h.b16 %v5231
    %v5314 = vunpack.c.l.b16 %v5232
    %v5315 = vunpack.c.h.b16 %v5232
    %v5316 = vunpack.c.l.b16 %v5233
    %v5317 = vunpack.c.h.b16 %v5233
    %v5318 = vunpack.c.l.b16 %v5234
    %v5319 = vunpack.c.h.b16 %v5234
    %v5320 = vunpack.c.l.b16 %v5235
    %v5321 = vunpack.c.h.b16 %v5235
    %v5322 = vunpack.c.l.b16 %v5236
    %v5323 = vunpack.c.h.b16 %v5236
    %v5324 = vunpack.c.l.b16 %v5237
    %v5325 = vunpack.c.h.b16 %v5237
    %v5326 = vunpack.c.l.b16 %v5238
    %v5327 = vunpack.c.h.b16 %v5238
    %v5328 = vunpack.c.l.b16 %v5239
    %v5329 = vunpack.c.h.b16 %v5239
    %v5330 = vunpack.c.l.b16 %v5240
    %v5331 = vunpack.c.h.b16 %v5240
    %v5332 = vunpack.c.l.b16 %v5241
    %v5333 = vunpack.c.h.b16 %v5241
    %v5334 = vunpack.c.l.b16 %v5242
    %v5335 = vunpack.c.h.b16 %v5242
    %v5336 = vunpack.c.l.b16 %v5243
    %v5337 = vunpack.c.h.b16 %v5243
    %v5338 = vunpack.c.l.b16 %v5244
    %v5339 = vunpack.c.h.b16 %v5244
    %v5340 = vunpack.c.l.b16 %v5245
    %v5341 = vunpack.c.h.b16 %v5245
    %v5342 = vunpack.c.l.b16 %v5246
    %v5343 = vunpack.c.h.b16 %v5246
    %v5344 = vunpack.c.l.b16 %v5247
    %v5345 = vunpack.c.h.b16 %v5247
    %v5346 = vunpack.c.l.b16 %v5248
    %v5347 = vunpack.c.h.b16 %v5248
    %v5348 = vunpack.c.l.b16 %v5249
    %v5349 = vunpack.c.h.b16 %v5249
    %v5350 = vunpack.c.l.b16 %v5250
    %v5351 = vunpack.c.h.b16 %v5250
    %v5352 = vunpack.c.l.b16 %v5251
    %v5353 = vunpack.c.h.b16 %v5251
    %v5354 = vunpack.c.l.b16 %v5252
    %v5355 = vunpack.c.h.b16 %v5252
    %v5356 = vunpack.c.l.b16 %v5253
    %v5357 = vunpack.c.h.b16 %v5253
    %v5358 = vunpack.c.l.b16 %v5254
    %v5359 = vunpack.c.h.b16 %v5254
    %v5360 = vunpack.c.l.b16 %v5255
    %v5361 = vunpack.c.h.b16 %v5255
    %v5362 = vunpack.c.l.b16 %v5256
    %v5363 = vunpack.c.h.b16 %v5256
    %v5364 = vunpack.c.l.b16 %v5257
    %v5365 = vunpack.c.h.b16 %v5257
    %v5366 = vunpack.c.l.b16 %v5258
    %v5367 = vunpack.c.h.b16 %v5258
    %v5368 = vunpack.c.l.b16 %v5259
    %v5369 = vunpack.c.h.b16 %v5259
    %v5370 = vunpack.c.l.b16 %v5260
    %v5371 = vunpack.c.h.b16 %v5260
    %v5372 = vunpack.c.l.b16 %v5261
    %v5373 = vunpack.c.h.b16 %v5261
    %v5374 = vunpack.c.l.b16 %v5262
    %v5375 = vunpack.c.h.b16 %v5262
    %v5376 = vunpack.c.l.b16 %v5263
    %v5377 = vunpack.c.h.b16 %v5263
    %v5378 = vunpack.c.l.b16 %v5264
    %v5379 = vunpack.c.h.b16 %v5264
    %v5380 = vunpack.c.l.b16 %v5265
    %v5381 = vunpack.c.h.b16 %v5265
    %v5382 = vunpack.c.l.b16 %v5266
    %v5383 = vunpack.c.h.b16 %v5266
    %v5384 = vunpack.c.l.b16 %v5267
    %v5385 = vunpack.c.h.b16 %v5267
    %v5386 = vunpack.c.l.b16 %v5268
    %v5387 = vunpack.c.h.b16 %v5268
    %v5388 = vunpack.c.l.b16 %v5269
    %v5389 = vunpack.c.h.b16 %v5269
    %v5390 = vpack.c.b16 %v5326, %v5310
    %v5391 = vpack.c.b16 %v5327, %v5311
    %v5392 = vpack.c.b16 %v5328, %v5312
    %v5393 = vpack.c.b16 %v5329, %v5313
    %v5394 = vpack.c.b16 %v5330, %v5314
    %v5395 = vpack.c.b16 %v5331, %v5315
    %v5396 = vpack.c.b16 %v5332, %v5316
    %v5397 = vpack.c.b16 %v5333, %v5317
    %v5398 = vpack.c.b16 %v5334, %v5318
    %v5399 = vpack.c.b16 %v5335, %v5319
    %v5400 = vpack.c.b16 %v5336, %v5320
    %v5401 = vpack.c.b16 %v5337, %v5321
    %v5402 = vpack.c.b16 %v5338, %v5322
    %v5403 = vpack.c.b16 %v5339, %v5323
    %v5404 = vpack.c.b16 %v5340, %v5324
    %v5405 = vpack.c.b16 %v5341, %v5325
    %v5406 = vpack.c.b16 %v5358, %v5342
    %v5407 = vpack.c.b16 %v5359, %v5343
    %v5408 = vpack.c.b16 %v5360, %v5344
    %v5409 = vpack.c.b16 %v5361, %v5345
    %v5410 = vpack.c.b16 %v5362, %v5346
    %v5411 = vpack.c.b16 %v5363, %v5347
    %v5412 = vpack.c.b16 %v5364, %v5348
    %v5413 = vpack.c.b16 %v5365, %v5349
    %v5414 = vpack.c.b16 %v5366, %v5350
    %v5415 = vpack.c.b16 %v5367, %v5351
    %v5416 = vpack.c.b16 %v5368, %v5352
    %v5417 = vpack.c.b16 %v5369, %v5353
    %v5418 = vpack.c.b16 %v5370, %v5354
    %v5419 = vpack.c.b16 %v5371, %v5355
    %v5420 = vpack.c.b16 %v5372, %v5356
    %v5421 = vpack.c.b16 %v5373, %v5357
    %v5422 = vpack.c.b16 %v5374, %v5374
    %v5423 = vpack.c.b16 %v5375, %v5375
    %v5424 = vpack.c.b16 %v5376, %v5376
    %v5425 = vpack.c.b16 %v5377, %v5377
    %v5426 = vpack.c.b16 %v5378, %v5378
    %v5427 = vpack.c.b16 %v5379, %v5379
    %v5428 = vpack.c.b16 %v5380, %v5380
    %v5429 = vpack.c.b16 %v5381, %v5381
    %v5430 = vpack.c.b16 %v5382, %v5382
    %v5431 = vpack.c.b16 %v5383, %v5383
    %v5432 = vpack.c.b16 %v5384, %v5384
    %v5433 = vpack.c.b16 %v5385, %v5385
    %v5434 = vpack.c.b16 %v5386, %v5386
    %v5435 = vpack.c.b16 %v5387, %v5387
    %v5436 = vpack.c.b16 %v5388, %v5388
    %v5437 = vpack.c.b16 %v5389, %v5389
    %vm5470 = vcmask 326656
    %v5472 = vsel %vm5470, %v5229, 0
    %v5475 = vsel %vm1066, %v5422, 0
    %v5478 = vsel %vm1066, %v5423, 0
    %v5481 = vsel %vm1066, %v5424, 0
    %v5484 = vsel %vm1066, %v5425, 0
    %v5487 = vsel %vm1066, %v5426, 0
    %v5490 = vsel %vm1066, %v5427, 0
    %v5493 = vsel %vm1066, %v5428, 0
    %v5496 = vsel %vm1066, %v5429, 0
    %v5499 = vsel %vm1066, %v5430, 0
    %v5502 = vsel %vm1066, %v5431, 0
    %v5505 = vsel %vm1066, %v5432, 0
    %v5508 = vsel %vm1066, %v5433, 0
    %v5511 = vsel %vm1066, %v5434, 0
    %v5514 = vsel %vm1066, %v5435, 0
    %v5517 = vsel %vm1066, %v5436, 0
    %v5520 = vsel %vm1066, %v5437, 0
    %5522 = vmatprep.subr.bf16.mxu0 0
    %5523 = vmatpush1.bf16.msra.mxu0 0
    %5524 = vmatprep.subr.bf16.mxu0 0
    %5525 = vmatpush1.bf16.msra.mxu0 0
    %5526 = vmatprep.subr.bf16.mxu0 0
    %5527 = vmatpush1.bf16.msra.mxu0 0
    %5528 = vmatprep.subr.bf16.mxu0 0
    %5529 = vmatpush1.bf16.msra.mxu0 0
    %5530 = vmatprep.subr.bf16.mxu0 0
    %5531 = vmatpush1.bf16.msra.mxu0 0
    %5532 = vmatprep.subr.bf16.mxu0 %v5478
    %5533 = vmatpush1.bf16.msra.mxu0 %v5475
    %5534 = vmatprep.subr.bf16.mxu0 %v5407
    %5535 = vmatpush1.bf16.msra.mxu0 %v5406
    %5536 = vmatprep.subr.bf16.mxu0 %v5391
    %5537 = vmatpush1.bf16.msra.mxu0 %v5390
    %5538 = vmatprep.subr.bf16.mxu0 0
    %5539 = vmatpush2.bf16.msra.mxu0 0
    %5540 = vmatprep.subr.bf16.mxu0 0
    %5541 = vmatpush2.bf16.msra.mxu0 0
    %5542 = vmatprep.subr.bf16.mxu0 0
    %5543 = vmatpush2.bf16.msra.mxu0 0
    %5544 = vmatprep.subr.bf16.mxu0 0
    %5545 = vmatpush2.bf16.msra.mxu0 0
    %5546 = vmatprep.subr.bf16.mxu0 0
    %5547 = vmatpush2.bf16.msra.mxu0 0
    %5548 = vmatprep.subr.bf16.mxu0 0
    %5549 = vmatpush2.bf16.msra.mxu0 0
    %5550 = vmatprep.subr.bf16.mxu0 0
    %5551 = vmatpush2.bf16.msra.mxu0 0
    %5552 = vmatprep.subr.bf16.mxu0 0
    %5553 = vmatpush2.bf16.msra.mxu0 0
    %5554 = vmatprep.mubr.bf16.mxu0 0
    %5555 = vmatmul.mubr.bf16.gmra.mxu0 %v5472
    %v5556 = vpop.f32.mrf.mxu0
    %v5557 = vadd.f32 0.0, %v5556
    %v5558 = vpop.f32.mrf.mxu0
    %v5559 = vadd.f32 0.0, %v5558
    %v5560 = vpop.f32.mrf.mxu0
    %v5561 = vpop.f32.mrf.mxu0
    %5562 = vdwg.mxu0
    %5563 = vmatprep.subr.bf16.mxu0 0
    %5564 = vmatpush1.bf16.msra.mxu0 0
    %5565 = vmatprep.subr.bf16.mxu0 0
    %5566 = vmatpush1.bf16.msra.mxu0 0
    %5567 = vmatprep.subr.bf16.mxu0 0
    %5568 = vmatpush1.bf16.msra.mxu0 0
    %5569 = vmatprep.subr.bf16.mxu0 0
    %5570 = vmatpush1.bf16.msra.mxu0 0
    %5571 = vmatprep.subr.bf16.mxu0 0
    %5572 = vmatpush1.bf16.msra.mxu0 0
    %5573 = vmatprep.subr.bf16.mxu0 %v5484
    %5574 = vmatpush1.bf16.msra.mxu0 %v5481
    %5575 = vmatprep.subr.bf16.mxu0 %v5409
    %5576 = vmatpush1.bf16.msra.mxu0 %v5408
    %5577 = vmatprep.subr.bf16.mxu0 %v5393
    %5578 = vmatpush1.bf16.msra.mxu0 %v5392
    %5579 = vmatprep.subr.bf16.mxu0 0
    %5580 = vmatpush2.bf16.msra.mxu0 0
    %5581 = vmatprep.subr.bf16.mxu0 0
    %5582 = vmatpush2.bf16.msra.mxu0 0
    %5583 = vmatprep.subr.bf16.mxu0 0
    %5584 = vmatpush2.bf16.msra.mxu0 0
    %5585 = vmatprep.subr.bf16.mxu0 0
    %5586 = vmatpush2.bf16.msra.mxu0 0
    %5587 = vmatprep.subr.bf16.mxu0 0
    %5588 = vmatpush2.bf16.msra.mxu0 0
    %5589 = vmatprep.subr.bf16.mxu0 0
    %5590 = vmatpush2.bf16.msra.mxu0 0
    %5591 = vmatprep.subr.bf16.mxu0 0
    %5592 = vmatpush2.bf16.msra.mxu0 0
    %5593 = vmatprep.subr.bf16.mxu0 0
    %5594 = vmatpush2.bf16.msra.mxu0 0
    %5595 = vmatprep.mubr.bf16.mxu0 0
    %5596 = vmatmul.mubr.bf16.gmra.mxu0 %v5472
    %v5597 = vpop.f32.mrf.mxu0
    %v5598 = vadd.f32 0.0, %v5597
    %v5599 = vpop.f32.mrf.mxu0
    %v5600 = vadd.f32 0.0, %v5599
    %v5601 = vpop.f32.mrf.mxu0
    %v5602 = vpop.f32.mrf.mxu0
    %5603 = vdwg.mxu0
    %5604 = vmatprep.subr.bf16.mxu0 0
    %5605 = vmatpush1.bf16.msra.mxu0 0
    %5606 = vmatprep.subr.bf16.mxu0 0
    %5607 = vmatpush1.bf16.msra.mxu0 0
    %5608 = vmatprep.subr.bf16.mxu0 0
    %5609 = vmatpush1.bf16.msra.mxu0 0
    %5610 = vmatprep.subr.bf16.mxu0 0
    %5611 = vmatpush1.bf16.msra.mxu0 0
    %5612 = vmatprep.subr.bf16.mxu0 0
    %5613 = vmatpush1.bf16.msra.mxu0 0
    %5614 = vmatprep.subr.bf16.mxu0 %v5490
    %5615 = vmatpush1.bf16.msra.mxu0 %v5487
    %5616 = vmatprep.subr.bf16.mxu0 %v5411
    %5617 = vmatpush1.bf16.msra.mxu0 %v5410
    %5618 = vmatprep.subr.bf16.mxu0 %v5395
    %5619 = vmatpush1.bf16.msra.mxu0 %v5394
    %5620 = vmatprep.subr.bf16.mxu0 0
    %5621 = vmatpush2.bf16.msra.mxu0 0
    %5622 = vmatprep.subr.bf16.mxu0 0
    %5623 = vmatpush2.bf16.msra.mxu0 0
    %5624 = vmatprep.subr.bf16.mxu0 0
    %5625 = vmatpush2.bf16.msra.mxu0 0
    %5626 = vmatprep.subr.bf16.mxu0 0
    %5627 = vmatpush2.bf16.msra.mxu0 0
    %5628 = vmatprep.subr.bf16.mxu0 0
    %5629 = vmatpush2.bf16.msra.mxu0 0
    %5630 = vmatprep.subr.bf16.mxu0 0
    %5631 = vmatpush2.bf16.msra.mxu0 0
    %5632 = vmatprep.subr.bf16.mxu0 0
    %5633 = vmatpush2.bf16.msra.mxu0 0
    %5634 = vmatprep.subr.bf16.mxu0 0
    %5635 = vmatpush2.bf16.msra.mxu0 0
    %5636 = vmatprep.mubr.bf16.mxu0 0
    %5637 = vmatmul.mubr.bf16.gmra.mxu0 %v5472
    %v5638 = vpop.f32.mrf.mxu0
    %v5639 = vadd.f32 0.0, %v5638
    %v5640 = vpop.f32.mrf.mxu0
    %v5641 = vadd.f32 0.0, %v5640
    %v5642 = vpop.f32.mrf.mxu0
    %v5643 = vpop.f32.mrf.mxu0
    %5644 = vdwg.mxu0
    %5645 = vmatprep.subr.bf16.mxu0 0
    %5646 = vmatpush1.bf16.msra.mxu0 0
    %5647 = vmatprep.subr.bf16.mxu0 0
    %5648 = vmatpush1.bf16.msra.mxu0 0
    %5649 = vmatprep.subr.bf16.mxu0 0
    %5650 = vmatpush1.bf16.msra.mxu0 0
    %5651 = vmatprep.subr.bf16.mxu0 0
    %5652 = vmatpush1.bf16.msra.mxu0 0
    %5653 = vmatprep.subr.bf16.mxu0 0
    %5654 = vmatpush1.bf16.msra.mxu0 0
    %5655 = vmatprep.subr.bf16.mxu0 %v5496
    %5656 = vmatpush1.bf16.msra.mxu0 %v5493
    %5657 = vmatprep.subr.bf16.mxu0 %v5413
    %5658 = vmatpush1.bf16.msra.mxu0 %v5412
    %5659 = vmatprep.subr.bf16.mxu0 %v5397
    %5660 = vmatpush1.bf16.msra.mxu0 %v5396
    %5661 = vmatprep.subr.bf16.mxu0 0
    %5662 = vmatpush2.bf16.msra.mxu0 0
    %5663 = vmatprep.subr.bf16.mxu0 0
    %5664 = vmatpush2.bf16.msra.mxu0 0
    %5665 = vmatprep.subr.bf16.mxu0 0
    %5666 = vmatpush2.bf16.msra.mxu0 0
    %5667 = vmatprep.subr.bf16.mxu0 0
    %5668 = vmatpush2.bf16.msra.mxu0 0
    %5669 = vmatprep.subr.bf16.mxu0 0
    %5670 = vmatpush2.bf16.msra.mxu0 0
    %5671 = vmatprep.subr.bf16.mxu0 0
    %5672 = vmatpush2.bf16.msra.mxu0 0
    %5673 = vmatprep.subr.bf16.mxu0 0
    %5674 = vmatpush2.bf16.msra.mxu0 0
    %5675 = vmatprep.subr.bf16.mxu0 0
    %5676 = vmatpush2.bf16.msra.mxu0 0
    %5677 = vmatprep.mubr.bf16.mxu0 0
    %5678 = vmatmul.mubr.bf16.gmra.mxu0 %v5472
    %v5679 = vpop.f32.mrf.mxu0
    %v5680 = vadd.f32 0.0, %v5679
    %v5681 = vpop.f32.mrf.mxu0
    %v5682 = vadd.f32 0.0, %v5681
    %v5683 = vpop.f32.mrf.mxu0
    %v5684 = vpop.f32.mrf.mxu0
    %5685 = vdwg.mxu0
    %5686 = vmatprep.subr.bf16.mxu0 0
    %5687 = vmatpush1.bf16.msra.mxu0 0
    %5688 = vmatprep.subr.bf16.mxu0 0
    %5689 = vmatpush1.bf16.msra.mxu0 0
    %5690 = vmatprep.subr.bf16.mxu0 0
    %5691 = vmatpush1.bf16.msra.mxu0 0
    %5692 = vmatprep.subr.bf16.mxu0 0
    %5693 = vmatpush1.bf16.msra.mxu0 0
    %5694 = vmatprep.subr.bf16.mxu0 0
    %5695 = vmatpush1.bf16.msra.mxu0 0
    %5696 = vmatprep.subr.bf16.mxu0 %v5502
    %5697 = vmatpush1.bf16.msra.mxu0 %v5499
    %5698 = vmatprep.subr.bf16.mxu0 %v5415
    %5699 = vmatpush1.bf16.msra.mxu0 %v5414
    %5700 = vmatprep.subr.bf16.mxu0 %v5399
    %5701 = vmatpush1.bf16.msra.mxu0 %v5398
    %5702 = vmatprep.subr.bf16.mxu0 0
    %5703 = vmatpush2.bf16.msra.mxu0 0
    %5704 = vmatprep.subr.bf16.mxu0 0
    %5705 = vmatpush2.bf16.msra.mxu0 0
    %5706 = vmatprep.subr.bf16.mxu0 0
    %5707 = vmatpush2.bf16.msra.mxu0 0
    %5708 = vmatprep.subr.bf16.mxu0 0
    %5709 = vmatpush2.bf16.msra.mxu0 0
    %5710 = vmatprep.subr.bf16.mxu0 0
    %5711 = vmatpush2.bf16.msra.mxu0 0
    %5712 = vmatprep.subr.bf16.mxu0 0
    %5713 = vmatpush2.bf16.msra.mxu0 0
    %5714 = vmatprep.subr.bf16.mxu0 0
    %5715 = vmatpush2.bf16.msra.mxu0 0
    %5716 = vmatprep.subr.bf16.mxu0 0
    %5717 = vmatpush2.bf16.msra.mxu0 0
    %5718 = vmatprep.mubr.bf16.mxu0 0
    %5719 = vmatmul.mubr.bf16.gmra.mxu0 %v5472
    %v5720 = vpop.f32.mrf.mxu0
    %v5721 = vadd.f32 0.0, %v5720
    %v5722 = vpop.f32.mrf.mxu0
    %v5723 = vadd.f32 0.0, %v5722
    %v5724 = vpop.f32.mrf.mxu0
    %v5725 = vpop.f32.mrf.mxu0
    %5726 = vdwg.mxu0
    %5727 = vmatprep.subr.bf16.mxu0 0
    %5728 = vmatpush1.bf16.msra.mxu0 0
    %5729 = vmatprep.subr.bf16.mxu0 0
    %5730 = vmatpush1.bf16.msra.mxu0 0
    %5731 = vmatprep.subr.bf16.mxu0 0
    %5732 = vmatpush1.bf16.msra.mxu0 0
    %5733 = vmatprep.subr.bf16.mxu0 0
    %5734 = vmatpush1.bf16.msra.mxu0 0
    %5735 = vmatprep.subr.bf16.mxu0 0
    %5736 = vmatpush1.bf16.msra.mxu0 0
    %5737 = vmatprep.subr.bf16.mxu0 %v5508
    %5738 = vmatpush1.bf16.msra.mxu0 %v5505
    %5739 = vmatprep.subr.bf16.mxu0 %v5417
    %5740 = vmatpush1.bf16.msra.mxu0 %v5416
    %5741 = vmatprep.subr.bf16.mxu0 %v5401
    %5742 = vmatpush1.bf16.msra.mxu0 %v5400
    %5743 = vmatprep.subr.bf16.mxu0 0
    %5744 = vmatpush2.bf16.msra.mxu0 0
    %5745 = vmatprep.subr.bf16.mxu0 0
    %5746 = vmatpush2.bf16.msra.mxu0 0
    %5747 = vmatprep.subr.bf16.mxu0 0
    %5748 = vmatpush2.bf16.msra.mxu0 0
    %5749 = vmatprep.subr.bf16.mxu0 0
    %5750 = vmatpush2.bf16.msra.mxu0 0
    %5751 = vmatprep.subr.bf16.mxu0 0
    %5752 = vmatpush2.bf16.msra.mxu0 0
    %5753 = vmatprep.subr.bf16.mxu0 0
    %5754 = vmatpush2.bf16.msra.mxu0 0
    %5755 = vmatprep.subr.bf16.mxu0 0
    %5756 = vmatpush2.bf16.msra.mxu0 0
    %5757 = vmatprep.subr.bf16.mxu0 0
    %5758 = vmatpush2.bf16.msra.mxu0 0
    %5759 = vmatprep.mubr.bf16.mxu0 0
    %5760 = vmatmul.mubr.bf16.gmra.mxu0 %v5472
    %v5761 = vpop.f32.mrf.mxu0
    %v5762 = vadd.f32 0.0, %v5761
    %v5763 = vpop.f32.mrf.mxu0
    %v5764 = vadd.f32 0.0, %v5763
    %v5765 = vpop.f32.mrf.mxu0
    %v5766 = vpop.f32.mrf.mxu0
    %5767 = vdwg.mxu0
    %5768 = vmatprep.subr.bf16.mxu0 0
    %5769 = vmatpush1.bf16.msra.mxu0 0
    %5770 = vmatprep.subr.bf16.mxu0 0
    %5771 = vmatpush1.bf16.msra.mxu0 0
    %5772 = vmatprep.subr.bf16.mxu0 0
    %5773 = vmatpush1.bf16.msra.mxu0 0
    %5774 = vmatprep.subr.bf16.mxu0 0
    %5775 = vmatpush1.bf16.msra.mxu0 0
    %5776 = vmatprep.subr.bf16.mxu0 0
    %5777 = vmatpush1.bf16.msra.mxu0 0
    %5778 = vmatprep.subr.bf16.mxu0 %v5514
    %5779 = vmatpush1.bf16.msra.mxu0 %v5511
    %5780 = vmatprep.subr.bf16.mxu0 %v5419
    %5781 = vmatpush1.bf16.msra.mxu0 %v5418
    %5782 = vmatprep.subr.bf16.mxu0 %v5403
    %5783 = vmatpush1.bf16.msra.mxu0 %v5402
    %5784 = vmatprep.subr.bf16.mxu0 0
    %5785 = vmatpush2.bf16.msra.mxu0 0
    %5786 = vmatprep.subr.bf16.mxu0 0
    %5787 = vmatpush2.bf16.msra.mxu0 0
    %5788 = vmatprep.subr.bf16.mxu0 0
    %5789 = vmatpush2.bf16.msra.mxu0 0
    %5790 = vmatprep.subr.bf16.mxu0 0
    %5791 = vmatpush2.bf16.msra.mxu0 0
    %5792 = vmatprep.subr.bf16.mxu0 0
    %5793 = vmatpush2.bf16.msra.mxu0 0
    %5794 = vmatprep.subr.bf16.mxu0 0
    %5795 = vmatpush2.bf16.msra.mxu0 0
    %5796 = vmatprep.subr.bf16.mxu0 0
    %5797 = vmatpush2.bf16.msra.mxu0 0
    %5798 = vmatprep.subr.bf16.mxu0 0
    %5799 = vmatpush2.bf16.msra.mxu0 0
    %5800 = vmatprep.mubr.bf16.mxu0 0
    %5801 = vmatmul.mubr.bf16.gmra.mxu0 %v5472
    %v5802 = vpop.f32.mrf.mxu0
    %v5803 = vadd.f32 0.0, %v5802
    %v5804 = vpop.f32.mrf.mxu0
    %v5805 = vadd.f32 0.0, %v5804
    %v5806 = vpop.f32.mrf.mxu0
    %v5807 = vpop.f32.mrf.mxu0
    %5808 = vdwg.mxu0
    %5809 = vmatprep.subr.bf16.mxu0 0
    %5810 = vmatpush1.bf16.msra.mxu0 0
    %5811 = vmatprep.subr.bf16.mxu0 0
    %5812 = vmatpush1.bf16.msra.mxu0 0
    %5813 = vmatprep.subr.bf16.mxu0 0
    %5814 = vmatpush1.bf16.msra.mxu0 0
    %5815 = vmatprep.subr.bf16.mxu0 0
    %5816 = vmatpush1.bf16.msra.mxu0 0
    %5817 = vmatprep.subr.bf16.mxu0 0
    %5818 = vmatpush1.bf16.msra.mxu0 0
    %5819 = vmatprep.subr.bf16.mxu0 %v5520
    %5820 = vmatpush1.bf16.msra.mxu0 %v5517
    %5821 = vmatprep.subr.bf16.mxu0 %v5421
    %5822 = vmatpush1.bf16.msra.mxu0 %v5420
    %5823 = vmatprep.subr.bf16.mxu0 %v5405
    %5824 = vmatpush1.bf16.msra.mxu0 %v5404
    %5825 = vmatprep.subr.bf16.mxu0 0
    %5826 = vmatpush2.bf16.msra.mxu0 0
    %5827 = vmatprep.subr.bf16.mxu0 0
    %5828 = vmatpush2.bf16.msra.mxu0 0
    %5829 = vmatprep.subr.bf16.mxu0 0
    %5830 = vmatpush2.bf16.msra.mxu0 0
    %5831 = vmatprep.subr.bf16.mxu0 0
    %5832 = vmatpush2.bf16.msra.mxu0 0
    %5833 = vmatprep.subr.bf16.mxu0 0
    %5834 = vmatpush2.bf16.msra.mxu0 0
    %5835 = vmatprep.subr.bf16.mxu0 0
    %5836 = vmatpush2.bf16.msra.mxu0 0
    %5837 = vmatprep.subr.bf16.mxu0 0
    %5838 = vmatpush2.bf16.msra.mxu0 0
    %5839 = vmatprep.subr.bf16.mxu0 0
    %5840 = vmatpush2.bf16.msra.mxu0 0
    %5841 = vmatprep.mubr.bf16.mxu0 0
    %5842 = vmatmul.mubr.bf16.gmra.mxu0 %v5472
    %v5843 = vpop.f32.mrf.mxu0
    %v5844 = vadd.f32 0.0, %v5843
    %v5845 = vpop.f32.mrf.mxu0
    %v5846 = vadd.f32 0.0, %v5845
    %v5847 = vpop.f32.mrf.mxu0
    %v5848 = vpop.f32.mrf.mxu0
    %5849 = vdwg.mxu0
    %v5850 = vsel %vm1066, %v5557, 0.0
    %v5851 = vsel %vm1066, %v5559, 0.0
    %v5852 = vadd.f32 %v5850, %v5851
    %v5853 = vsel %vm1066, %v5598, 0.0
    %v5854 = vadd.f32 %v5852, %v5853
    %v5855 = vsel %vm1066, %v5600, 0.0
    %v5856 = vadd.f32 %v5854, %v5855
    %v5857 = vsel %vm1066, %v5639, 0.0
    %v5858 = vadd.f32 %v5856, %v5857
    %v5859 = vsel %vm1066, %v5641, 0.0
    %v5860 = vadd.f32 %v5858, %v5859
    %v5861 = vsel %vm1066, %v5680, 0.0
    %v5862 = vadd.f32 %v5860, %v5861
    %v5863 = vsel %vm1066, %v5682, 0.0
    %v5864 = vadd.f32 %v5862, %v5863
    %v5865 = vsel %vm1066, %v5721, 0.0
    %v5866 = vadd.f32 %v5864, %v5865
    %v5867 = vsel %vm1066, %v5723, 0.0
    %v5868 = vadd.f32 %v5866, %v5867
    %v5869 = vsel %vm1066, %v5762, 0.0
    %v5870 = vadd.f32 %v5868, %v5869
    %v5871 = vsel %vm1066, %v5764, 0.0
    %v5872 = vadd.f32 %v5870, %v5871
    %v5873 = vsel %vm1066, %v5803, 0.0
    %v5874 = vadd.f32 %v5872, %v5873
    %v5875 = vsel %vm1066, %v5805, 0.0
    %v5876 = vadd.f32 %v5874, %v5875
    %v5877 = vsel %vm1066, %v5844, 0.0
    %v5878 = vadd.f32 %v5876, %v5877
    %v5879 = vsel %vm1066, %v5846, 0.0
    %v5880 = vadd.f32 %v5878, %v5879
    %5881 = vadd.xlane.f32.xlu0 %v5880
    %v5882 = vpop.xlane.xlu0 %5881
    %v5883 = vsel %vm1066, %v5882, 0.0
    %v5884 = vrot.slane %v5883, 4
    %v5885 = vadd.f32 %v5883, %v5884
    %v5886 = vrot.slane %v5885, 2
    %v5887 = vadd.f32 %v5885, %v5886
    %v5888 = vrot.slane %v5887, 1
    %v5889 = vadd.f32 %v5887, %v5888
    %v5890 = vmul.f32 %v5557, %v5557
    %v5891 = vmul.f32 %v5559, %v5559
    %v5892 = vmul.f32 %v5598, %v5598
    %v5893 = vmul.f32 %v5600, %v5600
    %v5894 = vmul.f32 %v5639, %v5639
    %v5895 = vmul.f32 %v5641, %v5641
    %v5896 = vmul.f32 %v5680, %v5680
    %v5897 = vmul.f32 %v5682, %v5682
    %v5898 = vmul.f32 %v5721, %v5721
    %v5899 = vmul.f32 %v5723, %v5723
    %v5900 = vmul.f32 %v5762, %v5762
    %v5901 = vmul.f32 %v5764, %v5764
    %v5902 = vmul.f32 %v5803, %v5803
    %v5903 = vmul.f32 %v5805, %v5805
    %v5904 = vmul.f32 %v5844, %v5844
    %v5905 = vmul.f32 %v5846, %v5846
    %v5906 = vsel %vm1066, %v5890, 0.0
    %v5907 = vsel %vm1066, %v5891, 0.0
    %v5908 = vadd.f32 %v5906, %v5907
    %v5909 = vsel %vm1066, %v5892, 0.0
    %v5910 = vadd.f32 %v5908, %v5909
    %v5911 = vsel %vm1066, %v5893, 0.0
    %v5912 = vadd.f32 %v5910, %v5911
    %v5913 = vsel %vm1066, %v5894, 0.0
    %v5914 = vadd.f32 %v5912, %v5913
    %v5915 = vsel %vm1066, %v5895, 0.0
    %v5916 = vadd.f32 %v5914, %v5915
    %v5917 = vsel %vm1066, %v5896, 0.0
    %v5918 = vadd.f32 %v5916, %v5917
    %v5919 = vsel %vm1066, %v5897, 0.0
    %v5920 = vadd.f32 %v5918, %v5919
    %v5921 = vsel %vm1066, %v5898, 0.0
    %v5922 = vadd.f32 %v5920, %v5921
    %v5923 = vsel %vm1066, %v5899, 0.0
    %v5924 = vadd.f32 %v5922, %v5923
    %v5925 = vsel %vm1066, %v5900, 0.0
    %v5926 = vadd.f32 %v5924, %v5925
    %v5927 = vsel %vm1066, %v5901, 0.0
    %v5928 = vadd.f32 %v5926, %v5927
    %v5929 = vsel %vm1066, %v5902, 0.0
    %v5930 = vadd.f32 %v5928, %v5929
    %v5931 = vsel %vm1066, %v5903, 0.0
    %v5932 = vadd.f32 %v5930, %v5931
    %v5933 = vsel %vm1066, %v5904, 0.0
    %v5934 = vadd.f32 %v5932, %v5933
    %v5935 = vsel %vm1066, %v5905, 0.0
    %v5936 = vadd.f32 %v5934, %v5935
    %5937 = vadd.xlane.f32.xlu0 %v5936
    %v5938 = vpop.xlane.xlu0 %5937
    %v5939 = vsel %vm1066, %v5938, 0.0
    %v5940 = vrot.slane %v5939, 4
    %v5941 = vadd.f32 %v5939, %v5940
    %v5942 = vrot.slane %v5941, 2
    %v5943 = vadd.f32 %v5941, %v5942
    %v5944 = vrot.slane %v5943, 1
    %v5945 = vadd.f32 %v5943, %v5944
    %v5946 = vmul.f32 %v5889, 0.000125
    %v5947 = vmul.f32 %v5945, 0.000125
    %v5948 = vmul.f32 %v5946, %v5946
    %v5949 = vsub.f32 %v5947, %v5948
    %s5950 = sld [smem:[#allocation15]]
    %v5951 = vadd.f32 %v5949, 1e-05
    %v5952 = vrsqrt.pop %v5951
    %v5953 = vstv %s5950
    %v5954 = vmul.f32 %v5953, %v5952
    %s5955 = sld [smem:[#allocation16]]
    %v5956 = vmul.f32 %v5946, %v5954
    %v5957 = vstv %s5955
    %v5958 = vsub.f32 %v5957, %v5956
    %v5959 = vmul.f32 %v1185, %v5954
    %v5960 = vadd.f32 %v5959, 0.0
    %v5961 = vmul.f32 %v1185, %v5958
    %v5962 = vadd.f32 %v5961, 0.0
    %v5963 = vsel %vm1200, %v5557, 0.0
    %v5964 = vsel %vm1200, %v5559, 0.0
    %v5965 = vadd.f32 %v5963, %v5964
    %v5966 = vsel %vm1200, %v5598, 0.0
    %v5967 = vadd.f32 %v5965, %v5966
    %v5968 = vsel %vm1200, %v5600, 0.0
    %v5969 = vadd.f32 %v5967, %v5968
    %v5970 = vsel %vm1200, %v5639, 0.0
    %v5971 = vadd.f32 %v5969, %v5970
    %v5972 = vsel %vm1200, %v5641, 0.0
    %v5973 = vadd.f32 %v5971, %v5972
    %v5974 = vsel %vm1200, %v5680, 0.0
    %v5975 = vadd.f32 %v5973, %v5974
    %v5976 = vsel %vm1200, %v5682, 0.0
    %v5977 = vadd.f32 %v5975, %v5976
    %v5978 = vsel %vm1200, %v5721, 0.0
    %v5979 = vadd.f32 %v5977, %v5978
    %v5980 = vsel %vm1200, %v5723, 0.0
    %v5981 = vadd.f32 %v5979, %v5980
    %v5982 = vsel %vm1200, %v5762, 0.0
    %v5983 = vadd.f32 %v5981, %v5982
    %v5984 = vsel %vm1200, %v5764, 0.0
    %v5985 = vadd.f32 %v5983, %v5984
    %v5986 = vsel %vm1200, %v5803, 0.0
    %v5987 = vadd.f32 %v5985, %v5986
    %v5988 = vsel %vm1200, %v5805, 0.0
    %v5989 = vadd.f32 %v5987, %v5988
    %v5990 = vsel %vm1200, %v5844, 0.0
    %v5991 = vadd.f32 %v5989, %v5990
    %v5992 = vsel %vm1200, %v5846, 0.0
    %v5993 = vadd.f32 %v5991, %v5992
    %5994 = vadd.xlane.f32.xlu0 %v5993
    %v5995 = vpop.xlane.xlu0 %5994
    %v5997 = vrot.slane %v5995, 4
    %v5999 = vsel %vm1066, %v5997, 0.0
    %v6000 = vrot.slane %v5999, 4
    %v6001 = vadd.f32 %v5999, %v6000
    %v6002 = vrot.slane %v6001, 2
    %v6003 = vadd.f32 %v6001, %v6002
    %v6004 = vrot.slane %v6003, 1
    %v6005 = vadd.f32 %v6003, %v6004
    %v6006 = vsel %vm1200, %v5890, 0.0
    %v6007 = vsel %vm1200, %v5891, 0.0
    %v6008 = vadd.f32 %v6006, %v6007
    %v6009 = vsel %vm1200, %v5892, 0.0
    %v6010 = vadd.f32 %v6008, %v6009
    %v6011 = vsel %vm1200, %v5893, 0.0
    %v6012 = vadd.f32 %v6010, %v6011
    %v6013 = vsel %vm1200, %v5894, 0.0
    %v6014 = vadd.f32 %v6012, %v6013
    %v6015 = vsel %vm1200, %v5895, 0.0
    %v6016 = vadd.f32 %v6014, %v6015
    %v6017 = vsel %vm1200, %v5896, 0.0
    %v6018 = vadd.f32 %v6016, %v6017
    %v6019 = vsel %vm1200, %v5897, 0.0
    %v6020 = vadd.f32 %v6018, %v6019
    %v6021 = vsel %vm1200, %v5898, 0.0
    %v6022 = vadd.f32 %v6020, %v6021
    %v6023 = vsel %vm1200, %v5899, 0.0
    %v6024 = vadd.f32 %v6022, %v6023
    %v6025 = vsel %vm1200, %v5900, 0.0
    %v6026 = vadd.f32 %v6024, %v6025
    %v6027 = vsel %vm1200, %v5901, 0.0
    %v6028 = vadd.f32 %v6026, %v6027
    %v6029 = vsel %vm1200, %v5902, 0.0
    %v6030 = vadd.f32 %v6028, %v6029
    %v6031 = vsel %vm1200, %v5903, 0.0
    %v6032 = vadd.f32 %v6030, %v6031
    %v6033 = vsel %vm1200, %v5904, 0.0
    %v6034 = vadd.f32 %v6032, %v6033
    %v6035 = vsel %vm1200, %v5905, 0.0
    %v6036 = vadd.f32 %v6034, %v6035
    %6037 = vadd.xlane.f32.xlu0 %v6036
    %v6038 = vpop.xlane.xlu0 %6037
    %v6040 = vrot.slane %v6038, 4
    %v6042 = vsel %vm1066, %v6040, 0.0
    %v6043 = vrot.slane %v6042, 4
    %v6044 = vadd.f32 %v6042, %v6043
    %v6045 = vrot.slane %v6044, 2
    %v6046 = vadd.f32 %v6044, %v6045
    %v6047 = vrot.slane %v6046, 1
    %v6048 = vadd.f32 %v6046, %v6047
    %v6049 = vmul.f32 %v6005, 0.000125
    %v6050 = vmul.f32 %v6048, 0.000125
    %v6051 = vmul.f32 %v6049, %v6049
    %v6052 = vsub.f32 %v6050, %v6051
    %s6053 = sld [smem:[#allocation15 + $0x1]]
    %v6054 = vadd.f32 %v6052, 1e-05
    %v6055 = vrsqrt.pop %v6054
    %v6056 = vstv %s6053
    %v6057 = vmul.f32 %v6056, %v6055
    %s6058 = sld [smem:[#allocation16 + $0x1]]
    %v6059 = vmul.f32 %v6049, %v6057
    %v6060 = vstv %s6058
    %v6061 = vsub.f32 %v6060, %v6059
    %v6062 = vmul.f32 %v1309, %v6057
    %v6063 = vadd.f32 %v5960, %v6062
    %v6064 = vmul.f32 %v1309, %v6061
    %v6065 = vadd.f32 %v5962, %v6064
    %v6066 = vmul.f32 %v5557, %v6063
    %v6067 = vmul.f32 %v5559, %v6063
    %v6068 = vmul.f32 %v5598, %v6063
    %v6069 = vmul.f32 %v5600, %v6063
    %v6070 = vmul.f32 %v5639, %v6063
    %v6071 = vmul.f32 %v5641, %v6063
    %v6072 = vmul.f32 %v5680, %v6063
    %v6073 = vmul.f32 %v5682, %v6063
    %v6074 = vmul.f32 %v5721, %v6063
    %v6075 = vmul.f32 %v5723, %v6063
    %v6076 = vmul.f32 %v5762, %v6063
    %v6077 = vmul.f32 %v5764, %v6063
    %v6078 = vmul.f32 %v5803, %v6063
    %v6079 = vmul.f32 %v5805, %v6063
    %v6080 = vmul.f32 %v5844, %v6063
    %v6081 = vmul.f32 %v5846, %v6063
    %v6082 = vadd.f32 %v6066, %v6065
    %v6083 = vadd.f32 %v6067, %v6065
    %v6084 = vadd.f32 %v6068, %v6065
    %v6085 = vadd.f32 %v6069, %v6065
    %v6086 = vadd.f32 %v6070, %v6065
    %v6087 = vadd.f32 %v6071, %v6065
    %v6088 = vadd.f32 %v6072, %v6065
    %v6089 = vadd.f32 %v6073, %v6065
    %v6090 = vadd.f32 %v6074, %v6065
    %v6091 = vadd.f32 %v6075, %v6065
    %v6092 = vadd.f32 %v6076, %v6065
    %v6093 = vadd.f32 %v6077, %v6065
    %v6094 = vadd.f32 %v6078, %v6065
    %v6095 = vadd.f32 %v6079, %v6065
    %v6096 = vadd.f32 %v6080, %v6065
    %v6097 = vadd.f32 %v6081, %v6065
    %s6098 = sshll.u32 %s1810, 4
    %6099 = dma.done %s216, %s6098
    %v6100 = vpack.c.bf16 %v6082, %v6082
    %v6101 = vpack.c.bf16 %v6083, %v6083
    %v6102 = vpack.c.bf16 %v6084, %v6084
    %v6103 = vpack.c.bf16 %v6085, %v6085
    %v6104 = vpack.c.bf16 %v6086, %v6086
    %v6105 = vpack.c.bf16 %v6087, %v6087
    %v6106 = vpack.c.bf16 %v6088, %v6088
    %v6107 = vpack.c.bf16 %v6089, %v6089
    %v6108 = vpack.c.bf16 %v6090, %v6090
    %v6109 = vpack.c.bf16 %v6091, %v6091
    %v6110 = vpack.c.bf16 %v6092, %v6092
    %v6111 = vpack.c.bf16 %v6093, %v6093
    %v6112 = vpack.c.bf16 %v6094, %v6094
    %v6113 = vpack.c.bf16 %v6095, %v6095
    %v6114 = vpack.c.bf16 %v6096, %v6096
    %v6115 = vpack.c.bf16 %v6097, %v6097
    %v6116 = vld [vmem:[#allocation3] sm:$0xff]
    %v6117 = vld [vmem:[#allocation3 + $0x8] sm:$0xf]
    %v6118 = vld [vmem:[#allocation3 + $0xc] sm:$0xff]
    %v6119 = vld [vmem:[#allocation3 + $0x14] sm:$0xf]
    %v6120 = vld [vmem:[#allocation3 + $0x18] sm:$0xff]
    %v6121 = vld [vmem:[#allocation3 + $0x20] sm:$0xf]
    %v6122 = vld [vmem:[#allocation3 + $0x24] sm:$0xff]
    %v6123 = vld [vmem:[#allocation3 + $0x2c] sm:$0xf]
    %v6124 = vld [vmem:[#allocation3 + $0x30] sm:$0xff]
    %v6125 = vld [vmem:[#allocation3 + $0x38] sm:$0xf]
    %v6126 = vld [vmem:[#allocation3 + $0x3c] sm:$0xff]
    %v6127 = vld [vmem:[#allocation3 + $0x44] sm:$0xf]
    %v6128 = vld [vmem:[#allocation3 + $0x48] sm:$0xff]
    %v6129 = vld [vmem:[#allocation3 + $0x50] sm:$0xf]
    %v6130 = vld [vmem:[#allocation3 + $0x54] sm:$0xff]
    %v6131 = vld [vmem:[#allocation3 + $0x5c] sm:$0xf]
    %v6132 = vld [vmem:[#allocation3 + $0x60] sm:$0xff]
    %v6133 = vld [vmem:[#allocation3 + $0x68] sm:$0xf]
    %v6134 = vld [vmem:[#allocation3 + $0x6c] sm:$0xff]
    %v6135 = vld [vmem:[#allocation3 + $0x74] sm:$0xf]
    %v6136 = vld [vmem:[#allocation3 + $0x78] sm:$0xff]
    %v6137 = vld [vmem:[#allocation3 + $0x80] sm:$0xf]
    %v6138 = vld [vmem:[#allocation3 + $0x84] sm:$0xff]
    %v6139 = vld [vmem:[#allocation3 + $0x8c] sm:$0xf]
    %v6140 = vld [vmem:[#allocation3 + $0x90] sm:$0xff]
    %v6141 = vld [vmem:[#allocation3 + $0x98] sm:$0xf]
    %v6142 = vld [vmem:[#allocation3 + $0x9c] sm:$0xff]
    %v6143 = vld [vmem:[#allocation3 + $0xa4] sm:$0xf]
    %v6144 = vld [vmem:[#allocation3 + $0xa8] sm:$0xff]
    %v6145 = vld [vmem:[#allocation3 + $0xb0] sm:$0xf]
    %v6146 = vld [vmem:[#allocation3 + $0xb4] sm:$0xff]
    %v6147 = vld [vmem:[#allocation3 + $0xbc] sm:$0xf]
    %v6148 = vld [vmem:[#allocation3 + $0xc0] sm:$0xff]
    %v6149 = vld [vmem:[#allocation3 + $0xc8] sm:$0xf]
    %v6150 = vld [vmem:[#allocation3 + $0xcc] sm:$0xff]
    %v6151 = vld [vmem:[#allocation3 + $0xd4] sm:$0xf]
    %v6152 = vld [vmem:[#allocation3 + $0xd8] sm:$0xff]
    %v6153 = vld [vmem:[#allocation3 + $0xe0] sm:$0xf]
    %v6154 = vld [vmem:[#allocation3 + $0xe4] sm:$0xff]
    %v6155 = vld [vmem:[#allocation3 + $0xec] sm:$0xf]
    %v6156 = vld [vmem:[#allocation3 + $0xf0] sm:$0xff]
    %v6157 = vld [vmem:[#allocation3 + $0xf8] sm:$0xf]
    %v6158 = vld [vmem:[#allocation3 + $0xfc] sm:$0xff]
    %v6159 = vld [vmem:[#allocation3 + $0x104] sm:$0xf]
    %v6160 = vld [vmem:[#allocation3 + $0x108] sm:$0xff]
    %v6161 = vld [vmem:[#allocation3 + $0x110] sm:$0xf]
    %v6162 = vld [vmem:[#allocation3 + $0x114] sm:$0xff]
    %v6163 = vld [vmem:[#allocation3 + $0x11c] sm:$0xf]
    %v6164 = vld [vmem:[#allocation3 + $0x120] sm:$0xff]
    %v6165 = vld [vmem:[#allocation3 + $0x128] sm:$0xf]
    %v6166 = vld [vmem:[#allocation3 + $0x12c] sm:$0xff]
    %v6167 = vld [vmem:[#allocation3 + $0x134] sm:$0xf]
    %v6168 = vld [vmem:[#allocation3 + $0x138] sm:$0xff]
    %v6169 = vld [vmem:[#allocation3 + $0x140] sm:$0xf]
    %v6170 = vld [vmem:[#allocation3 + $0x144] sm:$0xff]
    %v6171 = vld [vmem:[#allocation3 + $0x14c] sm:$0xf]
    %v6172 = vld [vmem:[#allocation3 + $0x150] sm:$0xff]
    %v6173 = vld [vmem:[#allocation3 + $0x158] sm:$0xf]
    %v6174 = vld [vmem:[#allocation3 + $0x15c] sm:$0xff]
    %v6175 = vld [vmem:[#allocation3 + $0x164] sm:$0xf]
    %v6176 = vld [vmem:[#allocation3 + $0x168] sm:$0xff]
    %v6177 = vld [vmem:[#allocation3 + $0x170] sm:$0xf]
    %v6178 = vld [vmem:[#allocation3 + $0x174] sm:$0xff]
    %v6179 = vld [vmem:[#allocation3 + $0x17c] sm:$0xf]
    %v6180 = vld [vmem:[#allocation3 + $0x180] sm:$0xff]
    %v6181 = vld [vmem:[#allocation3 + $0x188] sm:$0xf]
    %v6182 = vld [vmem:[#allocation3 + $0x18c] sm:$0xff]
    %v6183 = vld [vmem:[#allocation3 + $0x194] sm:$0xf]
    %v6184 = vld [vmem:[#allocation3 + $0x198] sm:$0xff]
    %v6185 = vld [vmem:[#allocation3 + $0x1a0] sm:$0xf]
    %v6186 = vld [vmem:[#allocation3 + $0x1a4] sm:$0xff]
    %v6187 = vld [vmem:[#allocation3 + $0x1ac] sm:$0xf]
    %v6188 = vld [vmem:[#allocation3 + $0x1b0] sm:$0xff]
    %v6189 = vld [vmem:[#allocation3 + $0x1b8] sm:$0xf]
    %v6190 = vld [vmem:[#allocation3 + $0x1bc] sm:$0xff]
    %v6191 = vld [vmem:[#allocation3 + $0x1c4] sm:$0xf]
    %v6192 = vld [vmem:[#allocation3 + $0x1c8] sm:$0xff]
    %v6193 = vld [vmem:[#allocation3 + $0x1d0] sm:$0xf]
    %v6194 = vld [vmem:[#allocation3 + $0x1d4] sm:$0xff]
    %v6195 = vld [vmem:[#allocation3 + $0x1dc] sm:$0xf]
    %v6196 = vld [vmem:[#allocation3 + $0x1e0] sm:$0xff]
    %v6197 = vld [vmem:[#allocation3 + $0x1e8] sm:$0xf]
    %v6198 = vld [vmem:[#allocation3 + $0x1ec] sm:$0xff]
    %v6199 = vld [vmem:[#allocation3 + $0x1f4] sm:$0xf]
    %v6200 = vld [vmem:[#allocation3 + $0x1f8] sm:$0xff]
    %v6201 = vld [vmem:[#allocation3 + $0x200] sm:$0xf]
    %v6202 = vld [vmem:[#allocation3 + $0x204] sm:$0xff]
    %v6203 = vld [vmem:[#allocation3 + $0x20c] sm:$0xf]
    %v6204 = vld [vmem:[#allocation3 + $0x210] sm:$0xff]
    %v6205 = vld [vmem:[#allocation3 + $0x218] sm:$0xf]
    %v6206 = vld [vmem:[#allocation3 + $0x21c] sm:$0xff]
    %v6207 = vld [vmem:[#allocation3 + $0x224] sm:$0xf]
    %v6208 = vld [vmem:[#allocation3 + $0x228] sm:$0xff]
    %v6209 = vld [vmem:[#allocation3 + $0x230] sm:$0xf]
    %v6210 = vld [vmem:[#allocation3 + $0x234] sm:$0xff]
    %v6211 = vld [vmem:[#allocation3 + $0x23c] sm:$0xf]
    %v6212 = vld [vmem:[#allocation3 + $0x240] sm:$0xff]
    %v6213 = vld [vmem:[#allocation3 + $0x248] sm:$0xf]
    %v6214 = vld [vmem:[#allocation3 + $0x24c] sm:$0xff]
    %v6215 = vld [vmem:[#allocation3 + $0x254] sm:$0xf]
    %v6216 = vld [vmem:[#allocation3 + $0x258] sm:$0xff]
    %v6217 = vld [vmem:[#allocation3 + $0x260] sm:$0xf]
    %v6218 = vld [vmem:[#allocation3 + $0x264] sm:$0xff]
    %v6219 = vld [vmem:[#allocation3 + $0x26c] sm:$0xf]
    %v6220 = vld [vmem:[#allocation3 + $0x270] sm:$0xff]
    %v6221 = vld [vmem:[#allocation3 + $0x278] sm:$0xf]
    %v6222 = vld [vmem:[#allocation3 + $0x27c] sm:$0xff]
    %v6223 = vld [vmem:[#allocation3 + $0x284] sm:$0xf]
    %v6224 = vld [vmem:[#allocation3 + $0x288] sm:$0xff]
    %v6225 = vld [vmem:[#allocation3 + $0x290] sm:$0xf]
    %v6226 = vld [vmem:[#allocation3 + $0x294] sm:$0xff]
    %v6227 = vld [vmem:[#allocation3 + $0x29c] sm:$0xf]
    %v6228 = vld [vmem:[#allocation3 + $0x2a0] sm:$0xff]
    %v6229 = vld [vmem:[#allocation3 + $0x2a8] sm:$0xf]
    %v6230 = vld [vmem:[#allocation3 + $0x2ac] sm:$0xff]
    %v6231 = vld [vmem:[#allocation3 + $0x2b4] sm:$0xf]
    %v6232 = vld [vmem:[#allocation3 + $0x2b8] sm:$0xff]
    %v6233 = vld [vmem:[#allocation3 + $0x2c0] sm:$0xf]
    %v6234 = vld [vmem:[#allocation3 + $0x2c4] sm:$0xff]
    %v6235 = vld [vmem:[#allocation3 + $0x2cc] sm:$0xf]
    %v6236 = vld [vmem:[#allocation3 + $0x2d0] sm:$0xff]
    %v6237 = vld [vmem:[#allocation3 + $0x2d8] sm:$0xf]
    %v6238 = vld [vmem:[#allocation3 + $0x2dc] sm:$0xff]
    %v6239 = vld [vmem:[#allocation3 + $0x2e4] sm:$0xf]
    %v6240 = vld [vmem:[#allocation3 + $0x2e8] sm:$0xff]
    %v6241 = vld [vmem:[#allocation3 + $0x2f0] sm:$0xf]
    %v6242 = vld [vmem:[#allocation3 + $0x2f4] sm:$0xff]
    %v6243 = vld [vmem:[#allocation3 + $0x2fc] sm:$0xf]
    %v6244 = vld [vmem:[#allocation3 + $0x300] sm:$0xff]
    %v6245 = vld [vmem:[#allocation3 + $0x308] sm:$0xf]
    %v6246 = vld [vmem:[#allocation3 + $0x30c] sm:$0xff]
    %v6247 = vld [vmem:[#allocation3 + $0x314] sm:$0xf]
    %v6248 = vld [vmem:[#allocation3 + $0x318] sm:$0xff]
    %v6249 = vld [vmem:[#allocation3 + $0x320] sm:$0xf]
    %v6250 = vld [vmem:[#allocation3 + $0x324] sm:$0xff]
    %v6251 = vld [vmem:[#allocation3 + $0x32c] sm:$0xf]
    %v6252 = vld [vmem:[#allocation3 + $0x330] sm:$0xff]
    %v6253 = vld [vmem:[#allocation3 + $0x338] sm:$0xf]
    %v6254 = vld [vmem:[#allocation3 + $0x33c] sm:$0xff]
    %v6255 = vld [vmem:[#allocation3 + $0x344] sm:$0xf]
    %v6256 = vld [vmem:[#allocation3 + $0x348] sm:$0xff]
    %v6257 = vld [vmem:[#allocation3 + $0x350] sm:$0xf]
    %v6258 = vld [vmem:[#allocation3 + $0x354] sm:$0xff]
    %v6259 = vld [vmem:[#allocation3 + $0x35c] sm:$0xf]
    %v6260 = vld [vmem:[#allocation3 + $0x360] sm:$0xff]
    %v6261 = vld [vmem:[#allocation3 + $0x368] sm:$0xf]
    %v6262 = vld [vmem:[#allocation3 + $0x36c] sm:$0xff]
    %v6263 = vld [vmem:[#allocation3 + $0x374] sm:$0xf]
    %v6264 = vld [vmem:[#allocation3 + $0x378] sm:$0xff]
    %v6265 = vld [vmem:[#allocation3 + $0x380] sm:$0xf]
    %v6266 = vld [vmem:[#allocation3 + $0x384] sm:$0xff]
    %v6267 = vld [vmem:[#allocation3 + $0x38c] sm:$0xf]
    %v6268 = vld [vmem:[#allocation3 + $0x390] sm:$0xff]
    %v6269 = vld [vmem:[#allocation3 + $0x398] sm:$0xf]
    %v6270 = vld [vmem:[#allocation3 + $0x39c] sm:$0xff]
    %v6271 = vld [vmem:[#allocation3 + $0x3a4] sm:$0xf]
    %v6272 = vld [vmem:[#allocation3 + $0x3a8] sm:$0xff]
    %v6273 = vld [vmem:[#allocation3 + $0x3b0] sm:$0xf]
    %v6274 = vld [vmem:[#allocation3 + $0x3b4] sm:$0xff]
    %v6275 = vld [vmem:[#allocation3 + $0x3bc] sm:$0xf]
    %v6276 = vld [vmem:[#allocation3 + $0x3c0] sm:$0xff]
    %v6277 = vld [vmem:[#allocation3 + $0x3c8] sm:$0xf]
    %v6278 = vld [vmem:[#allocation3 + $0x3cc] sm:$0xff]
    %v6279 = vld [vmem:[#allocation3 + $0x3d4] sm:$0xf]
    %v6280 = vld [vmem:[#allocation3 + $0x3d8] sm:$0xff]
    %v6281 = vld [vmem:[#allocation3 + $0x3e0] sm:$0xf]
    %v6282 = vld [vmem:[#allocation3 + $0x3e4] sm:$0xff]
    %v6283 = vld [vmem:[#allocation3 + $0x3ec] sm:$0xf]
    %v6284 = vld [vmem:[#allocation3 + $0x3f0] sm:$0xff]
    %v6285 = vld [vmem:[#allocation3 + $0x3f8] sm:$0xf]
    %v6286 = vld [vmem:[#allocation3 + $0x3fc] sm:$0xff]
    %v6287 = vld [vmem:[#allocation3 + $0x404] sm:$0xf]
    %v6288 = vld [vmem:[#allocation3 + $0x408] sm:$0xff]
    %v6289 = vld [vmem:[#allocation3 + $0x410] sm:$0xf]
    %v6290 = vld [vmem:[#allocation3 + $0x414] sm:$0xff]
    %v6291 = vld [vmem:[#allocation3 + $0x41c] sm:$0xf]
    %v6292 = vld [vmem:[#allocation3 + $0x420] sm:$0xff]
    %v6293 = vld [vmem:[#allocation3 + $0x428] sm:$0xf]
    %v6294 = vld [vmem:[#allocation3 + $0x42c] sm:$0xff]
    %v6295 = vld [vmem:[#allocation3 + $0x434] sm:$0xf]
    %v6296 = vld [vmem:[#allocation3 + $0x438] sm:$0xff]
    %v6297 = vld [vmem:[#allocation3 + $0x440] sm:$0xf]
    %v6298 = vld [vmem:[#allocation3 + $0x444] sm:$0xff]
    %v6299 = vld [vmem:[#allocation3 + $0x44c] sm:$0xf]
    %v6300 = vld [vmem:[#allocation3 + $0x450] sm:$0xff]
    %v6301 = vld [vmem:[#allocation3 + $0x458] sm:$0xf]
    %v6302 = vld [vmem:[#allocation3 + $0x45c] sm:$0xff]
    %v6303 = vld [vmem:[#allocation3 + $0x464] sm:$0xf]
    %v6304 = vld [vmem:[#allocation3 + $0x468] sm:$0xff]
    %v6305 = vld [vmem:[#allocation3 + $0x470] sm:$0xf]
    %v6306 = vld [vmem:[#allocation3 + $0x474] sm:$0xff]
    %v6307 = vld [vmem:[#allocation3 + $0x47c] sm:$0xf]
    %v6308 = vld [vmem:[#allocation3 + $0x480] sm:$0xff]
    %v6309 = vld [vmem:[#allocation3 + $0x488] sm:$0xf]
    %v6310 = vld [vmem:[#allocation3 + $0x48c] sm:$0xff]
    %v6311 = vld [vmem:[#allocation3 + $0x494] sm:$0xf]
    %v6312 = vld [vmem:[#allocation3 + $0x498] sm:$0xff]
    %v6313 = vld [vmem:[#allocation3 + $0x4a0] sm:$0xf]
    %v6314 = vld [vmem:[#allocation3 + $0x4a4] sm:$0xff]
    %v6315 = vld [vmem:[#allocation3 + $0x4ac] sm:$0xf]
    %v6316 = vld [vmem:[#allocation3 + $0x4b0] sm:$0xff]
    %v6317 = vld [vmem:[#allocation3 + $0x4b8] sm:$0xf]
    %v6318 = vld [vmem:[#allocation3 + $0x4bc] sm:$0xff]
    %v6319 = vld [vmem:[#allocation3 + $0x4c4] sm:$0xf]
    %v6320 = vld [vmem:[#allocation3 + $0x4c8] sm:$0xff]
    %v6321 = vld [vmem:[#allocation3 + $0x4d0] sm:$0xf]
    %v6322 = vld [vmem:[#allocation3 + $0x4d4] sm:$0xff]
    %v6323 = vld [vmem:[#allocation3 + $0x4dc] sm:$0xf]
    %v6324 = vld [vmem:[#allocation3 + $0x4e0] sm:$0xff]
    %v6325 = vld [vmem:[#allocation3 + $0x4e8] sm:$0xf]
    %v6326 = vld [vmem:[#allocation3 + $0x4ec] sm:$0xff]
    %v6327 = vld [vmem:[#allocation3 + $0x4f4] sm:$0xf]
    %v6328 = vld [vmem:[#allocation3 + $0x4f8] sm:$0xff]
    %v6329 = vld [vmem:[#allocation3 + $0x500] sm:$0xf]
    %v6330 = vld [vmem:[#allocation3 + $0x504] sm:$0xff]
    %v6331 = vld [vmem:[#allocation3 + $0x50c] sm:$0xf]
    %v6332 = vld [vmem:[#allocation3 + $0x510] sm:$0xff]
    %v6333 = vld [vmem:[#allocation3 + $0x518] sm:$0xf]
    %v6334 = vld [vmem:[#allocation3 + $0x51c] sm:$0xff]
    %v6335 = vld [vmem:[#allocation3 + $0x524] sm:$0xf]
    %v6336 = vld [vmem:[#allocation3 + $0x528] sm:$0xff]
    %v6337 = vld [vmem:[#allocation3 + $0x530] sm:$0xf]
    %v6338 = vld [vmem:[#allocation3 + $0x534] sm:$0xff]
    %v6339 = vld [vmem:[#allocation3 + $0x53c] sm:$0xf]
    %v6340 = vld [vmem:[#allocation3 + $0x540] sm:$0xff]
    %v6341 = vld [vmem:[#allocation3 + $0x548] sm:$0xf]
    %v6342 = vld [vmem:[#allocation3 + $0x54c] sm:$0xff]
    %v6343 = vld [vmem:[#allocation3 + $0x554] sm:$0xf]
    %v6344 = vld [vmem:[#allocation3 + $0x558] sm:$0xff]
    %v6345 = vld [vmem:[#allocation3 + $0x560] sm:$0xf]
    %v6346 = vld [vmem:[#allocation3 + $0x564] sm:$0xff]
    %v6347 = vld [vmem:[#allocation3 + $0x56c] sm:$0xf]
    %v6348 = vld [vmem:[#allocation3 + $0x570] sm:$0xff]
    %v6349 = vld [vmem:[#allocation3 + $0x578] sm:$0xf]
    %v6350 = vld [vmem:[#allocation3 + $0x57c] sm:$0xff]
    %v6351 = vld [vmem:[#allocation3 + $0x584] sm:$0xf]
    %v6352 = vld [vmem:[#allocation3 + $0x588] sm:$0xff]
    %v6353 = vld [vmem:[#allocation3 + $0x590] sm:$0xf]
    %v6354 = vld [vmem:[#allocation3 + $0x594] sm:$0xff]
    %v6355 = vld [vmem:[#allocation3 + $0x59c] sm:$0xf]
    %v6356 = vld [vmem:[#allocation3 + $0x5a0] sm:$0xff]
    %v6357 = vld [vmem:[#allocation3 + $0x5a8] sm:$0xf]
    %v6358 = vld [vmem:[#allocation3 + $0x5ac] sm:$0xff]
    %v6359 = vld [vmem:[#allocation3 + $0x5b4] sm:$0xf]
    %v6360 = vld [vmem:[#allocation3 + $0x5b8] sm:$0xff]
    %v6361 = vld [vmem:[#allocation3 + $0x5c0] sm:$0xf]
    %v6362 = vld [vmem:[#allocation3 + $0x5c4] sm:$0xff]
    %v6363 = vld [vmem:[#allocation3 + $0x5cc] sm:$0xf]
    %v6364 = vld [vmem:[#allocation3 + $0x5d0] sm:$0xff]
    %v6365 = vld [vmem:[#allocation3 + $0x5d8] sm:$0xf]
    %v6366 = vld [vmem:[#allocation3 + $0x5dc] sm:$0xff]
    %v6367 = vld [vmem:[#allocation3 + $0x5e4] sm:$0xf]
    %v6368 = vld [vmem:[#allocation3 + $0x5e8] sm:$0xff]
    %v6369 = vld [vmem:[#allocation3 + $0x5f0] sm:$0xf]
    %v6370 = vld [vmem:[#allocation3 + $0x5f4] sm:$0xff]
    %v6371 = vld [vmem:[#allocation3 + $0x5fc] sm:$0xf]
    %v6372 = vld [vmem:[#allocation3 + $0x600] sm:$0xff]
    %v6373 = vld [vmem:[#allocation3 + $0x608] sm:$0xf]
    %v6374 = vld [vmem:[#allocation3 + $0x60c] sm:$0xff]
    %v6375 = vld [vmem:[#allocation3 + $0x614] sm:$0xf]
    %v6376 = vld [vmem:[#allocation3 + $0x618] sm:$0xff]
    %v6377 = vld [vmem:[#allocation3 + $0x620] sm:$0xf]
    %v6378 = vld [vmem:[#allocation3 + $0x624] sm:$0xff]
    %v6379 = vld [vmem:[#allocation3 + $0x62c] sm:$0xf]
    %v6380 = vld [vmem:[#allocation3 + $0x630] sm:$0xff]
    %v6381 = vld [vmem:[#allocation3 + $0x638] sm:$0xf]
    %v6382 = vld [vmem:[#allocation3 + $0x63c] sm:$0xff]
    %v6383 = vld [vmem:[#allocation3 + $0x644] sm:$0xf]
    %v6384 = vld [vmem:[#allocation3 + $0x648] sm:$0xff]
    %v6385 = vld [vmem:[#allocation3 + $0x650] sm:$0xf]
    %v6386 = vld [vmem:[#allocation3 + $0x654] sm:$0xff]
    %v6387 = vld [vmem:[#allocation3 + $0x65c] sm:$0xf]
    %v6388 = vld [vmem:[#allocation3 + $0x660] sm:$0xff]
    %v6389 = vld [vmem:[#allocation3 + $0x668] sm:$0xf]
    %v6390 = vld [vmem:[#allocation3 + $0x66c] sm:$0xff]
    %v6391 = vld [vmem:[#allocation3 + $0x674] sm:$0xf]
    %v6392 = vld [vmem:[#allocation3 + $0x678] sm:$0xff]
    %v6393 = vld [vmem:[#allocation3 + $0x680] sm:$0xf]
    %v6394 = vld [vmem:[#allocation3 + $0x684] sm:$0xff]
    %v6395 = vld [vmem:[#allocation3 + $0x68c] sm:$0xf]
    %v6396 = vld [vmem:[#allocation3 + $0x690] sm:$0xff]
    %v6397 = vld [vmem:[#allocation3 + $0x698] sm:$0xf]
    %v6398 = vld [vmem:[#allocation3 + $0x69c] sm:$0xff]
    %v6399 = vld [vmem:[#allocation3 + $0x6a4] sm:$0xf]
    %v6400 = vld [vmem:[#allocation3 + $0x6a8] sm:$0xff]
    %v6401 = vld [vmem:[#allocation3 + $0x6b0] sm:$0xf]
    %v6402 = vld [vmem:[#allocation3 + $0x6b4] sm:$0xff]
    %v6403 = vld [vmem:[#allocation3 + $0x6bc] sm:$0xf]
    %v6404 = vld [vmem:[#allocation3 + $0x6c0] sm:$0xff]
    %v6405 = vld [vmem:[#allocation3 + $0x6c8] sm:$0xf]
    %v6406 = vld [vmem:[#allocation3 + $0x6cc] sm:$0xff]
    %v6407 = vld [vmem:[#allocation3 + $0x6d4] sm:$0xf]
    %v6408 = vld [vmem:[#allocation3 + $0x6d8] sm:$0xff]
    %v6409 = vld [vmem:[#allocation3 + $0x6e0] sm:$0xf]
    %v6410 = vld [vmem:[#allocation3 + $0x6e4] sm:$0xff]
    %v6411 = vld [vmem:[#allocation3 + $0x6ec] sm:$0xf]
    %v6412 = vld [vmem:[#allocation3 + $0x6f0] sm:$0xff]
    %v6413 = vld [vmem:[#allocation3 + $0x6f8] sm:$0xf]
    %v6414 = vld [vmem:[#allocation3 + $0x6fc] sm:$0xff]
    %v6415 = vld [vmem:[#allocation3 + $0x704] sm:$0xf]
    %v6416 = vld [vmem:[#allocation3 + $0x708] sm:$0xff]
    %v6417 = vld [vmem:[#allocation3 + $0x710] sm:$0xf]
    %v6418 = vld [vmem:[#allocation3 + $0x714] sm:$0xff]
    %v6419 = vld [vmem:[#allocation3 + $0x71c] sm:$0xf]
    %v6420 = vld [vmem:[#allocation3 + $0x720] sm:$0xff]
    %v6421 = vld [vmem:[#allocation3 + $0x728] sm:$0xf]
    %v6422 = vld [vmem:[#allocation3 + $0x72c] sm:$0xff]
    %v6423 = vld [vmem:[#allocation3 + $0x734] sm:$0xf]
    %v6424 = vld [vmem:[#allocation3 + $0x738] sm:$0xff]
    %v6425 = vld [vmem:[#allocation3 + $0x740] sm:$0xf]
    %v6426 = vld [vmem:[#allocation3 + $0x744] sm:$0xff]
    %v6427 = vld [vmem:[#allocation3 + $0x74c] sm:$0xf]
    %v6428 = vld [vmem:[#allocation3 + $0x750] sm:$0xff]
    %v6429 = vld [vmem:[#allocation3 + $0x758] sm:$0xf]
    %v6430 = vld [vmem:[#allocation3 + $0x75c] sm:$0xff]
    %v6431 = vld [vmem:[#allocation3 + $0x764] sm:$0xf]
    %v6432 = vld [vmem:[#allocation3 + $0x768] sm:$0xff]
    %v6433 = vld [vmem:[#allocation3 + $0x770] sm:$0xf]
    %v6434 = vld [vmem:[#allocation3 + $0x774] sm:$0xff]
    %v6435 = vld [vmem:[#allocation3 + $0x77c] sm:$0xf]
    %v6436 = vld [vmem:[#allocation3 + $0x780] sm:$0xff]
    %v6437 = vld [vmem:[#allocation3 + $0x788] sm:$0xf]
    %v6438 = vld [vmem:[#allocation3 + $0x78c] sm:$0xff]
    %v6439 = vld [vmem:[#allocation3 + $0x794] sm:$0xf]
    %v6440 = vld [vmem:[#allocation3 + $0x798] sm:$0xff]
    %v6441 = vld [vmem:[#allocation3 + $0x7a0] sm:$0xf]
    %v6442 = vld [vmem:[#allocation3 + $0x7a4] sm:$0xff]
    %v6443 = vld [vmem:[#allocation3 + $0x7ac] sm:$0xf]
    %v6444 = vld [vmem:[#allocation3 + $0x7b0] sm:$0xff]
    %v6445 = vld [vmem:[#allocation3 + $0x7b8] sm:$0xf]
    %v6446 = vld [vmem:[#allocation3 + $0x7bc] sm:$0xff]
    %v6447 = vld [vmem:[#allocation3 + $0x7c4] sm:$0xf]
    %v6448 = vld [vmem:[#allocation3 + $0x7c8] sm:$0xff]
    %v6449 = vld [vmem:[#allocation3 + $0x7d0] sm:$0xf]
    %v6450 = vld [vmem:[#allocation3 + $0x7d4] sm:$0xff]
    %v6451 = vld [vmem:[#allocation3 + $0x7dc] sm:$0xf]
    %v6452 = vld [vmem:[#allocation3 + $0x7e0] sm:$0xff]
    %v6453 = vld [vmem:[#allocation3 + $0x7e8] sm:$0xf]
    %v6454 = vld [vmem:[#allocation3 + $0x7ec] sm:$0xff]
    %v6455 = vld [vmem:[#allocation3 + $0x7f4] sm:$0xf]
    %v6456 = vld [vmem:[#allocation3 + $0x7f8] sm:$0xff]
    %v6457 = vld [vmem:[#allocation3 + $0x800] sm:$0xf]
    %v6458 = vld [vmem:[#allocation3 + $0x804] sm:$0xff]
    %v6459 = vld [vmem:[#allocation3 + $0x80c] sm:$0xf]
    %v6460 = vld [vmem:[#allocation3 + $0x810] sm:$0xff]
    %v6461 = vld [vmem:[#allocation3 + $0x818] sm:$0xf]
    %v6462 = vld [vmem:[#allocation3 + $0x81c] sm:$0xff]
    %v6463 = vld [vmem:[#allocation3 + $0x824] sm:$0xf]
    %v6464 = vld [vmem:[#allocation3 + $0x828] sm:$0xff]
    %v6465 = vld [vmem:[#allocation3 + $0x830] sm:$0xf]
    %v6466 = vld [vmem:[#allocation3 + $0x834] sm:$0xff]
    %v6467 = vld [vmem:[#allocation3 + $0x83c] sm:$0xf]
    %v6468 = vld [vmem:[#allocation3 + $0x840] sm:$0xff]
    %v6469 = vld [vmem:[#allocation3 + $0x848] sm:$0xf]
    %v6470 = vld [vmem:[#allocation3 + $0x84c] sm:$0xff]
    %v6471 = vld [vmem:[#allocation3 + $0x854] sm:$0xf]
    %v6472 = vld [vmem:[#allocation3 + $0x858] sm:$0xff]
    %v6473 = vld [vmem:[#allocation3 + $0x860] sm:$0xf]
    %v6474 = vld [vmem:[#allocation3 + $0x864] sm:$0xff]
    %v6475 = vld [vmem:[#allocation3 + $0x86c] sm:$0xf]
    %v6476 = vld [vmem:[#allocation3 + $0x870] sm:$0xff]
    %v6477 = vld [vmem:[#allocation3 + $0x878] sm:$0xf]
    %v6478 = vld [vmem:[#allocation3 + $0x87c] sm:$0xff]
    %v6479 = vld [vmem:[#allocation3 + $0x884] sm:$0xf]
    %v6480 = vld [vmem:[#allocation3 + $0x888] sm:$0xff]
    %v6481 = vld [vmem:[#allocation3 + $0x890] sm:$0xf]
    %v6482 = vld [vmem:[#allocation3 + $0x894] sm:$0xff]
    %v6483 = vld [vmem:[#allocation3 + $0x89c] sm:$0xf]
    %v6484 = vld [vmem:[#allocation3 + $0x8a0] sm:$0xff]
    %v6485 = vld [vmem:[#allocation3 + $0x8a8] sm:$0xf]
    %v6486 = vld [vmem:[#allocation3 + $0x8ac] sm:$0xff]
    %v6487 = vld [vmem:[#allocation3 + $0x8b4] sm:$0xf]
    %v6488 = vld [vmem:[#allocation3 + $0x8b8] sm:$0xff]
    %v6489 = vld [vmem:[#allocation3 + $0x8c0] sm:$0xf]
    %v6490 = vld [vmem:[#allocation3 + $0x8c4] sm:$0xff]
    %v6491 = vld [vmem:[#allocation3 + $0x8cc] sm:$0xf]
    %v6492 = vld [vmem:[#allocation3 + $0x8d0] sm:$0xff]
    %v6493 = vld [vmem:[#allocation3 + $0x8d8] sm:$0xf]
    %v6494 = vld [vmem:[#allocation3 + $0x8dc] sm:$0xff]
    %v6495 = vld [vmem:[#allocation3 + $0x8e4] sm:$0xf]
    %v6496 = vld [vmem:[#allocation3 + $0x8e8] sm:$0xff]
    %v6497 = vld [vmem:[#allocation3 + $0x8f0] sm:$0xf]
    %v6498 = vld [vmem:[#allocation3 + $0x8f4] sm:$0xff]
    %v6499 = vld [vmem:[#allocation3 + $0x8fc] sm:$0xf]
    %v6500 = vld [vmem:[#allocation3 + $0x900] sm:$0xff]
    %v6501 = vld [vmem:[#allocation3 + $0x908] sm:$0xf]
    %v6502 = vld [vmem:[#allocation3 + $0x90c] sm:$0xff]
    %v6503 = vld [vmem:[#allocation3 + $0x914] sm:$0xf]
    %v6504 = vld [vmem:[#allocation3 + $0x918] sm:$0xff]
    %v6505 = vld [vmem:[#allocation3 + $0x920] sm:$0xf]
    %v6506 = vld [vmem:[#allocation3 + $0x924] sm:$0xff]
    %v6507 = vld [vmem:[#allocation3 + $0x92c] sm:$0xf]
    %v6508 = vld [vmem:[#allocation3 + $0x930] sm:$0xff]
    %v6509 = vld [vmem:[#allocation3 + $0x938] sm:$0xf]
    %v6510 = vld [vmem:[#allocation3 + $0x93c] sm:$0xff]
    %v6511 = vld [vmem:[#allocation3 + $0x944] sm:$0xf]
    %v6512 = vld [vmem:[#allocation3 + $0x948] sm:$0xff]
    %v6513 = vld [vmem:[#allocation3 + $0x950] sm:$0xf]
    %v6514 = vld [vmem:[#allocation3 + $0x954] sm:$0xff]
    %v6515 = vld [vmem:[#allocation3 + $0x95c] sm:$0xf]
    %v6516 = vld [vmem:[#allocation3 + $0x960] sm:$0xff]
    %v6517 = vld [vmem:[#allocation3 + $0x968] sm:$0xf]
    %v6518 = vld [vmem:[#allocation3 + $0x96c] sm:$0xff]
    %v6519 = vld [vmem:[#allocation3 + $0x974] sm:$0xf]
    %v6520 = vld [vmem:[#allocation3 + $0x978] sm:$0xff]
    %v6521 = vld [vmem:[#allocation3 + $0x980] sm:$0xf]
    %v6522 = vld [vmem:[#allocation3 + $0x984] sm:$0xff]
    %v6523 = vld [vmem:[#allocation3 + $0x98c] sm:$0xf]
    %v6524 = vld [vmem:[#allocation3 + $0x990] sm:$0xff]
    %v6525 = vld [vmem:[#allocation3 + $0x998] sm:$0xf]
    %v6526 = vld [vmem:[#allocation3 + $0x99c] sm:$0xff]
    %v6527 = vld [vmem:[#allocation3 + $0x9a4] sm:$0xf]
    %v6528 = vld [vmem:[#allocation3 + $0x9a8] sm:$0xff]
    %v6529 = vld [vmem:[#allocation3 + $0x9b0] sm:$0xf]
    %v6530 = vld [vmem:[#allocation3 + $0x9b4] sm:$0xff]
    %v6531 = vld [vmem:[#allocation3 + $0x9bc] sm:$0xf]
    %v6532 = vld [vmem:[#allocation3 + $0x9c0] sm:$0xff]
    %v6533 = vld [vmem:[#allocation3 + $0x9c8] sm:$0xf]
    %v6534 = vld [vmem:[#allocation3 + $0x9cc] sm:$0xff]
    %v6535 = vld [vmem:[#allocation3 + $0x9d4] sm:$0xf]
    %v6536 = vld [vmem:[#allocation3 + $0x9d8] sm:$0xff]
    %v6537 = vld [vmem:[#allocation3 + $0x9e0] sm:$0xf]
    %v6538 = vld [vmem:[#allocation3 + $0x9e4] sm:$0xff]
    %v6539 = vld [vmem:[#allocation3 + $0x9ec] sm:$0xf]
    %v6540 = vld [vmem:[#allocation3 + $0x9f0] sm:$0xff]
    %v6541 = vld [vmem:[#allocation3 + $0x9f8] sm:$0xf]
    %v6542 = vld [vmem:[#allocation3 + $0x9fc] sm:$0xff]
    %v6543 = vld [vmem:[#allocation3 + $0xa04] sm:$0xf]
    %v6544 = vld [vmem:[#allocation3 + $0xa08] sm:$0xff]
    %v6545 = vld [vmem:[#allocation3 + $0xa10] sm:$0xf]
    %v6546 = vld [vmem:[#allocation3 + $0xa14] sm:$0xff]
    %v6547 = vld [vmem:[#allocation3 + $0xa1c] sm:$0xf]
    %v6548 = vld [vmem:[#allocation3 + $0xa20] sm:$0xff]
    %v6549 = vld [vmem:[#allocation3 + $0xa28] sm:$0xf]
    %v6550 = vld [vmem:[#allocation3 + $0xa2c] sm:$0xff]
    %v6551 = vld [vmem:[#allocation3 + $0xa34] sm:$0xf]
    %v6552 = vld [vmem:[#allocation3 + $0xa38] sm:$0xff]
    %v6553 = vld [vmem:[#allocation3 + $0xa40] sm:$0xf]
    %v6554 = vld [vmem:[#allocation3 + $0xa44] sm:$0xff]
    %v6555 = vld [vmem:[#allocation3 + $0xa4c] sm:$0xf]
    %v6556 = vld [vmem:[#allocation3 + $0xa50] sm:$0xff]
    %v6557 = vld [vmem:[#allocation3 + $0xa58] sm:$0xf]
    %v6558 = vld [vmem:[#allocation3 + $0xa5c] sm:$0xff]
    %v6559 = vld [vmem:[#allocation3 + $0xa64] sm:$0xf]
    %v6560 = vld [vmem:[#allocation3 + $0xa68] sm:$0xff]
    %v6561 = vld [vmem:[#allocation3 + $0xa70] sm:$0xf]
    %v6562 = vld [vmem:[#allocation3 + $0xa74] sm:$0xff]
    %v6563 = vld [vmem:[#allocation3 + $0xa7c] sm:$0xf]
    %v6564 = vld [vmem:[#allocation3 + $0xa80] sm:$0xff]
    %v6565 = vld [vmem:[#allocation3 + $0xa88] sm:$0xf]
    %v6566 = vld [vmem:[#allocation3 + $0xa8c] sm:$0xff]
    %v6567 = vld [vmem:[#allocation3 + $0xa94] sm:$0xf]
    %v6568 = vld [vmem:[#allocation3 + $0xa98] sm:$0xff]
    %v6569 = vld [vmem:[#allocation3 + $0xaa0] sm:$0xf]
    %v6570 = vld [vmem:[#allocation3 + $0xaa4] sm:$0xff]
    %v6571 = vld [vmem:[#allocation3 + $0xaac] sm:$0xf]
    %v6572 = vld [vmem:[#allocation3 + $0xab0] sm:$0xff]
    %v6573 = vld [vmem:[#allocation3 + $0xab8] sm:$0xf]
    %v6574 = vld [vmem:[#allocation3 + $0xabc] sm:$0xff]
    %v6575 = vld [vmem:[#allocation3 + $0xac4] sm:$0xf]
    %v6576 = vld [vmem:[#allocation3 + $0xac8] sm:$0xff]
    %v6577 = vld [vmem:[#allocation3 + $0xad0] sm:$0xf]
    %v6578 = vld [vmem:[#allocation3 + $0xad4] sm:$0xff]
    %v6579 = vld [vmem:[#allocation3 + $0xadc] sm:$0xf]
    %v6580 = vld [vmem:[#allocation3 + $0xae0] sm:$0xff]
    %v6581 = vld [vmem:[#allocation3 + $0xae8] sm:$0xf]
    %v6582 = vld [vmem:[#allocation3 + $0xaec] sm:$0xff]
    %v6583 = vld [vmem:[#allocation3 + $0xaf4] sm:$0xf]
    %v6584 = vld [vmem:[#allocation3 + $0xaf8] sm:$0xff]
    %v6585 = vld [vmem:[#allocation3 + $0xb00] sm:$0xf]
    %v6586 = vld [vmem:[#allocation3 + $0xb04] sm:$0xff]
    %v6587 = vld [vmem:[#allocation3 + $0xb0c] sm:$0xf]
    %v6588 = vld [vmem:[#allocation3 + $0xb10] sm:$0xff]
    %v6589 = vld [vmem:[#allocation3 + $0xb18] sm:$0xf]
    %v6590 = vld [vmem:[#allocation3 + $0xb1c] sm:$0xff]
    %v6591 = vld [vmem:[#allocation3 + $0xb24] sm:$0xf]
    %v6592 = vld [vmem:[#allocation3 + $0xb28] sm:$0xff]
    %v6593 = vld [vmem:[#allocation3 + $0xb30] sm:$0xf]
    %v6594 = vld [vmem:[#allocation3 + $0xb34] sm:$0xff]
    %v6595 = vld [vmem:[#allocation3 + $0xb3c] sm:$0xf]
    %v6596 = vld [vmem:[#allocation3 + $0xb40] sm:$0xff]
    %v6597 = vld [vmem:[#allocation3 + $0xb48] sm:$0xf]
    %v6598 = vld [vmem:[#allocation3 + $0xb4c] sm:$0xff]
    %v6599 = vld [vmem:[#allocation3 + $0xb54] sm:$0xf]
    %v6600 = vld [vmem:[#allocation3 + $0xb58] sm:$0xff]
    %v6601 = vld [vmem:[#allocation3 + $0xb60] sm:$0xf]
    %v6602 = vld [vmem:[#allocation3 + $0xb64] sm:$0xff]
    %v6603 = vld [vmem:[#allocation3 + $0xb6c] sm:$0xf]
    %v6604 = vld [vmem:[#allocation3 + $0xb70] sm:$0xff]
    %v6605 = vld [vmem:[#allocation3 + $0xb78] sm:$0xf]
    %v6606 = vld [vmem:[#allocation3 + $0xb7c] sm:$0xff]
    %v6607 = vld [vmem:[#allocation3 + $0xb84] sm:$0xf]
    %v6608 = vld [vmem:[#allocation3 + $0xb88] sm:$0xff]
    %v6609 = vld [vmem:[#allocation3 + $0xb90] sm:$0xf]
    %v6610 = vld [vmem:[#allocation3 + $0xb94] sm:$0xff]
    %v6611 = vld [vmem:[#allocation3 + $0xb9c] sm:$0xf]
    %v6612 = vld [vmem:[#allocation3 + $0xba0] sm:$0xff]
    %v6613 = vld [vmem:[#allocation3 + $0xba8] sm:$0xf]
    %v6614 = vld [vmem:[#allocation3 + $0xbac] sm:$0xff]
    %v6615 = vld [vmem:[#allocation3 + $0xbb4] sm:$0xf]
    %v6616 = vld [vmem:[#allocation3 + $0xbb8] sm:$0xff]
    %v6617 = vld [vmem:[#allocation3 + $0xbc0] sm:$0xf]
    %v6618 = vld [vmem:[#allocation3 + $0xbc4] sm:$0xff]
    %v6619 = vld [vmem:[#allocation3 + $0xbcc] sm:$0xf]
    %v6620 = vld [vmem:[#allocation3 + $0xbd0] sm:$0xff]
    %v6621 = vld [vmem:[#allocation3 + $0xbd8] sm:$0xf]
    %v6622 = vld [vmem:[#allocation3 + $0xbdc] sm:$0xff]
    %v6623 = vld [vmem:[#allocation3 + $0xbe4] sm:$0xf]
    %v6624 = vld [vmem:[#allocation3 + $0xbe8] sm:$0xff]
    %v6625 = vld [vmem:[#allocation3 + $0xbf0] sm:$0xf]
    %v6626 = vld [vmem:[#allocation3 + $0xbf4] sm:$0xff]
    %v6627 = vld [vmem:[#allocation3 + $0xbfc] sm:$0xf]
    %v6628 = vld [vmem:[#allocation19] sm:$0x7]
    %v6630 = vlaneseq
    %v6631 = vshrl.u32 %v6630, 7
    %v6632 = vsub.s32 0, %v6631
    %v6633 = vrot.slane %v6628, %v6632
    %v6634 = vlaneseq
    %v6635 = vshrl.u32 %v6634, 7
    %v6636 = vsub.s32 1, %v6635
    %v6637 = vrot.slane %v6628, %v6636
    %v6638 = vlaneseq
    %v6639 = vshrl.u32 %v6638, 7
    %v6640 = vsub.s32 2, %v6639
    %v6641 = vrot.slane %v6628, %v6640
    %v7157 = vunpack.c.l.b16 %v6116
    %v7158 = vunpack.c.h.b16 %v6116
    %v7159 = vunpack.c.l.b16 %v6117
    %v7160 = vunpack.c.l.b16 %v6118
    %v7161 = vunpack.c.h.b16 %v6118
    %v7162 = vunpack.c.l.b16 %v6119
    %v7163 = vunpack.c.l.b16 %v6120
    %v7164 = vunpack.c.h.b16 %v6120
    %v7165 = vunpack.c.l.b16 %v6121
    %v7166 = vunpack.c.l.b16 %v6122
    %v7167 = vunpack.c.h.b16 %v6122
    %v7168 = vunpack.c.l.b16 %v6123
    %v7169 = vunpack.c.l.b16 %v6124
    %v7170 = vunpack.c.h.b16 %v6124
    %v7171 = vunpack.c.l.b16 %v6125
    %v7172 = vunpack.c.l.b16 %v6126
    %v7173 = vunpack.c.h.b16 %v6126
    %v7174 = vunpack.c.l.b16 %v6127
    %v7175 = vunpack.c.l.b16 %v6128
    %v7176 = vunpack.c.h.b16 %v6128
    %v7177 = vunpack.c.l.b16 %v6129
    %v7178 = vunpack.c.l.b16 %v6130
    %v7179 = vunpack.c.h.b16 %v6130
    %v7180 = vunpack.c.l.b16 %v6131
    %v7181 = vunpack.c.l.b16 %v6132
    %v7182 = vunpack.c.h.b16 %v6132
    %v7183 = vunpack.c.l.b16 %v6133
    %v7184 = vunpack.c.l.b16 %v6134
    %v7185 = vunpack.c.h.b16 %v6134
    %v7186 = vunpack.c.l.b16 %v6135
    %v7187 = vunpack.c.l.b16 %v6136
    %v7188 = vunpack.c.h.b16 %v6136
    %v7189 = vunpack.c.l.b16 %v6137
    %v7190 = vunpack.c.l.b16 %v6138
    %v7191 = vunpack.c.h.b16 %v6138
    %v7192 = vunpack.c.l.b16 %v6139
    %v7193 = vunpack.c.l.b16 %v6140
    %v7194 = vunpack.c.h.b16 %v6140
    %v7195 = vunpack.c.l.b16 %v6141
    %v7196 = vunpack.c.l.b16 %v6142
    %v7197 = vunpack.c.h.b16 %v6142
    %v7198 = vunpack.c.l.b16 %v6143
    %v7199 = vunpack.c.l.b16 %v6144
    %v7200 = vunpack.c.h.b16 %v6144
    %v7201 = vunpack.c.l.b16 %v6145
    %v7202 = vunpack.c.l.b16 %v6146
    %v7203 = vunpack.c.h.b16 %v6146
    %v7204 = vunpack.c.l.b16 %v6147
    %v7205 = vunpack.c.l.b16 %v6148
    %v7206 = vunpack.c.h.b16 %v6148
    %v7207 = vunpack.c.l.b16 %v6149
    %v7208 = vunpack.c.l.b16 %v6150
    %v7209 = vunpack.c.h.b16 %v6150
    %v7210 = vunpack.c.l.b16 %v6151
    %v7211 = vunpack.c.l.b16 %v6152
    %v7212 = vunpack.c.h.b16 %v6152
    %v7213 = vunpack.c.l.b16 %v6153
    %v7214 = vunpack.c.l.b16 %v6154
    %v7215 = vunpack.c.h.b16 %v6154
    %v7216 = vunpack.c.l.b16 %v6155
    %v7217 = vunpack.c.l.b16 %v6156
    %v7218 = vunpack.c.h.b16 %v6156
    %v7219 = vunpack.c.l.b16 %v6157
    %v7220 = vunpack.c.l.b16 %v6158
    %v7221 = vunpack.c.h.b16 %v6158
    %v7222 = vunpack.c.l.b16 %v6159
    %v7223 = vunpack.c.l.b16 %v6160
    %v7224 = vunpack.c.h.b16 %v6160
    %v7225 = vunpack.c.l.b16 %v6161
    %v7226 = vunpack.c.l.b16 %v6162
    %v7227 = vunpack.c.h.b16 %v6162
    %v7228 = vunpack.c.l.b16 %v6163
    %v7229 = vunpack.c.l.b16 %v6164
    %v7230 = vunpack.c.h.b16 %v6164
    %v7231 = vunpack.c.l.b16 %v6165
    %v7232 = vunpack.c.l.b16 %v6166
    %v7233 = vunpack.c.h.b16 %v6166
    %v7234 = vunpack.c.l.b16 %v6167
    %v7235 = vunpack.c.l.b16 %v6168
    %v7236 = vunpack.c.h.b16 %v6168
    %v7237 = vunpack.c.l.b16 %v6169
    %v7238 = vunpack.c.l.b16 %v6170
    %v7239 = vunpack.c.h.b16 %v6170
    %v7240 = vunpack.c.l.b16 %v6171
    %v7241 = vunpack.c.l.b16 %v6172
    %v7242 = vunpack.c.h.b16 %v6172
    %v7243 = vunpack.c.l.b16 %v6173
    %v7244 = vunpack.c.l.b16 %v6174
    %v7245 = vunpack.c.h.b16 %v6174
    %v7246 = vunpack.c.l.b16 %v6175
    %v7247 = vunpack.c.l.b16 %v6176
    %v7248 = vunpack.c.h.b16 %v6176
    %v7249 = vunpack.c.l.b16 %v6177
    %v7250 = vunpack.c.l.b16 %v6178
    %v7251 = vunpack.c.h.b16 %v6178
    %v7252 = vunpack.c.l.b16 %v6179
    %v7253 = vunpack.c.l.b16 %v6180
    %v7254 = vunpack.c.h.b16 %v6180
    %v7255 = vunpack.c.l.b16 %v6181
    %v7256 = vunpack.c.l.b16 %v6182
    %v7257 = vunpack.c.h.b16 %v6182
    %v7258 = vunpack.c.l.b16 %v6183
    %v7259 = vunpack.c.l.b16 %v6184
    %v7260 = vunpack.c.h.b16 %v6184
    %v7261 = vunpack.c.l.b16 %v6185
    %v7262 = vunpack.c.l.b16 %v6186
    %v7263 = vunpack.c.h.b16 %v6186
    %v7264 = vunpack.c.l.b16 %v6187
    %v7265 = vunpack.c.l.b16 %v6188
    %v7266 = vunpack.c.h.b16 %v6188
    %v7267 = vunpack.c.l.b16 %v6189
    %v7268 = vunpack.c.l.b16 %v6190
    %v7269 = vunpack.c.h.b16 %v6190
    %v7270 = vunpack.c.l.b16 %v6191
    %v7271 = vunpack.c.l.b16 %v6192
    %v7272 = vunpack.c.h.b16 %v6192
    %v7273 = vunpack.c.l.b16 %v6193
    %v7274 = vunpack.c.l.b16 %v6194
    %v7275 = vunpack.c.h.b16 %v6194
    %v7276 = vunpack.c.l.b16 %v6195
    %v7277 = vunpack.c.l.b16 %v6196
    %v7278 = vunpack.c.h.b16 %v6196
    %v7279 = vunpack.c.l.b16 %v6197
    %v7280 = vunpack.c.l.b16 %v6198
    %v7281 = vunpack.c.h.b16 %v6198
    %v7282 = vunpack.c.l.b16 %v6199
    %v7283 = vunpack.c.l.b16 %v6200
    %v7284 = vunpack.c.h.b16 %v6200
    %v7285 = vunpack.c.l.b16 %v6201
    %v7286 = vunpack.c.l.b16 %v6202
    %v7287 = vunpack.c.h.b16 %v6202
    %v7288 = vunpack.c.l.b16 %v6203
    %v7289 = vunpack.c.l.b16 %v6204
    %v7290 = vunpack.c.h.b16 %v6204
    %v7291 = vunpack.c.l.b16 %v6205
    %v7292 = vunpack.c.l.b16 %v6206
    %v7293 = vunpack.c.h.b16 %v6206
    %v7294 = vunpack.c.l.b16 %v6207
    %v7295 = vunpack.c.l.b16 %v6208
    %v7296 = vunpack.c.h.b16 %v6208
    %v7297 = vunpack.c.l.b16 %v6209
    %v7298 = vunpack.c.l.b16 %v6210
    %v7299 = vunpack.c.h.b16 %v6210
    %v7300 = vunpack.c.l.b16 %v6211
    %v7301 = vunpack.c.l.b16 %v6212
    %v7302 = vunpack.c.h.b16 %v6212
    %v7303 = vunpack.c.l.b16 %v6213
    %v7304 = vunpack.c.l.b16 %v6214
    %v7305 = vunpack.c.h.b16 %v6214
    %v7306 = vunpack.c.l.b16 %v6215
    %v7307 = vunpack.c.l.b16 %v6216
    %v7308 = vunpack.c.h.b16 %v6216
    %v7309 = vunpack.c.l.b16 %v6217
    %v7310 = vunpack.c.l.b16 %v6218
    %v7311 = vunpack.c.h.b16 %v6218
    %v7312 = vunpack.c.l.b16 %v6219
    %v7313 = vunpack.c.l.b16 %v6220
    %v7314 = vunpack.c.h.b16 %v6220
    %v7315 = vunpack.c.l.b16 %v6221
    %v7316 = vunpack.c.l.b16 %v6222
    %v7317 = vunpack.c.h.b16 %v6222
    %v7318 = vunpack.c.l.b16 %v6223
    %v7319 = vunpack.c.l.b16 %v6224
    %v7320 = vunpack.c.h.b16 %v6224
    %v7321 = vunpack.c.l.b16 %v6225
    %v7322 = vunpack.c.l.b16 %v6226
    %v7323 = vunpack.c.h.b16 %v6226
    %v7324 = vunpack.c.l.b16 %v6227
    %v7325 = vunpack.c.l.b16 %v6228
    %v7326 = vunpack.c.h.b16 %v6228
    %v7327 = vunpack.c.l.b16 %v6229
    %v7328 = vunpack.c.l.b16 %v6230
    %v7329 = vunpack.c.h.b16 %v6230
    %v7330 = vunpack.c.l.b16 %v6231
    %v7331 = vunpack.c.l.b16 %v6232
    %v7332 = vunpack.c.h.b16 %v6232
    %v7333 = vunpack.c.l.b16 %v6233
    %v7334 = vunpack.c.l.b16 %v6234
    %v7335 = vunpack.c.h.b16 %v6234
    %v7336 = vunpack.c.l.b16 %v6235
    %v7337 = vunpack.c.l.b16 %v6236
    %v7338 = vunpack.c.h.b16 %v6236
    %v7339 = vunpack.c.l.b16 %v6237
    %v7340 = vunpack.c.l.b16 %v6238
    %v7341 = vunpack.c.h.b16 %v6238
    %v7342 = vunpack.c.l.b16 %v6239
    %v7343 = vunpack.c.l.b16 %v6240
    %v7344 = vunpack.c.h.b16 %v6240
    %v7345 = vunpack.c.l.b16 %v6241
    %v7346 = vunpack.c.l.b16 %v6242
    %v7347 = vunpack.c.h.b16 %v6242
    %v7348 = vunpack.c.l.b16 %v6243
    %v7349 = vunpack.c.l.b16 %v6244
    %v7350 = vunpack.c.h.b16 %v6244
    %v7351 = vunpack.c.l.b16 %v6245
    %v7352 = vunpack.c.l.b16 %v6246
    %v7353 = vunpack.c.h.b16 %v6246
    %v7354 = vunpack.c.l.b16 %v6247
    %v7355 = vunpack.c.l.b16 %v6248
    %v7356 = vunpack.c.h.b16 %v6248
    %v7357 = vunpack.c.l.b16 %v6249
    %v7358 = vunpack.c.l.b16 %v6250
    %v7359 = vunpack.c.h.b16 %v6250
    %v7360 = vunpack.c.l.b16 %v6251
    %v7361 = vunpack.c.l.b16 %v6252
    %v7362 = vunpack.c.h.b16 %v6252
    %v7363 = vunpack.c.l.b16 %v6253
    %v7364 = vunpack.c.l.b16 %v6254
    %v7365 = vunpack.c.h.b16 %v6254
    %v7366 = vunpack.c.l.b16 %v6255
    %v7367 = vunpack.c.l.b16 %v6256
    %v7368 = vunpack.c.h.b16 %v6256
    %v7369 = vunpack.c.l.b16 %v6257
    %v7370 = vunpack.c.l.b16 %v6258
    %v7371 = vunpack.c.h.b16 %v6258
    %v7372 = vunpack.c.l.b16 %v6259
    %v7373 = vunpack.c.l.b16 %v6260
    %v7374 = vunpack.c.h.b16 %v6260
    %v7375 = vunpack.c.l.b16 %v6261
    %v7376 = vunpack.c.l.b16 %v6262
    %v7377 = vunpack.c.h.b16 %v6262
    %v7378 = vunpack.c.l.b16 %v6263
    %v7379 = vunpack.c.l.b16 %v6264
    %v7380 = vunpack.c.h.b16 %v6264
    %v7381 = vunpack.c.l.b16 %v6265
    %v7382 = vunpack.c.l.b16 %v6266
    %v7383 = vunpack.c.h.b16 %v6266
    %v7384 = vunpack.c.l.b16 %v6267
    %v7385 = vunpack.c.l.b16 %v6268
    %v7386 = vunpack.c.h.b16 %v6268
    %v7387 = vunpack.c.l.b16 %v6269
    %v7388 = vunpack.c.l.b16 %v6270
    %v7389 = vunpack.c.h.b16 %v6270
    %v7390 = vunpack.c.l.b16 %v6271
    %v7391 = vunpack.c.l.b16 %v6272
    %v7392 = vunpack.c.h.b16 %v6272
    %v7393 = vunpack.c.l.b16 %v6273
    %v7394 = vunpack.c.l.b16 %v6274
    %v7395 = vunpack.c.h.b16 %v6274
    %v7396 = vunpack.c.l.b16 %v6275
    %v7397 = vunpack.c.l.b16 %v6276
    %v7398 = vunpack.c.h.b16 %v6276
    %v7399 = vunpack.c.l.b16 %v6277
    %v7400 = vunpack.c.l.b16 %v6278
    %v7401 = vunpack.c.h.b16 %v6278
    %v7402 = vunpack.c.l.b16 %v6279
    %v7403 = vunpack.c.l.b16 %v6280
    %v7404 = vunpack.c.h.b16 %v6280
    %v7405 = vunpack.c.l.b16 %v6281
    %v7406 = vunpack.c.l.b16 %v6282
    %v7407 = vunpack.c.h.b16 %v6282
    %v7408 = vunpack.c.l.b16 %v6283
    %v7409 = vunpack.c.l.b16 %v6284
    %v7410 = vunpack.c.h.b16 %v6284
    %v7411 = vunpack.c.l.b16 %v6285
    %v7412 = vunpack.c.l.b16 %v6286
    %v7413 = vunpack.c.h.b16 %v6286
    %v7414 = vunpack.c.l.b16 %v6287
    %v7415 = vunpack.c.l.b16 %v6288
    %v7416 = vunpack.c.h.b16 %v6288
    %v7417 = vunpack.c.l.b16 %v6289
    %v7418 = vunpack.c.l.b16 %v6290
    %v7419 = vunpack.c.h.b16 %v6290
    %v7420 = vunpack.c.l.b16 %v6291
    %v7421 = vunpack.c.l.b16 %v6292
    %v7422 = vunpack.c.h.b16 %v6292
    %v7423 = vunpack.c.l.b16 %v6293
    %v7424 = vunpack.c.l.b16 %v6294
    %v7425 = vunpack.c.h.b16 %v6294
    %v7426 = vunpack.c.l.b16 %v6295
    %v7427 = vunpack.c.l.b16 %v6296
    %v7428 = vunpack.c.h.b16 %v6296
    %v7429 = vunpack.c.l.b16 %v6297
    %v7430 = vunpack.c.l.b16 %v6298
    %v7431 = vunpack.c.h.b16 %v6298
    %v7432 = vunpack.c.l.b16 %v6299
    %v7433 = vunpack.c.l.b16 %v6300
    %v7434 = vunpack.c.h.b16 %v6300
    %v7435 = vunpack.c.l.b16 %v6301
    %v7436 = vunpack.c.l.b16 %v6302
    %v7437 = vunpack.c.h.b16 %v6302
    %v7438 = vunpack.c.l.b16 %v6303
    %v7439 = vunpack.c.l.b16 %v6304
    %v7440 = vunpack.c.h.b16 %v6304
    %v7441 = vunpack.c.l.b16 %v6305
    %v7442 = vunpack.c.l.b16 %v6306
    %v7443 = vunpack.c.h.b16 %v6306
    %v7444 = vunpack.c.l.b16 %v6307
    %v7445 = vunpack.c.l.b16 %v6308
    %v7446 = vunpack.c.h.b16 %v6308
    %v7447 = vunpack.c.l.b16 %v6309
    %v7448 = vunpack.c.l.b16 %v6310
    %v7449 = vunpack.c.h.b16 %v6310
    %v7450 = vunpack.c.l.b16 %v6311
    %v7451 = vunpack.c.l.b16 %v6312
    %v7452 = vunpack.c.h.b16 %v6312
    %v7453 = vunpack.c.l.b16 %v6313
    %v7454 = vunpack.c.l.b16 %v6314
    %v7455 = vunpack.c.h.b16 %v6314
    %v7456 = vunpack.c.l.b16 %v6315
    %v7457 = vunpack.c.l.b16 %v6316
    %v7458 = vunpack.c.h.b16 %v6316
    %v7459 = vunpack.c.l.b16 %v6317
    %v7460 = vunpack.c.l.b16 %v6318
    %v7461 = vunpack.c.h.b16 %v6318
    %v7462 = vunpack.c.l.b16 %v6319
    %v7463 = vunpack.c.l.b16 %v6320
    %v7464 = vunpack.c.h.b16 %v6320
    %v7465 = vunpack.c.l.b16 %v6321
    %v7466 = vunpack.c.l.b16 %v6322
    %v7467 = vunpack.c.h.b16 %v6322
    %v7468 = vunpack.c.l.b16 %v6323
    %v7469 = vunpack.c.l.b16 %v6324
    %v7470 = vunpack.c.h.b16 %v6324
    %v7471 = vunpack.c.l.b16 %v6325
    %v7472 = vunpack.c.l.b16 %v6326
    %v7473 = vunpack.c.h.b16 %v6326
    %v7474 = vunpack.c.l.b16 %v6327
    %v7475 = vunpack.c.l.b16 %v6328
    %v7476 = vunpack.c.h.b16 %v6328
    %v7477 = vunpack.c.l.b16 %v6329
    %v7478 = vunpack.c.l.b16 %v6330
    %v7479 = vunpack.c.h.b16 %v6330
    %v7480 = vunpack.c.l.b16 %v6331
    %v7481 = vunpack.c.l.b16 %v6332
    %v7482 = vunpack.c.h.b16 %v6332
    %v7483 = vunpack.c.l.b16 %v6333
    %v7484 = vunpack.c.l.b16 %v6334
    %v7485 = vunpack.c.h.b16 %v6334
    %v7486 = vunpack.c.l.b16 %v6335
    %v7487 = vunpack.c.l.b16 %v6336
    %v7488 = vunpack.c.h.b16 %v6336
    %v7489 = vunpack.c.l.b16 %v6337
    %v7490 = vunpack.c.l.b16 %v6338
    %v7491 = vunpack.c.h.b16 %v6338
    %v7492 = vunpack.c.l.b16 %v6339
    %v7493 = vunpack.c.l.b16 %v6340
    %v7494 = vunpack.c.h.b16 %v6340
    %v7495 = vunpack.c.l.b16 %v6341
    %v7496 = vunpack.c.l.b16 %v6342
    %v7497 = vunpack.c.h.b16 %v6342
    %v7498 = vunpack.c.l.b16 %v6343
    %v7499 = vunpack.c.l.b16 %v6344
    %v7500 = vunpack.c.h.b16 %v6344
    %v7501 = vunpack.c.l.b16 %v6345
    %v7502 = vunpack.c.l.b16 %v6346
    %v7503 = vunpack.c.h.b16 %v6346
    %v7504 = vunpack.c.l.b16 %v6347
    %v7505 = vunpack.c.l.b16 %v6348
    %v7506 = vunpack.c.h.b16 %v6348
    %v7507 = vunpack.c.l.b16 %v6349
    %v7508 = vunpack.c.l.b16 %v6350
    %v7509 = vunpack.c.h.b16 %v6350
    %v7510 = vunpack.c.l.b16 %v6351
    %v7511 = vunpack.c.l.b16 %v6352
    %v7512 = vunpack.c.h.b16 %v6352
    %v7513 = vunpack.c.l.b16 %v6353
    %v7514 = vunpack.c.l.b16 %v6354
    %v7515 = vunpack.c.h.b16 %v6354
    %v7516 = vunpack.c.l.b16 %v6355
    %v7517 = vunpack.c.l.b16 %v6356
    %v7518 = vunpack.c.h.b16 %v6356
    %v7519 = vunpack.c.l.b16 %v6357
    %v7520 = vunpack.c.l.b16 %v6358
    %v7521 = vunpack.c.h.b16 %v6358
    %v7522 = vunpack.c.l.b16 %v6359
    %v7523 = vunpack.c.l.b16 %v6360
    %v7524 = vunpack.c.h.b16 %v6360
    %v7525 = vunpack.c.l.b16 %v6361
    %v7526 = vunpack.c.l.b16 %v6362
    %v7527 = vunpack.c.h.b16 %v6362
    %v7528 = vunpack.c.l.b16 %v6363
    %v7529 = vunpack.c.l.b16 %v6364
    %v7530 = vunpack.c.h.b16 %v6364
    %v7531 = vunpack.c.l.b16 %v6365
    %v7532 = vunpack.c.l.b16 %v6366
    %v7533 = vunpack.c.h.b16 %v6366
    %v7534 = vunpack.c.l.b16 %v6367
    %v7535 = vunpack.c.l.b16 %v6368
    %v7536 = vunpack.c.h.b16 %v6368
    %v7537 = vunpack.c.l.b16 %v6369
    %v7538 = vunpack.c.l.b16 %v6370
    %v7539 = vunpack.c.h.b16 %v6370
    %v7540 = vunpack.c.l.b16 %v6371
    %v7541 = vunpack.c.l.b16 %v6372
    %v7542 = vunpack.c.h.b16 %v6372
    %v7543 = vunpack.c.l.b16 %v6373
    %v7544 = vunpack.c.l.b16 %v6374
    %v7545 = vunpack.c.h.b16 %v6374
    %v7546 = vunpack.c.l.b16 %v6375
    %v7547 = vunpack.c.l.b16 %v6376
    %v7548 = vunpack.c.h.b16 %v6376
    %v7549 = vunpack.c.l.b16 %v6377
    %v7550 = vunpack.c.l.b16 %v6378
    %v7551 = vunpack.c.h.b16 %v6378
    %v7552 = vunpack.c.l.b16 %v6379
    %v7553 = vunpack.c.l.b16 %v6380
    %v7554 = vunpack.c.h.b16 %v6380
    %v7555 = vunpack.c.l.b16 %v6381
    %v7556 = vunpack.c.l.b16 %v6382
    %v7557 = vunpack.c.h.b16 %v6382
    %v7558 = vunpack.c.l.b16 %v6383
    %v7559 = vunpack.c.l.b16 %v6384
    %v7560 = vunpack.c.h.b16 %v6384
    %v7561 = vunpack.c.l.b16 %v6385
    %v7562 = vunpack.c.l.b16 %v6386
    %v7563 = vunpack.c.h.b16 %v6386
    %v7564 = vunpack.c.l.b16 %v6387
    %v7565 = vunpack.c.l.b16 %v6388
    %v7566 = vunpack.c.h.b16 %v6388
    %v7567 = vunpack.c.l.b16 %v6389
    %v7568 = vunpack.c.l.b16 %v6390
    %v7569 = vunpack.c.h.b16 %v6390
    %v7570 = vunpack.c.l.b16 %v6391
    %v7571 = vunpack.c.l.b16 %v6392
    %v7572 = vunpack.c.h.b16 %v6392
    %v7573 = vunpack.c.l.b16 %v6393
    %v7574 = vunpack.c.l.b16 %v6394
    %v7575 = vunpack.c.h.b16 %v6394
    %v7576 = vunpack.c.l.b16 %v6395
    %v7577 = vunpack.c.l.b16 %v6396
    %v7578 = vunpack.c.h.b16 %v6396
    %v7579 = vunpack.c.l.b16 %v6397
    %v7580 = vunpack.c.l.b16 %v6398
    %v7581 = vunpack.c.h.b16 %v6398
    %v7582 = vunpack.c.l.b16 %v6399
    %v7583 = vunpack.c.l.b16 %v6400
    %v7584 = vunpack.c.h.b16 %v6400
    %v7585 = vunpack.c.l.b16 %v6401
    %v7586 = vunpack.c.l.b16 %v6402
    %v7587 = vunpack.c.h.b16 %v6402
    %v7588 = vunpack.c.l.b16 %v6403
    %v7589 = vunpack.c.l.b16 %v6404
    %v7590 = vunpack.c.h.b16 %v6404
    %v7591 = vunpack.c.l.b16 %v6405
    %v7592 = vunpack.c.l.b16 %v6406
    %v7593 = vunpack.c.h.b16 %v6406
    %v7594 = vunpack.c.l.b16 %v6407
    %v7595 = vunpack.c.l.b16 %v6408
    %v7596 = vunpack.c.h.b16 %v6408
    %v7597 = vunpack.c.l.b16 %v6409
    %v7598 = vunpack.c.l.b16 %v6410
    %v7599 = vunpack.c.h.b16 %v6410
    %v7600 = vunpack.c.l.b16 %v6411
    %v7601 = vunpack.c.l.b16 %v6412
    %v7602 = vunpack.c.h.b16 %v6412
    %v7603 = vunpack.c.l.b16 %v6413
    %v7604 = vunpack.c.l.b16 %v6414
    %v7605 = vunpack.c.h.b16 %v6414
    %v7606 = vunpack.c.l.b16 %v6415
    %v7607 = vunpack.c.l.b16 %v6416
    %v7608 = vunpack.c.h.b16 %v6416
    %v7609 = vunpack.c.l.b16 %v6417
    %v7610 = vunpack.c.l.b16 %v6418
    %v7611 = vunpack.c.h.b16 %v6418
    %v7612 = vunpack.c.l.b16 %v6419
    %v7613 = vunpack.c.l.b16 %v6420
    %v7614 = vunpack.c.h.b16 %v6420
    %v7615 = vunpack.c.l.b16 %v6421
    %v7616 = vunpack.c.l.b16 %v6422
    %v7617 = vunpack.c.h.b16 %v6422
    %v7618 = vunpack.c.l.b16 %v6423
    %v7619 = vunpack.c.l.b16 %v6424
    %v7620 = vunpack.c.h.b16 %v6424
    %v7621 = vunpack.c.l.b16 %v6425
    %v7622 = vunpack.c.l.b16 %v6426
    %v7623 = vunpack.c.h.b16 %v6426
    %v7624 = vunpack.c.l.b16 %v6427
    %v7625 = vunpack.c.l.b16 %v6428
    %v7626 = vunpack.c.h.b16 %v6428
    %v7627 = vunpack.c.l.b16 %v6429
    %v7628 = vunpack.c.l.b16 %v6430
    %v7629 = vunpack.c.h.b16 %v6430
    %v7630 = vunpack.c.l.b16 %v6431
    %v7631 = vunpack.c.l.b16 %v6432
    %v7632 = vunpack.c.h.b16 %v6432
    %v7633 = vunpack.c.l.b16 %v6433
    %v7634 = vunpack.c.l.b16 %v6434
    %v7635 = vunpack.c.h.b16 %v6434
    %v7636 = vunpack.c.l.b16 %v6435
    %v7637 = vunpack.c.l.b16 %v6436
    %v7638 = vunpack.c.h.b16 %v6436
    %v7639 = vunpack.c.l.b16 %v6437
    %v7640 = vunpack.c.l.b16 %v6438
    %v7641 = vunpack.c.h.b16 %v6438
    %v7642 = vunpack.c.l.b16 %v6439
    %v7643 = vunpack.c.l.b16 %v6440
    %v7644 = vunpack.c.h.b16 %v6440
    %v7645 = vunpack.c.l.b16 %v6441
    %v7646 = vunpack.c.l.b16 %v6442
    %v7647 = vunpack.c.h.b16 %v6442
    %v7648 = vunpack.c.l.b16 %v6443
    %v7649 = vunpack.c.l.b16 %v6444
    %v7650 = vunpack.c.h.b16 %v6444
    %v7651 = vunpack.c.l.b16 %v6445
    %v7652 = vunpack.c.l.b16 %v6446
    %v7653 = vunpack.c.h.b16 %v6446
    %v7654 = vunpack.c.l.b16 %v6447
    %v7655 = vunpack.c.l.b16 %v6448
    %v7656 = vunpack.c.h.b16 %v6448
    %v7657 = vunpack.c.l.b16 %v6449
    %v7658 = vunpack.c.l.b16 %v6450
    %v7659 = vunpack.c.h.b16 %v6450
    %v7660 = vunpack.c.l.b16 %v6451
    %v7661 = vunpack.c.l.b16 %v6452
    %v7662 = vunpack.c.h.b16 %v6452
    %v7663 = vunpack.c.l.b16 %v6453
    %v7664 = vunpack.c.l.b16 %v6454
    %v7665 = vunpack.c.h.b16 %v6454
    %v7666 = vunpack.c.l.b16 %v6455
    %v7667 = vunpack.c.l.b16 %v6456
    %v7668 = vunpack.c.h.b16 %v6456
    %v7669 = vunpack.c.l.b16 %v6457
    %v7670 = vunpack.c.l.b16 %v6458
    %v7671 = vunpack.c.h.b16 %v6458
    %v7672 = vunpack.c.l.b16 %v6459
    %v7673 = vunpack.c.l.b16 %v6460
    %v7674 = vunpack.c.h.b16 %v6460
    %v7675 = vunpack.c.l.b16 %v6461
    %v7676 = vunpack.c.l.b16 %v6462
    %v7677 = vunpack.c.h.b16 %v6462
    %v7678 = vunpack.c.l.b16 %v6463
    %v7679 = vunpack.c.l.b16 %v6464
    %v7680 = vunpack.c.h.b16 %v6464
    %v7681 = vunpack.c.l.b16 %v6465
    %v7682 = vunpack.c.l.b16 %v6466
    %v7683 = vunpack.c.h.b16 %v6466
    %v7684 = vunpack.c.l.b16 %v6467
    %v7685 = vunpack.c.l.b16 %v6468
    %v7686 = vunpack.c.h.b16 %v6468
    %v7687 = vunpack.c.l.b16 %v6469
    %v7688 = vunpack.c.l.b16 %v6470
    %v7689 = vunpack.c.h.b16 %v6470
    %v7690 = vunpack.c.l.b16 %v6471
    %v7691 = vunpack.c.l.b16 %v6472
    %v7692 = vunpack.c.h.b16 %v6472
    %v7693 = vunpack.c.l.b16 %v6473
    %v7694 = vunpack.c.l.b16 %v6474
    %v7695 = vunpack.c.h.b16 %v6474
    %v7696 = vunpack.c.l.b16 %v6475
    %v7697 = vunpack.c.l.b16 %v6476
    %v7698 = vunpack.c.h.b16 %v6476
    %v7699 = vunpack.c.l.b16 %v6477
    %v7700 = vunpack.c.l.b16 %v6478
    %v7701 = vunpack.c.h.b16 %v6478
    %v7702 = vunpack.c.l.b16 %v6479
    %v7703 = vunpack.c.l.b16 %v6480
    %v7704 = vunpack.c.h.b16 %v6480
    %v7705 = vunpack.c.l.b16 %v6481
    %v7706 = vunpack.c.l.b16 %v6482
    %v7707 = vunpack.c.h.b16 %v6482
    %v7708 = vunpack.c.l.b16 %v6483
    %v7709 = vunpack.c.l.b16 %v6484
    %v7710 = vunpack.c.h.b16 %v6484
    %v7711 = vunpack.c.l.b16 %v6485
    %v7712 = vunpack.c.l.b16 %v6486
    %v7713 = vunpack.c.h.b16 %v6486
    %v7714 = vunpack.c.l.b16 %v6487
    %v7715 = vunpack.c.l.b16 %v6488
    %v7716 = vunpack.c.h.b16 %v6488
    %v7717 = vunpack.c.l.b16 %v6489
    %v7718 = vunpack.c.l.b16 %v6490
    %v7719 = vunpack.c.h.b16 %v6490
    %v7720 = vunpack.c.l.b16 %v6491
    %v7721 = vunpack.c.l.b16 %v6492
    %v7722 = vunpack.c.h.b16 %v6492
    %v7723 = vunpack.c.l.b16 %v6493
    %v7724 = vunpack.c.l.b16 %v6494
    %v7725 = vunpack.c.h.b16 %v6494
    %v7726 = vunpack.c.l.b16 %v6495
    %v7727 = vunpack.c.l.b16 %v6496
    %v7728 = vunpack.c.h.b16 %v6496
    %v7729 = vunpack.c.l.b16 %v6497
    %v7730 = vunpack.c.l.b16 %v6498
    %v7731 = vunpack.c.h.b16 %v6498
    %v7732 = vunpack.c.l.b16 %v6499
    %v7733 = vunpack.c.l.b16 %v6500
    %v7734 = vunpack.c.h.b16 %v6500
    %v7735 = vunpack.c.l.b16 %v6501
    %v7736 = vunpack.c.l.b16 %v6502
    %v7737 = vunpack.c.h.b16 %v6502
    %v7738 = vunpack.c.l.b16 %v6503
    %v7739 = vunpack.c.l.b16 %v6504
    %v7740 = vunpack.c.h.b16 %v6504
    %v7741 = vunpack.c.l.b16 %v6505
    %v7742 = vunpack.c.l.b16 %v6506
    %v7743 = vunpack.c.h.b16 %v6506
    %v7744 = vunpack.c.l.b16 %v6507
    %v7745 = vunpack.c.l.b16 %v6508
    %v7746 = vunpack.c.h.b16 %v6508
    %v7747 = vunpack.c.l.b16 %v6509
    %v7748 = vunpack.c.l.b16 %v6510
    %v7749 = vunpack.c.h.b16 %v6510
    %v7750 = vunpack.c.l.b16 %v6511
    %v7751 = vunpack.c.l.b16 %v6512
    %v7752 = vunpack.c.h.b16 %v6512
    %v7753 = vunpack.c.l.b16 %v6513
    %v7754 = vunpack.c.l.b16 %v6514
    %v7755 = vunpack.c.h.b16 %v6514
    %v7756 = vunpack.c.l.b16 %v6515
    %v7757 = vunpack.c.l.b16 %v6516
    %v7758 = vunpack.c.h.b16 %v6516
    %v7759 = vunpack.c.l.b16 %v6517
    %v7760 = vunpack.c.l.b16 %v6518
    %v7761 = vunpack.c.h.b16 %v6518
    %v7762 = vunpack.c.l.b16 %v6519
    %v7763 = vunpack.c.l.b16 %v6520
    %v7764 = vunpack.c.h.b16 %v6520
    %v7765 = vunpack.c.l.b16 %v6521
    %v7766 = vunpack.c.l.b16 %v6522
    %v7767 = vunpack.c.h.b16 %v6522
    %v7768 = vunpack.c.l.b16 %v6523
    %v7769 = vunpack.c.l.b16 %v6524
    %v7770 = vunpack.c.h.b16 %v6524
    %v7771 = vunpack.c.l.b16 %v6525
    %v7772 = vunpack.c.l.b16 %v6526
    %v7773 = vunpack.c.h.b16 %v6526
    %v7774 = vunpack.c.l.b16 %v6527
    %v7775 = vunpack.c.l.b16 %v6528
    %v7776 = vunpack.c.h.b16 %v6528
    %v7777 = vunpack.c.l.b16 %v6529
    %v7778 = vunpack.c.l.b16 %v6530
    %v7779 = vunpack.c.h.b16 %v6530
    %v7780 = vunpack.c.l.b16 %v6531
    %v7781 = vunpack.c.l.b16 %v6532
    %v7782 = vunpack.c.h.b16 %v6532
    %v7783 = vunpack.c.l.b16 %v6533
    %v7784 = vunpack.c.l.b16 %v6534
    %v7785 = vunpack.c.h.b16 %v6534
    %v7786 = vunpack.c.l.b16 %v6535
    %v7787 = vunpack.c.l.b16 %v6536
    %v7788 = vunpack.c.h.b16 %v6536
    %v7789 = vunpack.c.l.b16 %v6537
    %v7790 = vunpack.c.l.b16 %v6538
    %v7791 = vunpack.c.h.b16 %v6538
    %v7792 = vunpack.c.l.b16 %v6539
    %v7793 = vunpack.c.l.b16 %v6540
    %v7794 = vunpack.c.h.b16 %v6540
    %v7795 = vunpack.c.l.b16 %v6541
    %v7796 = vunpack.c.l.b16 %v6542
    %v7797 = vunpack.c.h.b16 %v6542
    %v7798 = vunpack.c.l.b16 %v6543
    %v7799 = vunpack.c.l.b16 %v6544
    %v7800 = vunpack.c.h.b16 %v6544
    %v7801 = vunpack.c.l.b16 %v6545
    %v7802 = vunpack.c.l.b16 %v6546
    %v7803 = vunpack.c.h.b16 %v6546
    %v7804 = vunpack.c.l.b16 %v6547
    %v7805 = vunpack.c.l.b16 %v6548
    %v7806 = vunpack.c.h.b16 %v6548
    %v7807 = vunpack.c.l.b16 %v6549
    %v7808 = vunpack.c.l.b16 %v6550
    %v7809 = vunpack.c.h.b16 %v6550
    %v7810 = vunpack.c.l.b16 %v6551
    %v7811 = vunpack.c.l.b16 %v6552
    %v7812 = vunpack.c.h.b16 %v6552
    %v7813 = vunpack.c.l.b16 %v6553
    %v7814 = vunpack.c.l.b16 %v6554
    %v7815 = vunpack.c.h.b16 %v6554
    %v7816 = vunpack.c.l.b16 %v6555
    %v7817 = vunpack.c.l.b16 %v6556
    %v7818 = vunpack.c.h.b16 %v6556
    %v7819 = vunpack.c.l.b16 %v6557
    %v7820 = vunpack.c.l.b16 %v6558
    %v7821 = vunpack.c.h.b16 %v6558
    %v7822 = vunpack.c.l.b16 %v6559
    %v7823 = vunpack.c.l.b16 %v6560
    %v7824 = vunpack.c.h.b16 %v6560
    %v7825 = vunpack.c.l.b16 %v6561
    %v7826 = vunpack.c.l.b16 %v6562
    %v7827 = vunpack.c.h.b16 %v6562
    %v7828 = vunpack.c.l.b16 %v6563
    %v7829 = vunpack.c.l.b16 %v6564
    %v7830 = vunpack.c.h.b16 %v6564
    %v7831 = vunpack.c.l.b16 %v6565
    %v7832 = vunpack.c.l.b16 %v6566
    %v7833 = vunpack.c.h.b16 %v6566
    %v7834 = vunpack.c.l.b16 %v6567
    %v7835 = vunpack.c.l.b16 %v6568
    %v7836 = vunpack.c.h.b16 %v6568
    %v7837 = vunpack.c.l.b16 %v6569
    %v7838 = vunpack.c.l.b16 %v6570
    %v7839 = vunpack.c.h.b16 %v6570
    %v7840 = vunpack.c.l.b16 %v6571
    %v7841 = vunpack.c.l.b16 %v6572
    %v7842 = vunpack.c.h.b16 %v6572
    %v7843 = vunpack.c.l.b16 %v6573
    %v7844 = vunpack.c.l.b16 %v6574
    %v7845 = vunpack.c.h.b16 %v6574
    %v7846 = vunpack.c.l.b16 %v6575
    %v7847 = vunpack.c.l.b16 %v6576
    %v7848 = vunpack.c.h.b16 %v6576
    %v7849 = vunpack.c.l.b16 %v6577
    %v7850 = vunpack.c.l.b16 %v6578
    %v7851 = vunpack.c.h.b16 %v6578
    %v7852 = vunpack.c.l.b16 %v6579
    %v7853 = vunpack.c.l.b16 %v6580
    %v7854 = vunpack.c.h.b16 %v6580
    %v7855 = vunpack.c.l.b16 %v6581
    %v7856 = vunpack.c.l.b16 %v6582
    %v7857 = vunpack.c.h.b16 %v6582
    %v7858 = vunpack.c.l.b16 %v6583
    %v7859 = vunpack.c.l.b16 %v6584
    %v7860 = vunpack.c.h.b16 %v6584
    %v7861 = vunpack.c.l.b16 %v6585
    %v7862 = vunpack.c.l.b16 %v6586
    %v7863 = vunpack.c.h.b16 %v6586
    %v7864 = vunpack.c.l.b16 %v6587
    %v7865 = vunpack.c.l.b16 %v6588
    %v7866 = vunpack.c.h.b16 %v6588
    %v7867 = vunpack.c.l.b16 %v6589
    %v7868 = vunpack.c.l.b16 %v6590
    %v7869 = vunpack.c.h.b16 %v6590
    %v7870 = vunpack.c.l.b16 %v6591
    %v7871 = vunpack.c.l.b16 %v6592
    %v7872 = vunpack.c.h.b16 %v6592
    %v7873 = vunpack.c.l.b16 %v6593
    %v7874 = vunpack.c.l.b16 %v6594
    %v7875 = vunpack.c.h.b16 %v6594
    %v7876 = vunpack.c.l.b16 %v6595
    %v7877 = vunpack.c.l.b16 %v6596
    %v7878 = vunpack.c.h.b16 %v6596
    %v7879 = vunpack.c.l.b16 %v6597
    %v7880 = vunpack.c.l.b16 %v6598
    %v7881 = vunpack.c.h.b16 %v6598
    %v7882 = vunpack.c.l.b16 %v6599
    %v7883 = vunpack.c.l.b16 %v6600
    %v7884 = vunpack.c.h.b16 %v6600
    %v7885 = vunpack.c.l.b16 %v6601
    %v7886 = vunpack.c.l.b16 %v6602
    %v7887 = vunpack.c.h.b16 %v6602
    %v7888 = vunpack.c.l.b16 %v6603
    %v7889 = vunpack.c.l.b16 %v6604
    %v7890 = vunpack.c.h.b16 %v6604
    %v7891 = vunpack.c.l.b16 %v6605
    %v7892 = vunpack.c.l.b16 %v6606
    %v7893 = vunpack.c.h.b16 %v6606
    %v7894 = vunpack.c.l.b16 %v6607
    %v7895 = vunpack.c.l.b16 %v6608
    %v7896 = vunpack.c.h.b16 %v6608
    %v7897 = vunpack.c.l.b16 %v6609
    %v7898 = vunpack.c.l.b16 %v6610
    %v7899 = vunpack.c.h.b16 %v6610
    %v7900 = vunpack.c.l.b16 %v6611
    %v7901 = vunpack.c.l.b16 %v6612
    %v7902 = vunpack.c.h.b16 %v6612
    %v7903 = vunpack.c.l.b16 %v6613
    %v7904 = vunpack.c.l.b16 %v6614
    %v7905 = vunpack.c.h.b16 %v6614
    %v7906 = vunpack.c.l.b16 %v6615
    %v7907 = vunpack.c.l.b16 %v6616
    %v7908 = vunpack.c.h.b16 %v6616
    %v7909 = vunpack.c.l.b16 %v6617
    %v7910 = vunpack.c.l.b16 %v6618
    %v7911 = vunpack.c.h.b16 %v6618
    %v7912 = vunpack.c.l.b16 %v6619
    %v7913 = vunpack.c.l.b16 %v6620
    %v7914 = vunpack.c.h.b16 %v6620
    %v7915 = vunpack.c.l.b16 %v6621
    %v7916 = vunpack.c.l.b16 %v6622
    %v7917 = vunpack.c.h.b16 %v6622
    %v7918 = vunpack.c.l.b16 %v6623
    %v7919 = vunpack.c.l.b16 %v6624
    %v7920 = vunpack.c.h.b16 %v6624
    %v7921 = vunpack.c.l.b16 %v6625
    %v7922 = vunpack.c.l.b16 %v6626
    %v7923 = vunpack.c.h.b16 %v6626
    %v7924 = vunpack.c.l.b16 %v6627
    %v7925 = vpack.c.b16 %v7160, %v7157
    %v7926 = vpack.c.b16 %v7161, %v7158
    %v7927 = vpack.c.b16 %v7162, %v7159
    %v7928 = vpack.c.b16 %v7166, %v7163
    %v7929 = vpack.c.b16 %v7167, %v7164
    %v7930 = vpack.c.b16 %v7168, %v7165
    %v7931 = vpack.c.b16 %v7172, %v7169
    %v7932 = vpack.c.b16 %v7173, %v7170
    %v7933 = vpack.c.b16 %v7174, %v7171
    %v7934 = vpack.c.b16 %v7178, %v7175
    %v7935 = vpack.c.b16 %v7179, %v7176
    %v7936 = vpack.c.b16 %v7180, %v7177
    %v7937 = vpack.c.b16 %v7184, %v7181
    %v7938 = vpack.c.b16 %v7185, %v7182
    %v7939 = vpack.c.b16 %v7186, %v7183
    %v7940 = vpack.c.b16 %v7190, %v7187
    %v7941 = vpack.c.b16 %v7191, %v7188
    %v7942 = vpack.c.b16 %v7192, %v7189
    %v7943 = vpack.c.b16 %v7196, %v7193
    %v7944 = vpack.c.b16 %v7197, %v7194
    %v7945 = vpack.c.b16 %v7198, %v7195
    %v7946 = vpack.c.b16 %v7202, %v7199
    %v7947 = vpack.c.b16 %v7203, %v7200
    %v7948 = vpack.c.b16 %v7204, %v7201
    %v7949 = vpack.c.b16 %v7208, %v7205
    %v7950 = vpack.c.b16 %v7209, %v7206
    %v7951 = vpack.c.b16 %v7210, %v7207
    %v7952 = vpack.c.b16 %v7214, %v7211
    %v7953 = vpack.c.b16 %v7215, %v7212
    %v7954 = vpack.c.b16 %v7216, %v7213
    %v7955 = vpack.c.b16 %v7220, %v7217
    %v7956 = vpack.c.b16 %v7221, %v7218
    %v7957 = vpack.c.b16 %v7222, %v7219
    %v7958 = vpack.c.b16 %v7226, %v7223
    %v7959 = vpack.c.b16 %v7227, %v7224
    %v7960 = vpack.c.b16 %v7228, %v7225
    %v7961 = vpack.c.b16 %v7232, %v7229
    %v7962 = vpack.c.b16 %v7233, %v7230
    %v7963 = vpack.c.b16 %v7234, %v7231
    %v7964 = vpack.c.b16 %v7238, %v7235
    %v7965 = vpack.c.b16 %v7239, %v7236
    %v7966 = vpack.c.b16 %v7240, %v7237
    %v7967 = vpack.c.b16 %v7244, %v7241
    %v7968 = vpack.c.b16 %v7245, %v7242
    %v7969 = vpack.c.b16 %v7246, %v7243
    %v7970 = vpack.c.b16 %v7250, %v7247
    %v7971 = vpack.c.b16 %v7251, %v7248
    %v7972 = vpack.c.b16 %v7252, %v7249
    %v7973 = vpack.c.b16 %v7256, %v7253
    %v7974 = vpack.c.b16 %v7257, %v7254
    %v7975 = vpack.c.b16 %v7258, %v7255
    %v7976 = vpack.c.b16 %v7262, %v7259
    %v7977 = vpack.c.b16 %v7263, %v7260
    %v7978 = vpack.c.b16 %v7264, %v7261
    %v7979 = vpack.c.b16 %v7268, %v7265
    %v7980 = vpack.c.b16 %v7269, %v7266
    %v7981 = vpack.c.b16 %v7270, %v7267
    %v7982 = vpack.c.b16 %v7274, %v7271
    %v7983 = vpack.c.b16 %v7275, %v7272
    %v7984 = vpack.c.b16 %v7276, %v7273
    %v7985 = vpack.c.b16 %v7280, %v7277
    %v7986 = vpack.c.b16 %v7281, %v7278
    %v7987 = vpack.c.b16 %v7282, %v7279
    %v7988 = vpack.c.b16 %v7286, %v7283
    %v7989 = vpack.c.b16 %v7287, %v7284
    %v7990 = vpack.c.b16 %v7288, %v7285
    %v7991 = vpack.c.b16 %v7292, %v7289
    %v7992 = vpack.c.b16 %v7293, %v7290
    %v7993 = vpack.c.b16 %v7294, %v7291
    %v7994 = vpack.c.b16 %v7298, %v7295
    %v7995 = vpack.c.b16 %v7299, %v7296
    %v7996 = vpack.c.b16 %v7300, %v7297
    %v7997 = vpack.c.b16 %v7304, %v7301
    %v7998 = vpack.c.b16 %v7305, %v7302
    %v7999 = vpack.c.b16 %v7306, %v7303
    %v8000 = vpack.c.b16 %v7310, %v7307
    %v8001 = vpack.c.b16 %v7311, %v7308
    %v8002 = vpack.c.b16 %v7312, %v7309
    %v8003 = vpack.c.b16 %v7316, %v7313
    %v8004 = vpack.c.b16 %v7317, %v7314
    %v8005 = vpack.c.b16 %v7318, %v7315
    %v8006 = vpack.c.b16 %v7322, %v7319
    %v8007 = vpack.c.b16 %v7323, %v7320
    %v8008 = vpack.c.b16 %v7324, %v7321
    %v8009 = vpack.c.b16 %v7328, %v7325
    %v8010 = vpack.c.b16 %v7329, %v7326
    %v8011 = vpack.c.b16 %v7330, %v7327
    %v8012 = vpack.c.b16 %v7334, %v7331
    %v8013 = vpack.c.b16 %v7335, %v7332
    %v8014 = vpack.c.b16 %v7336, %v7333
    %v8015 = vpack.c.b16 %v7340, %v7337
    %v8016 = vpack.c.b16 %v7341, %v7338
    %v8017 = vpack.c.b16 %v7342, %v7339
    %v8018 = vpack.c.b16 %v7346, %v7343
    %v8019 = vpack.c.b16 %v7347, %v7344
    %v8020 = vpack.c.b16 %v7348, %v7345
    %v8021 = vpack.c.b16 %v7352, %v7349
    %v8022 = vpack.c.b16 %v7353, %v7350
    %v8023 = vpack.c.b16 %v7354, %v7351
    %v8024 = vpack.c.b16 %v7358, %v7355
    %v8025 = vpack.c.b16 %v7359, %v7356
    %v8026 = vpack.c.b16 %v7360, %v7357
    %v8027 = vpack.c.b16 %v7364, %v7361
    %v8028 = vpack.c.b16 %v7365, %v7362
    %v8029 = vpack.c.b16 %v7366, %v7363
    %v8030 = vpack.c.b16 %v7370, %v7367
    %v8031 = vpack.c.b16 %v7371, %v7368
    %v8032 = vpack.c.b16 %v7372, %v7369
    %v8033 = vpack.c.b16 %v7376, %v7373
    %v8034 = vpack.c.b16 %v7377, %v7374
    %v8035 = vpack.c.b16 %v7378, %v7375
    %v8036 = vpack.c.b16 %v7382, %v7379
    %v8037 = vpack.c.b16 %v7383, %v7380
    %v8038 = vpack.c.b16 %v7384, %v7381
    %v8039 = vpack.c.b16 %v7388, %v7385
    %v8040 = vpack.c.b16 %v7389, %v7386
    %v8041 = vpack.c.b16 %v7390, %v7387
    %v8042 = vpack.c.b16 %v7394, %v7391
    %v8043 = vpack.c.b16 %v7395, %v7392
    %v8044 = vpack.c.b16 %v7396, %v7393
    %v8045 = vpack.c.b16 %v7400, %v7397
    %v8046 = vpack.c.b16 %v7401, %v7398
    %v8047 = vpack.c.b16 %v7402, %v7399
    %v8048 = vpack.c.b16 %v7406, %v7403
    %v8049 = vpack.c.b16 %v7407, %v7404
    %v8050 = vpack.c.b16 %v7408, %v7405
    %v8051 = vpack.c.b16 %v7412, %v7409
    %v8052 = vpack.c.b16 %v7413, %v7410
    %v8053 = vpack.c.b16 %v7414, %v7411
    %v8054 = vpack.c.b16 %v7418, %v7415
    %v8055 = vpack.c.b16 %v7419, %v7416
    %v8056 = vpack.c.b16 %v7420, %v7417
    %v8057 = vpack.c.b16 %v7424, %v7421
    %v8058 = vpack.c.b16 %v7425, %v7422
    %v8059 = vpack.c.b16 %v7426, %v7423
    %v8060 = vpack.c.b16 %v7430, %v7427
    %v8061 = vpack.c.b16 %v7431, %v7428
    %v8062 = vpack.c.b16 %v7432, %v7429
    %v8063 = vpack.c.b16 %v7436, %v7433
    %v8064 = vpack.c.b16 %v7437, %v7434
    %v8065 = vpack.c.b16 %v7438, %v7435
    %v8066 = vpack.c.b16 %v7442, %v7439
    %v8067 = vpack.c.b16 %v7443, %v7440
    %v8068 = vpack.c.b16 %v7444, %v7441
    %v8069 = vpack.c.b16 %v7448, %v7445
    %v8070 = vpack.c.b16 %v7449, %v7446
    %v8071 = vpack.c.b16 %v7450, %v7447
    %v8072 = vpack.c.b16 %v7454, %v7451
    %v8073 = vpack.c.b16 %v7455, %v7452
    %v8074 = vpack.c.b16 %v7456, %v7453
    %v8075 = vpack.c.b16 %v7460, %v7457
    %v8076 = vpack.c.b16 %v7461, %v7458
    %v8077 = vpack.c.b16 %v7462, %v7459
    %v8078 = vpack.c.b16 %v7466, %v7463
    %v8079 = vpack.c.b16 %v7467, %v7464
    %v8080 = vpack.c.b16 %v7468, %v7465
    %v8081 = vpack.c.b16 %v7472, %v7469
    %v8082 = vpack.c.b16 %v7473, %v7470
    %v8083 = vpack.c.b16 %v7474, %v7471
    %v8084 = vpack.c.b16 %v7478, %v7475
    %v8085 = vpack.c.b16 %v7479, %v7476
    %v8086 = vpack.c.b16 %v7480, %v7477
    %v8087 = vpack.c.b16 %v7484, %v7481
    %v8088 = vpack.c.b16 %v7485, %v7482
    %v8089 = vpack.c.b16 %v7486, %v7483
    %v8090 = vpack.c.b16 %v7490, %v7487
    %v8091 = vpack.c.b16 %v7491, %v7488
    %v8092 = vpack.c.b16 %v7492, %v7489
    %v8093 = vpack.c.b16 %v7496, %v7493
    %v8094 = vpack.c.b16 %v7497, %v7494
    %v8095 = vpack.c.b16 %v7498, %v7495
    %v8096 = vpack.c.b16 %v7502, %v7499
    %v8097 = vpack.c.b16 %v7503, %v7500
    %v8098 = vpack.c.b16 %v7504, %v7501
    %v8099 = vpack.c.b16 %v7508, %v7505
    %v8100 = vpack.c.b16 %v7509, %v7506
    %v8101 = vpack.c.b16 %v7510, %v7507
    %v8102 = vpack.c.b16 %v7514, %v7511
    %v8103 = vpack.c.b16 %v7515, %v7512
    %v8104 = vpack.c.b16 %v7516, %v7513
    %v8105 = vpack.c.b16 %v7520, %v7517
    %v8106 = vpack.c.b16 %v7521, %v7518
    %v8107 = vpack.c.b16 %v7522, %v7519
    %v8108 = vpack.c.b16 %v7526, %v7523
    %v8109 = vpack.c.b16 %v7527, %v7524
    %v8110 = vpack.c.b16 %v7528, %v7525
    %v8111 = vpack.c.b16 %v7532, %v7529
    %v8112 = vpack.c.b16 %v7533, %v7530
    %v8113 = vpack.c.b16 %v7534, %v7531
    %v8114 = vpack.c.b16 %v7538, %v7535
    %v8115 = vpack.c.b16 %v7539, %v7536
    %v8116 = vpack.c.b16 %v7540, %v7537
    %v8117 = vpack.c.b16 %v7544, %v7541
    %v8118 = vpack.c.b16 %v7545, %v7542
    %v8119 = vpack.c.b16 %v7546, %v7543
    %v8120 = vpack.c.b16 %v7550, %v7547
    %v8121 = vpack.c.b16 %v7551, %v7548
    %v8122 = vpack.c.b16 %v7552, %v7549
    %v8123 = vpack.c.b16 %v7556, %v7553
    %v8124 = vpack.c.b16 %v7557, %v7554
    %v8125 = vpack.c.b16 %v7558, %v7555
    %v8126 = vpack.c.b16 %v7562, %v7559
    %v8127 = vpack.c.b16 %v7563, %v7560
    %v8128 = vpack.c.b16 %v7564, %v7561
    %v8129 = vpack.c.b16 %v7568, %v7565
    %v8130 = vpack.c.b16 %v7569, %v7566
    %v8131 = vpack.c.b16 %v7570, %v7567
    %v8132 = vpack.c.b16 %v7574, %v7571
    %v8133 = vpack.c.b16 %v7575, %v7572
    %v8134 = vpack.c.b16 %v7576, %v7573
    %v8135 = vpack.c.b16 %v7580, %v7577
    %v8136 = vpack.c.b16 %v7581, %v7578
    %v8137 = vpack.c.b16 %v7582, %v7579
    %v8138 = vpack.c.b16 %v7586, %v7583
    %v8139 = vpack.c.b16 %v7587, %v7584
    %v8140 = vpack.c.b16 %v7588, %v7585
    %v8141 = vpack.c.b16 %v7592, %v7589
    %v8142 = vpack.c.b16 %v7593, %v7590
    %v8143 = vpack.c.b16 %v7594, %v7591
    %v8144 = vpack.c.b16 %v7598, %v7595
    %v8145 = vpack.c.b16 %v7599, %v7596
    %v8146 = vpack.c.b16 %v7600, %v7597
    %v8147 = vpack.c.b16 %v7604, %v7601
    %v8148 = vpack.c.b16 %v7605, %v7602
    %v8149 = vpack.c.b16 %v7606, %v7603
    %v8150 = vpack.c.b16 %v7610, %v7607
    %v8151 = vpack.c.b16 %v7611, %v7608
    %v8152 = vpack.c.b16 %v7612, %v7609
    %v8153 = vpack.c.b16 %v7616, %v7613
    %v8154 = vpack.c.b16 %v7617, %v7614
    %v8155 = vpack.c.b16 %v7618, %v7615
    %v8156 = vpack.c.b16 %v7622, %v7619
    %v8157 = vpack.c.b16 %v7623, %v7620
    %v8158 = vpack.c.b16 %v7624, %v7621
    %v8159 = vpack.c.b16 %v7628, %v7625
    %v8160 = vpack.c.b16 %v7629, %v7626
    %v8161 = vpack.c.b16 %v7630, %v7627
    %v8162 = vpack.c.b16 %v7634, %v7631
    %v8163 = vpack.c.b16 %v7635, %v7632
    %v8164 = vpack.c.b16 %v7636, %v7633
    %v8165 = vpack.c.b16 %v7640, %v7637
    %v8166 = vpack.c.b16 %v7641, %v7638
    %v8167 = vpack.c.b16 %v7642, %v7639
    %v8168 = vpack.c.b16 %v7646, %v7643
    %v8169 = vpack.c.b16 %v7647, %v7644
    %v8170 = vpack.c.b16 %v7648, %v7645
    %v8171 = vpack.c.b16 %v7652, %v7649
    %v8172 = vpack.c.b16 %v7653, %v7650
    %v8173 = vpack.c.b16 %v7654, %v7651
    %v8174 = vpack.c.b16 %v7658, %v7655
    %v8175 = vpack.c.b16 %v7659, %v7656
    %v8176 = vpack.c.b16 %v7660, %v7657
    %v8177 = vpack.c.b16 %v7664, %v7661
    %v8178 = vpack.c.b16 %v7665, %v7662
    %v8179 = vpack.c.b16 %v7666, %v7663
    %v8180 = vpack.c.b16 %v7670, %v7667
    %v8181 = vpack.c.b16 %v7671, %v7668
    %v8182 = vpack.c.b16 %v7672, %v7669
    %v8183 = vpack.c.b16 %v7676, %v7673
    %v8184 = vpack.c.b16 %v7677, %v7674
    %v8185 = vpack.c.b16 %v7678, %v7675
    %v8186 = vpack.c.b16 %v7682, %v7679
    %v8187 = vpack.c.b16 %v7683, %v7680
    %v8188 = vpack.c.b16 %v7684, %v7681
    %v8189 = vpack.c.b16 %v7688, %v7685
    %v8190 = vpack.c.b16 %v7689, %v7686
    %v8191 = vpack.c.b16 %v7690, %v7687
    %v8192 = vpack.c.b16 %v7694, %v7691
    %v8193 = vpack.c.b16 %v7695, %v7692
    %v8194 = vpack.c.b16 %v7696, %v7693
    %v8195 = vpack.c.b16 %v7700, %v7697
    %v8196 = vpack.c.b16 %v7701, %v7698
    %v8197 = vpack.c.b16 %v7702, %v7699
    %v8198 = vpack.c.b16 %v7706, %v7703
    %v8199 = vpack.c.b16 %v7707, %v7704
    %v8200 = vpack.c.b16 %v7708, %v7705
    %v8201 = vpack.c.b16 %v7712, %v7709
    %v8202 = vpack.c.b16 %v7713, %v7710
    %v8203 = vpack.c.b16 %v7714, %v7711
    %v8204 = vpack.c.b16 %v7718, %v7715
    %v8205 = vpack.c.b16 %v7719, %v7716
    %v8206 = vpack.c.b16 %v7720, %v7717
    %v8207 = vpack.c.b16 %v7724, %v7721
    %v8208 = vpack.c.b16 %v7725, %v7722
    %v8209 = vpack.c.b16 %v7726, %v7723
    %v8210 = vpack.c.b16 %v7730, %v7727
    %v8211 = vpack.c.b16 %v7731, %v7728
    %v8212 = vpack.c.b16 %v7732, %v7729
    %v8213 = vpack.c.b16 %v7736, %v7733
    %v8214 = vpack.c.b16 %v7737, %v7734
    %v8215 = vpack.c.b16 %v7738, %v7735
    %v8216 = vpack.c.b16 %v7742, %v7739
    %v8217 = vpack.c.b16 %v7743, %v7740
    %v8218 = vpack.c.b16 %v7744, %v7741
    %v8219 = vpack.c.b16 %v7748, %v7745
    %v8220 = vpack.c.b16 %v7749, %v7746
    %v8221 = vpack.c.b16 %v7750, %v7747
    %v8222 = vpack.c.b16 %v7754, %v7751
    %v8223 = vpack.c.b16 %v7755, %v7752
    %v8224 = vpack.c.b16 %v7756, %v7753
    %v8225 = vpack.c.b16 %v7760, %v7757
    %v8226 = vpack.c.b16 %v7761, %v7758
    %v8227 = vpack.c.b16 %v7762, %v7759
    %v8228 = vpack.c.b16 %v7766, %v7763
    %v8229 = vpack.c.b16 %v7767, %v7764
    %v8230 = vpack.c.b16 %v7768, %v7765
    %v8231 = vpack.c.b16 %v7772, %v7769
    %v8232 = vpack.c.b16 %v7773, %v7770
    %v8233 = vpack.c.b16 %v7774, %v7771
    %v8234 = vpack.c.b16 %v7778, %v7775
    %v8235 = vpack.c.b16 %v7779, %v7776
    %v8236 = vpack.c.b16 %v7780, %v7777
    %v8237 = vpack.c.b16 %v7784, %v7781
    %v8238 = vpack.c.b16 %v7785, %v7782
    %v8239 = vpack.c.b16 %v7786, %v7783
    %v8240 = vpack.c.b16 %v7790, %v7787
    %v8241 = vpack.c.b16 %v7791, %v7788
    %v8242 = vpack.c.b16 %v7792, %v7789
    %v8243 = vpack.c.b16 %v7796, %v7793
    %v8244 = vpack.c.b16 %v7797, %v7794
    %v8245 = vpack.c.b16 %v7798, %v7795
    %v8246 = vpack.c.b16 %v7802, %v7799
    %v8247 = vpack.c.b16 %v7803, %v7800
    %v8248 = vpack.c.b16 %v7804, %v7801
    %v8249 = vpack.c.b16 %v7808, %v7805
    %v8250 = vpack.c.b16 %v7809, %v7806
    %v8251 = vpack.c.b16 %v7810, %v7807
    %v8252 = vpack.c.b16 %v7814, %v7811
    %v8253 = vpack.c.b16 %v7815, %v7812
    %v8254 = vpack.c.b16 %v7816, %v7813
    %v8255 = vpack.c.b16 %v7820, %v7817
    %v8256 = vpack.c.b16 %v7821, %v7818
    %v8257 = vpack.c.b16 %v7822, %v7819
    %v8258 = vpack.c.b16 %v7826, %v7823
    %v8259 = vpack.c.b16 %v7827, %v7824
    %v8260 = vpack.c.b16 %v7828, %v7825
    %v8261 = vpack.c.b16 %v7832, %v7829
    %v8262 = vpack.c.b16 %v7833, %v7830
    %v8263 = vpack.c.b16 %v7834, %v7831
    %v8264 = vpack.c.b16 %v7838, %v7835
    %v8265 = vpack.c.b16 %v7839, %v7836
    %v8266 = vpack.c.b16 %v7840, %v7837
    %v8267 = vpack.c.b16 %v7844, %v7841
    %v8268 = vpack.c.b16 %v7845, %v7842
    %v8269 = vpack.c.b16 %v7846, %v7843
    %v8270 = vpack.c.b16 %v7850, %v7847
    %v8271 = vpack.c.b16 %v7851, %v7848
    %v8272 = vpack.c.b16 %v7852, %v7849
    %v8273 = vpack.c.b16 %v7856, %v7853
    %v8274 = vpack.c.b16 %v7857, %v7854
    %v8275 = vpack.c.b16 %v7858, %v7855
    %v8276 = vpack.c.b16 %v7862, %v7859
    %v8277 = vpack.c.b16 %v7863, %v7860
    %v8278 = vpack.c.b16 %v7864, %v7861
    %v8279 = vpack.c.b16 %v7868, %v7865
    %v8280 = vpack.c.b16 %v7869, %v7866
    %v8281 = vpack.c.b16 %v7870, %v7867
    %v8282 = vpack.c.b16 %v7874, %v7871
    %v8283 = vpack.c.b16 %v7875, %v7872
    %v8284 = vpack.c.b16 %v7876, %v7873
    %v8285 = vpack.c.b16 %v7880, %v7877
    %v8286 = vpack.c.b16 %v7881, %v7878
    %v8287 = vpack.c.b16 %v7882, %v7879
    %v8288 = vpack.c.b16 %v7886, %v7883
    %v8289 = vpack.c.b16 %v7887, %v7884
    %v8290 = vpack.c.b16 %v7888, %v7885
    %v8291 = vpack.c.b16 %v7892, %v7889
    %v8292 = vpack.c.b16 %v7893, %v7890
    %v8293 = vpack.c.b16 %v7894, %v7891
    %v8294 = vpack.c.b16 %v7898, %v7895
    %v8295 = vpack.c.b16 %v7899, %v7896
    %v8296 = vpack.c.b16 %v7900, %v7897
    %v8297 = vpack.c.b16 %v7904, %v7901
    %v8298 = vpack.c.b16 %v7905, %v7902
    %v8299 = vpack.c.b16 %v7906, %v7903
    %v8300 = vpack.c.b16 %v7910, %v7907
    %v8301 = vpack.c.b16 %v7911, %v7908
    %v8302 = vpack.c.b16 %v7912, %v7909
    %v8303 = vpack.c.b16 %v7916, %v7913
    %v8304 = vpack.c.b16 %v7917, %v7914
    %v8305 = vpack.c.b16 %v7918, %v7915
    %v8306 = vpack.c.b16 %v7922, %v7919
    %v8307 = vpack.c.b16 %v7923, %v7920
    %v8308 = vpack.c.b16 %v7924, %v7921
    %8693 = vmatprep.subr.bf16.mxu0 %v7947
    %8694 = vmatpush1.bf16.msra.mxu0 %v7946
    %8695 = vmatprep.subr.bf16.mxu0 %v7944
    %8696 = vmatpush1.bf16.msra.mxu0 %v7943
    %8697 = vmatprep.subr.bf16.mxu0 %v7941
    %8698 = vmatpush1.bf16.msra.mxu0 %v7940
    %8699 = vmatprep.subr.bf16.mxu0 %v7938
    %8700 = vmatpush1.bf16.msra.mxu0 %v7937
    %8701 = vmatprep.subr.bf16.mxu0 %v7935
    %8702 = vmatpush1.bf16.msra.mxu0 %v7934
    %8703 = vmatprep.subr.bf16.mxu0 %v7932
    %8704 = vmatpush1.bf16.msra.mxu0 %v7931
    %8705 = vmatprep.subr.bf16.mxu0 %v7929
    %8706 = vmatpush1.bf16.msra.mxu0 %v7928
    %8707 = vmatprep.subr.bf16.mxu0 %v7926
    %8708 = vmatpush1.bf16.msra.mxu0 %v7925
    %8709 = vmatprep.subr.bf16.mxu0 %v7971
    %8710 = vmatpush2.bf16.msra.mxu0 %v7970
    %8711 = vmatprep.subr.bf16.mxu0 %v7968
    %8712 = vmatpush2.bf16.msra.mxu0 %v7967
    %8713 = vmatprep.subr.bf16.mxu0 %v7965
    %8714 = vmatpush2.bf16.msra.mxu0 %v7964
    %8715 = vmatprep.subr.bf16.mxu0 %v7962
    %8716 = vmatpush2.bf16.msra.mxu0 %v7961
    %8717 = vmatprep.subr.bf16.mxu0 %v7959
    %8718 = vmatpush2.bf16.msra.mxu0 %v7958
    %8719 = vmatprep.subr.bf16.mxu0 %v7956
    %8720 = vmatpush2.bf16.msra.mxu0 %v7955
    %8721 = vmatprep.subr.bf16.mxu0 %v7953
    %8722 = vmatpush2.bf16.msra.mxu0 %v7952
    %8723 = vmatprep.subr.bf16.mxu0 %v7950
    %8724 = vmatpush2.bf16.msra.mxu0 %v7949
    %8725 = vmatprep.mubr.bf16.mxu0 %v6101
    %8726 = vmatmul.mubr.bf16.gmra.mxu0 %v6100
    %v8727 = vpop.f32.mrf.mxu0
    %v8728 = vadd.f32 %v6633, %v8727
    %v8729 = vpop.f32.mrf.mxu0
    %v8730 = vadd.f32 %v6637, %v8729
    %v8731 = vpop.f32.mrf.mxu0
    %v8732 = vpop.f32.mrf.mxu0
    %8733 = vdwg.mxu0
    %8734 = vmatprep.subr.bf16.mxu0 %v7995
    %8735 = vmatpush1.bf16.msra.mxu0 %v7994
    %8736 = vmatprep.subr.bf16.mxu0 %v7992
    %8737 = vmatpush1.bf16.msra.mxu0 %v7991
    %8738 = vmatprep.subr.bf16.mxu0 %v7989
    %8739 = vmatpush1.bf16.msra.mxu0 %v7988
    %8740 = vmatprep.subr.bf16.mxu0 %v7986
    %8741 = vmatpush1.bf16.msra.mxu0 %v7985
    %8742 = vmatprep.subr.bf16.mxu0 %v7983
    %8743 = vmatpush1.bf16.msra.mxu0 %v7982
    %8744 = vmatprep.subr.bf16.mxu0 %v7980
    %8745 = vmatpush1.bf16.msra.mxu0 %v7979
    %8746 = vmatprep.subr.bf16.mxu0 %v7977
    %8747 = vmatpush1.bf16.msra.mxu0 %v7976
    %8748 = vmatprep.subr.bf16.mxu0 %v7974
    %8749 = vmatpush1.bf16.msra.mxu0 %v7973
    %8750 = vmatprep.subr.bf16.mxu0 %v8019
    %8751 = vmatpush2.bf16.msra.mxu0 %v8018
    %8752 = vmatprep.subr.bf16.mxu0 %v8016
    %8753 = vmatpush2.bf16.msra.mxu0 %v8015
    %8754 = vmatprep.subr.bf16.mxu0 %v8013
    %8755 = vmatpush2.bf16.msra.mxu0 %v8012
    %8756 = vmatprep.subr.bf16.mxu0 %v8010
    %8757 = vmatpush2.bf16.msra.mxu0 %v8009
    %8758 = vmatprep.subr.bf16.mxu0 %v8007
    %8759 = vmatpush2.bf16.msra.mxu0 %v8006
    %8760 = vmatprep.subr.bf16.mxu0 %v8004
    %8761 = vmatpush2.bf16.msra.mxu0 %v8003
    %8762 = vmatprep.subr.bf16.mxu0 %v8001
    %8763 = vmatpush2.bf16.msra.mxu0 %v8000
    %8764 = vmatprep.subr.bf16.mxu0 %v7998
    %8765 = vmatpush2.bf16.msra.mxu0 %v7997
    %8766 = vmatprep.mubr.bf16.mxu0 %v6103
    %8767 = vmatmul.mubr.bf16.gmra.mxu0 %v6102
    %v8768 = vpop.f32.mrf.mxu0
    %v8769 = vadd.f32 %v8728, %v8768
    %v8770 = vpop.f32.mrf.mxu0
    %v8771 = vadd.f32 %v8730, %v8770
    %v8772 = vpop.f32.mrf.mxu0
    %v8773 = vpop.f32.mrf.mxu0
    %8774 = vdwg.mxu0
    %8775 = vmatprep.subr.bf16.mxu0 %v8043
    %8776 = vmatpush1.bf16.msra.mxu0 %v8042
    %8777 = vmatprep.subr.bf16.mxu0 %v8040
    %8778 = vmatpush1.bf16.msra.mxu0 %v8039
    %8779 = vmatprep.subr.bf16.mxu0 %v8037
    %8780 = vmatpush1.bf16.msra.mxu0 %v8036
    %8781 = vmatprep.subr.bf16.mxu0 %v8034
    %8782 = vmatpush1.bf16.msra.mxu0 %v8033
    %8783 = vmatprep.subr.bf16.mxu0 %v8031
    %8784 = vmatpush1.bf16.msra.mxu0 %v8030
    %8785 = vmatprep.subr.bf16.mxu0 %v8028
    %8786 = vmatpush1.bf16.msra.mxu0 %v8027
    %8787 = vmatprep.subr.bf16.mxu0 %v8025
    %8788 = vmatpush1.bf16.msra.mxu0 %v8024
    %8789 = vmatprep.subr.bf16.mxu0 %v8022
    %8790 = vmatpush1.bf16.msra.mxu0 %v8021
    %8791 = vmatprep.subr.bf16.mxu0 %v8067
    %8792 = vmatpush2.bf16.msra.mxu0 %v8066
    %8793 = vmatprep.subr.bf16.mxu0 %v8064
    %8794 = vmatpush2.bf16.msra.mxu0 %v8063
    %8795 = vmatprep.subr.bf16.mxu0 %v8061
    %8796 = vmatpush2.bf16.msra.mxu0 %v8060
    %8797 = vmatprep.subr.bf16.mxu0 %v8058
    %8798 = vmatpush2.bf16.msra.mxu0 %v8057
    %8799 = vmatprep.subr.bf16.mxu0 %v8055
    %8800 = vmatpush2.bf16.msra.mxu0 %v8054
    %8801 = vmatprep.subr.bf16.mxu0 %v8052
    %8802 = vmatpush2.bf16.msra.mxu0 %v8051
    %8803 = vmatprep.subr.bf16.mxu0 %v8049
    %8804 = vmatpush2.bf16.msra.mxu0 %v8048
    %8805 = vmatprep.subr.bf16.mxu0 %v8046
    %8806 = vmatpush2.bf16.msra.mxu0 %v8045
    %8807 = vmatprep.mubr.bf16.mxu0 %v6105
    %8808 = vmatmul.mubr.bf16.gmra.mxu0 %v6104
    %v8809 = vpop.f32.mrf.mxu0
    %v8810 = vadd.f32 %v8769, %v8809
    %v8811 = vpop.f32.mrf.mxu0
    %v8812 = vadd.f32 %v8771, %v8811
    %v8813 = vpop.f32.mrf.mxu0
    %v8814 = vpop.f32.mrf.mxu0
    %8815 = vdwg.mxu0
    %8816 = vmatprep.subr.bf16.mxu0 %v8091
    %8817 = vmatpush1.bf16.msra.mxu0 %v8090
    %8818 = vmatprep.subr.bf16.mxu0 %v8088
    %8819 = vmatpush1.bf16.msra.mxu0 %v8087
    %8820 = vmatprep.subr.bf16.mxu0 %v8085
    %8821 = vmatpush1.bf16.msra.mxu0 %v8084
    %8822 = vmatprep.subr.bf16.mxu0 %v8082
    %8823 = vmatpush1.bf16.msra.mxu0 %v8081
    %8824 = vmatprep.subr.bf16.mxu0 %v8079
    %8825 = vmatpush1.bf16.msra.mxu0 %v8078
    %8826 = vmatprep.subr.bf16.mxu0 %v8076
    %8827 = vmatpush1.bf16.msra.mxu0 %v8075
    %8828 = vmatprep.subr.bf16.mxu0 %v8073
    %8829 = vmatpush1.bf16.msra.mxu0 %v8072
    %8830 = vmatprep.subr.bf16.mxu0 %v8070
    %8831 = vmatpush1.bf16.msra.mxu0 %v8069
    %8832 = vmatprep.subr.bf16.mxu0 %v8115
    %8833 = vmatpush2.bf16.msra.mxu0 %v8114
    %8834 = vmatprep.subr.bf16.mxu0 %v8112
    %8835 = vmatpush2.bf16.msra.mxu0 %v8111
    %8836 = vmatprep.subr.bf16.mxu0 %v8109
    %8837 = vmatpush2.bf16.msra.mxu0 %v8108
    %8838 = vmatprep.subr.bf16.mxu0 %v8106
    %8839 = vmatpush2.bf16.msra.mxu0 %v8105
    %8840 = vmatprep.subr.bf16.mxu0 %v8103
    %8841 = vmatpush2.bf16.msra.mxu0 %v8102
    %8842 = vmatprep.subr.bf16.mxu0 %v8100
    %8843 = vmatpush2.bf16.msra.mxu0 %v8099
    %8844 = vmatprep.subr.bf16.mxu0 %v8097
    %8845 = vmatpush2.bf16.msra.mxu0 %v8096
    %8846 = vmatprep.subr.bf16.mxu0 %v8094
    %8847 = vmatpush2.bf16.msra.mxu0 %v8093
    %8848 = vmatprep.mubr.bf16.mxu0 %v6107
    %8849 = vmatmul.mubr.bf16.gmra.mxu0 %v6106
    %v8850 = vpop.f32.mrf.mxu0
    %v8851 = vadd.f32 %v8810, %v8850
    %v8852 = vpop.f32.mrf.mxu0
    %v8853 = vadd.f32 %v8812, %v8852
    %v8854 = vpop.f32.mrf.mxu0
    %v8855 = vpop.f32.mrf.mxu0
    %8856 = vdwg.mxu0
    %8857 = vmatprep.subr.bf16.mxu0 %v8139
    %8858 = vmatpush1.bf16.msra.mxu0 %v8138
    %8859 = vmatprep.subr.bf16.mxu0 %v8136
    %8860 = vmatpush1.bf16.msra.mxu0 %v8135
    %8861 = vmatprep.subr.bf16.mxu0 %v8133
    %8862 = vmatpush1.bf16.msra.mxu0 %v8132
    %8863 = vmatprep.subr.bf16.mxu0 %v8130
    %8864 = vmatpush1.bf16.msra.mxu0 %v8129
    %8865 = vmatprep.subr.bf16.mxu0 %v8127
    %8866 = vmatpush1.bf16.msra.mxu0 %v8126
    %8867 = vmatprep.subr.bf16.mxu0 %v8124
    %8868 = vmatpush1.bf16.msra.mxu0 %v8123
    %8869 = vmatprep.subr.bf16.mxu0 %v8121
    %8870 = vmatpush1.bf16.msra.mxu0 %v8120
    %8871 = vmatprep.subr.bf16.mxu0 %v8118
    %8872 = vmatpush1.bf16.msra.mxu0 %v8117
    %8873 = vmatprep.subr.bf16.mxu0 %v8163
    %8874 = vmatpush2.bf16.msra.mxu0 %v8162
    %8875 = vmatprep.subr.bf16.mxu0 %v8160
    %8876 = vmatpush2.bf16.msra.mxu0 %v8159
    %8877 = vmatprep.subr.bf16.mxu0 %v8157
    %8878 = vmatpush2.bf16.msra.mxu0 %v8156
    %8879 = vmatprep.subr.bf16.mxu0 %v8154
    %8880 = vmatpush2.bf16.msra.mxu0 %v8153
    %8881 = vmatprep.subr.bf16.mxu0 %v8151
    %8882 = vmatpush2.bf16.msra.mxu0 %v8150
    %8883 = vmatprep.subr.bf16.mxu0 %v8148
    %8884 = vmatpush2.bf16.msra.mxu0 %v8147
    %8885 = vmatprep.subr.bf16.mxu0 %v8145
    %8886 = vmatpush2.bf16.msra.mxu0 %v8144
    %8887 = vmatprep.subr.bf16.mxu0 %v8142
    %8888 = vmatpush2.bf16.msra.mxu0 %v8141
    %8889 = vmatprep.mubr.bf16.mxu0 %v6109
    %8890 = vmatmul.mubr.bf16.gmra.mxu0 %v6108
    %v8891 = vpop.f32.mrf.mxu0
    %v8892 = vadd.f32 %v8851, %v8891
    %v8893 = vpop.f32.mrf.mxu0
    %v8894 = vadd.f32 %v8853, %v8893
    %v8895 = vpop.f32.mrf.mxu0
    %v8896 = vpop.f32.mrf.mxu0
    %8897 = vdwg.mxu0
    %8898 = vmatprep.subr.bf16.mxu0 %v8187
    %8899 = vmatpush1.bf16.msra.mxu0 %v8186
    %8900 = vmatprep.subr.bf16.mxu0 %v8184
    %8901 = vmatpush1.bf16.msra.mxu0 %v8183
    %8902 = vmatprep.subr.bf16.mxu0 %v8181
    %8903 = vmatpush1.bf16.msra.mxu0 %v8180
    %8904 = vmatprep.subr.bf16.mxu0 %v8178
    %8905 = vmatpush1.bf16.msra.mxu0 %v8177
    %8906 = vmatprep.subr.bf16.mxu0 %v8175
    %8907 = vmatpush1.bf16.msra.mxu0 %v8174
    %8908 = vmatprep.subr.bf16.mxu0 %v8172
    %8909 = vmatpush1.bf16.msra.mxu0 %v8171
    %8910 = vmatprep.subr.bf16.mxu0 %v8169
    %8911 = vmatpush1.bf16.msra.mxu0 %v8168
    %8912 = vmatprep.subr.bf16.mxu0 %v8166
    %8913 = vmatpush1.bf16.msra.mxu0 %v8165
    %8914 = vmatprep.subr.bf16.mxu0 %v8211
    %8915 = vmatpush2.bf16.msra.mxu0 %v8210
    %8916 = vmatprep.subr.bf16.mxu0 %v8208
    %8917 = vmatpush2.bf16.msra.mxu0 %v8207
    %8918 = vmatprep.subr.bf16.mxu0 %v8205
    %8919 = vmatpush2.bf16.msra.mxu0 %v8204
    %8920 = vmatprep.subr.bf16.mxu0 %v8202
    %8921 = vmatpush2.bf16.msra.mxu0 %v8201
    %8922 = vmatprep.subr.bf16.mxu0 %v8199
    %8923 = vmatpush2.bf16.msra.mxu0 %v8198
    %8924 = vmatprep.subr.bf16.mxu0 %v8196
    %8925 = vmatpush2.bf16.msra.mxu0 %v8195
    %8926 = vmatprep.subr.bf16.mxu0 %v8193
    %8927 = vmatpush2.bf16.msra.mxu0 %v8192
    %8928 = vmatprep.subr.bf16.mxu0 %v8190
    %8929 = vmatpush2.bf16.msra.mxu0 %v8189
    %8930 = vmatprep.mubr.bf16.mxu0 %v6111
    %8931 = vmatmul.mubr.bf16.gmra.mxu0 %v6110
    %v8932 = vpop.f32.mrf.mxu0
    %v8933 = vadd.f32 %v8892, %v8932
    %v8934 = vpop.f32.mrf.mxu0
    %v8935 = vadd.f32 %v8894, %v8934
    %v8936 = vpop.f32.mrf.mxu0
    %v8937 = vpop.f32.mrf.mxu0
    %8938 = vdwg.mxu0
    %8939 = vmatprep.subr.bf16.mxu0 %v8235
    %8940 = vmatpush1.bf16.msra.mxu0 %v8234
    %8941 = vmatprep.subr.bf16.mxu0 %v8232
    %8942 = vmatpush1.bf16.msra.mxu0 %v8231
    %8943 = vmatprep.subr.bf16.mxu0 %v8229
    %8944 = vmatpush1.bf16.msra.mxu0 %v8228
    %8945 = vmatprep.subr.bf16.mxu0 %v8226
    %8946 = vmatpush1.bf16.msra.mxu0 %v8225
    %8947 = vmatprep.subr.bf16.mxu0 %v8223
    %8948 = vmatpush1.bf16.msra.mxu0 %v8222
    %8949 = vmatprep.subr.bf16.mxu0 %v8220
    %8950 = vmatpush1.bf16.msra.mxu0 %v8219
    %8951 = vmatprep.subr.bf16.mxu0 %v8217
    %8952 = vmatpush1.bf16.msra.mxu0 %v8216
    %8953 = vmatprep.subr.bf16.mxu0 %v8214
    %8954 = vmatpush1.bf16.msra.mxu0 %v8213
    %8955 = vmatprep.subr.bf16.mxu0 %v8259
    %8956 = vmatpush2.bf16.msra.mxu0 %v8258
    %8957 = vmatprep.subr.bf16.mxu0 %v8256
    %8958 = vmatpush2.bf16.msra.mxu0 %v8255
    %8959 = vmatprep.subr.bf16.mxu0 %v8253
    %8960 = vmatpush2.bf16.msra.mxu0 %v8252
    %8961 = vmatprep.subr.bf16.mxu0 %v8250
    %8962 = vmatpush2.bf16.msra.mxu0 %v8249
    %8963 = vmatprep.subr.bf16.mxu0 %v8247
    %8964 = vmatpush2.bf16.msra.mxu0 %v8246
    %8965 = vmatprep.subr.bf16.mxu0 %v8244
    %8966 = vmatpush2.bf16.msra.mxu0 %v8243
    %8967 = vmatprep.subr.bf16.mxu0 %v8241
    %8968 = vmatpush2.bf16.msra.mxu0 %v8240
    %8969 = vmatprep.subr.bf16.mxu0 %v8238
    %8970 = vmatpush2.bf16.msra.mxu0 %v8237
    %8971 = vmatprep.mubr.bf16.mxu0 %v6113
    %8972 = vmatmul.mubr.bf16.gmra.mxu0 %v6112
    %v8973 = vpop.f32.mrf.mxu0
    %v8974 = vadd.f32 %v8933, %v8973
    %v8975 = vpop.f32.mrf.mxu0
    %v8976 = vadd.f32 %v8935, %v8975
    %v8977 = vpop.f32.mrf.mxu0
    %v8978 = vpop.f32.mrf.mxu0
    %8979 = vdwg.mxu0
    %8980 = vmatprep.subr.bf16.mxu0 %v8283
    %8981 = vmatpush1.bf16.msra.mxu0 %v8282
    %8982 = vmatprep.subr.bf16.mxu0 %v8280
    %8983 = vmatpush1.bf16.msra.mxu0 %v8279
    %8984 = vmatprep.subr.bf16.mxu0 %v8277
    %8985 = vmatpush1.bf16.msra.mxu0 %v8276
    %8986 = vmatprep.subr.bf16.mxu0 %v8274
    %8987 = vmatpush1.bf16.msra.mxu0 %v8273
    %8988 = vmatprep.subr.bf16.mxu0 %v8271
    %8989 = vmatpush1.bf16.msra.mxu0 %v8270
    %8990 = vmatprep.subr.bf16.mxu0 %v8268
    %8991 = vmatpush1.bf16.msra.mxu0 %v8267
    %8992 = vmatprep.subr.bf16.mxu0 %v8265
    %8993 = vmatpush1.bf16.msra.mxu0 %v8264
    %8994 = vmatprep.subr.bf16.mxu0 %v8262
    %8995 = vmatpush1.bf16.msra.mxu0 %v8261
    %8996 = vmatprep.subr.bf16.mxu0 %v8307
    %8997 = vmatpush2.bf16.msra.mxu0 %v8306
    %8998 = vmatprep.subr.bf16.mxu0 %v8304
    %8999 = vmatpush2.bf16.msra.mxu0 %v8303
    %9000 = vmatprep.subr.bf16.mxu0 %v8301
    %9001 = vmatpush2.bf16.msra.mxu0 %v8300
    %9002 = vmatprep.subr.bf16.mxu0 %v8298
    %9003 = vmatpush2.bf16.msra.mxu0 %v8297
    %9004 = vmatprep.subr.bf16.mxu0 %v8295
    %9005 = vmatpush2.bf16.msra.mxu0 %v8294
    %9006 = vmatprep.subr.bf16.mxu0 %v8292
    %9007 = vmatpush2.bf16.msra.mxu0 %v8291
    %9008 = vmatprep.subr.bf16.mxu0 %v8289
    %9009 = vmatpush2.bf16.msra.mxu0 %v8288
    %9010 = vmatprep.subr.bf16.mxu0 %v8286
    %9011 = vmatpush2.bf16.msra.mxu0 %v8285
    %9012 = vmatprep.mubr.bf16.mxu0 %v6115
    %9013 = vmatmul.mubr.bf16.gmra.mxu0 %v6114
    %v9014 = vpop.f32.mrf.mxu0
    %v9015 = vadd.f32 %v8974, %v9014
    %v9016 = vpop.f32.mrf.mxu0
    %v9017 = vadd.f32 %v8976, %v9016
    %v9018 = vpop.f32.mrf.mxu0
    %v9019 = vpop.f32.mrf.mxu0
    %9020 = vdwg.mxu0
    %9021 = vmatprep.subr.bf16.mxu0 0
    %9022 = vmatpush1.bf16.msra.mxu0 %v7948
    %9023 = vmatprep.subr.bf16.mxu0 0
    %9024 = vmatpush1.bf16.msra.mxu0 %v7945
    %9025 = vmatprep.subr.bf16.mxu0 0
    %9026 = vmatpush1.bf16.msra.mxu0 %v7942
    %9027 = vmatprep.subr.bf16.mxu0 0
    %9028 = vmatpush1.bf16.msra.mxu0 %v7939
    %9029 = vmatprep.subr.bf16.mxu0 0
    %9030 = vmatpush1.bf16.msra.mxu0 %v7936
    %9031 = vmatprep.subr.bf16.mxu0 0
    %9032 = vmatpush1.bf16.msra.mxu0 %v7933
    %9033 = vmatprep.subr.bf16.mxu0 0
    %9034 = vmatpush1.bf16.msra.mxu0 %v7930
    %9035 = vmatprep.subr.bf16.mxu0 0
    %9036 = vmatpush1.bf16.msra.mxu0 %v7927
    %9037 = vmatprep.subr.bf16.mxu0 0
    %9038 = vmatpush2.bf16.msra.mxu0 %v7972
    %9039 = vmatprep.subr.bf16.mxu0 0
    %9040 = vmatpush2.bf16.msra.mxu0 %v7969
    %9041 = vmatprep.subr.bf16.mxu0 0
    %9042 = vmatpush2.bf16.msra.mxu0 %v7966
    %9043 = vmatprep.subr.bf16.mxu0 0
    %9044 = vmatpush2.bf16.msra.mxu0 %v7963
    %9045 = vmatprep.subr.bf16.mxu0 0
    %9046 = vmatpush2.bf16.msra.mxu0 %v7960
    %9047 = vmatprep.subr.bf16.mxu0 0
    %9048 = vmatpush2.bf16.msra.mxu0 %v7957
    %9049 = vmatprep.subr.bf16.mxu0 0
    %9050 = vmatpush2.bf16.msra.mxu0 %v7954
    %9051 = vmatprep.subr.bf16.mxu0 0
    %9052 = vmatpush2.bf16.msra.mxu0 %v7951
    %9053 = vmatprep.mubr.bf16.mxu0 %v6101
    %9054 = vmatmul.mubr.bf16.gmra.mxu0 %v6100
    %v9055 = vpop.f32.mrf.mxu0
    %v9056 = vadd.f32 %v6641, %v9055
    %v9057 = vpop.f32.mrf.mxu0
    %v9058 = vpop.f32.mrf.mxu0
    %v9059 = vpop.f32.mrf.mxu0
    %9060 = vdwg.mxu0
    %9061 = vmatprep.subr.bf16.mxu0 0
    %9062 = vmatpush1.bf16.msra.mxu0 %v7996
    %9063 = vmatprep.subr.bf16.mxu0 0
    %9064 = vmatpush1.bf16.msra.mxu0 %v7993
    %9065 = vmatprep.subr.bf16.mxu0 0
    %9066 = vmatpush1.bf16.msra.mxu0 %v7990
    %9067 = vmatprep.subr.bf16.mxu0 0
    %9068 = vmatpush1.bf16.msra.mxu0 %v7987
    %9069 = vmatprep.subr.bf16.mxu0 0
    %9070 = vmatpush1.bf16.msra.mxu0 %v7984
    %9071 = vmatprep.subr.bf16.mxu0 0
    %9072 = vmatpush1.bf16.msra.mxu0 %v7981
    %9073 = vmatprep.subr.bf16.mxu0 0
    %9074 = vmatpush1.bf16.msra.mxu0 %v7978
    %9075 = vmatprep.subr.bf16.mxu0 0
    %9076 = vmatpush1.bf16.msra.mxu0 %v7975
    %9077 = vmatprep.subr.bf16.mxu0 0
    %9078 = vmatpush2.bf16.msra.mxu0 %v8020
    %9079 = vmatprep.subr.bf16.mxu0 0
    %9080 = vmatpush2.bf16.msra.mxu0 %v8017
    %9081 = vmatprep.subr.bf16.mxu0 0
    %9082 = vmatpush2.bf16.msra.mxu0 %v8014
    %9083 = vmatprep.subr.bf16.mxu0 0
    %9084 = vmatpush2.bf16.msra.mxu0 %v8011
    %9085 = vmatprep.subr.bf16.mxu0 0
    %9086 = vmatpush2.bf16.msra.mxu0 %v8008
    %9087 = vmatprep.subr.bf16.mxu0 0
    %9088 = vmatpush2.bf16.msra.mxu0 %v8005
    %9089 = vmatprep.subr.bf16.mxu0 0
    %9090 = vmatpush2.bf16.msra.mxu0 %v8002
    %9091 = vmatprep.subr.bf16.mxu0 0
    %9092 = vmatpush2.bf16.msra.mxu0 %v7999
    %9093 = vmatprep.mubr.bf16.mxu0 %v6103
    %9094 = vmatmul.mubr.bf16.gmra.mxu0 %v6102
    %v9095 = vpop.f32.mrf.mxu0
    %v9096 = vadd.f32 %v9056, %v9095
    %v9097 = vpop.f32.mrf.mxu0
    %v9098 = vpop.f32.mrf.mxu0
    %v9099 = vpop.f32.mrf.mxu0
    %9100 = vdwg.mxu0
    %9101 = vmatprep.subr.bf16.mxu0 0
    %9102 = vmatpush1.bf16.msra.mxu0 %v8044
    %9103 = vmatprep.subr.bf16.mxu0 0
    %9104 = vmatpush1.bf16.msra.mxu0 %v8041
    %9105 = vmatprep.subr.bf16.mxu0 0
    %9106 = vmatpush1.bf16.msra.mxu0 %v8038
    %9107 = vmatprep.subr.bf16.mxu0 0
    %9108 = vmatpush1.bf16.msra.mxu0 %v8035
    %9109 = vmatprep.subr.bf16.mxu0 0
    %9110 = vmatpush1.bf16.msra.mxu0 %v8032
    %9111 = vmatprep.subr.bf16.mxu0 0
    %9112 = vmatpush1.bf16.msra.mxu0 %v8029
    %9113 = vmatprep.subr.bf16.mxu0 0
    %9114 = vmatpush1.bf16.msra.mxu0 %v8026
    %9115 = vmatprep.subr.bf16.mxu0 0
    %9116 = vmatpush1.bf16.msra.mxu0 %v8023
    %9117 = vmatprep.subr.bf16.mxu0 0
    %9118 = vmatpush2.bf16.msra.mxu0 %v8068
    %9119 = vmatprep.subr.bf16.mxu0 0
    %9120 = vmatpush2.bf16.msra.mxu0 %v8065
    %9121 = vmatprep.subr.bf16.mxu0 0
    %9122 = vmatpush2.bf16.msra.mxu0 %v8062
    %9123 = vmatprep.subr.bf16.mxu0 0
    %9124 = vmatpush2.bf16.msra.mxu0 %v8059
    %9125 = vmatprep.subr.bf16.mxu0 0
    %9126 = vmatpush2.bf16.msra.mxu0 %v8056
    %9127 = vmatprep.subr.bf16.mxu0 0
    %9128 = vmatpush2.bf16.msra.mxu0 %v8053
    %9129 = vmatprep.subr.bf16.mxu0 0
    %9130 = vmatpush2.bf16.msra.mxu0 %v8050
    %9131 = vmatprep.subr.bf16.mxu0 0
    %9132 = vmatpush2.bf16.msra.mxu0 %v8047
    %9133 = vmatprep.mubr.bf16.mxu0 %v6105
    %9134 = vmatmul.mubr.bf16.gmra.mxu0 %v6104
    %v9135 = vpop.f32.mrf.mxu0
    %v9136 = vadd.f32 %v9096, %v9135
    %v9137 = vpop.f32.mrf.mxu0
    %v9138 = vpop.f32.mrf.mxu0
    %v9139 = vpop.f32.mrf.mxu0
    %9140 = vdwg.mxu0
    %9141 = vmatprep.subr.bf16.mxu0 0
    %9142 = vmatpush1.bf16.msra.mxu0 %v8092
    %9143 = vmatprep.subr.bf16.mxu0 0
    %9144 = vmatpush1.bf16.msra.mxu0 %v8089
    %9145 = vmatprep.subr.bf16.mxu0 0
    %9146 = vmatpush1.bf16.msra.mxu0 %v8086
    %9147 = vmatprep.subr.bf16.mxu0 0
    %9148 = vmatpush1.bf16.msra.mxu0 %v8083
    %9149 = vmatprep.subr.bf16.mxu0 0
    %9150 = vmatpush1.bf16.msra.mxu0 %v8080
    %9151 = vmatprep.subr.bf16.mxu0 0
    %9152 = vmatpush1.bf16.msra.mxu0 %v8077
    %9153 = vmatprep.subr.bf16.mxu0 0
    %9154 = vmatpush1.bf16.msra.mxu0 %v8074
    %9155 = vmatprep.subr.bf16.mxu0 0
    %9156 = vmatpush1.bf16.msra.mxu0 %v8071
    %9157 = vmatprep.subr.bf16.mxu0 0
    %9158 = vmatpush2.bf16.msra.mxu0 %v8116
    %9159 = vmatprep.subr.bf16.mxu0 0
    %9160 = vmatpush2.bf16.msra.mxu0 %v8113
    %9161 = vmatprep.subr.bf16.mxu0 0
    %9162 = vmatpush2.bf16.msra.mxu0 %v8110
    %9163 = vmatprep.subr.bf16.mxu0 0
    %9164 = vmatpush2.bf16.msra.mxu0 %v8107
    %9165 = vmatprep.subr.bf16.mxu0 0
    %9166 = vmatpush2.bf16.msra.mxu0 %v8104
    %9167 = vmatprep.subr.bf16.mxu0 0
    %9168 = vmatpush2.bf16.msra.mxu0 %v8101
    %9169 = vmatprep.subr.bf16.mxu0 0
    %9170 = vmatpush2.bf16.msra.mxu0 %v8098
    %9171 = vmatprep.subr.bf16.mxu0 0
    %9172 = vmatpush2.bf16.msra.mxu0 %v8095
    %9173 = vmatprep.mubr.bf16.mxu0 %v6107
    %9174 = vmatmul.mubr.bf16.gmra.mxu0 %v6106
    %v9175 = vpop.f32.mrf.mxu0
    %v9176 = vadd.f32 %v9136, %v9175
    %v9177 = vpop.f32.mrf.mxu0
    %v9178 = vpop.f32.mrf.mxu0
    %v9179 = vpop.f32.mrf.mxu0
    %9180 = vdwg.mxu0
    %9181 = vmatprep.subr.bf16.mxu0 0
    %9182 = vmatpush1.bf16.msra.mxu0 %v8140
    %9183 = vmatprep.subr.bf16.mxu0 0
    %9184 = vmatpush1.bf16.msra.mxu0 %v8137
    %9185 = vmatprep.subr.bf16.mxu0 0
    %9186 = vmatpush1.bf16.msra.mxu0 %v8134
    %9187 = vmatprep.subr.bf16.mxu0 0
    %9188 = vmatpush1.bf16.msra.mxu0 %v8131
    %9189 = vmatprep.subr.bf16.mxu0 0
    %9190 = vmatpush1.bf16.msra.mxu0 %v8128
    %9191 = vmatprep.subr.bf16.mxu0 0
    %9192 = vmatpush1.bf16.msra.mxu0 %v8125
    %9193 = vmatprep.subr.bf16.mxu0 0
    %9194 = vmatpush1.bf16.msra.mxu0 %v8122
    %9195 = vmatprep.subr.bf16.mxu0 0
    %9196 = vmatpush1.bf16.msra.mxu0 %v8119
    %9197 = vmatprep.subr.bf16.mxu0 0
    %9198 = vmatpush2.bf16.msra.mxu0 %v8164
    %9199 = vmatprep.subr.bf16.mxu0 0
    %9200 = vmatpush2.bf16.msra.mxu0 %v8161
    %9201 = vmatprep.subr.bf16.mxu0 0
    %9202 = vmatpush2.bf16.msra.mxu0 %v8158
    %9203 = vmatprep.subr.bf16.mxu0 0
    %9204 = vmatpush2.bf16.msra.mxu0 %v8155
    %9205 = vmatprep.subr.bf16.mxu0 0
    %9206 = vmatpush2.bf16.msra.mxu0 %v8152
    %9207 = vmatprep.subr.bf16.mxu0 0
    %9208 = vmatpush2.bf16.msra.mxu0 %v8149
    %9209 = vmatprep.subr.bf16.mxu0 0
    %9210 = vmatpush2.bf16.msra.mxu0 %v8146
    %9211 = vmatprep.subr.bf16.mxu0 0
    %9212 = vmatpush2.bf16.msra.mxu0 %v8143
    %9213 = vmatprep.mubr.bf16.mxu0 %v6109
    %9214 = vmatmul.mubr.bf16.gmra.mxu0 %v6108
    %v9215 = vpop.f32.mrf.mxu0
    %v9216 = vadd.f32 %v9176, %v9215
    %v9217 = vpop.f32.mrf.mxu0
    %v9218 = vpop.f32.mrf.mxu0
    %v9219 = vpop.f32.mrf.mxu0
    %9220 = vdwg.mxu0
    %9221 = vmatprep.subr.bf16.mxu0 0
    %9222 = vmatpush1.bf16.msra.mxu0 %v8188
    %9223 = vmatprep.subr.bf16.mxu0 0
    %9224 = vmatpush1.bf16.msra.mxu0 %v8185
    %9225 = vmatprep.subr.bf16.mxu0 0
    %9226 = vmatpush1.bf16.msra.mxu0 %v8182
    %9227 = vmatprep.subr.bf16.mxu0 0
    %9228 = vmatpush1.bf16.msra.mxu0 %v8179
    %9229 = vmatprep.subr.bf16.mxu0 0
    %9230 = vmatpush1.bf16.msra.mxu0 %v8176
    %9231 = vmatprep.subr.bf16.mxu0 0
    %9232 = vmatpush1.bf16.msra.mxu0 %v8173
    %9233 = vmatprep.subr.bf16.mxu0 0
    %9234 = vmatpush1.bf16.msra.mxu0 %v8170
    %9235 = vmatprep.subr.bf16.mxu0 0
    %9236 = vmatpush1.bf16.msra.mxu0 %v8167
    %9237 = vmatprep.subr.bf16.mxu0 0
    %9238 = vmatpush2.bf16.msra.mxu0 %v8212
    %9239 = vmatprep.subr.bf16.mxu0 0
    %9240 = vmatpush2.bf16.msra.mxu0 %v8209
    %9241 = vmatprep.subr.bf16.mxu0 0
    %9242 = vmatpush2.bf16.msra.mxu0 %v8206
    %9243 = vmatprep.subr.bf16.mxu0 0
    %9244 = vmatpush2.bf16.msra.mxu0 %v8203
    %9245 = vmatprep.subr.bf16.mxu0 0
    %9246 = vmatpush2.bf16.msra.mxu0 %v8200
    %9247 = vmatprep.subr.bf16.mxu0 0
    %9248 = vmatpush2.bf16.msra.mxu0 %v8197
    %9249 = vmatprep.subr.bf16.mxu0 0
    %9250 = vmatpush2.bf16.msra.mxu0 %v8194
    %9251 = vmatprep.subr.bf16.mxu0 0
    %9252 = vmatpush2.bf16.msra.mxu0 %v8191
    %9253 = vmatprep.mubr.bf16.mxu0 %v6111
    %9254 = vmatmul.mubr.bf16.gmra.mxu0 %v6110
    %v9255 = vpop.f32.mrf.mxu0
    %v9256 = vadd.f32 %v9216, %v9255
    %v9257 = vpop.f32.mrf.mxu0
    %v9258 = vpop.f32.mrf.mxu0
    %v9259 = vpop.f32.mrf.mxu0
    %9260 = vdwg.mxu0
    %9261 = vmatprep.subr.bf16.mxu0 0
    %9262 = vmatpush1.bf16.msra.mxu0 %v8236
    %9263 = vmatprep.subr.bf16.mxu0 0
    %9264 = vmatpush1.bf16.msra.mxu0 %v8233
    %9265 = vmatprep.subr.bf16.mxu0 0
    %9266 = vmatpush1.bf16.msra.mxu0 %v8230
    %9267 = vmatprep.subr.bf16.mxu0 0
    %9268 = vmatpush1.bf16.msra.mxu0 %v8227
    %9269 = vmatprep.subr.bf16.mxu0 0
    %9270 = vmatpush1.bf16.msra.mxu0 %v8224
    %9271 = vmatprep.subr.bf16.mxu0 0
    %9272 = vmatpush1.bf16.msra.mxu0 %v8221
    %9273 = vmatprep.subr.bf16.mxu0 0
    %9274 = vmatpush1.bf16.msra.mxu0 %v8218
    %9275 = vmatprep.subr.bf16.mxu0 0
    %9276 = vmatpush1.bf16.msra.mxu0 %v8215
    %9277 = vmatprep.subr.bf16.mxu0 0
    %9278 = vmatpush2.bf16.msra.mxu0 %v8260
    %9279 = vmatprep.subr.bf16.mxu0 0
    %9280 = vmatpush2.bf16.msra.mxu0 %v8257
    %9281 = vmatprep.subr.bf16.mxu0 0
    %9282 = vmatpush2.bf16.msra.mxu0 %v8254
    %9283 = vmatprep.subr.bf16.mxu0 0
    %9284 = vmatpush2.bf16.msra.mxu0 %v8251
    %9285 = vmatprep.subr.bf16.mxu0 0
    %9286 = vmatpush2.bf16.msra.mxu0 %v8248
    %9287 = vmatprep.subr.bf16.mxu0 0
    %9288 = vmatpush2.bf16.msra.mxu0 %v8245
    %9289 = vmatprep.subr.bf16.mxu0 0
    %9290 = vmatpush2.bf16.msra.mxu0 %v8242
    %9291 = vmatprep.subr.bf16.mxu0 0
    %9292 = vmatpush2.bf16.msra.mxu0 %v8239
    %9293 = vmatprep.mubr.bf16.mxu0 %v6113
    %9294 = vmatmul.mubr.bf16.gmra.mxu0 %v6112
    %v9295 = vpop.f32.mrf.mxu0
    %v9296 = vadd.f32 %v9256, %v9295
    %v9297 = vpop.f32.mrf.mxu0
    %v9298 = vpop.f32.mrf.mxu0
    %v9299 = vpop.f32.mrf.mxu0
    %9300 = vdwg.mxu0
    %9301 = vmatprep.subr.bf16.mxu0 0
    %9302 = vmatpush1.bf16.msra.mxu0 %v8284
    %9303 = vmatprep.subr.bf16.mxu0 0
    %9304 = vmatpush1.bf16.msra.mxu0 %v8281
    %9305 = vmatprep.subr.bf16.mxu0 0
    %9306 = vmatpush1.bf16.msra.mxu0 %v8278
    %9307 = vmatprep.subr.bf16.mxu0 0
    %9308 = vmatpush1.bf16.msra.mxu0 %v8275
    %9309 = vmatprep.subr.bf16.mxu0 0
    %9310 = vmatpush1.bf16.msra.mxu0 %v8272
    %9311 = vmatprep.subr.bf16.mxu0 0
    %9312 = vmatpush1.bf16.msra.mxu0 %v8269
    %9313 = vmatprep.subr.bf16.mxu0 0
    %9314 = vmatpush1.bf16.msra.mxu0 %v8266
    %9315 = vmatprep.subr.bf16.mxu0 0
    %9316 = vmatpush1.bf16.msra.mxu0 %v8263
    %9317 = vmatprep.subr.bf16.mxu0 0
    %9318 = vmatpush2.bf16.msra.mxu0 %v8308
    %9319 = vmatprep.subr.bf16.mxu0 0
    %9320 = vmatpush2.bf16.msra.mxu0 %v8305
    %9321 = vmatprep.subr.bf16.mxu0 0
    %9322 = vmatpush2.bf16.msra.mxu0 %v8302
    %9323 = vmatprep.subr.bf16.mxu0 0
    %9324 = vmatpush2.bf16.msra.mxu0 %v8299
    %9325 = vmatprep.subr.bf16.mxu0 0
    %9326 = vmatpush2.bf16.msra.mxu0 %v8296
    %9327 = vmatprep.subr.bf16.mxu0 0
    %9328 = vmatpush2.bf16.msra.mxu0 %v8293
    %9329 = vmatprep.subr.bf16.mxu0 0
    %9330 = vmatpush2.bf16.msra.mxu0 %v8290
    %9331 = vmatprep.subr.bf16.mxu0 0
    %9332 = vmatpush2.bf16.msra.mxu0 %v8287
    %9333 = vmatprep.mubr.bf16.mxu0 %v6115
    %9334 = vmatmul.mubr.bf16.gmra.mxu0 %v6114
    %v9335 = vpop.f32.mrf.mxu0
    %v9336 = vadd.f32 %v9296, %v9335
    %v9337 = vpop.f32.mrf.mxu0
    %v9338 = vpop.f32.mrf.mxu0
    %v9339 = vpop.f32.mrf.mxu0
    %9340 = vdwg.mxu0
    %v9341 = vmax.f32 %v9015, 0.0
    %v9342 = vmax.f32 %v9017, 0.0
    %v9343 = vmax.f32 %v9336, 0.0
    %v9344 = vpack.c.bf16 %v5217, %v5214
    %v9345 = vpack.c.bf16 %v5218, %v5215
    %v9346 = vpack.c.bf16 %v5219, %v5216
    %v9347 = vpack.c.bf16 %v9341, %v5220
    %v9348 = vpack.c.bf16 %v9342, %v5221
    %v9349 = vpack.c.bf16 %v9343, %v5222
    %v9350 = vld [vmem:[#allocation21] sm:$0xff]
    %v9351 = vld [vmem:[#allocation21 + $0x8] sm:$0xf]
    %v9352 = vld [vmem:[#allocation21 + $0xc] sm:$0xff]
    %v9353 = vld [vmem:[#allocation21 + $0x14] sm:$0xf]
    %v9354 = vld [vmem:[#allocation21 + $0x18] sm:$0xff]
    %v9355 = vld [vmem:[#allocation21 + $0x20] sm:$0xf]
    %v9356 = vld [vmem:[#allocation21 + $0x24] sm:$0xff]
    %v9357 = vld [vmem:[#allocation21 + $0x2c] sm:$0xf]
    %v9358 = vld [vmem:[#allocation21 + $0x30] sm:$0xff]
    %v9359 = vld [vmem:[#allocation21 + $0x38] sm:$0xf]
    %v9360 = vld [vmem:[#allocation21 + $0x3c] sm:$0xff]
    %v9361 = vld [vmem:[#allocation21 + $0x44] sm:$0xf]
    %v9362 = vld [vmem:[#allocation21 + $0x48] sm:$0xff]
    %v9363 = vld [vmem:[#allocation21 + $0x50] sm:$0xf]
    %v9364 = vld [vmem:[#allocation21 + $0x54] sm:$0xff]
    %v9365 = vld [vmem:[#allocation21 + $0x5c] sm:$0xf]
    %v9366 = vld [vmem:[#allocation21 + $0x60] sm:$0xff]
    %v9367 = vld [vmem:[#allocation21 + $0x68] sm:$0xf]
    %v9368 = vld [vmem:[#allocation21 + $0x6c] sm:$0xff]
    %v9369 = vld [vmem:[#allocation21 + $0x74] sm:$0xf]
    %v9370 = vld [vmem:[#allocation21 + $0x78] sm:$0xff]
    %v9371 = vld [vmem:[#allocation21 + $0x80] sm:$0xf]
    %v9372 = vld [vmem:[#allocation21 + $0x84] sm:$0xff]
    %v9373 = vld [vmem:[#allocation21 + $0x8c] sm:$0xf]
    %v9374 = vld [vmem:[#allocation21 + $0x90] sm:$0xff]
    %v9375 = vld [vmem:[#allocation21 + $0x98] sm:$0xf]
    %v9376 = vld [vmem:[#allocation21 + $0x9c] sm:$0xff]
    %v9377 = vld [vmem:[#allocation21 + $0xa4] sm:$0xf]
    %v9378 = vld [vmem:[#allocation21 + $0xa8] sm:$0xff]
    %v9379 = vld [vmem:[#allocation21 + $0xb0] sm:$0xf]
    %v9380 = vld [vmem:[#allocation21 + $0xb4] sm:$0xff]
    %v9381 = vld [vmem:[#allocation21 + $0xbc] sm:$0xf]
    %v9382 = vld [vmem:[#allocation21 + $0xc0] sm:$0xff]
    %v9383 = vld [vmem:[#allocation21 + $0xc8] sm:$0xf]
    %v9384 = vld [vmem:[#allocation21 + $0xcc] sm:$0xff]
    %v9385 = vld [vmem:[#allocation21 + $0xd4] sm:$0xf]
    %v9386 = vld [vmem:[#allocation21 + $0xd8] sm:$0xff]
    %v9387 = vld [vmem:[#allocation21 + $0xe0] sm:$0xf]
    %v9388 = vld [vmem:[#allocation21 + $0xe4] sm:$0xff]
    %v9389 = vld [vmem:[#allocation21 + $0xec] sm:$0xf]
    %v9390 = vld [vmem:[#allocation21 + $0xf0] sm:$0xff]
    %v9391 = vld [vmem:[#allocation21 + $0xf8] sm:$0xf]
    %v9392 = vld [vmem:[#allocation21 + $0xfc] sm:$0xff]
    %v9393 = vld [vmem:[#allocation21 + $0x104] sm:$0xf]
    %v9394 = vld [vmem:[#allocation21 + $0x108] sm:$0xff]
    %v9395 = vld [vmem:[#allocation21 + $0x110] sm:$0xf]
    %v9396 = vld [vmem:[#allocation21 + $0x114] sm:$0xff]
    %v9397 = vld [vmem:[#allocation21 + $0x11c] sm:$0xf]
    %v9398 = vld [vmem:[#allocation21 + $0x120] sm:$0xff]
    %v9399 = vld [vmem:[#allocation21 + $0x128] sm:$0xf]
    %v9400 = vld [vmem:[#allocation21 + $0x12c] sm:$0xff]
    %v9401 = vld [vmem:[#allocation21 + $0x134] sm:$0xf]
    %v9402 = vld [vmem:[#allocation21 + $0x138] sm:$0xff]
    %v9403 = vld [vmem:[#allocation21 + $0x140] sm:$0xf]
    %v9404 = vld [vmem:[#allocation21 + $0x144] sm:$0xff]
    %v9405 = vld [vmem:[#allocation21 + $0x14c] sm:$0xf]
    %v9406 = vld [vmem:[#allocation21 + $0x150] sm:$0xff]
    %v9407 = vld [vmem:[#allocation21 + $0x158] sm:$0xf]
    %v9408 = vld [vmem:[#allocation21 + $0x15c] sm:$0xff]
    %v9409 = vld [vmem:[#allocation21 + $0x164] sm:$0xf]
    %v9410 = vld [vmem:[#allocation21 + $0x168] sm:$0xff]
    %v9411 = vld [vmem:[#allocation21 + $0x170] sm:$0xf]
    %v9412 = vld [vmem:[#allocation21 + $0x174] sm:$0xff]
    %v9413 = vld [vmem:[#allocation21 + $0x17c] sm:$0xf]
    %v9414 = vld [vmem:[#allocation21 + $0x180] sm:$0xff]
    %v9415 = vld [vmem:[#allocation21 + $0x188] sm:$0xf]
    %v9416 = vld [vmem:[#allocation21 + $0x18c] sm:$0xff]
    %v9417 = vld [vmem:[#allocation21 + $0x194] sm:$0xf]
    %v9418 = vld [vmem:[#allocation21 + $0x198] sm:$0xff]
    %v9419 = vld [vmem:[#allocation21 + $0x1a0] sm:$0xf]
    %v9420 = vld [vmem:[#allocation21 + $0x1a4] sm:$0xff]
    %v9421 = vld [vmem:[#allocation21 + $0x1ac] sm:$0xf]
    %v9422 = vld [vmem:[#allocation21 + $0x1b0] sm:$0xff]
    %v9423 = vld [vmem:[#allocation21 + $0x1b8] sm:$0xf]
    %v9424 = vld [vmem:[#allocation21 + $0x1bc] sm:$0xff]
    %v9425 = vld [vmem:[#allocation21 + $0x1c4] sm:$0xf]
    %v9426 = vld [vmem:[#allocation21 + $0x1c8] sm:$0xff]
    %v9427 = vld [vmem:[#allocation21 + $0x1d0] sm:$0xf]
    %v9428 = vld [vmem:[#allocation21 + $0x1d4] sm:$0xff]
    %v9429 = vld [vmem:[#allocation21 + $0x1dc] sm:$0xf]
    %v9430 = vld [vmem:[#allocation21 + $0x1e0] sm:$0xff]
    %v9431 = vld [vmem:[#allocation21 + $0x1e8] sm:$0xf]
    %v9432 = vld [vmem:[#allocation21 + $0x1ec] sm:$0xff]
    %v9433 = vld [vmem:[#allocation21 + $0x1f4] sm:$0xf]
    %v9434 = vld [vmem:[#allocation21 + $0x1f8] sm:$0xff]
    %v9435 = vld [vmem:[#allocation21 + $0x200] sm:$0xf]
    %v9436 = vld [vmem:[#allocation21 + $0x204] sm:$0xff]
    %v9437 = vld [vmem:[#allocation21 + $0x20c] sm:$0xf]
    %v9438 = vld [vmem:[#allocation21 + $0x210] sm:$0xff]
    %v9439 = vld [vmem:[#allocation21 + $0x218] sm:$0xf]
    %v9440 = vld [vmem:[#allocation21 + $0x21c] sm:$0xff]
    %v9441 = vld [vmem:[#allocation21 + $0x224] sm:$0xf]
    %v9442 = vld [vmem:[#allocation21 + $0x228] sm:$0xff]
    %v9443 = vld [vmem:[#allocation21 + $0x230] sm:$0xf]
    %v9444 = vld [vmem:[#allocation21 + $0x234] sm:$0xff]
    %v9445 = vld [vmem:[#allocation21 + $0x23c] sm:$0xf]
    %v9446 = vld [vmem:[#allocation22] sm:$0x7]
    %v9448 = vlaneseq
    %v9449 = vshrl.u32 %v9448, 7
    %v9450 = vsub.s32 0, %v9449
    %v9451 = vrot.slane %v9446, %v9450
    %v9452 = vlaneseq
    %v9453 = vshrl.u32 %v9452, 7
    %v9454 = vsub.s32 1, %v9453
    %v9455 = vrot.slane %v9446, %v9454
    %v9456 = vlaneseq
    %v9457 = vshrl.u32 %v9456, 7
    %v9458 = vsub.s32 2, %v9457
    %v9459 = vrot.slane %v9446, %v9458
    %v9559 = vunpack.c.l.b16 %v9350
    %v9560 = vunpack.c.h.b16 %v9350
    %v9561 = vunpack.c.l.b16 %v9351
    %v9562 = vunpack.c.l.b16 %v9352
    %v9563 = vunpack.c.h.b16 %v9352
    %v9564 = vunpack.c.l.b16 %v9353
    %v9565 = vunpack.c.l.b16 %v9354
    %v9566 = vunpack.c.h.b16 %v9354
    %v9567 = vunpack.c.l.b16 %v9355
    %v9568 = vunpack.c.l.b16 %v9356
    %v9569 = vunpack.c.h.b16 %v9356
    %v9570 = vunpack.c.l.b16 %v9357
    %v9571 = vunpack.c.l.b16 %v9358
    %v9572 = vunpack.c.h.b16 %v9358
    %v9573 = vunpack.c.l.b16 %v9359
    %v9574 = vunpack.c.l.b16 %v9360
    %v9575 = vunpack.c.h.b16 %v9360
    %v9576 = vunpack.c.l.b16 %v9361
    %v9577 = vunpack.c.l.b16 %v9362
    %v9578 = vunpack.c.h.b16 %v9362
    %v9579 = vunpack.c.l.b16 %v9363
    %v9580 = vunpack.c.l.b16 %v9364
    %v9581 = vunpack.c.h.b16 %v9364
    %v9582 = vunpack.c.l.b16 %v9365
    %v9583 = vunpack.c.l.b16 %v9366
    %v9584 = vunpack.c.h.b16 %v9366
    %v9585 = vunpack.c.l.b16 %v9367
    %v9586 = vunpack.c.l.b16 %v9368
    %v9587 = vunpack.c.h.b16 %v9368
    %v9588 = vunpack.c.l.b16 %v9369
    %v9589 = vunpack.c.l.b16 %v9370
    %v9590 = vunpack.c.h.b16 %v9370
    %v9591 = vunpack.c.l.b16 %v9371
    %v9592 = vunpack.c.l.b16 %v9372
    %v9593 = vunpack.c.h.b16 %v9372
    %v9594 = vunpack.c.l.b16 %v9373
    %v9595 = vunpack.c.l.b16 %v9374
    %v9596 = vunpack.c.h.b16 %v9374
    %v9597 = vunpack.c.l.b16 %v9375
    %v9598 = vunpack.c.l.b16 %v9376
    %v9599 = vunpack.c.h.b16 %v9376
    %v9600 = vunpack.c.l.b16 %v9377
    %v9601 = vunpack.c.l.b16 %v9378
    %v9602 = vunpack.c.h.b16 %v9378
    %v9603 = vunpack.c.l.b16 %v9379
    %v9604 = vunpack.c.l.b16 %v9380
    %v9605 = vunpack.c.h.b16 %v9380
    %v9606 = vunpack.c.l.b16 %v9381
    %v9607 = vunpack.c.l.b16 %v9382
    %v9608 = vunpack.c.h.b16 %v9382
    %v9609 = vunpack.c.l.b16 %v9383
    %v9610 = vunpack.c.l.b16 %v9384
    %v9611 = vunpack.c.h.b16 %v9384
    %v9612 = vunpack.c.l.b16 %v9385
    %v9613 = vunpack.c.l.b16 %v9386
    %v9614 = vunpack.c.h.b16 %v9386
    %v9615 = vunpack.c.l.b16 %v9387
    %v9616 = vunpack.c.l.b16 %v9388
    %v9617 = vunpack.c.h.b16 %v9388
    %v9618 = vunpack.c.l.b16 %v9389
    %v9619 = vunpack.c.l.b16 %v9390
    %v9620 = vunpack.c.h.b16 %v9390
    %v9621 = vunpack.c.l.b16 %v9391
    %v9622 = vunpack.c.l.b16 %v9392
    %v9623 = vunpack.c.h.b16 %v9392
    %v9624 = vunpack.c.l.b16 %v9393
    %v9625 = vunpack.c.l.b16 %v9394
    %v9626 = vunpack.c.h.b16 %v9394
    %v9627 = vunpack.c.l.b16 %v9395
    %v9628 = vunpack.c.l.b16 %v9396
    %v9629 = vunpack.c.h.b16 %v9396
    %v9630 = vunpack.c.l.b16 %v9397
    %v9631 = vunpack.c.l.b16 %v9398
    %v9632 = vunpack.c.h.b16 %v9398
    %v9633 = vunpack.c.l.b16 %v9399
    %v9634 = vunpack.c.l.b16 %v9400
    %v9635 = vunpack.c.h.b16 %v9400
    %v9636 = vunpack.c.l.b16 %v9401
    %v9637 = vunpack.c.l.b16 %v9402
    %v9638 = vunpack.c.h.b16 %v9402
    %v9639 = vunpack.c.l.b16 %v9403
    %v9640 = vunpack.c.l.b16 %v9404
    %v9641 = vunpack.c.h.b16 %v9404
    %v9642 = vunpack.c.l.b16 %v9405
    %v9643 = vunpack.c.l.b16 %v9406
    %v9644 = vunpack.c.h.b16 %v9406
    %v9645 = vunpack.c.l.b16 %v9407
    %v9646 = vunpack.c.l.b16 %v9408
    %v9647 = vunpack.c.h.b16 %v9408
    %v9648 = vunpack.c.l.b16 %v9409
    %v9649 = vunpack.c.l.b16 %v9410
    %v9650 = vunpack.c.h.b16 %v9410
    %v9651 = vunpack.c.l.b16 %v9411
    %v9652 = vunpack.c.l.b16 %v9412
    %v9653 = vunpack.c.h.b16 %v9412
    %v9654 = vunpack.c.l.b16 %v9413
    %v9655 = vunpack.c.l.b16 %v9414
    %v9656 = vunpack.c.h.b16 %v9414
    %v9657 = vunpack.c.l.b16 %v9415
    %v9658 = vunpack.c.l.b16 %v9416
    %v9659 = vunpack.c.h.b16 %v9416
    %v9660 = vunpack.c.l.b16 %v9417
    %v9661 = vunpack.c.l.b16 %v9418
    %v9662 = vunpack.c.h.b16 %v9418
    %v9663 = vunpack.c.l.b16 %v9419
    %v9664 = vunpack.c.l.b16 %v9420
    %v9665 = vunpack.c.h.b16 %v9420
    %v9666 = vunpack.c.l.b16 %v9421
    %v9667 = vunpack.c.l.b16 %v9422
    %v9668 = vunpack.c.h.b16 %v9422
    %v9669 = vunpack.c.l.b16 %v9423
    %v9670 = vunpack.c.l.b16 %v9424
    %v9671 = vunpack.c.h.b16 %v9424
    %v9672 = vunpack.c.l.b16 %v9425
    %v9673 = vunpack.c.l.b16 %v9426
    %v9674 = vunpack.c.h.b16 %v9426
    %v9675 = vunpack.c.l.b16 %v9427
    %v9676 = vunpack.c.l.b16 %v9428
    %v9677 = vunpack.c.h.b16 %v9428
    %v9678 = vunpack.c.l.b16 %v9429
    %v9679 = vunpack.c.l.b16 %v9430
    %v9680 = vunpack.c.h.b16 %v9430
    %v9681 = vunpack.c.l.b16 %v9431
    %v9682 = vunpack.c.l.b16 %v9432
    %v9683 = vunpack.c.h.b16 %v9432
    %v9684 = vunpack.c.l.b16 %v9433
    %v9685 = vunpack.c.l.b16 %v9434
    %v9686 = vunpack.c.h.b16 %v9434
    %v9687 = vunpack.c.l.b16 %v9435
    %v9688 = vunpack.c.l.b16 %v9436
    %v9689 = vunpack.c.h.b16 %v9436
    %v9690 = vunpack.c.l.b16 %v9437
    %v9691 = vunpack.c.l.b16 %v9438
    %v9692 = vunpack.c.h.b16 %v9438
    %v9693 = vunpack.c.l.b16 %v9439
    %v9694 = vunpack.c.l.b16 %v9440
    %v9695 = vunpack.c.h.b16 %v9440
    %v9696 = vunpack.c.l.b16 %v9441
    %v9697 = vunpack.c.l.b16 %v9442
    %v9698 = vunpack.c.h.b16 %v9442
    %v9699 = vunpack.c.l.b16 %v9443
    %v9700 = vunpack.c.l.b16 %v9444
    %v9701 = vunpack.c.h.b16 %v9444
    %v9702 = vunpack.c.l.b16 %v9445
    %v9703 = vpack.c.b16 %v9562, %v9559
    %v9704 = vpack.c.b16 %v9563, %v9560
    %v9705 = vpack.c.b16 %v9564, %v9561
    %v9706 = vpack.c.b16 %v9568, %v9565
    %v9707 = vpack.c.b16 %v9569, %v9566
    %v9708 = vpack.c.b16 %v9570, %v9567
    %v9709 = vpack.c.b16 %v9574, %v9571
    %v9710 = vpack.c.b16 %v9575, %v9572
    %v9711 = vpack.c.b16 %v9576, %v9573
    %v9712 = vpack.c.b16 %v9580, %v9577
    %v9713 = vpack.c.b16 %v9581, %v9578
    %v9714 = vpack.c.b16 %v9582, %v9579
    %v9715 = vpack.c.b16 %v9586, %v9583
    %v9716 = vpack.c.b16 %v9587, %v9584
    %v9717 = vpack.c.b16 %v9588, %v9585
    %v9718 = vpack.c.b16 %v9592, %v9589
    %v9719 = vpack.c.b16 %v9593, %v9590
    %v9720 = vpack.c.b16 %v9594, %v9591
    %v9721 = vpack.c.b16 %v9598, %v9595
    %v9722 = vpack.c.b16 %v9599, %v9596
    %v9723 = vpack.c.b16 %v9600, %v9597
    %v9724 = vpack.c.b16 %v9604, %v9601
    %v9725 = vpack.c.b16 %v9605, %v9602
    %v9726 = vpack.c.b16 %v9606, %v9603
    %v9727 = vpack.c.b16 %v9610, %v9607
    %v9728 = vpack.c.b16 %v9611, %v9608
    %v9729 = vpack.c.b16 %v9612, %v9609
    %v9730 = vpack.c.b16 %v9616, %v9613
    %v9731 = vpack.c.b16 %v9617, %v9614
    %v9732 = vpack.c.b16 %v9618, %v9615
    %v9733 = vpack.c.b16 %v9622, %v9619
    %v9734 = vpack.c.b16 %v9623, %v9620
    %v9735 = vpack.c.b16 %v9624, %v9621
    %v9736 = vpack.c.b16 %v9628, %v9625
    %v9737 = vpack.c.b16 %v9629, %v9626
    %v9738 = vpack.c.b16 %v9630, %v9627
    %v9739 = vpack.c.b16 %v9634, %v9631
    %v9740 = vpack.c.b16 %v9635, %v9632
    %v9741 = vpack.c.b16 %v9636, %v9633
    %v9742 = vpack.c.b16 %v9640, %v9637
    %v9743 = vpack.c.b16 %v9641, %v9638
    %v9744 = vpack.c.b16 %v9642, %v9639
    %v9745 = vpack.c.b16 %v9646, %v9643
    %v9746 = vpack.c.b16 %v9647, %v9644
    %v9747 = vpack.c.b16 %v9648, %v9645
    %v9748 = vpack.c.b16 %v9652, %v9649
    %v9749 = vpack.c.b16 %v9653, %v9650
    %v9750 = vpack.c.b16 %v9654, %v9651
    %v9751 = vpack.c.b16 %v9658, %v9655
    %v9752 = vpack.c.b16 %v9659, %v9656
    %v9753 = vpack.c.b16 %v9660, %v9657
    %v9754 = vpack.c.b16 %v9664, %v9661
    %v9755 = vpack.c.b16 %v9665, %v9662
    %v9756 = vpack.c.b16 %v9666, %v9663
    %v9757 = vpack.c.b16 %v9670, %v9667
    %v9758 = vpack.c.b16 %v9671, %v9668
    %v9759 = vpack.c.b16 %v9672, %v9669
    %v9760 = vpack.c.b16 %v9676, %v9673
    %v9761 = vpack.c.b16 %v9677, %v9674
    %v9762 = vpack.c.b16 %v9678, %v9675
    %v9763 = vpack.c.b16 %v9682, %v9679
    %v9764 = vpack.c.b16 %v9683, %v9680
    %v9765 = vpack.c.b16 %v9684, %v9681
    %v9766 = vpack.c.b16 %v9688, %v9685
    %v9767 = vpack.c.b16 %v9689, %v9686
    %v9768 = vpack.c.b16 %v9690, %v9687
    %v9769 = vpack.c.b16 %v9694, %v9691
    %v9770 = vpack.c.b16 %v9695, %v9692
    %v9771 = vpack.c.b16 %v9696, %v9693
    %v9772 = vpack.c.b16 %v9700, %v9697
    %v9773 = vpack.c.b16 %v9701, %v9698
    %v9774 = vpack.c.b16 %v9702, %v9699
    %9847 = vmatprep.subr.bf16.mxu0 %v9725
    %9848 = vmatpush1.bf16.msra.mxu0 %v9724
    %9849 = vmatprep.subr.bf16.mxu0 %v9722
    %9850 = vmatpush1.bf16.msra.mxu0 %v9721
    %9851 = vmatprep.subr.bf16.mxu0 %v9719
    %9852 = vmatpush1.bf16.msra.mxu0 %v9718
    %9853 = vmatprep.subr.bf16.mxu0 %v9716
    %9854 = vmatpush1.bf16.msra.mxu0 %v9715
    %9855 = vmatprep.subr.bf16.mxu0 %v9713
    %9856 = vmatpush1.bf16.msra.mxu0 %v9712
    %9857 = vmatprep.subr.bf16.mxu0 %v9710
    %9858 = vmatpush1.bf16.msra.mxu0 %v9709
    %9859 = vmatprep.subr.bf16.mxu0 %v9707
    %9860 = vmatpush1.bf16.msra.mxu0 %v9706
    %9861 = vmatprep.subr.bf16.mxu0 %v9704
    %9862 = vmatpush1.bf16.msra.mxu0 %v9703
    %9863 = vmatprep.subr.bf16.mxu0 %v9749
    %9864 = vmatpush2.bf16.msra.mxu0 %v9748
    %9865 = vmatprep.subr.bf16.mxu0 %v9746
    %9866 = vmatpush2.bf16.msra.mxu0 %v9745
    %9867 = vmatprep.subr.bf16.mxu0 %v9743
    %9868 = vmatpush2.bf16.msra.mxu0 %v9742
    %9869 = vmatprep.subr.bf16.mxu0 %v9740
    %9870 = vmatpush2.bf16.msra.mxu0 %v9739
    %9871 = vmatprep.subr.bf16.mxu0 %v9737
    %9872 = vmatpush2.bf16.msra.mxu0 %v9736
    %9873 = vmatprep.subr.bf16.mxu0 %v9734
    %9874 = vmatpush2.bf16.msra.mxu0 %v9733
    %9875 = vmatprep.subr.bf16.mxu0 %v9731
    %9876 = vmatpush2.bf16.msra.mxu0 %v9730
    %9877 = vmatprep.subr.bf16.mxu0 %v9728
    %9878 = vmatpush2.bf16.msra.mxu0 %v9727
    %9879 = vmatprep.mubr.bf16.mxu0 %v9345
    %9880 = vmatmul.mubr.bf16.gmra.mxu0 %v9344
    %v9881 = vpop.f32.mrf.mxu0
    %v9882 = vadd.f32 %v9451, %v9881
    %v9883 = vpop.f32.mrf.mxu0
    %v9884 = vadd.f32 %v9455, %v9883
    %v9885 = vpop.f32.mrf.mxu0
    %v9886 = vadd.f32 %v9451, %v9885
    %v9887 = vpop.f32.mrf.mxu0
    %v9888 = vadd.f32 %v9455, %v9887
    %9889 = vmatprep.mubr.bf16.mxu0 %v9348
    %9890 = vmatmul.mubr.bf16.gmra.mxu0 %v9347
    %v9891 = vpop.f32.mrf.mxu0
    %v9892 = vadd.f32 %v9451, %v9891
    %v9893 = vpop.f32.mrf.mxu0
    %v9894 = vadd.f32 %v9455, %v9893
    %v9895 = vpop.f32.mrf.mxu0
    %v9896 = vadd.f32 %v9451, %v9895
    %v9897 = vpop.f32.mrf.mxu0
    %v9898 = vadd.f32 %v9455, %v9897
    %9899 = vdwg.mxu0
    %9900 = vmatprep.subr.bf16.mxu0 %v9773
    %9901 = vmatpush1.bf16.msra.mxu0 %v9772
    %9902 = vmatprep.subr.bf16.mxu0 %v9770
    %9903 = vmatpush1.bf16.msra.mxu0 %v9769
    %9904 = vmatprep.subr.bf16.mxu0 %v9767
    %9905 = vmatpush1.bf16.msra.mxu0 %v9766
    %9906 = vmatprep.subr.bf16.mxu0 %v9764
    %9907 = vmatpush1.bf16.msra.mxu0 %v9763
    %9908 = vmatprep.subr.bf16.mxu0 %v9761
    %9909 = vmatpush1.bf16.msra.mxu0 %v9760
    %9910 = vmatprep.subr.bf16.mxu0 %v9758
    %9911 = vmatpush1.bf16.msra.mxu0 %v9757
    %9912 = vmatprep.subr.bf16.mxu0 %v9755
    %9913 = vmatpush1.bf16.msra.mxu0 %v9754
    %9914 = vmatprep.subr.bf16.mxu0 %v9752
    %9915 = vmatpush1.bf16.msra.mxu0 %v9751
    %9916 = vmatprep.subr.bf16.mxu0 0
    %9917 = vmatpush2.bf16.msra.mxu0 0
    %9918 = vmatprep.subr.bf16.mxu0 0
    %9919 = vmatpush2.bf16.msra.mxu0 0
    %9920 = vmatprep.subr.bf16.mxu0 0
    %9921 = vmatpush2.bf16.msra.mxu0 0
    %9922 = vmatprep.subr.bf16.mxu0 0
    %9923 = vmatpush2.bf16.msra.mxu0 0
    %9924 = vmatprep.subr.bf16.mxu0 0
    %9925 = vmatpush2.bf16.msra.mxu0 0
    %9926 = vmatprep.subr.bf16.mxu0 0
    %9927 = vmatpush2.bf16.msra.mxu0 0
    %9928 = vmatprep.subr.bf16.mxu0 0
    %9929 = vmatpush2.bf16.msra.mxu0 0
    %9930 = vmatprep.subr.bf16.mxu0 0
    %9931 = vmatpush2.bf16.msra.mxu0 0
    %9932 = vmatprep.mubr.bf16.mxu0 0
    %9933 = vmatmul.mubr.bf16.gmra.mxu0 %v9346
    %v9934 = vpop.f32.mrf.mxu0
    %v9935 = vadd.f32 %v9882, %v9934
    %v9936 = vpop.f32.mrf.mxu0
    %v9937 = vadd.f32 %v9884, %v9936
    %v9938 = vpop.f32.mrf.mxu0
    %v9939 = vadd.f32 %v9886, %v9938
    %v9940 = vpop.f32.mrf.mxu0
    %v9941 = vadd.f32 %v9888, %v9940
    %9942 = vmatprep.mubr.bf16.mxu0 0
    %9943 = vmatmul.mubr.bf16.gmra.mxu0 %v9349
    %v9944 = vpop.f32.mrf.mxu0
    %v9945 = vadd.f32 %v9892, %v9944
    %v9946 = vpop.f32.mrf.mxu0
    %v9947 = vadd.f32 %v9894, %v9946
    %v9948 = vpop.f32.mrf.mxu0
    %v9949 = vadd.f32 %v9896, %v9948
    %v9950 = vpop.f32.mrf.mxu0
    %v9951 = vadd.f32 %v9898, %v9950
    %9952 = vdwg.mxu0
    %9953 = vmatprep.subr.bf16.mxu0 0
    %9954 = vmatpush1.bf16.msra.mxu0 %v9726
    %9955 = vmatprep.subr.bf16.mxu0 0
    %9956 = vmatpush1.bf16.msra.mxu0 %v9723
    %9957 = vmatprep.subr.bf16.mxu0 0
    %9958 = vmatpush1.bf16.msra.mxu0 %v9720
    %9959 = vmatprep.subr.bf16.mxu0 0
    %9960 = vmatpush1.bf16.msra.mxu0 %v9717
    %9961 = vmatprep.subr.bf16.mxu0 0
    %9962 = vmatpush1.bf16.msra.mxu0 %v9714
    %9963 = vmatprep.subr.bf16.mxu0 0
    %9964 = vmatpush1.bf16.msra.mxu0 %v9711
    %9965 = vmatprep.subr.bf16.mxu0 0
    %9966 = vmatpush1.bf16.msra.mxu0 %v9708
    %9967 = vmatprep.subr.bf16.mxu0 0
    %9968 = vmatpush1.bf16.msra.mxu0 %v9705
    %9969 = vmatprep.subr.bf16.mxu0 0
    %9970 = vmatpush2.bf16.msra.mxu0 %v9750
    %9971 = vmatprep.subr.bf16.mxu0 0
    %9972 = vmatpush2.bf16.msra.mxu0 %v9747
    %9973 = vmatprep.subr.bf16.mxu0 0
    %9974 = vmatpush2.bf16.msra.mxu0 %v9744
    %9975 = vmatprep.subr.bf16.mxu0 0
    %9976 = vmatpush2.bf16.msra.mxu0 %v9741
    %9977 = vmatprep.subr.bf16.mxu0 0
    %9978 = vmatpush2.bf16.msra.mxu0 %v9738
    %9979 = vmatprep.subr.bf16.mxu0 0
    %9980 = vmatpush2.bf16.msra.mxu0 %v9735
    %9981 = vmatprep.subr.bf16.mxu0 0
    %9982 = vmatpush2.bf16.msra.mxu0 %v9732
    %9983 = vmatprep.subr.bf16.mxu0 0
    %9984 = vmatpush2.bf16.msra.mxu0 %v9729
    %9985 = vmatprep.mubr.bf16.mxu0 %v9345
    %9986 = vmatmul.mubr.bf16.gmra.mxu0 %v9344
    %v9987 = vpop.f32.mrf.mxu0
    %v9988 = vadd.f32 %v9459, %v9987
    %v9989 = vpop.f32.mrf.mxu0
    %v9990 = vpop.f32.mrf.mxu0
    %v9991 = vadd.f32 %v9459, %v9990
    %v9992 = vpop.f32.mrf.mxu0
    %9993 = vmatprep.mubr.bf16.mxu0 %v9348
    %9994 = vmatmul.mubr.bf16.gmra.mxu0 %v9347
    %v9995 = vpop.f32.mrf.mxu0
    %v9996 = vadd.f32 %v9459, %v9995
    %v9997 = vpop.f32.mrf.mxu0
    %v9998 = vpop.f32.mrf.mxu0
    %v9999 = vadd.f32 %v9459, %v9998
    %v10000 = vpop.f32.mrf.mxu0
    %10001 = vdwg.mxu0
    %10002 = vmatprep.subr.bf16.mxu0 0
    %10003 = vmatpush1.bf16.msra.mxu0 %v9774
    %10004 = vmatprep.subr.bf16.mxu0 0
    %10005 = vmatpush1.bf16.msra.mxu0 %v9771
    %10006 = vmatprep.subr.bf16.mxu0 0
    %10007 = vmatpush1.bf16.msra.mxu0 %v9768
    %10008 = vmatprep.subr.bf16.mxu0 0
    %10009 = vmatpush1.bf16.msra.mxu0 %v9765
    %10010 = vmatprep.subr.bf16.mxu0 0
    %10011 = vmatpush1.bf16.msra.mxu0 %v9762
    %10012 = vmatprep.subr.bf16.mxu0 0
    %10013 = vmatpush1.bf16.msra.mxu0 %v9759
    %10014 = vmatprep.subr.bf16.mxu0 0
    %10015 = vmatpush1.bf16.msra.mxu0 %v9756
    %10016 = vmatprep.subr.bf16.mxu0 0
    %10017 = vmatpush1.bf16.msra.mxu0 %v9753
    %10018 = vmatprep.subr.bf16.mxu0 0
    %10019 = vmatpush2.bf16.msra.mxu0 0
    %10020 = vmatprep.subr.bf16.mxu0 0
    %10021 = vmatpush2.bf16.msra.mxu0 0
    %10022 = vmatprep.subr.bf16.mxu0 0
    %10023 = vmatpush2.bf16.msra.mxu0 0
    %10024 = vmatprep.subr.bf16.mxu0 0
    %10025 = vmatpush2.bf16.msra.mxu0 0
    %10026 = vmatprep.subr.bf16.mxu0 0
    %10027 = vmatpush2.bf16.msra.mxu0 0
    %10028 = vmatprep.subr.bf16.mxu0 0
    %10029 = vmatpush2.bf16.msra.mxu0 0
    %10030 = vmatprep.subr.bf16.mxu0 0
    %10031 = vmatpush2.bf16.msra.mxu0 0
    %10032 = vmatprep.subr.bf16.mxu0 0
    %10033 = vmatpush2.bf16.msra.mxu0 0
    %10034 = vmatprep.mubr.bf16.mxu0 0
    %10035 = vmatmul.mubr.bf16.gmra.mxu0 %v9346
    %v10036 = vpop.f32.mrf.mxu0
    %v10037 = vadd.f32 %v9988, %v10036
    %v10038 = vpop.f32.mrf.mxu0
    %v10039 = vpop.f32.mrf.mxu0
    %v10040 = vadd.f32 %v9991, %v10039
    %v10041 = vpop.f32.mrf.mxu0
    %10042 = vmatprep.mubr.bf16.mxu0 0
    %10043 = vmatmul.mubr.bf16.gmra.mxu0 %v9349
    %v10044 = vpop.f32.mrf.mxu0
    %v10045 = vadd.f32 %v9996, %v10044
    %v10046 = vpop.f32.mrf.mxu0
    %v10047 = vpop.f32.mrf.mxu0
    %v10048 = vadd.f32 %v9999, %v10047
    %v10049 = vpop.f32.mrf.mxu0
    %10050 = vdwg.mxu0
    %v10051 = vmax.f32 %v9935, 0.0
    %v10052 = vmax.f32 %v9937, 0.0
    %v10053 = vmax.f32 %v10037, 0.0
    %v10054 = vmax.f32 %v9939, 0.0
    %v10055 = vmax.f32 %v9941, 0.0
    %v10056 = vmax.f32 %v10040, 0.0
    %v10057 = vmax.f32 %v9945, 0.0
    %v10058 = vmax.f32 %v9947, 0.0
    %v10059 = vmax.f32 %v10045, 0.0
    %v10060 = vmax.f32 %v9949, 0.0
    %v10061 = vmax.f32 %v9951, 0.0
    %v10062 = vmax.f32 %v10048, 0.0
    %v10066 = vrot.slane %v10051, 4
    %v10067 = vrot.slane %v10052, 4
    %v10068 = vrot.slane %v10053, 4
    %v10075 = vrot.slane %v10054, 4
    %v10076 = vrot.slane %v10055, 4
    %v10077 = vrot.slane %v10056, 4
    %v10084 = vrot.slane %v10060, 4
    %v10085 = vrot.slane %v10061, 4
    %v10086 = vrot.slane %v10062, 4
    %s10090 = smul.u32 4, 336
    %s10091 = smul.u32 %s10090, 1
    %s10092 = sshll.u32 %s10091, 4
    %10093 = dma.done %s228, %s10092
    %v10094 = vpack.c.bf16 %v10051, %v10051
    %v10095 = vpack.c.bf16 %v10052, %v10052
    %v10096 = vpack.c.bf16 %v10053, %v10053
    %v10097 = vpack.c.bf16 %v10066, %v10066
    %v10098 = vpack.c.bf16 %v10067, %v10067
    %v10099 = vpack.c.bf16 %v10068, %v10068
    %v10100 = vpack.c.bf16 %v10054, %v10054
    %v10101 = vpack.c.bf16 %v10055, %v10055
    %v10102 = vpack.c.bf16 %v10056, %v10056
    %v10103 = vpack.c.bf16 %v10075, %v10075
    %v10104 = vpack.c.bf16 %v10076, %v10076
    %v10105 = vpack.c.bf16 %v10077, %v10077
    %v10106 = vpack.c.bf16 %v10057, %v10057
    %v10107 = vpack.c.bf16 %v10058, %v10058
    %v10108 = vpack.c.bf16 %v10059, %v10059
    %v10109 = vpack.c.bf16 %v10060, %v10060
    %v10110 = vpack.c.bf16 %v10061, %v10061
    %v10111 = vpack.c.bf16 %v10062, %v10062
    %v10112 = vpack.c.bf16 %v10084, %v10084
    %v10113 = vpack.c.bf16 %v10085, %v10085
    %v10114 = vpack.c.bf16 %v10086, %v10086
    %v10115 = vld [vmem:[#allocation4] sm:$0xf]
    %v10116 = vld [vmem:[#allocation4 + $0x4] sm:$0xf]
    %v10117 = vld [vmem:[#allocation4 + $0x8] sm:$0xf]
    %v10118 = vld [vmem:[#allocation4 + $0xc] sm:$0xf]
    %v10119 = vld [vmem:[#allocation4 + $0x10] sm:$0xf]
    %v10120 = vld [vmem:[#allocation4 + $0x14] sm:$0xf]
    %v10121 = vld [vmem:[#allocation4 + $0x18] sm:$0xf]
    %v10122 = vld [vmem:[#allocation4 + $0x1c] sm:$0xf]
    %v10123 = vld [vmem:[#allocation4 + $0x20] sm:$0xf]
    %v10124 = vld [vmem:[#allocation4 + $0x24] sm:$0xf]
    %v10125 = vld [vmem:[#allocation4 + $0x28] sm:$0xf]
    %v10126 = vld [vmem:[#allocation4 + $0x2c] sm:$0xf]
    %v10127 = vld [vmem:[#allocation4 + $0x30] sm:$0xf]
    %v10128 = vld [vmem:[#allocation4 + $0x34] sm:$0xf]
    %v10129 = vld [vmem:[#allocation4 + $0x38] sm:$0xf]
    %v10130 = vld [vmem:[#allocation4 + $0x3c] sm:$0xf]
    %v10131 = vld [vmem:[#allocation4 + $0x40] sm:$0xf]
    %v10132 = vld [vmem:[#allocation4 + $0x44] sm:$0xf]
    %v10133 = vld [vmem:[#allocation4 + $0x48] sm:$0xf]
    %v10134 = vld [vmem:[#allocation4 + $0x4c] sm:$0xf]
    %v10135 = vld [vmem:[#allocation4 + $0x50] sm:$0xf]
    %v10136 = vld [vmem:[#allocation4 + $0x54] sm:$0xf]
    %v10137 = vld [vmem:[#allocation4 + $0x58] sm:$0xf]
    %v10138 = vld [vmem:[#allocation4 + $0x5c] sm:$0xf]
    %v10139 = vld [vmem:[#allocation4 + $0x60] sm:$0xf]
    %v10140 = vld [vmem:[#allocation4 + $0x64] sm:$0xf]
    %v10141 = vld [vmem:[#allocation4 + $0x68] sm:$0xf]
    %v10142 = vld [vmem:[#allocation4 + $0x6c] sm:$0xf]
    %v10143 = vld [vmem:[#allocation4 + $0x70] sm:$0xf]
    %v10144 = vld [vmem:[#allocation4 + $0x74] sm:$0xf]
    %v10145 = vld [vmem:[#allocation4 + $0x78] sm:$0xf]
    %v10146 = vld [vmem:[#allocation4 + $0x7c] sm:$0xf]
    %v10147 = vld [vmem:[#allocation4 + $0x80] sm:$0xf]
    %v10148 = vld [vmem:[#allocation4 + $0x84] sm:$0xf]
    %v10149 = vld [vmem:[#allocation4 + $0x88] sm:$0xf]
    %v10150 = vld [vmem:[#allocation4 + $0x8c] sm:$0xf]
    %v10151 = vld [vmem:[#allocation4 + $0x90] sm:$0xf]
    %v10152 = vld [vmem:[#allocation4 + $0x94] sm:$0xf]
    %v10153 = vld [vmem:[#allocation4 + $0x98] sm:$0xf]
    %v10154 = vld [vmem:[#allocation4 + $0x9c] sm:$0xf]
    %v10155 = vld [vmem:[#allocation4 + $0xa0] sm:$0xf]
    %v10156 = vld [vmem:[#allocation4 + $0xa4] sm:$0xf]
    %v10157 = vld [vmem:[#allocation4 + $0xa8] sm:$0xf]
    %v10158 = vld [vmem:[#allocation4 + $0xac] sm:$0xf]
    %v10159 = vld [vmem:[#allocation4 + $0xb0] sm:$0xf]
    %v10160 = vld [vmem:[#allocation4 + $0xb4] sm:$0xf]
    %v10161 = vld [vmem:[#allocation4 + $0xb8] sm:$0xf]
    %v10162 = vld [vmem:[#allocation4 + $0xbc] sm:$0xf]
    %v10163 = vld [vmem:[#allocation4 + $0xc0] sm:$0xf]
    %v10164 = vld [vmem:[#allocation4 + $0xc4] sm:$0xf]
    %v10165 = vld [vmem:[#allocation4 + $0xc8] sm:$0xf]
    %v10166 = vld [vmem:[#allocation4 + $0xcc] sm:$0xf]
    %v10167 = vld [vmem:[#allocation4 + $0xd0] sm:$0xf]
    %v10168 = vld [vmem:[#allocation4 + $0xd4] sm:$0xf]
    %v10169 = vld [vmem:[#allocation4 + $0xd8] sm:$0xf]
    %v10170 = vld [vmem:[#allocation4 + $0xdc] sm:$0xf]
    %v10171 = vld [vmem:[#allocation4 + $0xe0] sm:$0xf]
    %v10172 = vld [vmem:[#allocation4 + $0xe4] sm:$0xf]
    %v10173 = vld [vmem:[#allocation4 + $0xe8] sm:$0xf]
    %v10174 = vld [vmem:[#allocation4 + $0xec] sm:$0xf]
    %v10175 = vld [vmem:[#allocation4 + $0xf0] sm:$0xf]
    %v10176 = vld [vmem:[#allocation4 + $0xf4] sm:$0xf]
    %v10177 = vld [vmem:[#allocation4 + $0xf8] sm:$0xf]
    %v10178 = vld [vmem:[#allocation4 + $0xfc] sm:$0xf]
    %v10179 = vld [vmem:[#allocation4 + $0x100] sm:$0xf]
    %v10180 = vld [vmem:[#allocation4 + $0x104] sm:$0xf]
    %v10181 = vld [vmem:[#allocation4 + $0x108] sm:$0xf]
    %v10182 = vld [vmem:[#allocation4 + $0x10c] sm:$0xf]
    %v10183 = vld [vmem:[#allocation4 + $0x110] sm:$0xf]
    %v10184 = vld [vmem:[#allocation4 + $0x114] sm:$0xf]
    %v10185 = vld [vmem:[#allocation4 + $0x118] sm:$0xf]
    %v10186 = vld [vmem:[#allocation4 + $0x11c] sm:$0xf]
    %v10187 = vld [vmem:[#allocation4 + $0x120] sm:$0xf]
    %v10188 = vld [vmem:[#allocation4 + $0x124] sm:$0xf]
    %v10189 = vld [vmem:[#allocation4 + $0x128] sm:$0xf]
    %v10190 = vld [vmem:[#allocation4 + $0x12c] sm:$0xf]
    %v10191 = vld [vmem:[#allocation4 + $0x130] sm:$0xf]
    %v10192 = vld [vmem:[#allocation4 + $0x134] sm:$0xf]
    %v10193 = vld [vmem:[#allocation4 + $0x138] sm:$0xf]
    %v10194 = vld [vmem:[#allocation4 + $0x13c] sm:$0xf]
    %v10195 = vld [vmem:[#allocation4 + $0x140] sm:$0xf]
    %v10196 = vld [vmem:[#allocation4 + $0x144] sm:$0xf]
    %v10197 = vld [vmem:[#allocation4 + $0x148] sm:$0xf]
    %v10198 = vld [vmem:[#allocation4 + $0x14c] sm:$0xf]
    %v10199 = vld [vmem:[#allocation4 + $0x150] sm:$0xf]
    %v10200 = vld [vmem:[#allocation4 + $0x154] sm:$0xf]
    %v10201 = vld [vmem:[#allocation4 + $0x158] sm:$0xf]
    %v10202 = vld [vmem:[#allocation4 + $0x15c] sm:$0xf]
    %v10203 = vld [vmem:[#allocation4 + $0x160] sm:$0xf]
    %v10204 = vld [vmem:[#allocation4 + $0x164] sm:$0xf]
    %v10205 = vld [vmem:[#allocation4 + $0x168] sm:$0xf]
    %v10206 = vld [vmem:[#allocation4 + $0x16c] sm:$0xf]
    %v10207 = vld [vmem:[#allocation4 + $0x170] sm:$0xf]
    %v10208 = vld [vmem:[#allocation4 + $0x174] sm:$0xf]
    %v10209 = vld [vmem:[#allocation4 + $0x178] sm:$0xf]
    %v10210 = vld [vmem:[#allocation4 + $0x17c] sm:$0xf]
    %v10211 = vld [vmem:[#allocation4 + $0x180] sm:$0xf]
    %v10212 = vld [vmem:[#allocation4 + $0x184] sm:$0xf]
    %v10213 = vld [vmem:[#allocation4 + $0x188] sm:$0xf]
    %v10214 = vld [vmem:[#allocation4 + $0x18c] sm:$0xf]
    %v10215 = vld [vmem:[#allocation4 + $0x190] sm:$0xf]
    %v10216 = vld [vmem:[#allocation4 + $0x194] sm:$0xf]
    %v10217 = vld [vmem:[#allocation4 + $0x198] sm:$0xf]
    %v10218 = vld [vmem:[#allocation4 + $0x19c] sm:$0xf]
    %v10219 = vld [vmem:[#allocation4 + $0x1a0] sm:$0xf]
    %v10220 = vld [vmem:[#allocation4 + $0x1a4] sm:$0xf]
    %v10221 = vld [vmem:[#allocation4 + $0x1a8] sm:$0xf]
    %v10222 = vld [vmem:[#allocation4 + $0x1ac] sm:$0xf]
    %v10223 = vld [vmem:[#allocation4 + $0x1b0] sm:$0xf]
    %v10224 = vld [vmem:[#allocation4 + $0x1b4] sm:$0xf]
    %v10225 = vld [vmem:[#allocation4 + $0x1b8] sm:$0xf]
    %v10226 = vld [vmem:[#allocation4 + $0x1bc] sm:$0xf]
    %v10227 = vld [vmem:[#allocation4 + $0x1c0] sm:$0xf]
    %v10228 = vld [vmem:[#allocation4 + $0x1c4] sm:$0xf]
    %v10229 = vld [vmem:[#allocation4 + $0x1c8] sm:$0xf]
    %v10230 = vld [vmem:[#allocation4 + $0x1cc] sm:$0xf]
    %v10231 = vld [vmem:[#allocation4 + $0x1d0] sm:$0xf]
    %v10232 = vld [vmem:[#allocation4 + $0x1d4] sm:$0xf]
    %v10233 = vld [vmem:[#allocation4 + $0x1d8] sm:$0xf]
    %v10234 = vld [vmem:[#allocation4 + $0x1dc] sm:$0xf]
    %v10235 = vld [vmem:[#allocation4 + $0x1e0] sm:$0xf]
    %v10236 = vld [vmem:[#allocation4 + $0x1e4] sm:$0xf]
    %v10237 = vld [vmem:[#allocation4 + $0x1e8] sm:$0xf]
    %v10238 = vld [vmem:[#allocation4 + $0x1ec] sm:$0xf]
    %v10239 = vld [vmem:[#allocation4 + $0x1f0] sm:$0xf]
    %v10240 = vld [vmem:[#allocation4 + $0x1f4] sm:$0xf]
    %v10241 = vld [vmem:[#allocation4 + $0x1f8] sm:$0xf]
    %v10242 = vld [vmem:[#allocation4 + $0x1fc] sm:$0xf]
    %v10243 = vld [vmem:[#allocation4 + $0x200] sm:$0xf]
    %v10244 = vld [vmem:[#allocation4 + $0x204] sm:$0xf]
    %v10245 = vld [vmem:[#allocation4 + $0x208] sm:$0xf]
    %v10246 = vld [vmem:[#allocation4 + $0x20c] sm:$0xf]
    %v10247 = vld [vmem:[#allocation4 + $0x210] sm:$0xf]
    %v10248 = vld [vmem:[#allocation4 + $0x214] sm:$0xf]
    %v10249 = vld [vmem:[#allocation4 + $0x218] sm:$0xf]
    %v10250 = vld [vmem:[#allocation4 + $0x21c] sm:$0xf]
    %v10251 = vld [vmem:[#allocation4 + $0x220] sm:$0xf]
    %v10252 = vld [vmem:[#allocation4 + $0x224] sm:$0xf]
    %v10253 = vld [vmem:[#allocation4 + $0x228] sm:$0xf]
    %v10254 = vld [vmem:[#allocation4 + $0x22c] sm:$0xf]
    %v10255 = vld [vmem:[#allocation4 + $0x230] sm:$0xf]
    %v10256 = vld [vmem:[#allocation4 + $0x234] sm:$0xf]
    %v10257 = vld [vmem:[#allocation4 + $0x238] sm:$0xf]
    %v10258 = vld [vmem:[#allocation4 + $0x23c] sm:$0xf]
    %v10259 = vld [vmem:[#allocation4 + $0x240] sm:$0xf]
    %v10260 = vld [vmem:[#allocation4 + $0x244] sm:$0xf]
    %v10261 = vld [vmem:[#allocation4 + $0x248] sm:$0xf]
    %v10262 = vld [vmem:[#allocation4 + $0x24c] sm:$0xf]
    %v10263 = vld [vmem:[#allocation4 + $0x250] sm:$0xf]
    %v10264 = vld [vmem:[#allocation4 + $0x254] sm:$0xf]
    %v10265 = vld [vmem:[#allocation4 + $0x258] sm:$0xf]
    %v10266 = vld [vmem:[#allocation4 + $0x25c] sm:$0xf]
    %v10267 = vld [vmem:[#allocation4 + $0x260] sm:$0xf]
    %v10268 = vld [vmem:[#allocation4 + $0x264] sm:$0xf]
    %v10269 = vld [vmem:[#allocation4 + $0x268] sm:$0xf]
    %v10270 = vld [vmem:[#allocation4 + $0x26c] sm:$0xf]
    %v10271 = vld [vmem:[#allocation4 + $0x270] sm:$0xf]
    %v10272 = vld [vmem:[#allocation4 + $0x274] sm:$0xf]
    %v10273 = vld [vmem:[#allocation4 + $0x278] sm:$0xf]
    %v10274 = vld [vmem:[#allocation4 + $0x27c] sm:$0xf]
    %v10275 = vld [vmem:[#allocation4 + $0x280] sm:$0xf]
    %v10276 = vld [vmem:[#allocation4 + $0x284] sm:$0xf]
    %v10277 = vld [vmem:[#allocation4 + $0x288] sm:$0xf]
    %v10278 = vld [vmem:[#allocation4 + $0x28c] sm:$0xf]
    %v10279 = vld [vmem:[#allocation4 + $0x290] sm:$0xf]
    %v10280 = vld [vmem:[#allocation4 + $0x294] sm:$0xf]
    %v10281 = vld [vmem:[#allocation4 + $0x298] sm:$0xf]
    %v10282 = vld [vmem:[#allocation4 + $0x29c] sm:$0xf]
    %v10283 = vld [vmem:[#allocation4 + $0x2a0] sm:$0xf]
    %v10284 = vld [vmem:[#allocation4 + $0x2a4] sm:$0xf]
    %v10285 = vld [vmem:[#allocation4 + $0x2a8] sm:$0xf]
    %v10286 = vld [vmem:[#allocation4 + $0x2ac] sm:$0xf]
    %v10287 = vld [vmem:[#allocation4 + $0x2b0] sm:$0xf]
    %v10288 = vld [vmem:[#allocation4 + $0x2b4] sm:$0xf]
    %v10289 = vld [vmem:[#allocation4 + $0x2b8] sm:$0xf]
    %v10290 = vld [vmem:[#allocation4 + $0x2bc] sm:$0xf]
    %v10291 = vld [vmem:[#allocation4 + $0x2c0] sm:$0xf]
    %v10292 = vld [vmem:[#allocation4 + $0x2c4] sm:$0xf]
    %v10293 = vld [vmem:[#allocation4 + $0x2c8] sm:$0xf]
    %v10294 = vld [vmem:[#allocation4 + $0x2cc] sm:$0xf]
    %v10295 = vld [vmem:[#allocation4 + $0x2d0] sm:$0xf]
    %v10296 = vld [vmem:[#allocation4 + $0x2d4] sm:$0xf]
    %v10297 = vld [vmem:[#allocation4 + $0x2d8] sm:$0xf]
    %v10298 = vld [vmem:[#allocation4 + $0x2dc] sm:$0xf]
    %v10299 = vld [vmem:[#allocation4 + $0x2e0] sm:$0xf]
    %v10300 = vld [vmem:[#allocation4 + $0x2e4] sm:$0xf]
    %v10301 = vld [vmem:[#allocation4 + $0x2e8] sm:$0xf]
    %v10302 = vld [vmem:[#allocation4 + $0x2ec] sm:$0xf]
    %v10303 = vld [vmem:[#allocation4 + $0x2f0] sm:$0xf]
    %v10304 = vld [vmem:[#allocation4 + $0x2f4] sm:$0xf]
    %v10305 = vld [vmem:[#allocation4 + $0x2f8] sm:$0xf]
    %v10306 = vld [vmem:[#allocation4 + $0x2fc] sm:$0xf]
    %v10307 = vld [vmem:[#allocation4 + $0x300] sm:$0xf]
    %v10308 = vld [vmem:[#allocation4 + $0x304] sm:$0xf]
    %v10309 = vld [vmem:[#allocation4 + $0x308] sm:$0xf]
    %v10310 = vld [vmem:[#allocation4 + $0x30c] sm:$0xf]
    %v10311 = vld [vmem:[#allocation4 + $0x310] sm:$0xf]
    %v10312 = vld [vmem:[#allocation4 + $0x314] sm:$0xf]
    %v10313 = vld [vmem:[#allocation4 + $0x318] sm:$0xf]
    %v10314 = vld [vmem:[#allocation4 + $0x31c] sm:$0xf]
    %v10315 = vld [vmem:[#allocation4 + $0x320] sm:$0xf]
    %v10316 = vld [vmem:[#allocation4 + $0x324] sm:$0xf]
    %v10317 = vld [vmem:[#allocation4 + $0x328] sm:$0xf]
    %v10318 = vld [vmem:[#allocation4 + $0x32c] sm:$0xf]
    %v10319 = vld [vmem:[#allocation4 + $0x330] sm:$0xf]
    %v10320 = vld [vmem:[#allocation4 + $0x334] sm:$0xf]
    %v10321 = vld [vmem:[#allocation4 + $0x338] sm:$0xf]
    %v10322 = vld [vmem:[#allocation4 + $0x33c] sm:$0xf]
    %v10323 = vld [vmem:[#allocation4 + $0x340] sm:$0xf]
    %v10324 = vld [vmem:[#allocation4 + $0x344] sm:$0xf]
    %v10325 = vld [vmem:[#allocation4 + $0x348] sm:$0xf]
    %v10326 = vld [vmem:[#allocation4 + $0x34c] sm:$0xf]
    %v10327 = vld [vmem:[#allocation4 + $0x350] sm:$0xf]
    %v10328 = vld [vmem:[#allocation4 + $0x354] sm:$0xf]
    %v10329 = vld [vmem:[#allocation4 + $0x358] sm:$0xf]
    %v10330 = vld [vmem:[#allocation4 + $0x35c] sm:$0xf]
    %v10331 = vld [vmem:[#allocation4 + $0x360] sm:$0xf]
    %v10332 = vld [vmem:[#allocation4 + $0x364] sm:$0xf]
    %v10333 = vld [vmem:[#allocation4 + $0x368] sm:$0xf]
    %v10334 = vld [vmem:[#allocation4 + $0x36c] sm:$0xf]
    %v10335 = vld [vmem:[#allocation4 + $0x370] sm:$0xf]
    %v10336 = vld [vmem:[#allocation4 + $0x374] sm:$0xf]
    %v10337 = vld [vmem:[#allocation4 + $0x378] sm:$0xf]
    %v10338 = vld [vmem:[#allocation4 + $0x37c] sm:$0xf]
    %v10339 = vld [vmem:[#allocation4 + $0x380] sm:$0xf]
    %v10340 = vld [vmem:[#allocation4 + $0x384] sm:$0xf]
    %v10341 = vld [vmem:[#allocation4 + $0x388] sm:$0xf]
    %v10342 = vld [vmem:[#allocation4 + $0x38c] sm:$0xf]
    %v10343 = vld [vmem:[#allocation4 + $0x390] sm:$0xf]
    %v10344 = vld [vmem:[#allocation4 + $0x394] sm:$0xf]
    %v10345 = vld [vmem:[#allocation4 + $0x398] sm:$0xf]
    %v10346 = vld [vmem:[#allocation4 + $0x39c] sm:$0xf]
    %v10347 = vld [vmem:[#allocation4 + $0x3a0] sm:$0xf]
    %v10348 = vld [vmem:[#allocation4 + $0x3a4] sm:$0xf]
    %v10349 = vld [vmem:[#allocation4 + $0x3a8] sm:$0xf]
    %v10350 = vld [vmem:[#allocation4 + $0x3ac] sm:$0xf]
    %v10351 = vld [vmem:[#allocation4 + $0x3b0] sm:$0xf]
    %v10352 = vld [vmem:[#allocation4 + $0x3b4] sm:$0xf]
    %v10353 = vld [vmem:[#allocation4 + $0x3b8] sm:$0xf]
    %v10354 = vld [vmem:[#allocation4 + $0x3bc] sm:$0xf]
    %v10355 = vld [vmem:[#allocation4 + $0x3c0] sm:$0xf]
    %v10356 = vld [vmem:[#allocation4 + $0x3c4] sm:$0xf]
    %v10357 = vld [vmem:[#allocation4 + $0x3c8] sm:$0xf]
    %v10358 = vld [vmem:[#allocation4 + $0x3cc] sm:$0xf]
    %v10359 = vld [vmem:[#allocation4 + $0x3d0] sm:$0xf]
    %v10360 = vld [vmem:[#allocation4 + $0x3d4] sm:$0xf]
    %v10361 = vld [vmem:[#allocation4 + $0x3d8] sm:$0xf]
    %v10362 = vld [vmem:[#allocation4 + $0x3dc] sm:$0xf]
    %v10363 = vld [vmem:[#allocation4 + $0x3e0] sm:$0xf]
    %v10364 = vld [vmem:[#allocation4 + $0x3e4] sm:$0xf]
    %v10365 = vld [vmem:[#allocation4 + $0x3e8] sm:$0xf]
    %v10366 = vld [vmem:[#allocation4 + $0x3ec] sm:$0xf]
    %v10367 = vld [vmem:[#allocation4 + $0x3f0] sm:$0xf]
    %v10368 = vld [vmem:[#allocation4 + $0x3f4] sm:$0xf]
    %v10369 = vld [vmem:[#allocation4 + $0x3f8] sm:$0xf]
    %v10370 = vld [vmem:[#allocation4 + $0x3fc] sm:$0xf]
    %v10371 = vld [vmem:[#allocation4 + $0x400] sm:$0xf]
    %v10372 = vld [vmem:[#allocation4 + $0x404] sm:$0xf]
    %v10373 = vld [vmem:[#allocation4 + $0x408] sm:$0xf]
    %v10374 = vld [vmem:[#allocation4 + $0x40c] sm:$0xf]
    %v10375 = vld [vmem:[#allocation4 + $0x410] sm:$0xf]
    %v10376 = vld [vmem:[#allocation4 + $0x414] sm:$0xf]
    %v10377 = vld [vmem:[#allocation4 + $0x418] sm:$0xf]
    %v10378 = vld [vmem:[#allocation4 + $0x41c] sm:$0xf]
    %v10379 = vld [vmem:[#allocation4 + $0x420] sm:$0xf]
    %v10380 = vld [vmem:[#allocation4 + $0x424] sm:$0xf]
    %v10381 = vld [vmem:[#allocation4 + $0x428] sm:$0xf]
    %v10382 = vld [vmem:[#allocation4 + $0x42c] sm:$0xf]
    %v10383 = vld [vmem:[#allocation4 + $0x430] sm:$0xf]
    %v10384 = vld [vmem:[#allocation4 + $0x434] sm:$0xf]
    %v10385 = vld [vmem:[#allocation4 + $0x438] sm:$0xf]
    %v10386 = vld [vmem:[#allocation4 + $0x43c] sm:$0xf]
    %v10387 = vld [vmem:[#allocation4 + $0x440] sm:$0xf]
    %v10388 = vld [vmem:[#allocation4 + $0x444] sm:$0xf]
    %v10389 = vld [vmem:[#allocation4 + $0x448] sm:$0xf]
    %v10390 = vld [vmem:[#allocation4 + $0x44c] sm:$0xf]
    %v10391 = vld [vmem:[#allocation4 + $0x450] sm:$0xf]
    %v10392 = vld [vmem:[#allocation4 + $0x454] sm:$0xf]
    %v10393 = vld [vmem:[#allocation4 + $0x458] sm:$0xf]
    %v10394 = vld [vmem:[#allocation4 + $0x45c] sm:$0xf]
    %v10395 = vld [vmem:[#allocation4 + $0x460] sm:$0xf]
    %v10396 = vld [vmem:[#allocation4 + $0x464] sm:$0xf]
    %v10397 = vld [vmem:[#allocation4 + $0x468] sm:$0xf]
    %v10398 = vld [vmem:[#allocation4 + $0x46c] sm:$0xf]
    %v10399 = vld [vmem:[#allocation4 + $0x470] sm:$0xf]
    %v10400 = vld [vmem:[#allocation4 + $0x474] sm:$0xf]
    %v10401 = vld [vmem:[#allocation4 + $0x478] sm:$0xf]
    %v10402 = vld [vmem:[#allocation4 + $0x47c] sm:$0xf]
    %v10403 = vld [vmem:[#allocation4 + $0x480] sm:$0xf]
    %v10404 = vld [vmem:[#allocation4 + $0x484] sm:$0xf]
    %v10405 = vld [vmem:[#allocation4 + $0x488] sm:$0xf]
    %v10406 = vld [vmem:[#allocation4 + $0x48c] sm:$0xf]
    %v10407 = vld [vmem:[#allocation4 + $0x490] sm:$0xf]
    %v10408 = vld [vmem:[#allocation4 + $0x494] sm:$0xf]
    %v10409 = vld [vmem:[#allocation4 + $0x498] sm:$0xf]
    %v10410 = vld [vmem:[#allocation4 + $0x49c] sm:$0xf]
    %v10411 = vld [vmem:[#allocation4 + $0x4a0] sm:$0xf]
    %v10412 = vld [vmem:[#allocation4 + $0x4a4] sm:$0xf]
    %v10413 = vld [vmem:[#allocation4 + $0x4a8] sm:$0xf]
    %v10414 = vld [vmem:[#allocation4 + $0x4ac] sm:$0xf]
    %v10415 = vld [vmem:[#allocation4 + $0x4b0] sm:$0xf]
    %v10416 = vld [vmem:[#allocation4 + $0x4b4] sm:$0xf]
    %v10417 = vld [vmem:[#allocation4 + $0x4b8] sm:$0xf]
    %v10418 = vld [vmem:[#allocation4 + $0x4bc] sm:$0xf]
    %v10419 = vld [vmem:[#allocation4 + $0x4c0] sm:$0xf]
    %v10420 = vld [vmem:[#allocation4 + $0x4c4] sm:$0xf]
    %v10421 = vld [vmem:[#allocation4 + $0x4c8] sm:$0xf]
    %v10422 = vld [vmem:[#allocation4 + $0x4cc] sm:$0xf]
    %v10423 = vld [vmem:[#allocation4 + $0x4d0] sm:$0xf]
    %v10424 = vld [vmem:[#allocation4 + $0x4d4] sm:$0xf]
    %v10425 = vld [vmem:[#allocation4 + $0x4d8] sm:$0xf]
    %v10426 = vld [vmem:[#allocation4 + $0x4dc] sm:$0xf]
    %v10427 = vld [vmem:[#allocation4 + $0x4e0] sm:$0xf]
    %v10428 = vld [vmem:[#allocation4 + $0x4e4] sm:$0xf]
    %v10429 = vld [vmem:[#allocation4 + $0x4e8] sm:$0xf]
    %v10430 = vld [vmem:[#allocation4 + $0x4ec] sm:$0xf]
    %v10431 = vld [vmem:[#allocation4 + $0x4f0] sm:$0xf]
    %v10432 = vld [vmem:[#allocation4 + $0x4f4] sm:$0xf]
    %v10433 = vld [vmem:[#allocation4 + $0x4f8] sm:$0xf]
    %v10434 = vld [vmem:[#allocation4 + $0x4fc] sm:$0xf]
    %v10435 = vld [vmem:[#allocation4 + $0x500] sm:$0xf]
    %v10436 = vld [vmem:[#allocation4 + $0x504] sm:$0xf]
    %v10437 = vld [vmem:[#allocation4 + $0x508] sm:$0xf]
    %v10438 = vld [vmem:[#allocation4 + $0x50c] sm:$0xf]
    %v10439 = vld [vmem:[#allocation4 + $0x510] sm:$0xf]
    %v10440 = vld [vmem:[#allocation4 + $0x514] sm:$0xf]
    %v10441 = vld [vmem:[#allocation4 + $0x518] sm:$0xf]
    %v10442 = vld [vmem:[#allocation4 + $0x51c] sm:$0xf]
    %v10443 = vld [vmem:[#allocation4 + $0x520] sm:$0xf]
    %v10444 = vld [vmem:[#allocation4 + $0x524] sm:$0xf]
    %v10445 = vld [vmem:[#allocation4 + $0x528] sm:$0xf]
    %v10446 = vld [vmem:[#allocation4 + $0x52c] sm:$0xf]
    %v10447 = vld [vmem:[#allocation4 + $0x530] sm:$0xf]
    %v10448 = vld [vmem:[#allocation4 + $0x534] sm:$0xf]
    %v10449 = vld [vmem:[#allocation4 + $0x538] sm:$0xf]
    %v10450 = vld [vmem:[#allocation4 + $0x53c] sm:$0xf]
    %v10451 = vld [vmem:[#allocation24] sm:$0x1]
    %v10453 = vlaneseq
    %v10454 = vshrl.u32 %v10453, 7
    %v10455 = vsub.s32 0, %v10454
    %v10456 = vrot.slane %v10451, %v10455
    %v10794 = vunpack.c.l.b16 %v10115
    %v10795 = vunpack.c.l.b16 %v10116
    %v10796 = vunpack.c.l.b16 %v10117
    %v10797 = vunpack.c.l.b16 %v10118
    %v10798 = vunpack.c.l.b16 %v10119
    %v10799 = vunpack.c.l.b16 %v10120
    %v10800 = vunpack.c.l.b16 %v10121
    %v10801 = vunpack.c.l.b16 %v10122
    %v10802 = vunpack.c.l.b16 %v10123
    %v10803 = vunpack.c.l.b16 %v10124
    %v10804 = vunpack.c.l.b16 %v10125
    %v10805 = vunpack.c.l.b16 %v10126
    %v10806 = vunpack.c.l.b16 %v10127
    %v10807 = vunpack.c.l.b16 %v10128
    %v10808 = vunpack.c.l.b16 %v10129
    %v10809 = vunpack.c.l.b16 %v10130
    %v10810 = vunpack.c.l.b16 %v10131
    %v10811 = vunpack.c.l.b16 %v10132
    %v10812 = vunpack.c.l.b16 %v10133
    %v10813 = vunpack.c.l.b16 %v10134
    %v10814 = vunpack.c.l.b16 %v10135
    %v10815 = vunpack.c.l.b16 %v10136
    %v10816 = vunpack.c.l.b16 %v10137
    %v10817 = vunpack.c.l.b16 %v10138
    %v10818 = vunpack.c.l.b16 %v10139
    %v10819 = vunpack.c.l.b16 %v10140
    %v10820 = vunpack.c.l.b16 %v10141
    %v10821 = vunpack.c.l.b16 %v10142
    %v10822 = vunpack.c.l.b16 %v10143
    %v10823 = vunpack.c.l.b16 %v10144
    %v10824 = vunpack.c.l.b16 %v10145
    %v10825 = vunpack.c.l.b16 %v10146
    %v10826 = vunpack.c.l.b16 %v10147
    %v10827 = vunpack.c.l.b16 %v10148
    %v10828 = vunpack.c.l.b16 %v10149
    %v10829 = vunpack.c.l.b16 %v10150
    %v10830 = vunpack.c.l.b16 %v10151
    %v10831 = vunpack.c.l.b16 %v10152
    %v10832 = vunpack.c.l.b16 %v10153
    %v10833 = vunpack.c.l.b16 %v10154
    %v10834 = vunpack.c.l.b16 %v10155
    %v10835 = vunpack.c.l.b16 %v10156
    %v10836 = vunpack.c.l.b16 %v10157
    %v10837 = vunpack.c.l.b16 %v10158
    %v10838 = vunpack.c.l.b16 %v10159
    %v10839 = vunpack.c.l.b16 %v10160
    %v10840 = vunpack.c.l.b16 %v10161
    %v10841 = vunpack.c.l.b16 %v10162
    %v10842 = vunpack.c.l.b16 %v10163
    %v10843 = vunpack.c.l.b16 %v10164
    %v10844 = vunpack.c.l.b16 %v10165
    %v10845 = vunpack.c.l.b16 %v10166
    %v10846 = vunpack.c.l.b16 %v10167
    %v10847 = vunpack.c.l.b16 %v10168
    %v10848 = vunpack.c.l.b16 %v10169
    %v10849 = vunpack.c.l.b16 %v10170
    %v10850 = vunpack.c.l.b16 %v10171
    %v10851 = vunpack.c.l.b16 %v10172
    %v10852 = vunpack.c.l.b16 %v10173
    %v10853 = vunpack.c.l.b16 %v10174
    %v10854 = vunpack.c.l.b16 %v10175
    %v10855 = vunpack.c.l.b16 %v10176
    %v10856 = vunpack.c.l.b16 %v10177
    %v10857 = vunpack.c.l.b16 %v10178
    %v10858 = vunpack.c.l.b16 %v10179
    %v10859 = vunpack.c.l.b16 %v10180
    %v10860 = vunpack.c.l.b16 %v10181
    %v10861 = vunpack.c.l.b16 %v10182
    %v10862 = vunpack.c.l.b16 %v10183
    %v10863 = vunpack.c.l.b16 %v10184
    %v10864 = vunpack.c.l.b16 %v10185
    %v10865 = vunpack.c.l.b16 %v10186
    %v10866 = vunpack.c.l.b16 %v10187
    %v10867 = vunpack.c.l.b16 %v10188
    %v10868 = vunpack.c.l.b16 %v10189
    %v10869 = vunpack.c.l.b16 %v10190
    %v10870 = vunpack.c.l.b16 %v10191
    %v10871 = vunpack.c.l.b16 %v10192
    %v10872 = vunpack.c.l.b16 %v10193
    %v10873 = vunpack.c.l.b16 %v10194
    %v10874 = vunpack.c.l.b16 %v10195
    %v10875 = vunpack.c.l.b16 %v10196
    %v10876 = vunpack.c.l.b16 %v10197
    %v10877 = vunpack.c.l.b16 %v10198
    %v10878 = vunpack.c.l.b16 %v10199
    %v10879 = vunpack.c.l.b16 %v10200
    %v10880 = vunpack.c.l.b16 %v10201
    %v10881 = vunpack.c.l.b16 %v10202
    %v10882 = vunpack.c.l.b16 %v10203
    %v10883 = vunpack.c.l.b16 %v10204
    %v10884 = vunpack.c.l.b16 %v10205
    %v10885 = vunpack.c.l.b16 %v10206
    %v10886 = vunpack.c.l.b16 %v10207
    %v10887 = vunpack.c.l.b16 %v10208
    %v10888 = vunpack.c.l.b16 %v10209
    %v10889 = vunpack.c.l.b16 %v10210
    %v10890 = vunpack.c.l.b16 %v10211
    %v10891 = vunpack.c.l.b16 %v10212
    %v10892 = vunpack.c.l.b16 %v10213
    %v10893 = vunpack.c.l.b16 %v10214
    %v10894 = vunpack.c.l.b16 %v10215
    %v10895 = vunpack.c.l.b16 %v10216
    %v10896 = vunpack.c.l.b16 %v10217
    %v10897 = vunpack.c.l.b16 %v10218
    %v10898 = vunpack.c.l.b16 %v10219
    %v10899 = vunpack.c.l.b16 %v10220
    %v10900 = vunpack.c.l.b16 %v10221
    %v10901 = vunpack.c.l.b16 %v10222
    %v10902 = vunpack.c.l.b16 %v10223
    %v10903 = vunpack.c.l.b16 %v10224
    %v10904 = vunpack.c.l.b16 %v10225
    %v10905 = vunpack.c.l.b16 %v10226
    %v10906 = vunpack.c.l.b16 %v10227
    %v10907 = vunpack.c.l.b16 %v10228
    %v10908 = vunpack.c.l.b16 %v10229
    %v10909 = vunpack.c.l.b16 %v10230
    %v10910 = vunpack.c.l.b16 %v10231
    %v10911 = vunpack.c.l.b16 %v10232
    %v10912 = vunpack.c.l.b16 %v10233
    %v10913 = vunpack.c.l.b16 %v10234
    %v10914 = vunpack.c.l.b16 %v10235
    %v10915 = vunpack.c.l.b16 %v10236
    %v10916 = vunpack.c.l.b16 %v10237
    %v10917 = vunpack.c.l.b16 %v10238
    %v10918 = vunpack.c.l.b16 %v10239
    %v10919 = vunpack.c.l.b16 %v10240
    %v10920 = vunpack.c.l.b16 %v10241
    %v10921 = vunpack.c.l.b16 %v10242
    %v10922 = vunpack.c.l.b16 %v10243
    %v10923 = vunpack.c.l.b16 %v10244
    %v10924 = vunpack.c.l.b16 %v10245
    %v10925 = vunpack.c.l.b16 %v10246
    %v10926 = vunpack.c.l.b16 %v10247
    %v10927 = vunpack.c.l.b16 %v10248
    %v10928 = vunpack.c.l.b16 %v10249
    %v10929 = vunpack.c.l.b16 %v10250
    %v10930 = vunpack.c.l.b16 %v10251
    %v10931 = vunpack.c.l.b16 %v10252
    %v10932 = vunpack.c.l.b16 %v10253
    %v10933 = vunpack.c.l.b16 %v10254
    %v10934 = vunpack.c.l.b16 %v10255
    %v10935 = vunpack.c.l.b16 %v10256
    %v10936 = vunpack.c.l.b16 %v10257
    %v10937 = vunpack.c.l.b16 %v10258
    %v10938 = vunpack.c.l.b16 %v10259
    %v10939 = vunpack.c.l.b16 %v10260
    %v10940 = vunpack.c.l.b16 %v10261
    %v10941 = vunpack.c.l.b16 %v10262
    %v10942 = vunpack.c.l.b16 %v10263
    %v10943 = vunpack.c.l.b16 %v10264
    %v10944 = vunpack.c.l.b16 %v10265
    %v10945 = vunpack.c.l.b16 %v10266
    %v10946 = vunpack.c.l.b16 %v10267
    %v10947 = vunpack.c.l.b16 %v10268
    %v10948 = vunpack.c.l.b16 %v10269
    %v10949 = vunpack.c.l.b16 %v10270
    %v10950 = vunpack.c.l.b16 %v10271
    %v10951 = vunpack.c.l.b16 %v10272
    %v10952 = vunpack.c.l.b16 %v10273
    %v10953 = vunpack.c.l.b16 %v10274
    %v10954 = vunpack.c.l.b16 %v10275
    %v10955 = vunpack.c.l.b16 %v10276
    %v10956 = vunpack.c.l.b16 %v10277
    %v10957 = vunpack.c.l.b16 %v10278
    %v10958 = vunpack.c.l.b16 %v10279
    %v10959 = vunpack.c.l.b16 %v10280
    %v10960 = vunpack.c.l.b16 %v10281
    %v10961 = vunpack.c.l.b16 %v10282
    %v10962 = vunpack.c.l.b16 %v10283
    %v10963 = vunpack.c.l.b16 %v10284
    %v10964 = vunpack.c.l.b16 %v10285
    %v10965 = vunpack.c.l.b16 %v10286
    %v10966 = vunpack.c.l.b16 %v10287
    %v10967 = vunpack.c.l.b16 %v10288
    %v10968 = vunpack.c.l.b16 %v10289
    %v10969 = vunpack.c.l.b16 %v10290
    %v10970 = vunpack.c.l.b16 %v10291
    %v10971 = vunpack.c.l.b16 %v10292
    %v10972 = vunpack.c.l.b16 %v10293
    %v10973 = vunpack.c.l.b16 %v10294
    %v10974 = vunpack.c.l.b16 %v10295
    %v10975 = vunpack.c.l.b16 %v10296
    %v10976 = vunpack.c.l.b16 %v10297
    %v10977 = vunpack.c.l.b16 %v10298
    %v10978 = vunpack.c.l.b16 %v10299
    %v10979 = vunpack.c.l.b16 %v10300
    %v10980 = vunpack.c.l.b16 %v10301
    %v10981 = vunpack.c.l.b16 %v10302
    %v10982 = vunpack.c.l.b16 %v10303
    %v10983 = vunpack.c.l.b16 %v10304
    %v10984 = vunpack.c.l.b16 %v10305
    %v10985 = vunpack.c.l.b16 %v10306
    %v10986 = vunpack.c.l.b16 %v10307
    %v10987 = vunpack.c.l.b16 %v10308
    %v10988 = vunpack.c.l.b16 %v10309
    %v10989 = vunpack.c.l.b16 %v10310
    %v10990 = vunpack.c.l.b16 %v10311
    %v10991 = vunpack.c.l.b16 %v10312
    %v10992 = vunpack.c.l.b16 %v10313
    %v10993 = vunpack.c.l.b16 %v10314
    %v10994 = vunpack.c.l.b16 %v10315
    %v10995 = vunpack.c.l.b16 %v10316
    %v10996 = vunpack.c.l.b16 %v10317
    %v10997 = vunpack.c.l.b16 %v10318
    %v10998 = vunpack.c.l.b16 %v10319
    %v10999 = vunpack.c.l.b16 %v10320
    %v11000 = vunpack.c.l.b16 %v10321
    %v11001 = vunpack.c.l.b16 %v10322
    %v11002 = vunpack.c.l.b16 %v10323
    %v11003 = vunpack.c.l.b16 %v10324
    %v11004 = vunpack.c.l.b16 %v10325
    %v11005 = vunpack.c.l.b16 %v10326
    %v11006 = vunpack.c.l.b16 %v10327
    %v11007 = vunpack.c.l.b16 %v10328
    %v11008 = vunpack.c.l.b16 %v10329
    %v11009 = vunpack.c.l.b16 %v10330
    %v11010 = vunpack.c.l.b16 %v10331
    %v11011 = vunpack.c.l.b16 %v10332
    %v11012 = vunpack.c.l.b16 %v10333
    %v11013 = vunpack.c.l.b16 %v10334
    %v11014 = vunpack.c.l.b16 %v10335
    %v11015 = vunpack.c.l.b16 %v10336
    %v11016 = vunpack.c.l.b16 %v10337
    %v11017 = vunpack.c.l.b16 %v10338
    %v11018 = vunpack.c.l.b16 %v10339
    %v11019 = vunpack.c.l.b16 %v10340
    %v11020 = vunpack.c.l.b16 %v10341
    %v11021 = vunpack.c.l.b16 %v10342
    %v11022 = vunpack.c.l.b16 %v10343
    %v11023 = vunpack.c.l.b16 %v10344
    %v11024 = vunpack.c.l.b16 %v10345
    %v11025 = vunpack.c.l.b16 %v10346
    %v11026 = vunpack.c.l.b16 %v10347
    %v11027 = vunpack.c.l.b16 %v10348
    %v11028 = vunpack.c.l.b16 %v10349
    %v11029 = vunpack.c.l.b16 %v10350
    %v11030 = vunpack.c.l.b16 %v10351
    %v11031 = vunpack.c.l.b16 %v10352
    %v11032 = vunpack.c.l.b16 %v10353
    %v11033 = vunpack.c.l.b16 %v10354
    %v11034 = vunpack.c.l.b16 %v10355
    %v11035 = vunpack.c.l.b16 %v10356
    %v11036 = vunpack.c.l.b16 %v10357
    %v11037 = vunpack.c.l.b16 %v10358
    %v11038 = vunpack.c.l.b16 %v10359
    %v11039 = vunpack.c.l.b16 %v10360
    %v11040 = vunpack.c.l.b16 %v10361
    %v11041 = vunpack.c.l.b16 %v10362
    %v11042 = vunpack.c.l.b16 %v10363
    %v11043 = vunpack.c.l.b16 %v10364
    %v11044 = vunpack.c.l.b16 %v10365
    %v11045 = vunpack.c.l.b16 %v10366
    %v11046 = vunpack.c.l.b16 %v10367
    %v11047 = vunpack.c.l.b16 %v10368
    %v11048 = vunpack.c.l.b16 %v10369
    %v11049 = vunpack.c.l.b16 %v10370
    %v11050 = vunpack.c.l.b16 %v10371
    %v11051 = vunpack.c.l.b16 %v10372
    %v11052 = vunpack.c.l.b16 %v10373
    %v11053 = vunpack.c.l.b16 %v10374
    %v11054 = vunpack.c.l.b16 %v10375
    %v11055 = vunpack.c.l.b16 %v10376
    %v11056 = vunpack.c.l.b16 %v10377
    %v11057 = vunpack.c.l.b16 %v10378
    %v11058 = vunpack.c.l.b16 %v10379
    %v11059 = vunpack.c.l.b16 %v10380
    %v11060 = vunpack.c.l.b16 %v10381
    %v11061 = vunpack.c.l.b16 %v10382
    %v11062 = vunpack.c.l.b16 %v10383
    %v11063 = vunpack.c.l.b16 %v10384
    %v11064 = vunpack.c.l.b16 %v10385
    %v11065 = vunpack.c.l.b16 %v10386
    %v11066 = vunpack.c.l.b16 %v10387
    %v11067 = vunpack.c.l.b16 %v10388
    %v11068 = vunpack.c.l.b16 %v10389
    %v11069 = vunpack.c.l.b16 %v10390
    %v11070 = vunpack.c.l.b16 %v10391
    %v11071 = vunpack.c.l.b16 %v10392
    %v11072 = vunpack.c.l.b16 %v10393
    %v11073 = vunpack.c.l.b16 %v10394
    %v11074 = vunpack.c.l.b16 %v10395
    %v11075 = vunpack.c.l.b16 %v10396
    %v11076 = vunpack.c.l.b16 %v10397
    %v11077 = vunpack.c.l.b16 %v10398
    %v11078 = vunpack.c.l.b16 %v10399
    %v11079 = vunpack.c.l.b16 %v10400
    %v11080 = vunpack.c.l.b16 %v10401
    %v11081 = vunpack.c.l.b16 %v10402
    %v11082 = vunpack.c.l.b16 %v10403
    %v11083 = vunpack.c.l.b16 %v10404
    %v11084 = vunpack.c.l.b16 %v10405
    %v11085 = vunpack.c.l.b16 %v10406
    %v11086 = vunpack.c.l.b16 %v10407
    %v11087 = vunpack.c.l.b16 %v10408
    %v11088 = vunpack.c.l.b16 %v10409
    %v11089 = vunpack.c.l.b16 %v10410
    %v11090 = vunpack.c.l.b16 %v10411
    %v11091 = vunpack.c.l.b16 %v10412
    %v11092 = vunpack.c.l.b16 %v10413
    %v11093 = vunpack.c.l.b16 %v10414
    %v11094 = vunpack.c.l.b16 %v10415
    %v11095 = vunpack.c.l.b16 %v10416
    %v11096 = vunpack.c.l.b16 %v10417
    %v11097 = vunpack.c.l.b16 %v10418
    %v11098 = vunpack.c.l.b16 %v10419
    %v11099 = vunpack.c.l.b16 %v10420
    %v11100 = vunpack.c.l.b16 %v10421
    %v11101 = vunpack.c.l.b16 %v10422
    %v11102 = vunpack.c.l.b16 %v10423
    %v11103 = vunpack.c.l.b16 %v10424
    %v11104 = vunpack.c.l.b16 %v10425
    %v11105 = vunpack.c.l.b16 %v10426
    %v11106 = vunpack.c.l.b16 %v10427
    %v11107 = vunpack.c.l.b16 %v10428
    %v11108 = vunpack.c.l.b16 %v10429
    %v11109 = vunpack.c.l.b16 %v10430
    %v11110 = vunpack.c.l.b16 %v10431
    %v11111 = vunpack.c.l.b16 %v10432
    %v11112 = vunpack.c.l.b16 %v10433
    %v11113 = vunpack.c.l.b16 %v10434
    %v11114 = vunpack.c.l.b16 %v10435
    %v11115 = vunpack.c.l.b16 %v10436
    %v11116 = vunpack.c.l.b16 %v10437
    %v11117 = vunpack.c.l.b16 %v10438
    %v11118 = vunpack.c.l.b16 %v10439
    %v11119 = vunpack.c.l.b16 %v10440
    %v11120 = vunpack.c.l.b16 %v10441
    %v11121 = vunpack.c.l.b16 %v10442
    %v11122 = vunpack.c.l.b16 %v10443
    %v11123 = vunpack.c.l.b16 %v10444
    %v11124 = vunpack.c.l.b16 %v10445
    %v11125 = vunpack.c.l.b16 %v10446
    %v11126 = vunpack.c.l.b16 %v10447
    %v11127 = vunpack.c.l.b16 %v10448
    %v11128 = vunpack.c.l.b16 %v10449
    %v11129 = vunpack.c.l.b16 %v10450
    %v11130 = vpack.c.b16 %v10795, %v10794
    %v11131 = vpack.c.b16 %v10797, %v10796
    %v11132 = vpack.c.b16 %v10799, %v10798
    %v11133 = vpack.c.b16 %v10801, %v10800
    %v11134 = vpack.c.b16 %v10803, %v10802
    %v11135 = vpack.c.b16 %v10805, %v10804
    %v11136 = vpack.c.b16 %v10807, %v10806
    %v11137 = vpack.c.b16 %v10809, %v10808
    %v11138 = vpack.c.b16 %v10811, %v10810
    %v11139 = vpack.c.b16 %v10813, %v10812
    %v11140 = vpack.c.b16 %v10815, %v10814
    %v11141 = vpack.c.b16 %v10817, %v10816
    %v11142 = vpack.c.b16 %v10819, %v10818
    %v11143 = vpack.c.b16 %v10821, %v10820
    %v11144 = vpack.c.b16 %v10823, %v10822
    %v11145 = vpack.c.b16 %v10825, %v10824
    %v11146 = vpack.c.b16 %v10827, %v10826
    %v11147 = vpack.c.b16 %v10829, %v10828
    %v11148 = vpack.c.b16 %v10831, %v10830
    %v11149 = vpack.c.b16 %v10833, %v10832
    %v11150 = vpack.c.b16 %v10835, %v10834
    %v11151 = vpack.c.b16 %v10837, %v10836
    %v11152 = vpack.c.b16 %v10839, %v10838
    %v11153 = vpack.c.b16 %v10841, %v10840
    %v11154 = vpack.c.b16 %v10843, %v10842
    %v11155 = vpack.c.b16 %v10845, %v10844
    %v11156 = vpack.c.b16 %v10847, %v10846
    %v11157 = vpack.c.b16 %v10849, %v10848
    %v11158 = vpack.c.b16 %v10851, %v10850
    %v11159 = vpack.c.b16 %v10853, %v10852
    %v11160 = vpack.c.b16 %v10855, %v10854
    %v11161 = vpack.c.b16 %v10857, %v10856
    %v11162 = vpack.c.b16 %v10859, %v10858
    %v11163 = vpack.c.b16 %v10861, %v10860
    %v11164 = vpack.c.b16 %v10863, %v10862
    %v11165 = vpack.c.b16 %v10865, %v10864
    %v11166 = vpack.c.b16 %v10867, %v10866
    %v11167 = vpack.c.b16 %v10869, %v10868
    %v11168 = vpack.c.b16 %v10871, %v10870
    %v11169 = vpack.c.b16 %v10873, %v10872
    %v11170 = vpack.c.b16 %v10875, %v10874
    %v11171 = vpack.c.b16 %v10877, %v10876
    %v11172 = vpack.c.b16 %v10879, %v10878
    %v11173 = vpack.c.b16 %v10881, %v10880
    %v11174 = vpack.c.b16 %v10883, %v10882
    %v11175 = vpack.c.b16 %v10885, %v10884
    %v11176 = vpack.c.b16 %v10887, %v10886
    %v11177 = vpack.c.b16 %v10889, %v10888
    %v11178 = vpack.c.b16 %v10891, %v10890
    %v11179 = vpack.c.b16 %v10893, %v10892
    %v11180 = vpack.c.b16 %v10895, %v10894
    %v11181 = vpack.c.b16 %v10897, %v10896
    %v11182 = vpack.c.b16 %v10899, %v10898
    %v11183 = vpack.c.b16 %v10901, %v10900
    %v11184 = vpack.c.b16 %v10903, %v10902
    %v11185 = vpack.c.b16 %v10905, %v10904
    %v11186 = vpack.c.b16 %v10907, %v10906
    %v11187 = vpack.c.b16 %v10909, %v10908
    %v11188 = vpack.c.b16 %v10911, %v10910
    %v11189 = vpack.c.b16 %v10913, %v10912
    %v11190 = vpack.c.b16 %v10915, %v10914
    %v11191 = vpack.c.b16 %v10917, %v10916
    %v11192 = vpack.c.b16 %v10919, %v10918
    %v11193 = vpack.c.b16 %v10921, %v10920
    %v11194 = vpack.c.b16 %v10923, %v10922
    %v11195 = vpack.c.b16 %v10925, %v10924
    %v11196 = vpack.c.b16 %v10927, %v10926
    %v11197 = vpack.c.b16 %v10929, %v10928
    %v11198 = vpack.c.b16 %v10931, %v10930
    %v11199 = vpack.c.b16 %v10933, %v10932
    %v11200 = vpack.c.b16 %v10935, %v10934
    %v11201 = vpack.c.b16 %v10937, %v10936
    %v11202 = vpack.c.b16 %v10939, %v10938
    %v11203 = vpack.c.b16 %v10941, %v10940
    %v11204 = vpack.c.b16 %v10943, %v10942
    %v11205 = vpack.c.b16 %v10945, %v10944
    %v11206 = vpack.c.b16 %v10947, %v10946
    %v11207 = vpack.c.b16 %v10949, %v10948
    %v11208 = vpack.c.b16 %v10951, %v10950
    %v11209 = vpack.c.b16 %v10953, %v10952
    %v11210 = vpack.c.b16 %v10955, %v10954
    %v11211 = vpack.c.b16 %v10957, %v10956
    %v11212 = vpack.c.b16 %v10959, %v10958
    %v11213 = vpack.c.b16 %v10961, %v10960
    %v11214 = vpack.c.b16 %v10963, %v10962
    %v11215 = vpack.c.b16 %v10965, %v10964
    %v11216 = vpack.c.b16 %v10967, %v10966
    %v11217 = vpack.c.b16 %v10969, %v10968
    %v11218 = vpack.c.b16 %v10971, %v10970
    %v11219 = vpack.c.b16 %v10973, %v10972
    %v11220 = vpack.c.b16 %v10975, %v10974
    %v11221 = vpack.c.b16 %v10977, %v10976
    %v11222 = vpack.c.b16 %v10979, %v10978
    %v11223 = vpack.c.b16 %v10981, %v10980
    %v11224 = vpack.c.b16 %v10983, %v10982
    %v11225 = vpack.c.b16 %v10985, %v10984
    %v11226 = vpack.c.b16 %v10987, %v10986
    %v11227 = vpack.c.b16 %v10989, %v10988
    %v11228 = vpack.c.b16 %v10991, %v10990
    %v11229 = vpack.c.b16 %v10993, %v10992
    %v11230 = vpack.c.b16 %v10995, %v10994
    %v11231 = vpack.c.b16 %v10997, %v10996
    %v11232 = vpack.c.b16 %v10999, %v10998
    %v11233 = vpack.c.b16 %v11001, %v11000
    %v11234 = vpack.c.b16 %v11003, %v11002
    %v11235 = vpack.c.b16 %v11005, %v11004
    %v11236 = vpack.c.b16 %v11007, %v11006
    %v11237 = vpack.c.b16 %v11009, %v11008
    %v11238 = vpack.c.b16 %v11011, %v11010
    %v11239 = vpack.c.b16 %v11013, %v11012
    %v11240 = vpack.c.b16 %v11015, %v11014
    %v11241 = vpack.c.b16 %v11017, %v11016
    %v11242 = vpack.c.b16 %v11019, %v11018
    %v11243 = vpack.c.b16 %v11021, %v11020
    %v11244 = vpack.c.b16 %v11023, %v11022
    %v11245 = vpack.c.b16 %v11025, %v11024
    %v11246 = vpack.c.b16 %v11027, %v11026
    %v11247 = vpack.c.b16 %v11029, %v11028
    %v11248 = vpack.c.b16 %v11031, %v11030
    %v11249 = vpack.c.b16 %v11033, %v11032
    %v11250 = vpack.c.b16 %v11035, %v11034
    %v11251 = vpack.c.b16 %v11037, %v11036
    %v11252 = vpack.c.b16 %v11039, %v11038
    %v11253 = vpack.c.b16 %v11041, %v11040
    %v11254 = vpack.c.b16 %v11043, %v11042
    %v11255 = vpack.c.b16 %v11045, %v11044
    %v11256 = vpack.c.b16 %v11047, %v11046
    %v11257 = vpack.c.b16 %v11049, %v11048
    %v11258 = vpack.c.b16 %v11051, %v11050
    %v11259 = vpack.c.b16 %v11053, %v11052
    %v11260 = vpack.c.b16 %v11055, %v11054
    %v11261 = vpack.c.b16 %v11057, %v11056
    %v11262 = vpack.c.b16 %v11059, %v11058
    %v11263 = vpack.c.b16 %v11061, %v11060
    %v11264 = vpack.c.b16 %v11063, %v11062
    %v11265 = vpack.c.b16 %v11065, %v11064
    %v11266 = vpack.c.b16 %v11067, %v11066
    %v11267 = vpack.c.b16 %v11069, %v11068
    %v11268 = vpack.c.b16 %v11071, %v11070
    %v11269 = vpack.c.b16 %v11073, %v11072
    %v11270 = vpack.c.b16 %v11075, %v11074
    %v11271 = vpack.c.b16 %v11077, %v11076
    %v11272 = vpack.c.b16 %v11079, %v11078
    %v11273 = vpack.c.b16 %v11081, %v11080
    %v11274 = vpack.c.b16 %v11083, %v11082
    %v11275 = vpack.c.b16 %v11085, %v11084
    %v11276 = vpack.c.b16 %v11087, %v11086
    %v11277 = vpack.c.b16 %v11089, %v11088
    %v11278 = vpack.c.b16 %v11091, %v11090
    %v11279 = vpack.c.b16 %v11093, %v11092
    %v11280 = vpack.c.b16 %v11095, %v11094
    %v11281 = vpack.c.b16 %v11097, %v11096
    %v11282 = vpack.c.b16 %v11099, %v11098
    %v11283 = vpack.c.b16 %v11101, %v11100
    %v11284 = vpack.c.b16 %v11103, %v11102
    %v11285 = vpack.c.b16 %v11105, %v11104
    %v11286 = vpack.c.b16 %v11107, %v11106
    %v11287 = vpack.c.b16 %v11109, %v11108
    %v11288 = vpack.c.b16 %v11111, %v11110
    %v11289 = vpack.c.b16 %v11113, %v11112
    %v11290 = vpack.c.b16 %v11115, %v11114
    %v11291 = vpack.c.b16 %v11117, %v11116
    %v11292 = vpack.c.b16 %v11119, %v11118
    %v11293 = vpack.c.b16 %v11121, %v11120
    %v11294 = vpack.c.b16 %v11123, %v11122
    %v11295 = vpack.c.b16 %v11125, %v11124
    %v11296 = vpack.c.b16 %v11127, %v11126
    %v11297 = vpack.c.b16 %v11129, %v11128
    %11466 = vmatprep.subr.bf16.mxu0 0
    %11467 = vmatpush1.bf16.msra.mxu0 %v11137
    %11468 = vmatprep.subr.bf16.mxu0 0
    %11469 = vmatpush1.bf16.msra.mxu0 %v11136
    %11470 = vmatprep.subr.bf16.mxu0 0
    %11471 = vmatpush1.bf16.msra.mxu0 %v11135
    %11472 = vmatprep.subr.bf16.mxu0 0
    %11473 = vmatpush1.bf16.msra.mxu0 %v11134
    %11474 = vmatprep.subr.bf16.mxu0 0
    %11475 = vmatpush1.bf16.msra.mxu0 %v11133
    %11476 = vmatprep.subr.bf16.mxu0 0
    %11477 = vmatpush1.bf16.msra.mxu0 %v11132
    %11478 = vmatprep.subr.bf16.mxu0 0
    %11479 = vmatpush1.bf16.msra.mxu0 %v11131
    %11480 = vmatprep.subr.bf16.mxu0 0
    %11481 = vmatpush1.bf16.msra.mxu0 %v11130
    %11482 = vmatprep.subr.bf16.mxu0 0
    %11483 = vmatpush2.bf16.msra.mxu0 %v11145
    %11484 = vmatprep.subr.bf16.mxu0 0
    %11485 = vmatpush2.bf16.msra.mxu0 %v11144
    %11486 = vmatprep.subr.bf16.mxu0 0
    %11487 = vmatpush2.bf16.msra.mxu0 %v11143
    %11488 = vmatprep.subr.bf16.mxu0 0
    %11489 = vmatpush2.bf16.msra.mxu0 %v11142
    %11490 = vmatprep.subr.bf16.mxu0 0
    %11491 = vmatpush2.bf16.msra.mxu0 %v11141
    %11492 = vmatprep.subr.bf16.mxu0 0
    %11493 = vmatpush2.bf16.msra.mxu0 %v11140
    %11494 = vmatprep.subr.bf16.mxu0 0
    %11495 = vmatpush2.bf16.msra.mxu0 %v11139
    %11496 = vmatprep.subr.bf16.mxu0 0
    %11497 = vmatpush2.bf16.msra.mxu0 %v11138
    %11498 = vmatprep.mubr.bf16.mxu0 %v10095
    %11499 = vmatmul.mubr.bf16.gmra.mxu0 %v10094
    %v11500 = vpop.f32.mrf.mxu0
    %v11501 = vadd.f32 %v10456, %v11500
    %v11502 = vpop.f32.mrf.mxu0
    %v11503 = vpop.f32.mrf.mxu0
    %v11504 = vpop.f32.mrf.mxu0
    %11505 = vdwg.mxu0
    %11506 = vmatprep.subr.bf16.mxu0 0
    %11507 = vmatpush1.bf16.msra.mxu0 %v11153
    %11508 = vmatprep.subr.bf16.mxu0 0
    %11509 = vmatpush1.bf16.msra.mxu0 %v11152
    %11510 = vmatprep.subr.bf16.mxu0 0
    %11511 = vmatpush1.bf16.msra.mxu0 %v11151
    %11512 = vmatprep.subr.bf16.mxu0 0
    %11513 = vmatpush1.bf16.msra.mxu0 %v11150
    %11514 = vmatprep.subr.bf16.mxu0 0
    %11515 = vmatpush1.bf16.msra.mxu0 %v11149
    %11516 = vmatprep.subr.bf16.mxu0 0
    %11517 = vmatpush1.bf16.msra.mxu0 %v11148
    %11518 = vmatprep.subr.bf16.mxu0 0
    %11519 = vmatpush1.bf16.msra.mxu0 %v11147
    %11520 = vmatprep.subr.bf16.mxu0 0
    %11521 = vmatpush1.bf16.msra.mxu0 %v11146
    %11522 = vmatprep.subr.bf16.mxu0 0
    %11523 = vmatpush2.bf16.msra.mxu0 %v11161
    %11524 = vmatprep.subr.bf16.mxu0 0
    %11525 = vmatpush2.bf16.msra.mxu0 %v11160
    %11526 = vmatprep.subr.bf16.mxu0 0
    %11527 = vmatpush2.bf16.msra.mxu0 %v11159
    %11528 = vmatprep.subr.bf16.mxu0 0
    %11529 = vmatpush2.bf16.msra.mxu0 %v11158
    %11530 = vmatprep.subr.bf16.mxu0 0
    %11531 = vmatpush2.bf16.msra.mxu0 %v11157
    %11532 = vmatprep.subr.bf16.mxu0 0
    %11533 = vmatpush2.bf16.msra.mxu0 %v11156
    %11534 = vmatprep.subr.bf16.mxu0 0
    %11535 = vmatpush2.bf16.msra.mxu0 %v11155
    %11536 = vmatprep.subr.bf16.mxu0 0
    %11537 = vmatpush2.bf16.msra.mxu0 %v11154
    %11538 = vmatprep.mubr.bf16.mxu0 %v10097
    %11539 = vmatmul.mubr.bf16.gmra.mxu0 %v10096
    %v11540 = vpop.f32.mrf.mxu0
    %v11541 = vadd.f32 %v11501, %v11540
    %v11542 = vpop.f32.mrf.mxu0
    %v11543 = vpop.f32.mrf.mxu0
    %v11544 = vpop.f32.mrf.mxu0
    %11545 = vdwg.mxu0
    %11546 = vmatprep.subr.bf16.mxu0 0
    %11547 = vmatpush1.bf16.msra.mxu0 %v11169
    %11548 = vmatprep.subr.bf16.mxu0 0
    %11549 = vmatpush1.bf16.msra.mxu0 %v11168
    %11550 = vmatprep.subr.bf16.mxu0 0
    %11551 = vmatpush1.bf16.msra.mxu0 %v11167
    %11552 = vmatprep.subr.bf16.mxu0 0
    %11553 = vmatpush1.bf16.msra.mxu0 %v11166
    %11554 = vmatprep.subr.bf16.mxu0 0
    %11555 = vmatpush1.bf16.msra.mxu0 %v11165
    %11556 = vmatprep.subr.bf16.mxu0 0
    %11557 = vmatpush1.bf16.msra.mxu0 %v11164
    %11558 = vmatprep.subr.bf16.mxu0 0
    %11559 = vmatpush1.bf16.msra.mxu0 %v11163
    %11560 = vmatprep.subr.bf16.mxu0 0
    %11561 = vmatpush1.bf16.msra.mxu0 %v11162
    %11562 = vmatprep.subr.bf16.mxu0 0
    %11563 = vmatpush2.bf16.msra.mxu0 %v11177
    %11564 = vmatprep.subr.bf16.mxu0 0
    %11565 = vmatpush2.bf16.msra.mxu0 %v11176
    %11566 = vmatprep.subr.bf16.mxu0 0
    %11567 = vmatpush2.bf16.msra.mxu0 %v11175
    %11568 = vmatprep.subr.bf16.mxu0 0
    %11569 = vmatpush2.bf16.msra.mxu0 %v11174
    %11570 = vmatprep.subr.bf16.mxu0 0
    %11571 = vmatpush2.bf16.msra.mxu0 %v11173
    %11572 = vmatprep.subr.bf16.mxu0 0
    %11573 = vmatpush2.bf16.msra.mxu0 %v11172
    %11574 = vmatprep.subr.bf16.mxu0 0
    %11575 = vmatpush2.bf16.msra.mxu0 %v11171
    %11576 = vmatprep.subr.bf16.mxu0 0
    %11577 = vmatpush2.bf16.msra.mxu0 %v11170
    %11578 = vmatprep.mubr.bf16.mxu0 %v10099
    %11579 = vmatmul.mubr.bf16.gmra.mxu0 %v10098
    %v11580 = vpop.f32.mrf.mxu0
    %v11581 = vadd.f32 %v11541, %v11580
    %v11582 = vpop.f32.mrf.mxu0
    %v11583 = vpop.f32.mrf.mxu0
    %v11584 = vpop.f32.mrf.mxu0
    %11585 = vdwg.mxu0
    %11586 = vmatprep.subr.bf16.mxu0 0
    %11587 = vmatpush1.bf16.msra.mxu0 %v11185
    %11588 = vmatprep.subr.bf16.mxu0 0
    %11589 = vmatpush1.bf16.msra.mxu0 %v11184
    %11590 = vmatprep.subr.bf16.mxu0 0
    %11591 = vmatpush1.bf16.msra.mxu0 %v11183
    %11592 = vmatprep.subr.bf16.mxu0 0
    %11593 = vmatpush1.bf16.msra.mxu0 %v11182
    %11594 = vmatprep.subr.bf16.mxu0 0
    %11595 = vmatpush1.bf16.msra.mxu0 %v11181
    %11596 = vmatprep.subr.bf16.mxu0 0
    %11597 = vmatpush1.bf16.msra.mxu0 %v11180
    %11598 = vmatprep.subr.bf16.mxu0 0
    %11599 = vmatpush1.bf16.msra.mxu0 %v11179
    %11600 = vmatprep.subr.bf16.mxu0 0
    %11601 = vmatpush1.bf16.msra.mxu0 %v11178
    %11602 = vmatprep.subr.bf16.mxu0 0
    %11603 = vmatpush2.bf16.msra.mxu0 %v11193
    %11604 = vmatprep.subr.bf16.mxu0 0
    %11605 = vmatpush2.bf16.msra.mxu0 %v11192
    %11606 = vmatprep.subr.bf16.mxu0 0
    %11607 = vmatpush2.bf16.msra.mxu0 %v11191
    %11608 = vmatprep.subr.bf16.mxu0 0
    %11609 = vmatpush2.bf16.msra.mxu0 %v11190
    %11610 = vmatprep.subr.bf16.mxu0 0
    %11611 = vmatpush2.bf16.msra.mxu0 %v11189
    %11612 = vmatprep.subr.bf16.mxu0 0
    %11613 = vmatpush2.bf16.msra.mxu0 %v11188
    %11614 = vmatprep.subr.bf16.mxu0 0
    %11615 = vmatpush2.bf16.msra.mxu0 %v11187
    %11616 = vmatprep.subr.bf16.mxu0 0
    %11617 = vmatpush2.bf16.msra.mxu0 %v11186
    %11618 = vmatprep.mubr.bf16.mxu0 %v10101
    %11619 = vmatmul.mubr.bf16.gmra.mxu0 %v10100
    %v11620 = vpop.f32.mrf.mxu0
    %v11621 = vadd.f32 %v11581, %v11620
    %v11622 = vpop.f32.mrf.mxu0
    %v11623 = vpop.f32.mrf.mxu0
    %v11624 = vpop.f32.mrf.mxu0
    %11625 = vdwg.mxu0
    %11626 = vmatprep.subr.bf16.mxu0 0
    %11627 = vmatpush1.bf16.msra.mxu0 %v11201
    %11628 = vmatprep.subr.bf16.mxu0 0
    %11629 = vmatpush1.bf16.msra.mxu0 %v11200
    %11630 = vmatprep.subr.bf16.mxu0 0
    %11631 = vmatpush1.bf16.msra.mxu0 %v11199
    %11632 = vmatprep.subr.bf16.mxu0 0
    %11633 = vmatpush1.bf16.msra.mxu0 %v11198
    %11634 = vmatprep.subr.bf16.mxu0 0
    %11635 = vmatpush1.bf16.msra.mxu0 %v11197
    %11636 = vmatprep.subr.bf16.mxu0 0
    %11637 = vmatpush1.bf16.msra.mxu0 %v11196
    %11638 = vmatprep.subr.bf16.mxu0 0
    %11639 = vmatpush1.bf16.msra.mxu0 %v11195
    %11640 = vmatprep.subr.bf16.mxu0 0
    %11641 = vmatpush1.bf16.msra.mxu0 %v11194
    %11642 = vmatprep.subr.bf16.mxu0 0
    %11643 = vmatpush2.bf16.msra.mxu0 %v11209
    %11644 = vmatprep.subr.bf16.mxu0 0
    %11645 = vmatpush2.bf16.msra.mxu0 %v11208
    %11646 = vmatprep.subr.bf16.mxu0 0
    %11647 = vmatpush2.bf16.msra.mxu0 %v11207
    %11648 = vmatprep.subr.bf16.mxu0 0
    %11649 = vmatpush2.bf16.msra.mxu0 %v11206
    %11650 = vmatprep.subr.bf16.mxu0 0
    %11651 = vmatpush2.bf16.msra.mxu0 %v11205
    %11652 = vmatprep.subr.bf16.mxu0 0
    %11653 = vmatpush2.bf16.msra.mxu0 %v11204
    %11654 = vmatprep.subr.bf16.mxu0 0
    %11655 = vmatpush2.bf16.msra.mxu0 %v11203
    %11656 = vmatprep.subr.bf16.mxu0 0
    %11657 = vmatpush2.bf16.msra.mxu0 %v11202
    %11658 = vmatprep.mubr.bf16.mxu0 %v10103
    %11659 = vmatmul.mubr.bf16.gmra.mxu0 %v10102
    %v11660 = vpop.f32.mrf.mxu0
    %v11661 = vadd.f32 %v11621, %v11660
    %v11662 = vpop.f32.mrf.mxu0
    %v11663 = vpop.f32.mrf.mxu0
    %v11664 = vpop.f32.mrf.mxu0
    %11665 = vdwg.mxu0
    %11666 = vmatprep.subr.bf16.mxu0 0
    %11667 = vmatpush1.bf16.msra.mxu0 %v11217
    %11668 = vmatprep.subr.bf16.mxu0 0
    %11669 = vmatpush1.bf16.msra.mxu0 %v11216
    %11670 = vmatprep.subr.bf16.mxu0 0
    %11671 = vmatpush1.bf16.msra.mxu0 %v11215
    %11672 = vmatprep.subr.bf16.mxu0 0
    %11673 = vmatpush1.bf16.msra.mxu0 %v11214
    %11674 = vmatprep.subr.bf16.mxu0 0
    %11675 = vmatpush1.bf16.msra.mxu0 %v11213
    %11676 = vmatprep.subr.bf16.mxu0 0
    %11677 = vmatpush1.bf16.msra.mxu0 %v11212
    %11678 = vmatprep.subr.bf16.mxu0 0
    %11679 = vmatpush1.bf16.msra.mxu0 %v11211
    %11680 = vmatprep.subr.bf16.mxu0 0
    %11681 = vmatpush1.bf16.msra.mxu0 %v11210
    %11682 = vmatprep.subr.bf16.mxu0 0
    %11683 = vmatpush2.bf16.msra.mxu0 %v11225
    %11684 = vmatprep.subr.bf16.mxu0 0
    %11685 = vmatpush2.bf16.msra.mxu0 %v11224
    %11686 = vmatprep.subr.bf16.mxu0 0
    %11687 = vmatpush2.bf16.msra.mxu0 %v11223
    %11688 = vmatprep.subr.bf16.mxu0 0
    %11689 = vmatpush2.bf16.msra.mxu0 %v11222
    %11690 = vmatprep.subr.bf16.mxu0 0
    %11691 = vmatpush2.bf16.msra.mxu0 %v11221
    %11692 = vmatprep.subr.bf16.mxu0 0
    %11693 = vmatpush2.bf16.msra.mxu0 %v11220
    %11694 = vmatprep.subr.bf16.mxu0 0
    %11695 = vmatpush2.bf16.msra.mxu0 %v11219
    %11696 = vmatprep.subr.bf16.mxu0 0
    %11697 = vmatpush2.bf16.msra.mxu0 %v11218
    %11698 = vmatprep.mubr.bf16.mxu0 %v10105
    %11699 = vmatmul.mubr.bf16.gmra.mxu0 %v10104
    %v11700 = vpop.f32.mrf.mxu0
    %v11701 = vadd.f32 %v11661, %v11700
    %v11702 = vpop.f32.mrf.mxu0
    %v11703 = vpop.f32.mrf.mxu0
    %v11704 = vpop.f32.mrf.mxu0
    %11705 = vdwg.mxu0
    %11706 = vmatprep.subr.bf16.mxu0 0
    %11707 = vmatpush1.bf16.msra.mxu0 %v11233
    %11708 = vmatprep.subr.bf16.mxu0 0
    %11709 = vmatpush1.bf16.msra.mxu0 %v11232
    %11710 = vmatprep.subr.bf16.mxu0 0
    %11711 = vmatpush1.bf16.msra.mxu0 %v11231
    %11712 = vmatprep.subr.bf16.mxu0 0
    %11713 = vmatpush1.bf16.msra.mxu0 %v11230
    %11714 = vmatprep.subr.bf16.mxu0 0
    %11715 = vmatpush1.bf16.msra.mxu0 %v11229
    %11716 = vmatprep.subr.bf16.mxu0 0
    %11717 = vmatpush1.bf16.msra.mxu0 %v11228
    %11718 = vmatprep.subr.bf16.mxu0 0
    %11719 = vmatpush1.bf16.msra.mxu0 %v11227
    %11720 = vmatprep.subr.bf16.mxu0 0
    %11721 = vmatpush1.bf16.msra.mxu0 %v11226
    %11722 = vmatprep.subr.bf16.mxu0 0
    %11723 = vmatpush2.bf16.msra.mxu0 %v11241
    %11724 = vmatprep.subr.bf16.mxu0 0
    %11725 = vmatpush2.bf16.msra.mxu0 %v11240
    %11726 = vmatprep.subr.bf16.mxu0 0
    %11727 = vmatpush2.bf16.msra.mxu0 %v11239
    %11728 = vmatprep.subr.bf16.mxu0 0
    %11729 = vmatpush2.bf16.msra.mxu0 %v11238
    %11730 = vmatprep.subr.bf16.mxu0 0
    %11731 = vmatpush2.bf16.msra.mxu0 %v11237
    %11732 = vmatprep.subr.bf16.mxu0 0
    %11733 = vmatpush2.bf16.msra.mxu0 %v11236
    %11734 = vmatprep.subr.bf16.mxu0 0
    %11735 = vmatpush2.bf16.msra.mxu0 %v11235
    %11736 = vmatprep.subr.bf16.mxu0 0
    %11737 = vmatpush2.bf16.msra.mxu0 %v11234
    %11738 = vmatprep.mubr.bf16.mxu0 %v10107
    %11739 = vmatmul.mubr.bf16.gmra.mxu0 %v10106
    %v11740 = vpop.f32.mrf.mxu0
    %v11741 = vadd.f32 %v11701, %v11740
    %v11742 = vpop.f32.mrf.mxu0
    %v11743 = vpop.f32.mrf.mxu0
    %v11744 = vpop.f32.mrf.mxu0
    %11745 = vdwg.mxu0
    %11746 = vmatprep.subr.bf16.mxu0 0
    %11747 = vmatpush1.bf16.msra.mxu0 %v11249
    %11748 = vmatprep.subr.bf16.mxu0 0
    %11749 = vmatpush1.bf16.msra.mxu0 %v11248
    %11750 = vmatprep.subr.bf16.mxu0 0
    %11751 = vmatpush1.bf16.msra.mxu0 %v11247
    %11752 = vmatprep.subr.bf16.mxu0 0
    %11753 = vmatpush1.bf16.msra.mxu0 %v11246
    %11754 = vmatprep.subr.bf16.mxu0 0
    %11755 = vmatpush1.bf16.msra.mxu0 %v11245
    %11756 = vmatprep.subr.bf16.mxu0 0
    %11757 = vmatpush1.bf16.msra.mxu0 %v11244
    %11758 = vmatprep.subr.bf16.mxu0 0
    %11759 = vmatpush1.bf16.msra.mxu0 %v11243
    %11760 = vmatprep.subr.bf16.mxu0 0
    %11761 = vmatpush1.bf16.msra.mxu0 %v11242
    %11762 = vmatprep.subr.bf16.mxu0 0
    %11763 = vmatpush2.bf16.msra.mxu0 %v11257
    %11764 = vmatprep.subr.bf16.mxu0 0
    %11765 = vmatpush2.bf16.msra.mxu0 %v11256
    %11766 = vmatprep.subr.bf16.mxu0 0
    %11767 = vmatpush2.bf16.msra.mxu0 %v11255
    %11768 = vmatprep.subr.bf16.mxu0 0
    %11769 = vmatpush2.bf16.msra.mxu0 %v11254
    %11770 = vmatprep.subr.bf16.mxu0 0
    %11771 = vmatpush2.bf16.msra.mxu0 %v11253
    %11772 = vmatprep.subr.bf16.mxu0 0
    %11773 = vmatpush2.bf16.msra.mxu0 %v11252
    %11774 = vmatprep.subr.bf16.mxu0 0
    %11775 = vmatpush2.bf16.msra.mxu0 %v11251
    %11776 = vmatprep.subr.bf16.mxu0 0
    %11777 = vmatpush2.bf16.msra.mxu0 %v11250
    %11778 = vmatprep.mubr.bf16.mxu0 %v10109
    %11779 = vmatmul.mubr.bf16.gmra.mxu0 %v10108
    %v11780 = vpop.f32.mrf.mxu0
    %v11781 = vadd.f32 %v11741, %v11780
    %v11782 = vpop.f32.mrf.mxu0
    %v11783 = vpop.f32.mrf.mxu0
    %v11784 = vpop.f32.mrf.mxu0
    %11785 = vdwg.mxu0
    %11786 = vmatprep.subr.bf16.mxu0 0
    %11787 = vmatpush1.bf16.msra.mxu0 %v11265
    %11788 = vmatprep.subr.bf16.mxu0 0
    %11789 = vmatpush1.bf16.msra.mxu0 %v11264
    %11790 = vmatprep.subr.bf16.mxu0 0
    %11791 = vmatpush1.bf16.msra.mxu0 %v11263
    %11792 = vmatprep.subr.bf16.mxu0 0
    %11793 = vmatpush1.bf16.msra.mxu0 %v11262
    %11794 = vmatprep.subr.bf16.mxu0 0
    %11795 = vmatpush1.bf16.msra.mxu0 %v11261
    %11796 = vmatprep.subr.bf16.mxu0 0
    %11797 = vmatpush1.bf16.msra.mxu0 %v11260
    %11798 = vmatprep.subr.bf16.mxu0 0
    %11799 = vmatpush1.bf16.msra.mxu0 %v11259
    %11800 = vmatprep.subr.bf16.mxu0 0
    %11801 = vmatpush1.bf16.msra.mxu0 %v11258
    %11802 = vmatprep.subr.bf16.mxu0 0
    %11803 = vmatpush2.bf16.msra.mxu0 %v11273
    %11804 = vmatprep.subr.bf16.mxu0 0
    %11805 = vmatpush2.bf16.msra.mxu0 %v11272
    %11806 = vmatprep.subr.bf16.mxu0 0
    %11807 = vmatpush2.bf16.msra.mxu0 %v11271
    %11808 = vmatprep.subr.bf16.mxu0 0
    %11809 = vmatpush2.bf16.msra.mxu0 %v11270
    %11810 = vmatprep.subr.bf16.mxu0 0
    %11811 = vmatpush2.bf16.msra.mxu0 %v11269
    %11812 = vmatprep.subr.bf16.mxu0 0
    %11813 = vmatpush2.bf16.msra.mxu0 %v11268
    %11814 = vmatprep.subr.bf16.mxu0 0
    %11815 = vmatpush2.bf16.msra.mxu0 %v11267
    %11816 = vmatprep.subr.bf16.mxu0 0
    %11817 = vmatpush2.bf16.msra.mxu0 %v11266
    %11818 = vmatprep.mubr.bf16.mxu0 %v10111
    %11819 = vmatmul.mubr.bf16.gmra.mxu0 %v10110
    %v11820 = vpop.f32.mrf.mxu0
    %v11821 = vadd.f32 %v11781, %v11820
    %v11822 = vpop.f32.mrf.mxu0
    %v11823 = vpop.f32.mrf.mxu0
    %v11824 = vpop.f32.mrf.mxu0
    %11825 = vdwg.mxu0
    %11826 = vmatprep.subr.bf16.mxu0 0
    %11827 = vmatpush1.bf16.msra.mxu0 %v11281
    %11828 = vmatprep.subr.bf16.mxu0 0
    %11829 = vmatpush1.bf16.msra.mxu0 %v11280
    %11830 = vmatprep.subr.bf16.mxu0 0
    %11831 = vmatpush1.bf16.msra.mxu0 %v11279
    %11832 = vmatprep.subr.bf16.mxu0 0
    %11833 = vmatpush1.bf16.msra.mxu0 %v11278
    %11834 = vmatprep.subr.bf16.mxu0 0
    %11835 = vmatpush1.bf16.msra.mxu0 %v11277
    %11836 = vmatprep.subr.bf16.mxu0 0
    %11837 = vmatpush1.bf16.msra.mxu0 %v11276
    %11838 = vmatprep.subr.bf16.mxu0 0
    %11839 = vmatpush1.bf16.msra.mxu0 %v11275
    %11840 = vmatprep.subr.bf16.mxu0 0
    %11841 = vmatpush1.bf16.msra.mxu0 %v11274
    %11842 = vmatprep.subr.bf16.mxu0 0
    %11843 = vmatpush2.bf16.msra.mxu0 %v11289
    %11844 = vmatprep.subr.bf16.mxu0 0
    %11845 = vmatpush2.bf16.msra.mxu0 %v11288
    %11846 = vmatprep.subr.bf16.mxu0 0
    %11847 = vmatpush2.bf16.msra.mxu0 %v11287
    %11848 = vmatprep.subr.bf16.mxu0 0
    %11849 = vmatpush2.bf16.msra.mxu0 %v11286
    %11850 = vmatprep.subr.bf16.mxu0 0
    %11851 = vmatpush2.bf16.msra.mxu0 %v11285
    %11852 = vmatprep.subr.bf16.mxu0 0
    %11853 = vmatpush2.bf16.msra.mxu0 %v11284
    %11854 = vmatprep.subr.bf16.mxu0 0
    %11855 = vmatpush2.bf16.msra.mxu0 %v11283
    %11856 = vmatprep.subr.bf16.mxu0 0
    %11857 = vmatpush2.bf16.msra.mxu0 %v11282
    %11858 = vmatprep.mubr.bf16.mxu0 %v10113
    %11859 = vmatmul.mubr.bf16.gmra.mxu0 %v10112
    %v11860 = vpop.f32.mrf.mxu0
    %v11861 = vadd.f32 %v11821, %v11860
    %v11862 = vpop.f32.mrf.mxu0
    %v11863 = vpop.f32.mrf.mxu0
    %v11864 = vpop.f32.mrf.mxu0
    %11865 = vdwg.mxu0
    %11866 = vmatprep.subr.bf16.mxu0 0
    %11867 = vmatpush1.bf16.msra.mxu0 %v11297
    %11868 = vmatprep.subr.bf16.mxu0 0
    %11869 = vmatpush1.bf16.msra.mxu0 %v11296
    %11870 = vmatprep.subr.bf16.mxu0 0
    %11871 = vmatpush1.bf16.msra.mxu0 %v11295
    %11872 = vmatprep.subr.bf16.mxu0 0
    %11873 = vmatpush1.bf16.msra.mxu0 %v11294
    %11874 = vmatprep.subr.bf16.mxu0 0
    %11875 = vmatpush1.bf16.msra.mxu0 %v11293
    %11876 = vmatprep.subr.bf16.mxu0 0
    %11877 = vmatpush1.bf16.msra.mxu0 %v11292
    %11878 = vmatprep.subr.bf16.mxu0 0
    %11879 = vmatpush1.bf16.msra.mxu0 %v11291
    %11880 = vmatprep.subr.bf16.mxu0 0
    %11881 = vmatpush1.bf16.msra.mxu0 %v11290
    %11882 = vmatprep.subr.bf16.mxu0 0
    %11883 = vmatpush2.bf16.msra.mxu0 0
    %11884 = vmatprep.subr.bf16.mxu0 0
    %11885 = vmatpush2.bf16.msra.mxu0 0
    %11886 = vmatprep.subr.bf16.mxu0 0
    %11887 = vmatpush2.bf16.msra.mxu0 0
    %11888 = vmatprep.subr.bf16.mxu0 0
    %11889 = vmatpush2.bf16.msra.mxu0 0
    %11890 = vmatprep.subr.bf16.mxu0 0
    %11891 = vmatpush2.bf16.msra.mxu0 0
    %11892 = vmatprep.subr.bf16.mxu0 0
    %11893 = vmatpush2.bf16.msra.mxu0 0
    %11894 = vmatprep.subr.bf16.mxu0 0
    %11895 = vmatpush2.bf16.msra.mxu0 0
    %11896 = vmatprep.subr.bf16.mxu0 0
    %11897 = vmatpush2.bf16.msra.mxu0 0
    %11898 = vmatprep.mubr.bf16.mxu0 0
    %11899 = vmatmul.mubr.bf16.gmra.mxu0 %v10114
    %v11900 = vpop.f32.mrf.mxu0
    %v11901 = vadd.f32 %v11861, %v11900
    %v11902 = vpop.f32.mrf.mxu0
    %v11903 = vpop.f32.mrf.mxu0
    %v11904 = vpop.f32.mrf.mxu0
    %11905 = vdwg.mxu0
    %v11906 = vsel %vm1066, %v11901, 0.0
    %v11907 = vrot.slane %v11906, 4
    %v11908 = vadd.f32 %v11906, %v11907
    %v11909 = vrot.slane %v11908, 2
    %v11910 = vadd.f32 %v11908, %v11909
    %v11911 = vrot.slane %v11910, 1
    %v11912 = vadd.f32 %v11910, %v11911
    %v11913 = vrcp.pop 4.0
    %v11914 = vmul.f32 %v11912, %v11913
    %v11915 = vsub.f32 %v11901, %v11914
    %v11916 = vmul.f32 %v11915, %v11915
    %v11917 = vsel %vm1066, %v11916, 0.0
    %v11918 = vrot.slane %v11917, 4
    %v11919 = vadd.f32 %v11917, %v11918
    %v11920 = vrot.slane %v11919, 2
    %v11921 = vadd.f32 %v11919, %v11920
    %v11922 = vrot.slane %v11921, 1
    %v11923 = vadd.f32 %v11921, %v11922
    %v11924 = vmul.f32 %v11923, %v11913
    %v11925 = vadd.f32 %v11924, 1e-05
    %v11926 = vrsqrt.pop %v11925
    %v11927 = vmul.f32 %v11915, %v11926
    %v11928 = vld [vmem:[#allocation25] sm:$0x1]
    %v11930 = vlaneseq
    %v11931 = vshrl.u32 %v11930, 7
    %v11932 = vsub.s32 0, %v11931
    %v11933 = vrot.slane %v11928, %v11932
    %v11935 = vmul.f32 %v11927, %v11933
    %v11936 = vld [vmem:[#allocation27] sm:$0x1]
    %v11938 = vlaneseq
    %v11939 = vshrl.u32 %v11938, 7
    %v11940 = vsub.s32 0, %v11939
    %v11941 = vrot.slane %v11936, %v11940
    %v11943 = vadd.f32 %v11935, %v11941
    %11944 = vst [vmem:[#allocation28] sm:$0xf] %v11943
    // Predicated region
    $region126: #{neural_net_forward.1} parent=1 // pred_check
      _
    $region127: #{neural_net_forward.1} parent=1 // pred_check_branch
      %11946 = sbr.rel (0) target = $region129
    $region128: #{neural_net_forward.1} parent=1 // pred_region
      %s11948 = ssub.s32 64, 64
      %11949 = vsyncadd [#allocation8], %s11948
      %s11951 = sshll.u32 [#allocation28], 4
      %s11952 = int_to_ptr.vmem [resolvable:$true] %s11951
      %11954 = dma.vmem_to_hbm [thread:$0]  %s11952, 64, %s18, [#allocation8]
    $region129: #{neural_net_forward.1} parent=1 // pred_fallthru
      _
    // Predicated region
    $region130: #{neural_net_forward.1} parent=1 // pred_check
      _
    $region131: #{neural_net_forward.1} parent=1 // pred_check_branch
      %11956 = sbr.rel (0) target = $region133
    $region132: #{neural_net_forward.1} parent=1 // pred_region
      %11957 = dma.done [#allocation8], 64
    $region133: #{neural_net_forward.1} parent=1 // pred_fallthru
      _
    %11958 = vsyncpa [#allocation7], 1
    %11959 = vsyncpa [#allocation11], 1
    %11960 = vsyncpa [#allocation20], 1
    %11961 = vsyncpa [#allocation23], 1
    %11962 = vsyncpa [#allocation26], 1
    %11963 = vsyncpa [#allocation8], 1
    %11964 = vsyncpa [#allocation9], 1
    %11965 = vsyncpa [#allocation14], 1
    %11966 = vsyncpa [#allocation17], 1
  %11967 = vsyncmov [#allocation5]
  %s11968 = vpop.sfrf %11967
  %p11969 = scmp.eq.s32.totalorder %s11968, 0
  %p11970 = pneg %p11969
  %11972 = shalt.err (%p11970)
  %s11973 = scalar_lea.sflag [#allocation5], 1
  %11974 = vsyncmov %s11973
  %s11975 = vpop.sfrf %11974
  %p11976 = scmp.eq.s32.totalorder %s11975, 0
  %p11977 = pneg %p11976
  %11979 = shalt.err (%p11977)
  %s11980 = scalar_lea.sflag [#allocation5], 2
  %11981 = vsyncmov %s11980
  %s11982 = vpop.sfrf %11981
  %p11983 = scmp.eq.s32.totalorder %s11982, 0
  %p11984 = pneg %p11983
  %11986 = shalt.err (%p11984)

</llo_original>
